<compile_context>
chip_gen: v7x
topology: tpu7x:2x2x1
jax: 0.10.0
libtpu: 0.0.40
codegen_flags: <defaults>
</compile_context>

<pallas_src>
import math
from functools import partial

import jax
import jax.numpy as jnp
from jax import lax
from jax.experimental import pallas as pl
from jax.experimental.pallas import tpu as pltpu

_SQRT2 = math.sqrt(2.0)


def _round_up(x, m):
    return (x + m - 1) // m * m


def _styled_conv_kernel(xm_ref, xh_ref, w_ref, o_ref, scr_ref, *,
                        K, TILE_OH, OW, Caug, OCT, use_im2col):
    """One (batch, oc-tile, row-tile) grid step.

    xm_ref : (1, TILE_OH, Wp, Caug) bf16  main input rows (conv-padded; noise and
                                          the activation bias ride as the last two channels)
    xh_ref : (1, HALO,   Wp, Caug)  bf16  halo rows below the tile (first K-1 used)
    w_ref  : (1, K*K*Caug, OCT)     bf16  per-batch folded weight, tap-major rows
    o_ref  : (1, TILE_OH, OW, OCT)  bf16  output tile
    scr_ref: VMEM scratch:
               im2col  (TILE_OH, OW, K*K*Caug)      when Caug < 128
               rows    (TILE_OH + K - 1, Wp, Caug)  otherwise
    """
    if use_im2col:
        # Small-C path: assemble the im2col patch once, then ONE MXU matmul over
        # all K*K taps (K*K deeper contraction than a per-tap loop; single dot,
        # no per-tap accumulator adds).
        for kh in range(K):
            top = TILE_OH - kh                       # rows served by the main block
            for kw in range(K):
                lo = (kh * K + kw) * Caug
                scr_ref[0:top, :, lo:lo + Caug] = xm_ref[0, kh:kh + top, kw:kw + OW, :]
                if kh > 0:                           # remaining rows come from the halo
                    scr_ref[top:TILE_OH, :, lo:lo + Caug] = xh_ref[0, 0:kh, kw:kw + OW, :]
        patch = scr_ref[...].reshape(TILE_OH * OW, K * K * Caug)
        acc = jnp.dot(patch, w_ref[0], preferred_element_type=jnp.float32)
        acc = acc.reshape(TILE_OH, OW, OCT)
    else:
        # Large-C path: per-tap 3-D dot_general (contraction on the channel dim,
        # no reshape copies of strided slices); im2col would inflate VMEM/store
        # traffic K*K-fold at large C.
        scr_ref[0:TILE_OH] = xm_ref[0]
        if K > 1:
            scr_ref[TILE_OH:TILE_OH + K - 1] = xh_ref[0, 0:K - 1]
        w_full = w_ref[0].reshape(K * K, Caug, OCT)
        acc = jnp.zeros((TILE_OH, OW, OCT), jnp.float32)
        for kh in range(K):
            for kw in range(K):
                p = scr_ref[kh:kh + TILE_OH, kw:kw + OW, :]
                acc += lax.dot_general(p, w_full[kh * K + kw],
                                       (((2,), (0,)), ((), ())),
                                       preferred_element_type=jnp.float32)

    # FusedLeakyReLU (noise and bias were already added through the matmul).
    out = jnp.where(acc >= 0.0, acc * _SQRT2, acc * (0.2 * _SQRT2))
    o_ref[0] = out.astype(o_ref.dtype)


def styled_conv_ainp_forward(x, style, noise,
                             conv_weight, mod_weight, mod_bias,
                             noise_weight, act_bias,
                             *, demodulate=True, lr_mul=1.0, add_input=None):
    """Forward of StyledConvAInp_BUG (ModulatedConv2d stride 1 / pad K//2,
    upsample=False) + NoiseInjection + FusedLeakyReLU.  x: (N, C, H, W) f32."""
    # TODO(synk): upsample/downsample branches (conv_transpose2d + Blur/upfirdn2d),
    # simple_modulation / weights_delta / return_s variants and in-module random
    # noise sampling (noise=None) are not implemented.
    if add_input is not None:
        ainp = jnp.broadcast_to(add_input, (x.shape[0],) + add_input.shape[1:])
        x = jnp.concatenate([x, ainp], axis=1)

    N, C, H, W = x.shape
    _, OC, C_w, K, K2 = conv_weight.shape
    assert C_w == C and K == K2 and K % 2 == 1
    style_dim = mod_weight.shape[1]

    conv_scale = 1.0 / math.sqrt(C * K * K)
    mod_scale = 1.0 / math.sqrt(style_dim) * lr_mul
    pad = K // 2
    OH, OW = H, W                                   # stride 1, 'same' padding
    assert noise.shape == (N, 1, OH, OW), noise.shape

    # --- tiny f32 prologue: EqualLinear modulation, per-batch modulated +
    # demodulated weight, and folding of noise / activation bias as channels ---
    style_mod = (style.astype(jnp.float32) @ (mod_weight * mod_scale).T
                 + mod_bias * lr_mul)                                       # (N, C)
    w_b = (conv_weight[0].astype(jnp.float32) * conv_scale)[None] \
        * style_mod[:, None, :, None, None]                                # (N, OC, C, K, K)
    if demodulate:
        demod = lax.rsqrt(jnp.sum(w_b * w_b, axis=(2, 3, 4)) + 1e-8)        # (N, OC)
        w_b = w_b * demod[:, :, None, None, None]

    # Extra channels:  ch C   = noise_weight * noise  (centre-tap weight 1)
    #                  ch C+1 = 1                     (centre-tap weight act_bias)
    Caug = C + 2
    w_aug = jnp.zeros((N, OC, Caug, K, K), jnp.float32)
    w_aug = w_aug.at[:, :, :C].set(w_b)
    w_aug = w_aug.at[:, :, C, pad, pad].set(1.0)
    w_aug = w_aug.at[:, :, C + 1, pad, pad].set(
        jnp.broadcast_to(act_bias.astype(jnp.float32), (N, OC)))

    # --- tiling ---------------------------------------------------------------
    OCT = 128 if OC <= 128 else 256        # TODO(synk): keep 128 on v5e (128x128 MXU)
    OC_pad = _round_up(OC, OCT)
    num_oc = OC_pad // OCT
    Wp = W + 2 * pad
    KKCa = K * K * Caug
    use_im2col = Caug < 128

    def pick_halo(t):
        h = max(1, K - 1)
        while t % h:
            h += 1
        return h

    try:
        vmem_cap = int(pltpu.get_tpu_info().vmem_capacity_bytes)
    except Exception:
        vmem_cap = 64 * 2 ** 20                       # conservative (v7x per-core)
    block_budget = max(16 * 2 ** 20, int(0.55 * vmem_cap))

    def _p8(v):
        return _round_up(v, 8)

    def _p128(v):
        return _round_up(v, 128)

    def vmem_est(t):
        """Padded-layout VMEM estimate for the chosen block sizes."""
        h = pick_halo(t)
        b = 2 * t * _p8(Wp) * _p128(Caug) * 2          # main input blocks (bf16, 2 bufs)
        b += 2 * h * _p8(Wp) * _p128(Caug) * 2         # halo blocks
        b += 2 * _p8(KKCa) * _p128(OCT) * 2            # weight (counted double-buffered)
        b += 2 * t * _p8(OW) * _p128(OCT) * 2          # output blocks (bf16)
        if use_im2col:
            b += t * _p8(OW) * _p128(KKCa) * 2         # im2col scratch
        else:
            b += (t + K - 1) * _p8(Wp) * _p128(Caug) * 2
        return b

    # Accumulator bounded to <= ~32 f32 vregs independent of OC_pad (OC is tiled).
    # TODO(synk): add an OW tile axis (with a W halo) for very wide images, and
    # block several batch elements per grid step for tiny images.
    ACC_CAP = 32 * 1024
    tile_oh = max(8, (ACC_CAP // max(1, OW * OCT)) // 8 * 8)
    tile_oh = min(tile_oh, _round_up(OH, 8))
    while tile_oh > 8 and vmem_est(tile_oh) > block_budget:
        tile_oh -= 8
    HALO = pick_halo(tile_oh)
    halo_stride = tile_oh // HALO
    num_t = pl.cdiv(OH, tile_oh)
    OH_pad = num_t * tile_oh
    Hext = OH_pad + HALO

    # --- layout glue: NCHW -> NHWC, fold noise/ones channels, conv + tile pad --
    x_nhwc = jnp.transpose(x, (0, 2, 3, 1)).astype(jnp.float32)            # (N,H,W,C)
    noise_ch = (noise_weight.astype(jnp.float32).reshape(())
                * noise.astype(jnp.float32).reshape(N, H, W, 1))
    ones_ch = jnp.ones((N, H, W, 1), jnp.float32)
    x_aug = jnp.concatenate([x_nhwc, noise_ch, ones_ch], axis=-1)          # (N,H,W,Caug)
    x_ext = jnp.pad(x_aug, ((0, 0), (pad, Hext - H - pad), (pad, pad), (0, 0)))
    x_ext = x_ext.astype(jnp.bfloat16)

    # weight: (N, OC, Caug, K, K) -> (N, K*K*Caug, OC_pad), tap-major rows.
    w_t = jnp.transpose(w_aug, (0, 3, 4, 2, 1)).reshape(N, KKCa, OC)
    w_t = jnp.pad(w_t, ((0, 0), (0, 0), (0, OC_pad - OC))).astype(jnp.bfloat16)

    kernel = partial(_styled_conv_kernel, K=K, TILE_OH=tile_oh, OW=OW,
                     Caug=Caug, OCT=OCT, use_im2col=use_im2col)

    if use_im2col:
        scratch = pltpu.VMEM((tile_oh, OW, KKCa), jnp.bfloat16)
    else:
        scratch = pltpu.VMEM((tile_oh + K - 1, Wp, Caug), jnp.bfloat16)

    vmem_limit = int(min(0.9 * vmem_cap, max(32 * 2 ** 20, 2 * vmem_est(tile_oh))))

    def run(single_buffer_weight):
        w_kwargs = ({"pipeline_mode": pl.Buffered(1)}
                    if single_buffer_weight else {})
        grid_spec = pltpu.PrefetchScalarGridSpec(
            num_scalar_prefetch=0,
            grid=(N, num_oc, num_t),
            in_specs=[
                # main rows of this output row-tile
                pl.BlockSpec((1, tile_oh, Wp, Caug), lambda n, j, t: (n, t, 0, 0)),
                # K-1 halo rows directly below the tile
                pl.BlockSpec((1, HALO, Wp, Caug),
                             lambda n, j, t: (n, (t + 1) * halo_stride, 0, 0)),
                # per-batch folded weight for this OC tile (t-invariant)
                pl.BlockSpec((1, KKCa, OCT), lambda n, j, t: (n, 0, j), **w_kwargs),
            ],
            out_specs=pl.BlockSpec((1, tile_oh, OW, OCT),
                                   lambda n, j, t: (n, t, 0, j)),
            scratch_shapes=[scratch],
        )
        out = pl.pallas_call(
            kernel,
            out_shape=jax.ShapeDtypeStruct((N, OH_pad, OW, OC_pad), jnp.bfloat16),
            grid_spec=grid_spec,
            compiler_params=pltpu.CompilerParams(
                dimension_semantics=("parallel", "parallel", "parallel"),
                vmem_limit_bytes=vmem_limit,
            ),
        )(x_ext, x_ext, w_t)
        return jax.block_until_ready(out)

    try:
        out = run(True)      # single-buffer the grid-invariant weight block
    except Exception:
        out = run(False)     # fall back if pl.Buffered(1) is unsupported here

    out = out[:, :OH, :, :OC].astype(jnp.float32)
    # TODO(synk): keep the NHWC / bf16 layout downstream instead of this extra
    # slice + transpose + f32-cast pass when composing with consumer layers.
    return jnp.transpose(out, (0, 3, 1, 2))           # back to NCHW


def _reference(x, style, noise, conv_weight, mod_weight, mod_bias,
               noise_weight, act_bias, *, demodulate=True, lr_mul=1.0):
    """Pure-JAX f32 reference following the PyTorch module line by line."""
    N, C, H, W = x.shape
    _, OC, _, K, _ = conv_weight.shape
    style_dim = mod_weight.shape[1]
    conv_scale = 1.0 / math.sqrt(C * K * K)
    mod_scale = 1.0 / math.sqrt(style_dim) * lr_mul
    pad = K // 2

    s = style @ (mod_weight * mod_scale).T + mod_bias * lr_mul        # EqualLinear
    w = conv_scale * conv_weight * s[:, None, :, None, None]          # (N, OC, C, K, K)
    if demodulate:
        d = lax.rsqrt(jnp.sum(w * w, axis=(2, 3, 4)) + 1e-8)
        w = w * d[:, :, None, None, None]
    outs = []
    for b in range(N):                                                # groups=batch conv
        outs.append(lax.conv_general_dilated(
            x[b:b + 1], w[b], window_strides=(1, 1),
            padding=[(pad, pad), (pad, pad)],
            dimension_numbers=("NCHW", "OIHW", "NCHW")))
    out = jnp.concatenate(outs, axis=0)
    out = out + noise_weight.reshape(1, 1, 1, 1) * noise              # NoiseInjection
    out = out + act_bias.reshape(1, -1, 1, 1)                         # FusedLeakyReLU
    out = jnp.where(out >= 0, out, 0.2 * out) * _SQRT2
    return out


if __name__ == "__main__":
    # Small config consistent with the module defaults.
    in_channel, out_channel, kernel_size, style_dim = 4, 8, 3, 16
    batch, H, W = 2, 16, 16

    key = jax.random.PRNGKey(0)
    k_w, k_mw, k_x, k_s, k_n, k_ab = jax.random.split(key, 6)

    # Parameters mirroring __init__ (ModulatedConv2d / EqualLinear(bias_init=1) /
    # NoiseInjection / FusedLeakyReLU).  The noise weight and activation bias are
    # zero-initialized in the module; small nonzero values are used here so those
    # code paths are actually exercised by the check.
    conv_weight = jax.random.normal(
        k_w, (1, out_channel, in_channel, kernel_size, kernel_size), jnp.float32)
    mod_weight = jax.random.normal(k_mw, (in_channel, style_dim), jnp.float32)
    mod_bias = jnp.ones((in_channel,), jnp.float32)                             # bias_init=1
    noise_weight = jnp.full((1,), 0.3, jnp.float32)                             # module init: 0
    act_bias = 0.1 * jax.random.normal(k_ab, (out_channel,), jnp.float32)       # module init: 0

    # Inputs.  noise is passed explicitly for determinism.
    x = jax.random.normal(k_x, (batch, in_channel, H, W), jnp.float32)
    style = jax.random.normal(k_s, (batch, style_dim), jnp.float32)
    noise = jax.random.normal(k_n, (batch, 1, H, W), jnp.float32)

    out = styled_conv_ainp_forward(x, style, noise, conv_weight, mod_weight,
                                   mod_bias, noise_weight, act_bias,
                                   demodulate=True, lr_mul=1.0)
    out = jax.block_until_ready(out)

    ref = _reference(x, style, noise, conv_weight, mod_weight, mod_bias,
                     noise_weight, act_bias, demodulate=True, lr_mul=1.0)

    assert out.shape == ref.shape == (batch, out_channel, H, W), (out.shape, ref.shape)
    max_err = float(jnp.max(jnp.abs(out - ref)))
    # bf16 MXU operands / bf16 output with f32 accumulation -> ~1% error vs f32 ref.
    assert jnp.allclose(out, ref, atol=5e-2, rtol=5e-2), max_err
    print("KERNEL_OK")
</pallas_src>

<mosaic_0001>
module attributes {stable_mosaic.version = 11 : i64} {
  func.func @_styled_conv_kernel(%arg0: i32, %arg1: i32, %arg2: i32, %arg3: memref<1x16x18x6xbf16, #tpu.memory_space<vmem>>, %arg4: memref<1x2x18x6xbf16, #tpu.memory_space<vmem>>, %arg5: memref<1x54x128xbf16, #tpu.memory_space<vmem>>, %arg6: memref<1x16x16x128xbf16, #tpu.memory_space<vmem>>, %arg7: memref<16x16x54xbf16, #tpu.memory_space<vmem>>) attributes {dimension_semantics = [#tpu.dimension_semantics<parallel>, #tpu.dimension_semantics<parallel>, #tpu.dimension_semantics<parallel>], iteration_bounds = array<i64: 2, 1, 1>, scalar_prefetch = 0 : i64, scratch_operands = 1 : i64, tpu.core_type = #tpu.core_type<tc>, window_params = [{transform_indices = @transform_0, window_bounds = array<i64: 1, 16, 18, 6>}, {transform_indices = @transform_1, window_bounds = array<i64: 1, 2, 18, 6>}, {pipeline_mode = #tpu.pipeline_mode<synchronous>, transform_indices = @transform_2, window_bounds = array<i64: 1, 54, 128>}, {transform_indices = @transform_3, window_bounds = array<i64: 1, 16, 16, 128>}]} {
    %c0 = arith.constant 0 : index
    %c0_0 = arith.constant 0 : index
    %c0_1 = arith.constant 0 : index
    %c0_2 = arith.constant 0 : index
    %0 = vector.load %arg3[%c0, %c0_0, %c0_1, %c0_2] : memref<1x16x18x6xbf16, #tpu.memory_space<vmem>>, vector<1x16x16x6xbf16>
    %1 = vector.shape_cast %0 : vector<1x16x16x6xbf16> to vector<16x16x6xbf16>
    %c0_3 = arith.constant 0 : index
    %c0_4 = arith.constant 0 : index
    %c0_5 = arith.constant 0 : index
    %2 = vector.load %arg7[%c0_3, %c0_4, %c0_5] : memref<16x16x54xbf16, #tpu.memory_space<vmem>>, vector<16x16x6xbf16>
    tpu.vector_store %arg7[%c0_3, %c0_4, %c0_5], %1 {strides = array<i32>} : memref<16x16x54xbf16, #tpu.memory_space<vmem>>, vector<16x16x6xbf16>,
    %c0_6 = arith.constant 0 : index
    %c0_7 = arith.constant 0 : index
    %c1 = arith.constant 1 : index
    %c0_8 = arith.constant 0 : index
    %3 = vector.load %arg3[%c0_6, %c0_7, %c1, %c0_8] : memref<1x16x18x6xbf16, #tpu.memory_space<vmem>>, vector<1x16x16x6xbf16>
    %4 = vector.shape_cast %3 : vector<1x16x16x6xbf16> to vector<16x16x6xbf16>
    %c0_9 = arith.constant 0 : index
    %c0_10 = arith.constant 0 : index
    %c6 = arith.constant 6 : index
    %5 = vector.load %arg7[%c0_9, %c0_10, %c6] : memref<16x16x54xbf16, #tpu.memory_space<vmem>>, vector<16x16x6xbf16>
    tpu.vector_store %arg7[%c0_9, %c0_10, %c6], %4 {strides = array<i32>} : memref<16x16x54xbf16, #tpu.memory_space<vmem>>, vector<16x16x6xbf16>,
    %c0_11 = arith.constant 0 : index
    %c0_12 = arith.constant 0 : index
    %c2 = arith.constant 2 : index
    %c0_13 = arith.constant 0 : index
    %6 = vector.load %arg3[%c0_11, %c0_12, %c2, %c0_13] : memref<1x16x18x6xbf16, #tpu.memory_space<vmem>>, vector<1x16x16x6xbf16>
    %7 = vector.shape_cast %6 : vector<1x16x16x6xbf16> to vector<16x16x6xbf16>
    %c0_14 = arith.constant 0 : index
    %c0_15 = arith.constant 0 : index
    %c12 = arith.constant 12 : index
    %8 = vector.load %arg7[%c0_14, %c0_15, %c12] : memref<16x16x54xbf16, #tpu.memory_space<vmem>>, vector<16x16x6xbf16>
    tpu.vector_store %arg7[%c0_14, %c0_15, %c12], %7 {strides = array<i32>} : memref<16x16x54xbf16, #tpu.memory_space<vmem>>, vector<16x16x6xbf16>,
    %c0_16 = arith.constant 0 : index
    %c1_17 = arith.constant 1 : index
    %c0_18 = arith.constant 0 : index
    %c0_19 = arith.constant 0 : index
    %9 = vector.load %arg3[%c0_16, %c1_17, %c0_18, %c0_19] : memref<1x16x18x6xbf16, #tpu.memory_space<vmem>>, vector<1x15x16x6xbf16>
    %10 = vector.shape_cast %9 : vector<1x15x16x6xbf16> to vector<15x16x6xbf16>
    %c0_20 = arith.constant 0 : index
    %c0_21 = arith.constant 0 : index
    %c18 = arith.constant 18 : index
    %11 = vector.load %arg7[%c0_20, %c0_21, %c18] : memref<16x16x54xbf16, #tpu.memory_space<vmem>>, vector<15x16x6xbf16>
    tpu.vector_store %arg7[%c0_20, %c0_21, %c18], %10 {strides = array<i32>} : memref<16x16x54xbf16, #tpu.memory_space<vmem>>, vector<15x16x6xbf16>,
    %c0_22 = arith.constant 0 : index
    %c0_23 = arith.constant 0 : index
    %c0_24 = arith.constant 0 : index
    %c0_25 = arith.constant 0 : index
    %12 = vector.load %arg4[%c0_22, %c0_23, %c0_24, %c0_25] : memref<1x2x18x6xbf16, #tpu.memory_space<vmem>>, vector<1x1x16x6xbf16>
    %13 = vector.shape_cast %12 : vector<1x1x16x6xbf16> to vector<1x16x6xbf16>
    %c15 = arith.constant 15 : index
    %c0_26 = arith.constant 0 : index
    %c18_27 = arith.constant 18 : index
    %14 = vector.load %arg7[%c15, %c0_26, %c18_27] : memref<16x16x54xbf16, #tpu.memory_space<vmem>>, vector<1x16x6xbf16>
    tpu.vector_store %arg7[%c15, %c0_26, %c18_27], %13 {strides = array<i32>} : memref<16x16x54xbf16, #tpu.memory_space<vmem>>, vector<1x16x6xbf16>,
    %c0_28 = arith.constant 0 : index
    %c1_29 = arith.constant 1 : index
    %c1_30 = arith.constant 1 : index
    %c0_31 = arith.constant 0 : index
    %15 = vector.load %arg3[%c0_28, %c1_29, %c1_30, %c0_31] : memref<1x16x18x6xbf16, #tpu.memory_space<vmem>>, vector<1x15x16x6xbf16>
    %16 = vector.shape_cast %15 : vector<1x15x16x6xbf16> to vector<15x16x6xbf16>
    %c0_32 = arith.constant 0 : index
    %c0_33 = arith.constant 0 : index
    %c24 = arith.constant 24 : index
    %17 = vector.load %arg7[%c0_32, %c0_33, %c24] : memref<16x16x54xbf16, #tpu.memory_space<vmem>>, vector<15x16x6xbf16>
    tpu.vector_store %arg7[%c0_32, %c0_33, %c24], %16 {strides = array<i32>} : memref<16x16x54xbf16, #tpu.memory_space<vmem>>, vector<15x16x6xbf16>,
    %c0_34 = arith.constant 0 : index
    %c0_35 = arith.constant 0 : index
    %c1_36 = arith.constant 1 : index
    %c0_37 = arith.constant 0 : index
    %18 = vector.load %arg4[%c0_34, %c0_35, %c1_36, %c0_37] : memref<1x2x18x6xbf16, #tpu.memory_space<vmem>>, vector<1x1x16x6xbf16>
    %19 = vector.shape_cast %18 : vector<1x1x16x6xbf16> to vector<1x16x6xbf16>
    %c15_38 = arith.constant 15 : index
    %c0_39 = arith.constant 0 : index
    %c24_40 = arith.constant 24 : index
    %20 = vector.load %arg7[%c15_38, %c0_39, %c24_40] : memref<16x16x54xbf16, #tpu.memory_space<vmem>>, vector<1x16x6xbf16>
    tpu.vector_store %arg7[%c15_38, %c0_39, %c24_40], %19 {strides = array<i32>} : memref<16x16x54xbf16, #tpu.memory_space<vmem>>, vector<1x16x6xbf16>,
    %c0_41 = arith.constant 0 : index
    %c1_42 = arith.constant 1 : index
    %c2_43 = arith.constant 2 : index
    %c0_44 = arith.constant 0 : index
    %21 = vector.load %arg3[%c0_41, %c1_42, %c2_43, %c0_44] : memref<1x16x18x6xbf16, #tpu.memory_space<vmem>>, vector<1x15x16x6xbf16>
    %22 = vector.shape_cast %21 : vector<1x15x16x6xbf16> to vector<15x16x6xbf16>
    %c0_45 = arith.constant 0 : index
    %c0_46 = arith.constant 0 : index
    %c30 = arith.constant 30 : index
    %23 = vector.load %arg7[%c0_45, %c0_46, %c30] : memref<16x16x54xbf16, #tpu.memory_space<vmem>>, vector<15x16x6xbf16>
    tpu.vector_store %arg7[%c0_45, %c0_46, %c30], %22 {strides = array<i32>} : memref<16x16x54xbf16, #tpu.memory_space<vmem>>, vector<15x16x6xbf16>,
    %c0_47 = arith.constant 0 : index
    %c0_48 = arith.constant 0 : index
    %c2_49 = arith.constant 2 : index
    %c0_50 = arith.constant 0 : index
    %24 = vector.load %arg4[%c0_47, %c0_48, %c2_49, %c0_50] : memref<1x2x18x6xbf16, #tpu.memory_space<vmem>>, vector<1x1x16x6xbf16>
    %25 = vector.shape_cast %24 : vector<1x1x16x6xbf16> to vector<1x16x6xbf16>
    %c15_51 = arith.constant 15 : index
    %c0_52 = arith.constant 0 : index
    %c30_53 = arith.constant 30 : index
    %26 = vector.load %arg7[%c15_51, %c0_52, %c30_53] : memref<16x16x54xbf16, #tpu.memory_space<vmem>>, vector<1x16x6xbf16>
    tpu.vector_store %arg7[%c15_51, %c0_52, %c30_53], %25 {strides = array<i32>} : memref<16x16x54xbf16, #tpu.memory_space<vmem>>, vector<1x16x6xbf16>,
    %c0_54 = arith.constant 0 : index
    %c2_55 = arith.constant 2 : index
    %c0_56 = arith.constant 0 : index
    %c0_57 = arith.constant 0 : index
    %27 = vector.load %arg3[%c0_54, %c2_55, %c0_56, %c0_57] : memref<1x16x18x6xbf16, #tpu.memory_space<vmem>>, vector<1x14x16x6xbf16>
    %28 = vector.shape_cast %27 : vector<1x14x16x6xbf16> to vector<14x16x6xbf16>
    %c0_58 = arith.constant 0 : index
    %c0_59 = arith.constant 0 : index
    %c36 = arith.constant 36 : index
    %29 = vector.load %arg7[%c0_58, %c0_59, %c36] : memref<16x16x54xbf16, #tpu.memory_space<vmem>>, vector<14x16x6xbf16>
    tpu.vector_store %arg7[%c0_58, %c0_59, %c36], %28 {strides = array<i32>} : memref<16x16x54xbf16, #tpu.memory_space<vmem>>, vector<14x16x6xbf16>,
    %c0_60 = arith.constant 0 : index
    %c0_61 = arith.constant 0 : index
    %c0_62 = arith.constant 0 : index
    %c0_63 = arith.constant 0 : index
    %30 = vector.load %arg4[%c0_60, %c0_61, %c0_62, %c0_63] : memref<1x2x18x6xbf16, #tpu.memory_space<vmem>>, vector<1x2x16x6xbf16>
    %31 = vector.shape_cast %30 : vector<1x2x16x6xbf16> to vector<2x16x6xbf16>
    %c14 = arith.constant 14 : index
    %c0_64 = arith.constant 0 : index
    %c36_65 = arith.constant 36 : index
    %32 = vector.load %arg7[%c14, %c0_64, %c36_65] : memref<16x16x54xbf16, #tpu.memory_space<vmem>>, vector<2x16x6xbf16>
    tpu.vector_store %arg7[%c14, %c0_64, %c36_65], %31 {strides = array<i32>} : memref<16x16x54xbf16, #tpu.memory_space<vmem>>, vector<2x16x6xbf16>,
    %c0_66 = arith.constant 0 : index
    %c2_67 = arith.constant 2 : index
    %c1_68 = arith.constant 1 : index
    %c0_69 = arith.constant 0 : index
    %33 = vector.load %arg3[%c0_66, %c2_67, %c1_68, %c0_69] : memref<1x16x18x6xbf16, #tpu.memory_space<vmem>>, vector<1x14x16x6xbf16>
    %34 = vector.shape_cast %33 : vector<1x14x16x6xbf16> to vector<14x16x6xbf16>
    %c0_70 = arith.constant 0 : index
    %c0_71 = arith.constant 0 : index
    %c42 = arith.constant 42 : index
    %35 = vector.load %arg7[%c0_70, %c0_71, %c42] : memref<16x16x54xbf16, #tpu.memory_space<vmem>>, vector<14x16x6xbf16>
    tpu.vector_store %arg7[%c0_70, %c0_71, %c42], %34 {strides = array<i32>} : memref<16x16x54xbf16, #tpu.memory_space<vmem>>, vector<14x16x6xbf16>,
    %c0_72 = arith.constant 0 : index
    %c0_73 = arith.constant 0 : index
    %c1_74 = arith.constant 1 : index
    %c0_75 = arith.constant 0 : index
    %36 = vector.load %arg4[%c0_72, %c0_73, %c1_74, %c0_75] : memref<1x2x18x6xbf16, #tpu.memory_space<vmem>>, vector<1x2x16x6xbf16>
    %37 = vector.shape_cast %36 : vector<1x2x16x6xbf16> to vector<2x16x6xbf16>
    %c14_76 = arith.constant 14 : index
    %c0_77 = arith.constant 0 : index
    %c42_78 = arith.constant 42 : index
    %38 = vector.load %arg7[%c14_76, %c0_77, %c42_78] : memref<16x16x54xbf16, #tpu.memory_space<vmem>>, vector<2x16x6xbf16>
    tpu.vector_store %arg7[%c14_76, %c0_77, %c42_78], %37 {strides = array<i32>} : memref<16x16x54xbf16, #tpu.memory_space<vmem>>, vector<2x16x6xbf16>,
    %c0_79 = arith.constant 0 : index
    %c2_80 = arith.constant 2 : index
    %c2_81 = arith.constant 2 : index
    %c0_82 = arith.constant 0 : index
    %39 = vector.load %arg3[%c0_79, %c2_80, %c2_81, %c0_82] : memref<1x16x18x6xbf16, #tpu.memory_space<vmem>>, vector<1x14x16x6xbf16>
    %40 = vector.shape_cast %39 : vector<1x14x16x6xbf16> to vector<14x16x6xbf16>
    %c0_83 = arith.constant 0 : index
    %c0_84 = arith.constant 0 : index
    %c48 = arith.constant 48 : index
    %41 = vector.load %arg7[%c0_83, %c0_84, %c48] : memref<16x16x54xbf16, #tpu.memory_space<vmem>>, vector<14x16x6xbf16>
    tpu.vector_store %arg7[%c0_83, %c0_84, %c48], %40 {strides = array<i32>} : memref<16x16x54xbf16, #tpu.memory_space<vmem>>, vector<14x16x6xbf16>,
    %c0_85 = arith.constant 0 : index
    %c0_86 = arith.constant 0 : index
    %c2_87 = arith.constant 2 : index
    %c0_88 = arith.constant 0 : index
    %42 = vector.load %arg4[%c0_85, %c0_86, %c2_87, %c0_88] : memref<1x2x18x6xbf16, #tpu.memory_space<vmem>>, vector<1x2x16x6xbf16>
    %43 = vector.shape_cast %42 : vector<1x2x16x6xbf16> to vector<2x16x6xbf16>
    %c14_89 = arith.constant 14 : index
    %c0_90 = arith.constant 0 : index
    %c48_91 = arith.constant 48 : index
    %44 = vector.load %arg7[%c14_89, %c0_90, %c48_91] : memref<16x16x54xbf16, #tpu.memory_space<vmem>>, vector<2x16x6xbf16>
    tpu.vector_store %arg7[%c14_89, %c0_90, %c48_91], %43 {strides = array<i32>} : memref<16x16x54xbf16, #tpu.memory_space<vmem>>, vector<2x16x6xbf16>,
    %c0_92 = arith.constant 0 : index
    %c0_93 = arith.constant 0 : index
    %c0_94 = arith.constant 0 : index
    %45 = vector.load %arg7[%c0_92, %c0_93, %c0_94] : memref<16x16x54xbf16, #tpu.memory_space<vmem>>, vector<16x16x54xbf16>
    %46 = vector.shape_cast %45 : vector<16x16x54xbf16> to vector<256x54xbf16>
    %c0_95 = arith.constant 0 : index
    %c0_96 = arith.constant 0 : index
    %c0_97 = arith.constant 0 : index
    %47 = vector.load %arg5[%c0_95, %c0_96, %c0_97] : memref<1x54x128xbf16, #tpu.memory_space<vmem>>, vector<1x54x128xbf16>
    %48 = vector.shape_cast %47 : vector<1x54x128xbf16> to vector<54x128xbf16>
    %cst = arith.constant dense<0.000000e+00> : vector<256x128xf32>
    %49 = tpu.matmul %46, %48, %cst {dimension_numbers = #tpu.dot_dimension_numbers<[1], [0], [0], [1], [0, 0, 1, 1], [], []>} : vector<256x54xbf16>, vector<54x128xbf16>, vector<256x128xf32> -> vector<256x128xf32>
    %50 = vector.shape_cast %49 : vector<256x128xf32> to vector<16x16x128xf32>
    %cst_98 = arith.constant 0.000000e+00 : f32
    %51 = vector.broadcast %cst_98 : f32 to vector<16x16x128xf32>
    %52 = arith.cmpf oge, %50, %51 : vector<16x16x128xf32>
    %cst_99 = arith.constant 1.41421354 : f32
    %53 = vector.broadcast %cst_99 : f32 to vector<16x16x128xf32>
    %54 = arith.mulf %50, %53 : vector<16x16x128xf32>
    %cst_100 = arith.constant 0.282842726 : f32
    %55 = vector.broadcast %cst_100 : f32 to vector<16x16x128xf32>
    %56 = arith.mulf %50, %55 : vector<16x16x128xf32>
    %57 = arith.select %52, %54, %56 : vector<16x16x128xi1>, vector<16x16x128xf32>
    %58 = arith.truncf %57 : vector<16x16x128xf32> to vector<16x16x128xbf16>
    %c0_101 = arith.constant 0 : index
    %c0_102 = arith.constant 0 : index
    %c0_103 = arith.constant 0 : index
    %c0_104 = arith.constant 0 : index
    %59 = vector.load %arg6[%c0_101, %c0_102, %c0_103, %c0_104] : memref<1x16x16x128xbf16, #tpu.memory_space<vmem>>, vector<1x16x16x128xbf16>
    %60 = vector.shape_cast %59 : vector<1x16x16x128xbf16> to vector<16x16x128xbf16>
    %61 = vector.shape_cast %58 : vector<16x16x128xbf16> to vector<1x16x16x128xbf16>
    tpu.vector_store %arg6[%c0_101, %c0_102, %c0_103, %c0_104], %61 {strides = array<i32>} : memref<1x16x16x128xbf16, #tpu.memory_space<vmem>>, vector<1x16x16x128xbf16>,
    return
  }
  func.func @transform_0(%arg0: i32, %arg1: i32, %arg2: i32) -> (i32, i32, i32, i32) {
    %c0_i32 = arith.constant 0 : i32
    %c0_i32_0 = arith.constant 0 : i32
    %c0_i32_1 = arith.constant 0 : i32
    return %arg0, %arg2, %c0_i32, %c0_i32_0 : i32, i32, i32, i32
  }
  func.func @transform_1(%arg0: i32, %arg1: i32, %arg2: i32) -> (i32, i32, i32, i32) {
    %c1_i32 = arith.constant 1 : i32
    %0 = arith.addi %arg2, %c1_i32 : i32
    %c8_i32 = arith.constant 8 : i32
    %1 = arith.muli %0, %c8_i32 : i32
    %c0_i32 = arith.constant 0 : i32
    %c0_i32_0 = arith.constant 0 : i32
    %c0_i32_1 = arith.constant 0 : i32
    return %arg0, %1, %c0_i32, %c0_i32_0 : i32, i32, i32, i32
  }
  func.func @transform_2(%arg0: i32, %arg1: i32, %arg2: i32) -> (i32, i32, i32) {
    %c0_i32 = arith.constant 0 : i32
    %c0_i32_0 = arith.constant 0 : i32
    return %arg0, %c0_i32, %arg1 : i32, i32, i32
  }
  func.func @transform_3(%arg0: i32, %arg1: i32, %arg2: i32) -> (i32, i32, i32, i32) {
    %c0_i32 = arith.constant 0 : i32
    %c0_i32_0 = arith.constant 0 : i32
    return %arg0, %arg2, %c0_i32, %arg1 : i32, i32, i32, i32
  }
}

module attributes {stable_mosaic.version = 11 : i64} {
  func.func @_styled_conv_kernel(%arg0: i32, %arg1: i32, %arg2: i32, %arg3: memref<1x16x18x6xbf16, #tpu.memory_space<vmem>>, %arg4: memref<1x2x18x6xbf16, #tpu.memory_space<vmem>>, %arg5: memref<1x54x128xbf16, #tpu.memory_space<vmem>>, %arg6: memref<1x16x16x128xbf16, #tpu.memory_space<vmem>>, %arg7: memref<16x16x54xbf16, #tpu.memory_space<vmem>>) attributes {dimension_semantics = [#tpu.dimension_semantics<parallel>, #tpu.dimension_semantics<parallel>, #tpu.dimension_semantics<parallel>], iteration_bounds = array<i64: 2, 1, 1>, scalar_prefetch = 0 : i64, scratch_operands = 1 : i64, tpu.core_type = #tpu.core_type<tc>, window_params = [{transform_indices = @transform_0, window_bounds = array<i64: 1, 16, 18, 6>}, {transform_indices = @transform_1, window_bounds = array<i64: 1, 2, 18, 6>}, {transform_indices = @transform_2, window_bounds = array<i64: 1, 54, 128>}, {transform_indices = @transform_3, window_bounds = array<i64: 1, 16, 16, 128>}]} {
    %c0 = arith.constant 0 : index
    %c0_0 = arith.constant 0 : index
    %c0_1 = arith.constant 0 : index
    %c0_2 = arith.constant 0 : index
    %0 = vector.load %arg3[%c0, %c0_0, %c0_1, %c0_2] : memref<1x16x18x6xbf16, #tpu.memory_space<vmem>>, vector<1x16x16x6xbf16>
    %1 = vector.shape_cast %0 : vector<1x16x16x6xbf16> to vector<16x16x6xbf16>
    %c0_3 = arith.constant 0 : index
    %c0_4 = arith.constant 0 : index
    %c0_5 = arith.constant 0 : index
    %2 = vector.load %arg7[%c0_3, %c0_4, %c0_5] : memref<16x16x54xbf16, #tpu.memory_space<vmem>>, vector<16x16x6xbf16>
    tpu.vector_store %arg7[%c0_3, %c0_4, %c0_5], %1 {strides = array<i32>} : memref<16x16x54xbf16, #tpu.memory_space<vmem>>, vector<16x16x6xbf16>,
    %c0_6 = arith.constant 0 : index
    %c0_7 = arith.constant 0 : index
    %c1 = arith.constant 1 : index
    %c0_8 = arith.constant 0 : index
    %3 = vector.load %arg3[%c0_6, %c0_7, %c1, %c0_8] : memref<1x16x18x6xbf16, #tpu.memory_space<vmem>>, vector<1x16x16x6xbf16>
    %4 = vector.shape_cast %3 : vector<1x16x16x6xbf16> to vector<16x16x6xbf16>
    %c0_9 = arith.constant 0 : index
    %c0_10 = arith.constant 0 : index
    %c6 = arith.constant 6 : index
    %5 = vector.load %arg7[%c0_9, %c0_10, %c6] : memref<16x16x54xbf16, #tpu.memory_space<vmem>>, vector<16x16x6xbf16>
    tpu.vector_store %arg7[%c0_9, %c0_10, %c6], %4 {strides = array<i32>} : memref<16x16x54xbf16, #tpu.memory_space<vmem>>, vector<16x16x6xbf16>,
    %c0_11 = arith.constant 0 : index
    %c0_12 = arith.constant 0 : index
    %c2 = arith.constant 2 : index
    %c0_13 = arith.constant 0 : index
    %6 = vector.load %arg3[%c0_11, %c0_12, %c2, %c0_13] : memref<1x16x18x6xbf16, #tpu.memory_space<vmem>>, vector<1x16x16x6xbf16>
    %7 = vector.shape_cast %6 : vector<1x16x16x6xbf16> to vector<16x16x6xbf16>
    %c0_14 = arith.constant 0 : index
    %c0_15 = arith.constant 0 : index
    %c12 = arith.constant 12 : index
    %8 = vector.load %arg7[%c0_14, %c0_15, %c12] : memref<16x16x54xbf16, #tpu.memory_space<vmem>>, vector<16x16x6xbf16>
    tpu.vector_store %arg7[%c0_14, %c0_15, %c12], %7 {strides = array<i32>} : memref<16x16x54xbf16, #tpu.memory_space<vmem>>, vector<16x16x6xbf16>,
    %c0_16 = arith.constant 0 : index
    %c1_17 = arith.constant 1 : index
    %c0_18 = arith.constant 0 : index
    %c0_19 = arith.constant 0 : index
    %9 = vector.load %arg3[%c0_16, %c1_17, %c0_18, %c0_19] : memref<1x16x18x6xbf16, #tpu.memory_space<vmem>>, vector<1x15x16x6xbf16>
    %10 = vector.shape_cast %9 : vector<1x15x16x6xbf16> to vector<15x16x6xbf16>
    %c0_20 = arith.constant 0 : index
    %c0_21 = arith.constant 0 : index
    %c18 = arith.constant 18 : index
    %11 = vector.load %arg7[%c0_20, %c0_21, %c18] : memref<16x16x54xbf16, #tpu.memory_space<vmem>>, vector<15x16x6xbf16>
    tpu.vector_store %arg7[%c0_20, %c0_21, %c18], %10 {strides = array<i32>} : memref<16x16x54xbf16, #tpu.memory_space<vmem>>, vector<15x16x6xbf16>,
    %c0_22 = arith.constant 0 : index
    %c0_23 = arith.constant 0 : index
    %c0_24 = arith.constant 0 : index
    %c0_25 = arith.constant 0 : index
    %12 = vector.load %arg4[%c0_22, %c0_23, %c0_24, %c0_25] : memref<1x2x18x6xbf16, #tpu.memory_space<vmem>>, vector<1x1x16x6xbf16>
    %13 = vector.shape_cast %12 : vector<1x1x16x6xbf16> to vector<1x16x6xbf16>
    %c15 = arith.constant 15 : index
    %c0_26 = arith.constant 0 : index
    %c18_27 = arith.constant 18 : index
    %14 = vector.load %arg7[%c15, %c0_26, %c18_27] : memref<16x16x54xbf16, #tpu.memory_space<vmem>>, vector<1x16x6xbf16>
    tpu.vector_store %arg7[%c15, %c0_26, %c18_27], %13 {strides = array<i32>} : memref<16x16x54xbf16, #tpu.memory_space<vmem>>, vector<1x16x6xbf16>,
    %c0_28 = arith.constant 0 : index
    %c1_29 = arith.constant 1 : index
    %c1_30 = arith.constant 1 : index
    %c0_31 = arith.constant 0 : index
    %15 = vector.load %arg3[%c0_28, %c1_29, %c1_30, %c0_31] : memref<1x16x18x6xbf16, #tpu.memory_space<vmem>>, vector<1x15x16x6xbf16>
    %16 = vector.shape_cast %15 : vector<1x15x16x6xbf16> to vector<15x16x6xbf16>
    %c0_32 = arith.constant 0 : index
    %c0_33 = arith.constant 0 : index
    %c24 = arith.constant 24 : index
    %17 = vector.load %arg7[%c0_32, %c0_33, %c24] : memref<16x16x54xbf16, #tpu.memory_space<vmem>>, vector<15x16x6xbf16>
    tpu.vector_store %arg7[%c0_32, %c0_33, %c24], %16 {strides = array<i32>} : memref<16x16x54xbf16, #tpu.memory_space<vmem>>, vector<15x16x6xbf16>,
    %c0_34 = arith.constant 0 : index
    %c0_35 = arith.constant 0 : index
    %c1_36 = arith.constant 1 : index
    %c0_37 = arith.constant 0 : index
    %18 = vector.load %arg4[%c0_34, %c0_35, %c1_36, %c0_37] : memref<1x2x18x6xbf16, #tpu.memory_space<vmem>>, vector<1x1x16x6xbf16>
    %19 = vector.shape_cast %18 : vector<1x1x16x6xbf16> to vector<1x16x6xbf16>
    %c15_38 = arith.constant 15 : index
    %c0_39 = arith.constant 0 : index
    %c24_40 = arith.constant 24 : index
    %20 = vector.load %arg7[%c15_38, %c0_39, %c24_40] : memref<16x16x54xbf16, #tpu.memory_space<vmem>>, vector<1x16x6xbf16>
    tpu.vector_store %arg7[%c15_38, %c0_39, %c24_40], %19 {strides = array<i32>} : memref<16x16x54xbf16, #tpu.memory_space<vmem>>, vector<1x16x6xbf16>,
    %c0_41 = arith.constant 0 : index
    %c1_42 = arith.constant 1 : index
    %c2_43 = arith.constant 2 : index
    %c0_44 = arith.constant 0 : index
    %21 = vector.load %arg3[%c0_41, %c1_42, %c2_43, %c0_44] : memref<1x16x18x6xbf16, #tpu.memory_space<vmem>>, vector<1x15x16x6xbf16>
    %22 = vector.shape_cast %21 : vector<1x15x16x6xbf16> to vector<15x16x6xbf16>
    %c0_45 = arith.constant 0 : index
    %c0_46 = arith.constant 0 : index
    %c30 = arith.constant 30 : index
    %23 = vector.load %arg7[%c0_45, %c0_46, %c30] : memref<16x16x54xbf16, #tpu.memory_space<vmem>>, vector<15x16x6xbf16>
    tpu.vector_store %arg7[%c0_45, %c0_46, %c30], %22 {strides = array<i32>} : memref<16x16x54xbf16, #tpu.memory_space<vmem>>, vector<15x16x6xbf16>,
    %c0_47 = arith.constant 0 : index
    %c0_48 = arith.constant 0 : index
    %c2_49 = arith.constant 2 : index
    %c0_50 = arith.constant 0 : index
    %24 = vector.load %arg4[%c0_47, %c0_48, %c2_49, %c0_50] : memref<1x2x18x6xbf16, #tpu.memory_space<vmem>>, vector<1x1x16x6xbf16>
    %25 = vector.shape_cast %24 : vector<1x1x16x6xbf16> to vector<1x16x6xbf16>
    %c15_51 = arith.constant 15 : index
    %c0_52 = arith.constant 0 : index
    %c30_53 = arith.constant 30 : index
    %26 = vector.load %arg7[%c15_51, %c0_52, %c30_53] : memref<16x16x54xbf16, #tpu.memory_space<vmem>>, vector<1x16x6xbf16>
    tpu.vector_store %arg7[%c15_51, %c0_52, %c30_53], %25 {strides = array<i32>} : memref<16x16x54xbf16, #tpu.memory_space<vmem>>, vector<1x16x6xbf16>,
    %c0_54 = arith.constant 0 : index
    %c2_55 = arith.constant 2 : index
    %c0_56 = arith.constant 0 : index
    %c0_57 = arith.constant 0 : index
    %27 = vector.load %arg3[%c0_54, %c2_55, %c0_56, %c0_57] : memref<1x16x18x6xbf16, #tpu.memory_space<vmem>>, vector<1x14x16x6xbf16>
    %28 = vector.shape_cast %27 : vector<1x14x16x6xbf16> to vector<14x16x6xbf16>
    %c0_58 = arith.constant 0 : index
    %c0_59 = arith.constant 0 : index
    %c36 = arith.constant 36 : index
    %29 = vector.load %arg7[%c0_58, %c0_59, %c36] : memref<16x16x54xbf16, #tpu.memory_space<vmem>>, vector<14x16x6xbf16>
    tpu.vector_store %arg7[%c0_58, %c0_59, %c36], %28 {strides = array<i32>} : memref<16x16x54xbf16, #tpu.memory_space<vmem>>, vector<14x16x6xbf16>,
    %c0_60 = arith.constant 0 : index
    %c0_61 = arith.constant 0 : index
    %c0_62 = arith.constant 0 : index
    %c0_63 = arith.constant 0 : index
    %30 = vector.load %arg4[%c0_60, %c0_61, %c0_62, %c0_63] : memref<1x2x18x6xbf16, #tpu.memory_space<vmem>>, vector<1x2x16x6xbf16>
    %31 = vector.shape_cast %30 : vector<1x2x16x6xbf16> to vector<2x16x6xbf16>
    %c14 = arith.constant 14 : index
    %c0_64 = arith.constant 0 : index
    %c36_65 = arith.constant 36 : index
    %32 = vector.load %arg7[%c14, %c0_64, %c36_65] : memref<16x16x54xbf16, #tpu.memory_space<vmem>>, vector<2x16x6xbf16>
    tpu.vector_store %arg7[%c14, %c0_64, %c36_65], %31 {strides = array<i32>} : memref<16x16x54xbf16, #tpu.memory_space<vmem>>, vector<2x16x6xbf16>,
    %c0_66 = arith.constant 0 : index
    %c2_67 = arith.constant 2 : index
    %c1_68 = arith.constant 1 : index
    %c0_69 = arith.constant 0 : index
    %33 = vector.load %arg3[%c0_66, %c2_67, %c1_68, %c0_69] : memref<1x16x18x6xbf16, #tpu.memory_space<vmem>>, vector<1x14x16x6xbf16>
    %34 = vector.shape_cast %33 : vector<1x14x16x6xbf16> to vector<14x16x6xbf16>
    %c0_70 = arith.constant 0 : index
    %c0_71 = arith.constant 0 : index
    %c42 = arith.constant 42 : index
    %35 = vector.load %arg7[%c0_70, %c0_71, %c42] : memref<16x16x54xbf16, #tpu.memory_space<vmem>>, vector<14x16x6xbf16>
    tpu.vector_store %arg7[%c0_70, %c0_71, %c42], %34 {strides = array<i32>} : memref<16x16x54xbf16, #tpu.memory_space<vmem>>, vector<14x16x6xbf16>,
    %c0_72 = arith.constant 0 : index
    %c0_73 = arith.constant 0 : index
    %c1_74 = arith.constant 1 : index
    %c0_75 = arith.constant 0 : index
    %36 = vector.load %arg4[%c0_72, %c0_73, %c1_74, %c0_75] : memref<1x2x18x6xbf16, #tpu.memory_space<vmem>>, vector<1x2x16x6xbf16>
    %37 = vector.shape_cast %36 : vector<1x2x16x6xbf16> to vector<2x16x6xbf16>
    %c14_76 = arith.constant 14 : index
    %c0_77 = arith.constant 0 : index
    %c42_78 = arith.constant 42 : index
    %38 = vector.load %arg7[%c14_76, %c0_77, %c42_78] : memref<16x16x54xbf16, #tpu.memory_space<vmem>>, vector<2x16x6xbf16>
    tpu.vector_store %arg7[%c14_76, %c0_77, %c42_78], %37 {strides = array<i32>} : memref<16x16x54xbf16, #tpu.memory_space<vmem>>, vector<2x16x6xbf16>,
    %c0_79 = arith.constant 0 : index
    %c2_80 = arith.constant 2 : index
    %c2_81 = arith.constant 2 : index
    %c0_82 = arith.constant 0 : index
    %39 = vector.load %arg3[%c0_79, %c2_80, %c2_81, %c0_82] : memref<1x16x18x6xbf16, #tpu.memory_space<vmem>>, vector<1x14x16x6xbf16>
    %40 = vector.shape_cast %39 : vector<1x14x16x6xbf16> to vector<14x16x6xbf16>
    %c0_83 = arith.constant 0 : index
    %c0_84 = arith.constant 0 : index
    %c48 = arith.constant 48 : index
    %41 = vector.load %arg7[%c0_83, %c0_84, %c48] : memref<16x16x54xbf16, #tpu.memory_space<vmem>>, vector<14x16x6xbf16>
    tpu.vector_store %arg7[%c0_83, %c0_84, %c48], %40 {strides = array<i32>} : memref<16x16x54xbf16, #tpu.memory_space<vmem>>, vector<14x16x6xbf16>,
    %c0_85 = arith.constant 0 : index
    %c0_86 = arith.constant 0 : index
    %c2_87 = arith.constant 2 : index
    %c0_88 = arith.constant 0 : index
    %42 = vector.load %arg4[%c0_85, %c0_86, %c2_87, %c0_88] : memref<1x2x18x6xbf16, #tpu.memory_space<vmem>>, vector<1x2x16x6xbf16>
    %43 = vector.shape_cast %42 : vector<1x2x16x6xbf16> to vector<2x16x6xbf16>
    %c14_89 = arith.constant 14 : index
    %c0_90 = arith.constant 0 : index
    %c48_91 = arith.constant 48 : index
    %44 = vector.load %arg7[%c14_89, %c0_90, %c48_91] : memref<16x16x54xbf16, #tpu.memory_space<vmem>>, vector<2x16x6xbf16>
    tpu.vector_store %arg7[%c14_89, %c0_90, %c48_91], %43 {strides = array<i32>} : memref<16x16x54xbf16, #tpu.memory_space<vmem>>, vector<2x16x6xbf16>,
    %c0_92 = arith.constant 0 : index
    %c0_93 = arith.constant 0 : index
    %c0_94 = arith.constant 0 : index
    %45 = vector.load %arg7[%c0_92, %c0_93, %c0_94] : memref<16x16x54xbf16, #tpu.memory_space<vmem>>, vector<16x16x54xbf16>
    %46 = vector.shape_cast %45 : vector<16x16x54xbf16> to vector<256x54xbf16>
    %c0_95 = arith.constant 0 : index
    %c0_96 = arith.constant 0 : index
    %c0_97 = arith.constant 0 : index
    %47 = vector.load %arg5[%c0_95, %c0_96, %c0_97] : memref<1x54x128xbf16, #tpu.memory_space<vmem>>, vector<1x54x128xbf16>
    %48 = vector.shape_cast %47 : vector<1x54x128xbf16> to vector<54x128xbf16>
    %cst = arith.constant dense<0.000000e+00> : vector<256x128xf32>
    %49 = tpu.matmul %46, %48, %cst {dimension_numbers = #tpu.dot_dimension_numbers<[1], [0], [0], [1], [0, 0, 1, 1], [], []>} : vector<256x54xbf16>, vector<54x128xbf16>, vector<256x128xf32> -> vector<256x128xf32>
    %50 = vector.shape_cast %49 : vector<256x128xf32> to vector<16x16x128xf32>
    %cst_98 = arith.constant 0.000000e+00 : f32
    %51 = vector.broadcast %cst_98 : f32 to vector<16x16x128xf32>
    %52 = arith.cmpf oge, %50, %51 : vector<16x16x128xf32>
    %cst_99 = arith.constant 1.41421354 : f32
    %53 = vector.broadcast %cst_99 : f32 to vector<16x16x128xf32>
    %54 = arith.mulf %50, %53 : vector<16x16x128xf32>
    %cst_100 = arith.constant 0.282842726 : f32
    %55 = vector.broadcast %cst_100 : f32 to vector<16x16x128xf32>
    %56 = arith.mulf %50, %55 : vector<16x16x128xf32>
    %57 = arith.select %52, %54, %56 : vector<16x16x128xi1>, vector<16x16x128xf32>
    %58 = arith.truncf %57 : vector<16x16x128xf32> to vector<16x16x128xbf16>
    %c0_101 = arith.constant 0 : index
    %c0_102 = arith.constant 0 : index
    %c0_103 = arith.constant 0 : index
    %c0_104 = arith.constant 0 : index
    %59 = vector.load %arg6[%c0_101, %c0_102, %c0_103, %c0_104] : memref<1x16x16x128xbf16, #tpu.memory_space<vmem>>, vector<1x16x16x128xbf16>
    %60 = vector.shape_cast %59 : vector<1x16x16x128xbf16> to vector<16x16x128xbf16>
    %61 = vector.shape_cast %58 : vector<16x16x128xbf16> to vector<1x16x16x128xbf16>
    tpu.vector_store %arg6[%c0_101, %c0_102, %c0_103, %c0_104], %61 {strides = array<i32>} : memref<1x16x16x128xbf16, #tpu.memory_space<vmem>>, vector<1x16x16x128xbf16>,
    return
  }
  func.func @transform_0(%arg0: i32, %arg1: i32, %arg2: i32) -> (i32, i32, i32, i32) {
    %c0_i32 = arith.constant 0 : i32
    %c0_i32_0 = arith.constant 0 : i32
    %c0_i32_1 = arith.constant 0 : i32
    return %arg0, %arg2, %c0_i32, %c0_i32_0 : i32, i32, i32, i32
  }
  func.func @transform_1(%arg0: i32, %arg1: i32, %arg2: i32) -> (i32, i32, i32, i32) {
    %c1_i32 = arith.constant 1 : i32
    %0 = arith.addi %arg2, %c1_i32 : i32
    %c8_i32 = arith.constant 8 : i32
    %1 = arith.muli %0, %c8_i32 : i32
    %c0_i32 = arith.constant 0 : i32
    %c0_i32_0 = arith.constant 0 : i32
    %c0_i32_1 = arith.constant 0 : i32
    return %arg0, %1, %c0_i32, %c0_i32_0 : i32, i32, i32, i32
  }
  func.func @transform_2(%arg0: i32, %arg1: i32, %arg2: i32) -> (i32, i32, i32) {
    %c0_i32 = arith.constant 0 : i32
    %c0_i32_0 = arith.constant 0 : i32
    return %arg0, %c0_i32, %arg1 : i32, i32, i32
  }
  func.func @transform_3(%arg0: i32, %arg1: i32, %arg2: i32) -> (i32, i32, i32, i32) {
    %c0_i32 = arith.constant 0 : i32
    %c0_i32_0 = arith.constant 0 : i32
    return %arg0, %arg2, %c0_i32, %arg1 : i32, i32, i32, i32
  }
}

</mosaic_0001>

<llo_original>
// kernel: tpu_custom_call.1
$region0: #{tpu_custom_call.1}
  #allocation0 [shape = 'u32[]', space=smem, size = 0x4, offset = 0x4, fixed_abs, tag = 'smem constant byte address 0x4 - core index']
  #allocation1 [shape = 'u32[144,128]{1,0:T(1,128)}', space=vmem, size = 0x12000, scoped, tag = 'internal scratch']
  #allocation2 [shape = 'bf16[16,16,54]{2,1,0:T(16,128)(2,1)}', space=vmem, size = 0x10000, scoped, tag = 'scratch operand']
  %s0 = inlined_call_operand.vmem [shape: bf16[2,18,18,6], index: 0, kind: input, shape index: {}]
  %s1 = inlined_call_operand.vmem [shape: bf16[2,18,18,6], index: 1, kind: input, shape index: {}]
  %s2 = inlined_call_operand.vmem [shape: bf16[2,54,128], index: 2, kind: input, shape index: {}]
  %s3 = inlined_call_operand.hbm [shape: bf16[2,16,16,128], index: 3, kind: output, shape index: {}]
  %s4 = sld [smem:[#allocation0]]
  $region45: #{tpu_custom_call.1} parent=0
    _
  %s6 = ssub.s32 1, %s4
  %s7 = scalar_select 0, %s6, %s4
  $region1: #{tpu_custom_call.1} parent=0
    #allocation3 [shape = 'u8[131072]{0}', space=vmem, size = 0x20000, scoped, tag = 'output window, operand 0']
    #allocation4 [shape = 's32[2]{0}', space=sflag, size = 0x8, scoped, tag = 'scoped memory for tpu_custom_call.1']
    %8 = vsyncpa [#allocation4], 0
    %s9 = scalar_lea.sflag [#allocation4], 1
    %10 = vsyncpa %s9, 0
    loop: start=0, step=1, limit=4
    $region2: #{tpu_custom_call.1} parent=1 // loop_pre_header
      _
    $region3: #{tpu_custom_call.1} parent=1 // loop_header
      %s12 = sphi 0, %s16
      %p13 = scmp.ge.s32.totalorder %s12, 4
      %s19 = sphi 0, %s38
      %s20 = sphi 0, %s34
      %s21 = sphi 0, %s30
      %s22 = sphi 0, %s19
      %s23 = sphi 0, %s20
      %s24 = sphi 0, %s21
      %s25 = sphi 0, %s22
      %s26 = sphi 0, %s23
      %s27 = sphi 0, %s24
      %s43 = sphi 0, %s45
      %s46 = sphi 0, %s43
      %s47 = sphi 0, %s46
      %s63 = sphi 0, %s47
      %s75 = sphi 0, %s77
      %s78 = sphi 0, %s75
      %s79 = sphi 0, %s78
      %s95 = sphi 0, %s79
      %s103 = sphi 0, %s105
      %s106 = sphi 0, %s103
      %s107 = sphi 0, %s106
      %s123 = sphi 0, %s107
      %s133 = sphi 0, %s135
      %s136 = sphi 0, %s133
      %s137 = sphi 0, %s136
      %s153 = sphi 0, %s137
    $region4: #{tpu_custom_call.1} parent=1 // loop_header_branch
      %15 = sbr.rel (%p13) target = $region8
    $region5: #{tpu_custom_call.1} parent=1 // loop_body
      %s17 = ssub.s32 %s12, 1
      %s18 = ssub.s32 %s12, 2
      %s28 = sadd.s32 1, %s21
      %p29 = scmp.ge.s32.totalorder %s28, 1
      %s30 = scalar_select %p29, 0, %s28
      %s31 = sadd.s32 1, %s20
      %s32 = scalar_select %p29, %s31, %s20
      %p33 = scmp.ge.s32.totalorder %s32, 1
      %s34 = scalar_select %p33, 0, %s32
      %s35 = sadd.s32 1, %s19
      %s36 = scalar_select %p33, %s35, %s19
      %p37 = scmp.ge.s32.totalorder %s36, 2
      %s38 = scalar_select %p37, 0, %s36
      %s39 = ssub.s32 %s19, %s38
      %s40 = ssub.s32 %s21, %s30
      %s41 = sor.u32 %s39, %s40
      %p42 = scmp.eq.s32.totalorder %s41, 0
      %s44 = sadd.s32 %s43, 1
      %s45 = scalar_select %p42, %s43, %s44
      %p48 = pneg %p42
      %p49 = scmp.eq.s32.totalorder %s12, 1
      %p50 = por %p48, %p49
      %p51 = scmp.ne.s32.totalorder %s43, %s46
      %p52 = scmp.eq.s32.totalorder %s12, 0
      %p53 = por %p51, %p52
      %p54 = scmp.ne.s32.totalorder %s43, %s46
      %p55 = scmp.eq.s32.totalorder %s17, 1
      %p56 = por %p54, %p55
      %p57 = scmp.ne.s32.totalorder %s46, %s47
      %p58 = scmp.eq.s32.totalorder %s17, 0
      %p59 = por %p57, %p58
      %p60 = scmp.ne.s32.totalorder %s46, %s47
      %p61 = scmp.eq.s32.totalorder %s18, 1
      %p62 = por %p60, %p61
      %p64 = scmp.ne.s32.totalorder %s47, %s63
      %p65 = scmp.eq.s32.totalorder %s18, 0
      %p66 = por %p64, %p65
      %s67 = sadd.s32 %s21, 1
      %s68 = smul.u32 %s67, 8
      %s69 = sadd.s32 %s30, 1
      %s70 = smul.u32 %s69, 8
      %s71 = ssub.s32 %s19, %s38
      %s72 = ssub.s32 %s68, %s70
      %s73 = sor.u32 %s71, %s72
      %p74 = scmp.eq.s32.totalorder %s73, 0
      %s76 = sadd.s32 %s75, 1
      %s77 = scalar_select %p74, %s75, %s76
      %p80 = pneg %p74
      %p81 = scmp.eq.s32.totalorder %s12, 1
      %p82 = por %p80, %p81
      %p83 = scmp.ne.s32.totalorder %s75, %s78
      %p84 = scmp.eq.s32.totalorder %s12, 0
      %p85 = por %p83, %p84
      %p86 = scmp.ne.s32.totalorder %s75, %s78
      %p87 = scmp.eq.s32.totalorder %s17, 1
      %p88 = por %p86, %p87
      %p89 = scmp.ne.s32.totalorder %s78, %s79
      %p90 = scmp.eq.s32.totalorder %s17, 0
      %p91 = por %p89, %p90
      %p92 = scmp.ne.s32.totalorder %s78, %s79
      %p93 = scmp.eq.s32.totalorder %s18, 1
      %p94 = por %p92, %p93
      %p96 = scmp.ne.s32.totalorder %s79, %s95
      %p97 = scmp.eq.s32.totalorder %s18, 0
      %p98 = por %p96, %p97
      %s99 = ssub.s32 %s19, %s38
      %s100 = ssub.s32 %s20, %s34
      %s101 = sor.u32 %s99, %s100
      %p102 = scmp.eq.s32.totalorder %s101, 0
      %s104 = sadd.s32 %s103, 1
      %s105 = scalar_select %p102, %s103, %s104
      %p108 = pneg %p102
      %p109 = scmp.eq.s32.totalorder %s12, 1
      %p110 = por %p108, %p109
      %p111 = scmp.ne.s32.totalorder %s103, %s106
      %p112 = scmp.eq.s32.totalorder %s12, 0
      %p113 = por %p111, %p112
      %p114 = scmp.ne.s32.totalorder %s103, %s106
      %p115 = scmp.eq.s32.totalorder %s17, 1
      %p116 = por %p114, %p115
      %p117 = scmp.ne.s32.totalorder %s106, %s107
      %p118 = scmp.eq.s32.totalorder %s17, 0
      %p119 = por %p117, %p118
      %p120 = scmp.ne.s32.totalorder %s106, %s107
      %p121 = scmp.eq.s32.totalorder %s18, 1
      %p122 = por %p120, %p121
      %p124 = scmp.ne.s32.totalorder %s107, %s123
      %p125 = scmp.eq.s32.totalorder %s18, 0
      %p126 = por %p124, %p125
      %s127 = ssub.s32 %s19, %s38
      %s128 = ssub.s32 %s21, %s30
      %s129 = sor.u32 %s127, %s128
      %s130 = ssub.s32 %s20, %s34
      %s131 = sor.u32 %s129, %s130
      %p132 = scmp.eq.s32.totalorder %s131, 0
      %s134 = sadd.s32 %s133, 1
      %s135 = scalar_select %p132, %s133, %s134
      %p138 = pneg %p132
      %p139 = scmp.eq.s32.totalorder %s12, 1
      %p140 = por %p138, %p139
      %p141 = scmp.ne.s32.totalorder %s133, %s136
      %p142 = scmp.eq.s32.totalorder %s12, 0
      %p143 = por %p141, %p142
      %p144 = scmp.ne.s32.totalorder %s133, %s136
      %p145 = scmp.eq.s32.totalorder %s17, 1
      %p146 = por %p144, %p145
      %p147 = scmp.ne.s32.totalorder %s136, %s137
      %p148 = scmp.eq.s32.totalorder %s17, 0
      %p149 = por %p147, %p148
      %p150 = scmp.ne.s32.totalorder %s136, %s137
      %p151 = scmp.eq.s32.totalorder %s18, 1
      %p152 = por %p150, %p151
      %p154 = scmp.ne.s32.totalorder %s137, %s153
      %p155 = scmp.eq.s32.totalorder %s18, 0
      %p156 = por %p154, %p155
      %p157 = scmp.le.s32.totalorder 1, %s12
      %p158 = scmp.lt.s32.totalorder %s12, 3
      %p159 = pnand %p157, %p158
      %p160 = pneg %p159
      // Predicated region
      $region9: #{tpu_custom_call.1} parent=5 // pred_check
        _
      $region10: #{tpu_custom_call.1} parent=5 // pred_check_branch
        %162 = sbr.rel (%p159) target = $region12
      $region11: #{tpu_custom_call.1} parent=5 // pred_region
        %s163 = ssub.s32 %s12, 1
        // Predicated region
        $region13: #{tpu_custom_call.1} parent=11 // pred_check
          %p164 = pneg %p119
        $region14: #{tpu_custom_call.1} parent=11 // pred_check_branch
          %166 = sbr.rel (%p164) target = $region16
        $region15: #{tpu_custom_call.1} parent=11 // pred_region
          %p167 = scmp.lt.s32.totalorder %s22, 1
          %s168 = scalar_select %p167, %s22, 1
          %p169 = scmp.lt.s32.totalorder %s23, 0
          %s170 = scalar_select %p169, %s23, 0
          %s171 = smul.addr %s168, 7
          %s172 = sadd.s32 %s170, %s171
          %s173 = smul.addr %s172, 4
          %s174 = scalar_lea.vmem %s2, %s173
        $region16: #{tpu_custom_call.1} parent=11 // pred_fallthru
          _
      $region12: #{tpu_custom_call.1} parent=5 // pred_fallthru
        _
      %p175 = scmp.lt.s32.totalorder %s12, 2
      // Predicated region
      $region17: #{tpu_custom_call.1} parent=5 // pred_check
        %p176 = pneg %p175
      $region18: #{tpu_custom_call.1} parent=5 // pred_check_branch
        %178 = sbr.rel (%p176) target = $region20
      $region19: #{tpu_custom_call.1} parent=5 // pred_region
        // Predicated region
        $region21: #{tpu_custom_call.1} parent=19 // pred_check
          %p179 = pneg %p53
        $region22: #{tpu_custom_call.1} parent=19 // pred_check_branch
          %181 = sbr.rel (%p179) target = $region24
        $region23: #{tpu_custom_call.1} parent=19 // pred_region
          %s182 = smul.u32 16, %s21
          %s183 = ssub.s32 18, %s182
          %p184 = scmp.lt.s32.totalorder %s183, 16
          %s185 = scalar_select %p184, %s183, 16
          %s186 = smul.u32 64, %s185
          %s187 = smul.u32 %s186, 3
          %p188 = scmp.lt.s32.totalorder %s19, 1
          %s189 = scalar_select %p188, %s19, 1
          %p190 = scmp.lt.s32.totalorder %s182, 17
          %s191 = scalar_select %p190, %s182, 17
          %s192 = smul.addr %s191, 3
          %s193 = smul.addr %s189, 54
          %s194 = sadd.s32 %s192, %s193
          %s195 = smul.addr %s194, 4
          %s196 = scalar_lea.vmem %s0, %s195
          %s197 = smul.u32 16, %s21
          %s198 = ssub.s32 18, %s197
          %p199 = scmp.lt.s32.totalorder %s198, 16
          %s200 = scalar_select %p199, %s198, 16
          %s201 = smul.u32 64, %s200
          %s202 = smul.u32 %s201, 3
        $region24: #{tpu_custom_call.1} parent=19 // pred_fallthru
          _
        // Predicated region
        $region25: #{tpu_custom_call.1} parent=19 // pred_check
          %p203 = pneg %p85
        $region26: #{tpu_custom_call.1} parent=19 // pred_check_branch
          %205 = sbr.rel (%p203) target = $region28
        $region27: #{tpu_custom_call.1} parent=19 // pred_region
          %s206 = sadd.s32 %s21, 1
          %s207 = smul.u32 %s206, 8
          %s208 = smul.u32 2, %s207
          %p209 = scmp.lt.s32.totalorder %s19, 1
          %s210 = scalar_select %p209, %s19, 1
          %p211 = scmp.lt.s32.totalorder %s208, 17
          %s212 = scalar_select %p211, %s208, 17
          %s213 = smul.addr %s212, 3
          %s214 = smul.addr %s210, 54
          %s215 = sadd.s32 %s213, %s214
          %s216 = smul.addr %s215, 4
          %s217 = scalar_lea.vmem %s1, %s216
          %s218 = sadd.s32 %s21, 1
          %s219 = smul.u32 %s218, 8
          %s220 = smul.u32 2, %s219
        $region28: #{tpu_custom_call.1} parent=19 // pred_fallthru
          _
      $region20: #{tpu_custom_call.1} parent=5 // pred_fallthru
        _
      %p221 = scmp.le.s32.totalorder 1, %s12
      %p222 = scmp.lt.s32.totalorder %s12, 3
      %p223 = pnand %p221, %p222
      %p224 = pneg %p223
      // Predicated region
      $region29: #{tpu_custom_call.1} parent=5 // pred_check
        _
      $region30: #{tpu_custom_call.1} parent=5 // pred_check_branch
        %226 = sbr.rel (%p223) target = $region32
      $region31: #{tpu_custom_call.1} parent=5 // pred_region
        %s227 = ssub.s32 %s12, 1
        %s228 = smul.u32 16, %s24
        %s229 = ssub.s32 18, %s228
        %p230 = scmp.lt.s32.totalorder %s229, 16
        %s231 = scalar_select %p230, %s229, 16
        %s232 = smul.u32 64, %s231
        %s233 = smul.u32 %s232, 3
        %p234 = scmp.lt.s32.totalorder %s22, 1
        %s235 = scalar_select %p234, %s22, 1
        %p236 = scmp.lt.s32.totalorder %s228, 17
        %s237 = scalar_select %p236, %s228, 17
        %s238 = smul.addr %s237, 3
        %s239 = smul.addr %s235, 54
        %s240 = sadd.s32 %s238, %s239
        %s241 = smul.addr %s240, 4
        %s242 = scalar_lea.vmem %s0, %s241
        %p243 = pneg %p59
        %p244 = pneg %p56
        %s245 = sadd.s32 %s24, 1
        %s246 = smul.u32 %s245, 8
        %s247 = smul.u32 2, %s246
        %p248 = scmp.lt.s32.totalorder %s22, 1
        %s249 = scalar_select %p248, %s22, 1
        %p250 = scmp.lt.s32.totalorder %s247, 17
        %s251 = scalar_select %p250, %s247, 17
        %s252 = smul.addr %s251, 3
        %s253 = smul.addr %s249, 54
        %s254 = sadd.s32 %s252, %s253
        %s255 = smul.addr %s254, 4
        %s256 = scalar_lea.vmem %s1, %s255
        %p257 = pneg %p91
        %p258 = pneg %p88
        %p259 = scmp.lt.s32.totalorder %s22, 1
        %s260 = scalar_select %p259, %s22, 1
        %p261 = scmp.lt.s32.totalorder %s23, 0
        %s262 = scalar_select %p261, %s23, 0
        %s263 = smul.addr %s260, 7
        %s264 = sadd.s32 %s262, %s263
        %s265 = smul.addr %s264, 4
        %s266 = scalar_lea.vmem %s2, %s265
        %p267 = pneg %p119
        %p268 = pneg %p116
        %p269 = pneg %p149
        %p270 = pneg %p146
        %s271 = sand.u32 %s136, 1
        %s272 = scalar_lea.sflag [#allocation4], %s271
        %s273 = sand.u32 %s136, 1
        %s274 = smul.addr %s273, 128
        %s275 = scalar_lea.vmem [#allocation3], %s274
        %s276 = smul.u32 16, %s24
        %s277 = ssub.s32 18, %s276
        %p278 = scmp.lt.s32.totalorder %s277, 16
        %s279 = scalar_select %p278, %s277, 16
        %s280 = smul.u32 64, %s279
        %s281 = smul.u32 %s280, 3
        %p282 = scmp.lt.s32.totalorder %s22, 1
        %s283 = scalar_select %p282, %s22, 1
        %p284 = scmp.lt.s32.totalorder %s276, 17
        %s285 = scalar_select %p284, %s276, 17
        %s286 = smul.addr %s285, 3
        %s287 = smul.addr %s283, 54
        %s288 = sadd.s32 %s286, %s287
        %s289 = smul.addr %s288, 4
        %s290 = scalar_lea.vmem %s0, %s289
        %s291 = smul.u32 16, %s24
        %s292 = ssub.s32 18, %s291
        %p293 = scmp.lt.s32.totalorder %s292, 16
        %s294 = scalar_select %p293, %s292, 16
        %s295 = smul.u32 64, %s294
        %s296 = smul.u32 %s295, 3
        %s297 = sadd.s32 %s24, 1
        %s298 = smul.u32 %s297, 8
        %s299 = smul.u32 2, %s298
        %p300 = scmp.lt.s32.totalorder %s22, 1
        %s301 = scalar_select %p300, %s22, 1
        %p302 = scmp.lt.s32.totalorder %s299, 17
        %s303 = scalar_select %p302, %s299, 17
        %s304 = smul.addr %s303, 3
        %s305 = smul.addr %s301, 54
        %s306 = sadd.s32 %s304, %s305
        %s307 = smul.addr %s306, 4
        %s308 = scalar_lea.vmem %s1, %s307
        %s309 = sadd.s32 %s24, 1
        %s310 = smul.u32 %s309, 8
        %s311 = smul.u32 2, %s310
        %p312 = scmp.lt.s32.totalorder %s22, 1
        %s313 = scalar_select %p312, %s22, 1
        %p314 = scmp.lt.s32.totalorder %s23, 0
        %s315 = scalar_select %p314, %s23, 0
        %s316 = smul.addr %s313, 7
        %s317 = sadd.s32 %s315, %s316
        %s318 = smul.addr %s317, 4
        %s319 = scalar_lea.vmem %s2, %s318
        %s320 = smul.u32 16, %s24
        %v322 = vld [vmem:[%s290] sm:$0xf]
        %v323 = vld [vmem:[%s290 + $0x4] sm:$0xf]
        %v324 = vld [vmem:[%s290 + $0xc] sm:$0xf]
        %v325 = vld [vmem:[%s290 + $0x10] sm:$0xf]
        %v326 = vld [vmem:[%s290 + $0x18] sm:$0xf]
        %v327 = vld [vmem:[%s290 + $0x1c] sm:$0xf]
        %v328 = vld [vmem:[%s290 + $0x24] sm:$0xf]
        %v329 = vld [vmem:[%s290 + $0x28] sm:$0xf]
        %v330 = vld [vmem:[%s290 + $0x30] sm:$0xf]
        %v331 = vld [vmem:[%s290 + $0x34] sm:$0xf]
        %v332 = vld [vmem:[%s290 + $0x3c] sm:$0xf]
        %v333 = vld [vmem:[%s290 + $0x40] sm:$0xf]
        %v334 = vld [vmem:[%s290 + $0x48] sm:$0xf]
        %v335 = vld [vmem:[%s290 + $0x4c] sm:$0xf]
        %v336 = vld [vmem:[%s290 + $0x54] sm:$0xf]
        %v337 = vld [vmem:[%s290 + $0x58] sm:$0xf]
        %v338 = vld [vmem:[%s290 + $0x60] sm:$0xf]
        %v339 = vld [vmem:[%s290 + $0x64] sm:$0xf]
        %v340 = vld [vmem:[%s290 + $0x6c] sm:$0xf]
        %v341 = vld [vmem:[%s290 + $0x70] sm:$0xf]
        %v342 = vld [vmem:[%s290 + $0x78] sm:$0xf]
        %v343 = vld [vmem:[%s290 + $0x7c] sm:$0xf]
        %v344 = vld [vmem:[%s290 + $0x84] sm:$0xf]
        %v345 = vld [vmem:[%s290 + $0x88] sm:$0xf]
        %v346 = vld [vmem:[%s290 + $0x90] sm:$0xf]
        %v347 = vld [vmem:[%s290 + $0x94] sm:$0xf]
        %v348 = vld [vmem:[%s290 + $0x9c] sm:$0xf]
        %v349 = vld [vmem:[%s290 + $0xa0] sm:$0xf]
        %v350 = vld [vmem:[%s290 + $0xa8] sm:$0xf]
        %v351 = vld [vmem:[%s290 + $0xac] sm:$0xf]
        %v352 = vld [vmem:[%s290 + $0xb4] sm:$0xf]
        %v353 = vld [vmem:[%s290 + $0xb8] sm:$0xf]
        %v386 = vunpack.c.l.b16 %v322
        %v387 = vunpack.c.l.b16 %v323
        %v388 = vunpack.c.l.b16 %v324
        %v389 = vunpack.c.l.b16 %v325
        %v390 = vunpack.c.l.b16 %v326
        %v391 = vunpack.c.l.b16 %v327
        %v392 = vunpack.c.l.b16 %v328
        %v393 = vunpack.c.l.b16 %v329
        %v394 = vunpack.c.l.b16 %v330
        %v395 = vunpack.c.l.b16 %v331
        %v396 = vunpack.c.l.b16 %v332
        %v397 = vunpack.c.l.b16 %v333
        %v398 = vunpack.c.l.b16 %v334
        %v399 = vunpack.c.l.b16 %v335
        %v400 = vunpack.c.l.b16 %v336
        %v401 = vunpack.c.l.b16 %v337
        %v402 = vunpack.c.l.b16 %v338
        %v403 = vunpack.c.l.b16 %v339
        %v404 = vunpack.c.l.b16 %v340
        %v405 = vunpack.c.l.b16 %v341
        %v406 = vunpack.c.l.b16 %v342
        %v407 = vunpack.c.l.b16 %v343
        %v408 = vunpack.c.l.b16 %v344
        %v409 = vunpack.c.l.b16 %v345
        %v410 = vunpack.c.l.b16 %v346
        %v411 = vunpack.c.l.b16 %v347
        %v412 = vunpack.c.l.b16 %v348
        %v413 = vunpack.c.l.b16 %v349
        %v414 = vunpack.c.l.b16 %v350
        %v415 = vunpack.c.l.b16 %v351
        %v416 = vunpack.c.l.b16 %v352
        %v417 = vunpack.c.l.b16 %v353
        %v418 = vpack.c.b16 %v387, %v386
        %v419 = vpack.c.b16 %v389, %v388
        %v420 = vpack.c.b16 %v391, %v390
        %v421 = vpack.c.b16 %v393, %v392
        %v422 = vpack.c.b16 %v395, %v394
        %v423 = vpack.c.b16 %v397, %v396
        %v424 = vpack.c.b16 %v399, %v398
        %v425 = vpack.c.b16 %v401, %v400
        %v426 = vpack.c.b16 %v403, %v402
        %v427 = vpack.c.b16 %v405, %v404
        %v428 = vpack.c.b16 %v407, %v406
        %v429 = vpack.c.b16 %v409, %v408
        %v430 = vpack.c.b16 %v411, %v410
        %v431 = vpack.c.b16 %v413, %v412
        %v432 = vpack.c.b16 %v415, %v414
        %v433 = vpack.c.b16 %v417, %v416
        %vm450 = vcmask 48128
        %451 = vst.msk [vmem:[#allocation2] sm:$0xff] %vm450, %v418
        %452 = vst.msk [vmem:[#allocation2 + $0x8] sm:$0xff] %vm450, %v419
        %453 = vst.msk [vmem:[#allocation2 + $0x10] sm:$0xff] %vm450, %v420
        %454 = vst.msk [vmem:[#allocation2 + $0x18] sm:$0xff] %vm450, %v421
        %455 = vst.msk [vmem:[#allocation2 + $0x20] sm:$0xff] %vm450, %v422
        %456 = vst.msk [vmem:[#allocation2 + $0x28] sm:$0xff] %vm450, %v423
        %457 = vst.msk [vmem:[#allocation2 + $0x30] sm:$0xff] %vm450, %v424
        %458 = vst.msk [vmem:[#allocation2 + $0x38] sm:$0xff] %vm450, %v425
        %459 = vst.msk [vmem:[#allocation2 + $0x40] sm:$0xff] %vm450, %v426
        %460 = vst.msk [vmem:[#allocation2 + $0x48] sm:$0xff] %vm450, %v427
        %461 = vst.msk [vmem:[#allocation2 + $0x50] sm:$0xff] %vm450, %v428
        %462 = vst.msk [vmem:[#allocation2 + $0x58] sm:$0xff] %vm450, %v429
        %463 = vst.msk [vmem:[#allocation2 + $0x60] sm:$0xff] %vm450, %v430
        %464 = vst.msk [vmem:[#allocation2 + $0x68] sm:$0xff] %vm450, %v431
        %465 = vst.msk [vmem:[#allocation2 + $0x70] sm:$0xff] %vm450, %v432
        %466 = vst.msk [vmem:[#allocation2 + $0x78] sm:$0xff] %vm450, %v433
        %v467 = vld [vmem:[%s290] sm:$0xf]
        %v468 = vld [vmem:[%s290 + $0x4] sm:$0xf]
        %v469 = vld [vmem:[%s290 + $0x8] sm:$0x1]
        %v470 = vld [vmem:[%s290 + $0xc] sm:$0xf]
        %v471 = vld [vmem:[%s290 + $0x10] sm:$0xf]
        %v472 = vld [vmem:[%s290 + $0x14] sm:$0x1]
        %v473 = vld [vmem:[%s290 + $0x18] sm:$0xf]
        %v474 = vld [vmem:[%s290 + $0x1c] sm:$0xf]
        %v475 = vld [vmem:[%s290 + $0x20] sm:$0x1]
        %v476 = vld [vmem:[%s290 + $0x24] sm:$0xf]
        %v477 = vld [vmem:[%s290 + $0x28] sm:$0xf]
        %v478 = vld [vmem:[%s290 + $0x2c] sm:$0x1]
        %v479 = vld [vmem:[%s290 + $0x30] sm:$0xf]
        %v480 = vld [vmem:[%s290 + $0x34] sm:$0xf]
        %v481 = vld [vmem:[%s290 + $0x38] sm:$0x1]
        %v482 = vld [vmem:[%s290 + $0x3c] sm:$0xf]
        %v483 = vld [vmem:[%s290 + $0x40] sm:$0xf]
        %v484 = vld [vmem:[%s290 + $0x44] sm:$0x1]
        %v485 = vld [vmem:[%s290 + $0x48] sm:$0xf]
        %v486 = vld [vmem:[%s290 + $0x4c] sm:$0xf]
        %v487 = vld [vmem:[%s290 + $0x50] sm:$0x1]
        %v488 = vld [vmem:[%s290 + $0x54] sm:$0xf]
        %v489 = vld [vmem:[%s290 + $0x58] sm:$0xf]
        %v490 = vld [vmem:[%s290 + $0x5c] sm:$0x1]
        %v491 = vld [vmem:[%s290 + $0x60] sm:$0xf]
        %v492 = vld [vmem:[%s290 + $0x64] sm:$0xf]
        %v493 = vld [vmem:[%s290 + $0x68] sm:$0x1]
        %v494 = vld [vmem:[%s290 + $0x6c] sm:$0xf]
        %v495 = vld [vmem:[%s290 + $0x70] sm:$0xf]
        %v496 = vld [vmem:[%s290 + $0x74] sm:$0x1]
        %v497 = vld [vmem:[%s290 + $0x78] sm:$0xf]
        %v498 = vld [vmem:[%s290 + $0x7c] sm:$0xf]
        %v499 = vld [vmem:[%s290 + $0x80] sm:$0x1]
        %v500 = vld [vmem:[%s290 + $0x84] sm:$0xf]
        %v501 = vld [vmem:[%s290 + $0x88] sm:$0xf]
        %v502 = vld [vmem:[%s290 + $0x8c] sm:$0x1]
        %v503 = vld [vmem:[%s290 + $0x90] sm:$0xf]
        %v504 = vld [vmem:[%s290 + $0x94] sm:$0xf]
        %v505 = vld [vmem:[%s290 + $0x98] sm:$0x1]
        %v506 = vld [vmem:[%s290 + $0x9c] sm:$0xf]
        %v507 = vld [vmem:[%s290 + $0xa0] sm:$0xf]
        %v508 = vld [vmem:[%s290 + $0xa4] sm:$0x1]
        %v509 = vld [vmem:[%s290 + $0xa8] sm:$0xf]
        %v510 = vld [vmem:[%s290 + $0xac] sm:$0xf]
        %v511 = vld [vmem:[%s290 + $0xb0] sm:$0x1]
        %v512 = vld [vmem:[%s290 + $0xb4] sm:$0xf]
        %v513 = vld [vmem:[%s290 + $0xb8] sm:$0xf]
        %v514 = vld [vmem:[%s290 + $0xbc] sm:$0x1]
        %v563 = vunpack.c.l.b16 %v467
        %v564 = vunpack.c.l.b16 %v468
        %v565 = vunpack.c.l.b16 %v469
        %v566 = vunpack.c.l.b16 %v470
        %v567 = vunpack.c.l.b16 %v471
        %v568 = vunpack.c.l.b16 %v472
        %v569 = vunpack.c.l.b16 %v473
        %v570 = vunpack.c.l.b16 %v474
        %v571 = vunpack.c.l.b16 %v475
        %v572 = vunpack.c.l.b16 %v476
        %v573 = vunpack.c.l.b16 %v477
        %v574 = vunpack.c.l.b16 %v478
        %v575 = vunpack.c.l.b16 %v479
        %v576 = vunpack.c.l.b16 %v480
        %v577 = vunpack.c.l.b16 %v481
        %v578 = vunpack.c.l.b16 %v482
        %v579 = vunpack.c.l.b16 %v483
        %v580 = vunpack.c.l.b16 %v484
        %v581 = vunpack.c.l.b16 %v485
        %v582 = vunpack.c.l.b16 %v486
        %v583 = vunpack.c.l.b16 %v487
        %v584 = vunpack.c.l.b16 %v488
        %v585 = vunpack.c.l.b16 %v489
        %v586 = vunpack.c.l.b16 %v490
        %v587 = vunpack.c.l.b16 %v491
        %v588 = vunpack.c.l.b16 %v492
        %v589 = vunpack.c.l.b16 %v493
        %v590 = vunpack.c.l.b16 %v494
        %v591 = vunpack.c.l.b16 %v495
        %v592 = vunpack.c.l.b16 %v496
        %v593 = vunpack.c.l.b16 %v497
        %v594 = vunpack.c.l.b16 %v498
        %v595 = vunpack.c.l.b16 %v499
        %v596 = vunpack.c.l.b16 %v500
        %v597 = vunpack.c.l.b16 %v501
        %v598 = vunpack.c.l.b16 %v502
        %v599 = vunpack.c.l.b16 %v503
        %v600 = vunpack.c.l.b16 %v504
        %v601 = vunpack.c.l.b16 %v505
        %v602 = vunpack.c.l.b16 %v506
        %v603 = vunpack.c.l.b16 %v507
        %v604 = vunpack.c.l.b16 %v508
        %v605 = vunpack.c.l.b16 %v509
        %v606 = vunpack.c.l.b16 %v510
        %v607 = vunpack.c.l.b16 %v511
        %v608 = vunpack.c.l.b16 %v512
        %v609 = vunpack.c.l.b16 %v513
        %v610 = vunpack.c.l.b16 %v514
        %v611 = vpack.c.b16 %v564, %v563
        %v612 = vpack.c.b16 %v565, %v565
        %v613 = vpack.c.b16 %v567, %v566
        %v614 = vpack.c.b16 %v568, %v568
        %v615 = vpack.c.b16 %v570, %v569
        %v616 = vpack.c.b16 %v571, %v571
        %v617 = vpack.c.b16 %v573, %v572
        %v618 = vpack.c.b16 %v574, %v574
        %v619 = vpack.c.b16 %v576, %v575
        %v620 = vpack.c.b16 %v577, %v577
        %v621 = vpack.c.b16 %v579, %v578
        %v622 = vpack.c.b16 %v580, %v580
        %v623 = vpack.c.b16 %v582, %v581
        %v624 = vpack.c.b16 %v583, %v583
        %v625 = vpack.c.b16 %v585, %v584
        %v626 = vpack.c.b16 %v586, %v586
        %v627 = vpack.c.b16 %v588, %v587
        %v628 = vpack.c.b16 %v589, %v589
        %v629 = vpack.c.b16 %v591, %v590
        %v630 = vpack.c.b16 %v592, %v592
        %v631 = vpack.c.b16 %v594, %v593
        %v632 = vpack.c.b16 %v595, %v595
        %v633 = vpack.c.b16 %v597, %v596
        %v634 = vpack.c.b16 %v598, %v598
        %v635 = vpack.c.b16 %v600, %v599
        %v636 = vpack.c.b16 %v601, %v601
        %v637 = vpack.c.b16 %v603, %v602
        %v638 = vpack.c.b16 %v604, %v604
        %v639 = vpack.c.b16 %v606, %v605
        %v640 = vpack.c.b16 %v607, %v607
        %v641 = vpack.c.b16 %v609, %v608
        %v642 = vpack.c.b16 %v610, %v610
        %vm643 = vsmask.f32 7424
        %v645 = vshrl.u32 %v611, 16
        %v647 = vshll.u32 %v611, 16
        %v649 = vrot.slane %v647, 1
        %v650 = vor.u32 %v645, %v649
        %v652 = vshll.u32 %v612, 16
        %v654 = vrot.slane %v652, 1
        %v655 = vsel %vm643, %v650, %v654
        %v657 = vshrl.u32 %v613, 16
        %v659 = vshll.u32 %v613, 16
        %v661 = vrot.slane %v659, 1
        %v662 = vor.u32 %v657, %v661
        %v664 = vshll.u32 %v614, 16
        %v666 = vrot.slane %v664, 1
        %v667 = vsel %vm643, %v662, %v666
        %v669 = vshrl.u32 %v615, 16
        %v671 = vshll.u32 %v615, 16
        %v673 = vrot.slane %v671, 1
        %v674 = vor.u32 %v669, %v673
        %v676 = vshll.u32 %v616, 16
        %v678 = vrot.slane %v676, 1
        %v679 = vsel %vm643, %v674, %v678
        %v681 = vshrl.u32 %v617, 16
        %v683 = vshll.u32 %v617, 16
        %v685 = vrot.slane %v683, 1
        %v686 = vor.u32 %v681, %v685
        %v688 = vshll.u32 %v618, 16
        %v690 = vrot.slane %v688, 1
        %v691 = vsel %vm643, %v686, %v690
        %v693 = vshrl.u32 %v619, 16
        %v695 = vshll.u32 %v619, 16
        %v697 = vrot.slane %v695, 1
        %v698 = vor.u32 %v693, %v697
        %v700 = vshll.u32 %v620, 16
        %v702 = vrot.slane %v700, 1
        %v703 = vsel %vm643, %v698, %v702
        %v705 = vshrl.u32 %v621, 16
        %v707 = vshll.u32 %v621, 16
        %v709 = vrot.slane %v707, 1
        %v710 = vor.u32 %v705, %v709
        %v712 = vshll.u32 %v622, 16
        %v714 = vrot.slane %v712, 1
        %v715 = vsel %vm643, %v710, %v714
        %v717 = vshrl.u32 %v623, 16
        %v719 = vshll.u32 %v623, 16
        %v721 = vrot.slane %v719, 1
        %v722 = vor.u32 %v717, %v721
        %v724 = vshll.u32 %v624, 16
        %v726 = vrot.slane %v724, 1
        %v727 = vsel %vm643, %v722, %v726
        %v729 = vshrl.u32 %v625, 16
        %v731 = vshll.u32 %v625, 16
        %v733 = vrot.slane %v731, 1
        %v734 = vor.u32 %v729, %v733
        %v736 = vshll.u32 %v626, 16
        %v738 = vrot.slane %v736, 1
        %v739 = vsel %vm643, %v734, %v738
        %v741 = vshrl.u32 %v627, 16
        %v743 = vshll.u32 %v627, 16
        %v745 = vrot.slane %v743, 1
        %v746 = vor.u32 %v741, %v745
        %v748 = vshll.u32 %v628, 16
        %v750 = vrot.slane %v748, 1
        %v751 = vsel %vm643, %v746, %v750
        %v753 = vshrl.u32 %v629, 16
        %v755 = vshll.u32 %v629, 16
        %v757 = vrot.slane %v755, 1
        %v758 = vor.u32 %v753, %v757
        %v760 = vshll.u32 %v630, 16
        %v762 = vrot.slane %v760, 1
        %v763 = vsel %vm643, %v758, %v762
        %v765 = vshrl.u32 %v631, 16
        %v767 = vshll.u32 %v631, 16
        %v769 = vrot.slane %v767, 1
        %v770 = vor.u32 %v765, %v769
        %v772 = vshll.u32 %v632, 16
        %v774 = vrot.slane %v772, 1
        %v775 = vsel %vm643, %v770, %v774
        %v777 = vshrl.u32 %v633, 16
        %v779 = vshll.u32 %v633, 16
        %v781 = vrot.slane %v779, 1
        %v782 = vor.u32 %v777, %v781
        %v784 = vshll.u32 %v634, 16
        %v786 = vrot.slane %v784, 1
        %v787 = vsel %vm643, %v782, %v786
        %v789 = vshrl.u32 %v635, 16
        %v791 = vshll.u32 %v635, 16
        %v793 = vrot.slane %v791, 1
        %v794 = vor.u32 %v789, %v793
        %v796 = vshll.u32 %v636, 16
        %v798 = vrot.slane %v796, 1
        %v799 = vsel %vm643, %v794, %v798
        %v801 = vshrl.u32 %v637, 16
        %v803 = vshll.u32 %v637, 16
        %v805 = vrot.slane %v803, 1
        %v806 = vor.u32 %v801, %v805
        %v808 = vshll.u32 %v638, 16
        %v810 = vrot.slane %v808, 1
        %v811 = vsel %vm643, %v806, %v810
        %v813 = vshrl.u32 %v639, 16
        %v815 = vshll.u32 %v639, 16
        %v817 = vrot.slane %v815, 1
        %v818 = vor.u32 %v813, %v817
        %v820 = vshll.u32 %v640, 16
        %v822 = vrot.slane %v820, 1
        %v823 = vsel %vm643, %v818, %v822
        %v825 = vshrl.u32 %v641, 16
        %v827 = vshll.u32 %v641, 16
        %v829 = vrot.slane %v827, 1
        %v830 = vor.u32 %v825, %v829
        %v832 = vshll.u32 %v642, 16
        %v834 = vrot.slane %v832, 1
        %v835 = vsel %vm643, %v830, %v834
        %836 = vrot.lane.b32.xlu0 %v655, 6
        %v837 = vpop.permute.xlu0 %836
        %838 = vrot.lane.b32.xlu0 %v667, 6
        %v839 = vpop.permute.xlu0 %838
        %840 = vrot.lane.b32.xlu0 %v679, 6
        %v841 = vpop.permute.xlu0 %840
        %842 = vrot.lane.b32.xlu0 %v691, 6
        %v843 = vpop.permute.xlu0 %842
        %844 = vrot.lane.b32.xlu0 %v703, 6
        %v845 = vpop.permute.xlu0 %844
        %846 = vrot.lane.b32.xlu0 %v715, 6
        %v847 = vpop.permute.xlu0 %846
        %848 = vrot.lane.b32.xlu0 %v727, 6
        %v849 = vpop.permute.xlu0 %848
        %850 = vrot.lane.b32.xlu0 %v739, 6
        %v851 = vpop.permute.xlu0 %850
        %852 = vrot.lane.b32.xlu0 %v751, 6
        %v853 = vpop.permute.xlu0 %852
        %854 = vrot.lane.b32.xlu0 %v763, 6
        %v855 = vpop.permute.xlu0 %854
        %856 = vrot.lane.b32.xlu0 %v775, 6
        %v857 = vpop.permute.xlu0 %856
        %858 = vrot.lane.b32.xlu0 %v787, 6
        %v859 = vpop.permute.xlu0 %858
        %860 = vrot.lane.b32.xlu0 %v799, 6
        %v861 = vpop.permute.xlu0 %860
        %862 = vrot.lane.b32.xlu0 %v811, 6
        %v863 = vpop.permute.xlu0 %862
        %864 = vrot.lane.b32.xlu0 %v823, 6
        %v865 = vpop.permute.xlu0 %864
        %866 = vrot.lane.b32.xlu0 %v835, 6
        %v867 = vpop.permute.xlu0 %866
        %vm884 = vcmask 97328
        %885 = vst.msk [vmem:[#allocation2] sm:$0xff] %vm884, %v837
        %886 = vst.msk [vmem:[#allocation2 + $0x8] sm:$0xff] %vm884, %v839
        %887 = vst.msk [vmem:[#allocation2 + $0x10] sm:$0xff] %vm884, %v841
        %888 = vst.msk [vmem:[#allocation2 + $0x18] sm:$0xff] %vm884, %v843
        %889 = vst.msk [vmem:[#allocation2 + $0x20] sm:$0xff] %vm884, %v845
        %890 = vst.msk [vmem:[#allocation2 + $0x28] sm:$0xff] %vm884, %v847
        %891 = vst.msk [vmem:[#allocation2 + $0x30] sm:$0xff] %vm884, %v849
        %892 = vst.msk [vmem:[#allocation2 + $0x38] sm:$0xff] %vm884, %v851
        %893 = vst.msk [vmem:[#allocation2 + $0x40] sm:$0xff] %vm884, %v853
        %894 = vst.msk [vmem:[#allocation2 + $0x48] sm:$0xff] %vm884, %v855
        %895 = vst.msk [vmem:[#allocation2 + $0x50] sm:$0xff] %vm884, %v857
        %896 = vst.msk [vmem:[#allocation2 + $0x58] sm:$0xff] %vm884, %v859
        %897 = vst.msk [vmem:[#allocation2 + $0x60] sm:$0xff] %vm884, %v861
        %898 = vst.msk [vmem:[#allocation2 + $0x68] sm:$0xff] %vm884, %v863
        %899 = vst.msk [vmem:[#allocation2 + $0x70] sm:$0xff] %vm884, %v865
        %900 = vst.msk [vmem:[#allocation2 + $0x78] sm:$0xff] %vm884, %v867
        %v901 = vld [vmem:[%s290] sm:$0xe]
        %v902 = vld [vmem:[%s290 + $0x4] sm:$0xf]
        %v903 = vld [vmem:[%s290 + $0x8] sm:$0x1]
        %v904 = vld [vmem:[%s290 + $0xc] sm:$0xe]
        %v905 = vld [vmem:[%s290 + $0x10] sm:$0xf]
        %v906 = vld [vmem:[%s290 + $0x14] sm:$0x1]
        %v907 = vld [vmem:[%s290 + $0x18] sm:$0xe]
        %v908 = vld [vmem:[%s290 + $0x1c] sm:$0xf]
        %v909 = vld [vmem:[%s290 + $0x20] sm:$0x1]
        %v910 = vld [vmem:[%s290 + $0x24] sm:$0xe]
        %v911 = vld [vmem:[%s290 + $0x28] sm:$0xf]
        %v912 = vld [vmem:[%s290 + $0x2c] sm:$0x1]
        %v913 = vld [vmem:[%s290 + $0x30] sm:$0xe]
        %v914 = vld [vmem:[%s290 + $0x34] sm:$0xf]
        %v915 = vld [vmem:[%s290 + $0x38] sm:$0x1]
        %v916 = vld [vmem:[%s290 + $0x3c] sm:$0xe]
        %v917 = vld [vmem:[%s290 + $0x40] sm:$0xf]
        %v918 = vld [vmem:[%s290 + $0x44] sm:$0x1]
        %v919 = vld [vmem:[%s290 + $0x48] sm:$0xe]
        %v920 = vld [vmem:[%s290 + $0x4c] sm:$0xf]
        %v921 = vld [vmem:[%s290 + $0x50] sm:$0x1]
        %v922 = vld [vmem:[%s290 + $0x54] sm:$0xe]
        %v923 = vld [vmem:[%s290 + $0x58] sm:$0xf]
        %v924 = vld [vmem:[%s290 + $0x5c] sm:$0x1]
        %v925 = vld [vmem:[%s290 + $0x60] sm:$0xe]
        %v926 = vld [vmem:[%s290 + $0x64] sm:$0xf]
        %v927 = vld [vmem:[%s290 + $0x68] sm:$0x1]
        %v928 = vld [vmem:[%s290 + $0x6c] sm:$0xe]
        %v929 = vld [vmem:[%s290 + $0x70] sm:$0xf]
        %v930 = vld [vmem:[%s290 + $0x74] sm:$0x1]
        %v931 = vld [vmem:[%s290 + $0x78] sm:$0xe]
        %v932 = vld [vmem:[%s290 + $0x7c] sm:$0xf]
        %v933 = vld [vmem:[%s290 + $0x80] sm:$0x1]
        %v934 = vld [vmem:[%s290 + $0x84] sm:$0xe]
        %v935 = vld [vmem:[%s290 + $0x88] sm:$0xf]
        %v936 = vld [vmem:[%s290 + $0x8c] sm:$0x1]
        %v937 = vld [vmem:[%s290 + $0x90] sm:$0xe]
        %v938 = vld [vmem:[%s290 + $0x94] sm:$0xf]
        %v939 = vld [vmem:[%s290 + $0x98] sm:$0x1]
        %v940 = vld [vmem:[%s290 + $0x9c] sm:$0xe]
        %v941 = vld [vmem:[%s290 + $0xa0] sm:$0xf]
        %v942 = vld [vmem:[%s290 + $0xa4] sm:$0x1]
        %v943 = vld [vmem:[%s290 + $0xa8] sm:$0xe]
        %v944 = vld [vmem:[%s290 + $0xac] sm:$0xf]
        %v945 = vld [vmem:[%s290 + $0xb0] sm:$0x1]
        %v946 = vld [vmem:[%s290 + $0xb4] sm:$0xe]
        %v947 = vld [vmem:[%s290 + $0xb8] sm:$0xf]
        %v948 = vld [vmem:[%s290 + $0xbc] sm:$0x1]
        %v997 = vunpack.c.l.b16 %v901
        %v998 = vunpack.c.l.b16 %v902
        %v999 = vunpack.c.l.b16 %v903
        %v1000 = vunpack.c.l.b16 %v904
        %v1001 = vunpack.c.l.b16 %v905
        %v1002 = vunpack.c.l.b16 %v906
        %v1003 = vunpack.c.l.b16 %v907
        %v1004 = vunpack.c.l.b16 %v908
        %v1005 = vunpack.c.l.b16 %v909
        %v1006 = vunpack.c.l.b16 %v910
        %v1007 = vunpack.c.l.b16 %v911
        %v1008 = vunpack.c.l.b16 %v912
        %v1009 = vunpack.c.l.b16 %v913
        %v1010 = vunpack.c.l.b16 %v914
        %v1011 = vunpack.c.l.b16 %v915
        %v1012 = vunpack.c.l.b16 %v916
        %v1013 = vunpack.c.l.b16 %v917
        %v1014 = vunpack.c.l.b16 %v918
        %v1015 = vunpack.c.l.b16 %v919
        %v1016 = vunpack.c.l.b16 %v920
        %v1017 = vunpack.c.l.b16 %v921
        %v1018 = vunpack.c.l.b16 %v922
        %v1019 = vunpack.c.l.b16 %v923
        %v1020 = vunpack.c.l.b16 %v924
        %v1021 = vunpack.c.l.b16 %v925
        %v1022 = vunpack.c.l.b16 %v926
        %v1023 = vunpack.c.l.b16 %v927
        %v1024 = vunpack.c.l.b16 %v928
        %v1025 = vunpack.c.l.b16 %v929
        %v1026 = vunpack.c.l.b16 %v930
        %v1027 = vunpack.c.l.b16 %v931
        %v1028 = vunpack.c.l.b16 %v932
        %v1029 = vunpack.c.l.b16 %v933
        %v1030 = vunpack.c.l.b16 %v934
        %v1031 = vunpack.c.l.b16 %v935
        %v1032 = vunpack.c.l.b16 %v936
        %v1033 = vunpack.c.l.b16 %v937
        %v1034 = vunpack.c.l.b16 %v938
        %v1035 = vunpack.c.l.b16 %v939
        %v1036 = vunpack.c.l.b16 %v940
        %v1037 = vunpack.c.l.b16 %v941
        %v1038 = vunpack.c.l.b16 %v942
        %v1039 = vunpack.c.l.b16 %v943
        %v1040 = vunpack.c.l.b16 %v944
        %v1041 = vunpack.c.l.b16 %v945
        %v1042 = vunpack.c.l.b16 %v946
        %v1043 = vunpack.c.l.b16 %v947
        %v1044 = vunpack.c.l.b16 %v948
        %v1045 = vpack.c.b16 %v998, %v997
        %v1046 = vpack.c.b16 %v999, %v999
        %v1047 = vpack.c.b16 %v1001, %v1000
        %v1048 = vpack.c.b16 %v1002, %v1002
        %v1049 = vpack.c.b16 %v1004, %v1003
        %v1050 = vpack.c.b16 %v1005, %v1005
        %v1051 = vpack.c.b16 %v1007, %v1006
        %v1052 = vpack.c.b16 %v1008, %v1008
        %v1053 = vpack.c.b16 %v1010, %v1009
        %v1054 = vpack.c.b16 %v1011, %v1011
        %v1055 = vpack.c.b16 %v1013, %v1012
        %v1056 = vpack.c.b16 %v1014, %v1014
        %v1057 = vpack.c.b16 %v1016, %v1015
        %v1058 = vpack.c.b16 %v1017, %v1017
        %v1059 = vpack.c.b16 %v1019, %v1018
        %v1060 = vpack.c.b16 %v1020, %v1020
        %v1061 = vpack.c.b16 %v1022, %v1021
        %v1062 = vpack.c.b16 %v1023, %v1023
        %v1063 = vpack.c.b16 %v1025, %v1024
        %v1064 = vpack.c.b16 %v1026, %v1026
        %v1065 = vpack.c.b16 %v1028, %v1027
        %v1066 = vpack.c.b16 %v1029, %v1029
        %v1067 = vpack.c.b16 %v1031, %v1030
        %v1068 = vpack.c.b16 %v1032, %v1032
        %v1069 = vpack.c.b16 %v1034, %v1033
        %v1070 = vpack.c.b16 %v1035, %v1035
        %v1071 = vpack.c.b16 %v1037, %v1036
        %v1072 = vpack.c.b16 %v1038, %v1038
        %v1073 = vpack.c.b16 %v1040, %v1039
        %v1074 = vpack.c.b16 %v1041, %v1041
        %v1075 = vpack.c.b16 %v1043, %v1042
        %v1076 = vpack.c.b16 %v1044, %v1044
        %vm1077 = vcmask 1046528
        %v1078 = vrot.slane %v1045, 1
        %v1079 = vrot.slane %v1046, 1
        %v1080 = vsel %vm1077, %v1078, %v1079
        %v1081 = vrot.slane %v1047, 1
        %v1082 = vrot.slane %v1048, 1
        %v1083 = vsel %vm1077, %v1081, %v1082
        %v1084 = vrot.slane %v1049, 1
        %v1085 = vrot.slane %v1050, 1
        %v1086 = vsel %vm1077, %v1084, %v1085
        %v1087 = vrot.slane %v1051, 1
        %v1088 = vrot.slane %v1052, 1
        %v1089 = vsel %vm1077, %v1087, %v1088
        %v1090 = vrot.slane %v1053, 1
        %v1091 = vrot.slane %v1054, 1
        %v1092 = vsel %vm1077, %v1090, %v1091
        %v1093 = vrot.slane %v1055, 1
        %v1094 = vrot.slane %v1056, 1
        %v1095 = vsel %vm1077, %v1093, %v1094
        %v1096 = vrot.slane %v1057, 1
        %v1097 = vrot.slane %v1058, 1
        %v1098 = vsel %vm1077, %v1096, %v1097
        %v1099 = vrot.slane %v1059, 1
        %v1100 = vrot.slane %v1060, 1
        %v1101 = vsel %vm1077, %v1099, %v1100
        %v1102 = vrot.slane %v1061, 1
        %v1103 = vrot.slane %v1062, 1
        %v1104 = vsel %vm1077, %v1102, %v1103
        %v1105 = vrot.slane %v1063, 1
        %v1106 = vrot.slane %v1064, 1
        %v1107 = vsel %vm1077, %v1105, %v1106
        %v1108 = vrot.slane %v1065, 1
        %v1109 = vrot.slane %v1066, 1
        %v1110 = vsel %vm1077, %v1108, %v1109
        %v1111 = vrot.slane %v1067, 1
        %v1112 = vrot.slane %v1068, 1
        %v1113 = vsel %vm1077, %v1111, %v1112
        %v1114 = vrot.slane %v1069, 1
        %v1115 = vrot.slane %v1070, 1
        %v1116 = vsel %vm1077, %v1114, %v1115
        %v1117 = vrot.slane %v1071, 1
        %v1118 = vrot.slane %v1072, 1
        %v1119 = vsel %vm1077, %v1117, %v1118
        %v1120 = vrot.slane %v1073, 1
        %v1121 = vrot.slane %v1074, 1
        %v1122 = vsel %vm1077, %v1120, %v1121
        %v1123 = vrot.slane %v1075, 1
        %v1124 = vrot.slane %v1076, 1
        %v1125 = vsel %vm1077, %v1123, %v1124
        %1126 = vrot.lane.b32.xlu0 %v1080, 12
        %v1127 = vpop.permute.xlu0 %1126
        %1128 = vrot.lane.b32.xlu0 %v1083, 12
        %v1129 = vpop.permute.xlu0 %1128
        %1130 = vrot.lane.b32.xlu0 %v1086, 12
        %v1131 = vpop.permute.xlu0 %1130
        %1132 = vrot.lane.b32.xlu0 %v1089, 12
        %v1133 = vpop.permute.xlu0 %1132
        %1134 = vrot.lane.b32.xlu0 %v1092, 12
        %v1135 = vpop.permute.xlu0 %1134
        %1136 = vrot.lane.b32.xlu0 %v1095, 12
        %v1137 = vpop.permute.xlu0 %1136
        %1138 = vrot.lane.b32.xlu0 %v1098, 12
        %v1139 = vpop.permute.xlu0 %1138
        %1140 = vrot.lane.b32.xlu0 %v1101, 12
        %v1141 = vpop.permute.xlu0 %1140
        %1142 = vrot.lane.b32.xlu0 %v1104, 12
        %v1143 = vpop.permute.xlu0 %1142
        %1144 = vrot.lane.b32.xlu0 %v1107, 12
        %v1145 = vpop.permute.xlu0 %1144
        %1146 = vrot.lane.b32.xlu0 %v1110, 12
        %v1147 = vpop.permute.xlu0 %1146
        %1148 = vrot.lane.b32.xlu0 %v1113, 12
        %v1149 = vpop.permute.xlu0 %1148
        %1150 = vrot.lane.b32.xlu0 %v1116, 12
        %v1151 = vpop.permute.xlu0 %1150
        %1152 = vrot.lane.b32.xlu0 %v1119, 12
        %v1153 = vpop.permute.xlu0 %1152
        %1154 = vrot.lane.b32.xlu0 %v1122, 12
        %v1155 = vpop.permute.xlu0 %1154
        %1156 = vrot.lane.b32.xlu0 %v1125, 12
        %v1157 = vpop.permute.xlu0 %1156
        %vm1174 = vcmask 146528
        %1175 = vst.msk [vmem:[#allocation2] sm:$0xff] %vm1174, %v1127
        %1176 = vst.msk [vmem:[#allocation2 + $0x8] sm:$0xff] %vm1174, %v1129
        %1177 = vst.msk [vmem:[#allocation2 + $0x10] sm:$0xff] %vm1174, %v1131
        %1178 = vst.msk [vmem:[#allocation2 + $0x18] sm:$0xff] %vm1174, %v1133
        %1179 = vst.msk [vmem:[#allocation2 + $0x20] sm:$0xff] %vm1174, %v1135
        %1180 = vst.msk [vmem:[#allocation2 + $0x28] sm:$0xff] %vm1174, %v1137
        %1181 = vst.msk [vmem:[#allocation2 + $0x30] sm:$0xff] %vm1174, %v1139
        %1182 = vst.msk [vmem:[#allocation2 + $0x38] sm:$0xff] %vm1174, %v1141
        %1183 = vst.msk [vmem:[#allocation2 + $0x40] sm:$0xff] %vm1174, %v1143
        %1184 = vst.msk [vmem:[#allocation2 + $0x48] sm:$0xff] %vm1174, %v1145
        %1185 = vst.msk [vmem:[#allocation2 + $0x50] sm:$0xff] %vm1174, %v1147
        %1186 = vst.msk [vmem:[#allocation2 + $0x58] sm:$0xff] %vm1174, %v1149
        %1187 = vst.msk [vmem:[#allocation2 + $0x60] sm:$0xff] %vm1174, %v1151
        %1188 = vst.msk [vmem:[#allocation2 + $0x68] sm:$0xff] %vm1174, %v1153
        %1189 = vst.msk [vmem:[#allocation2 + $0x70] sm:$0xff] %vm1174, %v1155
        %1190 = vst.msk [vmem:[#allocation2 + $0x78] sm:$0xff] %vm1174, %v1157
        %s1191 = scalar_lea.vmem %s290, 12
        %v1192 = vld [vmem:[%s1191] sm:$0xf]
        %v1193 = vld [vmem:[%s1191 + $0x4] sm:$0xf]
        %v1194 = vld [vmem:[%s1191 + $0xc] sm:$0xf]
        %v1195 = vld [vmem:[%s1191 + $0x10] sm:$0xf]
        %v1196 = vld [vmem:[%s1191 + $0x18] sm:$0xf]
        %v1197 = vld [vmem:[%s1191 + $0x1c] sm:$0xf]
        %v1198 = vld [vmem:[%s1191 + $0x24] sm:$0xf]
        %v1199 = vld [vmem:[%s1191 + $0x28] sm:$0xf]
        %v1200 = vld [vmem:[%s1191 + $0x30] sm:$0xf]
        %v1201 = vld [vmem:[%s1191 + $0x34] sm:$0xf]
        %v1202 = vld [vmem:[%s1191 + $0x3c] sm:$0xf]
        %v1203 = vld [vmem:[%s1191 + $0x40] sm:$0xf]
        %v1204 = vld [vmem:[%s1191 + $0x48] sm:$0xf]
        %v1205 = vld [vmem:[%s1191 + $0x4c] sm:$0xf]
        %v1206 = vld [vmem:[%s1191 + $0x54] sm:$0xf]
        %v1207 = vld [vmem:[%s1191 + $0x58] sm:$0xf]
        %v1208 = vld [vmem:[%s1191 + $0x60] sm:$0xf]
        %v1209 = vld [vmem:[%s1191 + $0x64] sm:$0xf]
        %v1210 = vld [vmem:[%s1191 + $0x6c] sm:$0xf]
        %v1211 = vld [vmem:[%s1191 + $0x70] sm:$0xf]
        %v1212 = vld [vmem:[%s1191 + $0x78] sm:$0xf]
        %v1213 = vld [vmem:[%s1191 + $0x7c] sm:$0xf]
        %v1214 = vld [vmem:[%s1191 + $0x84] sm:$0xf]
        %v1215 = vld [vmem:[%s1191 + $0x88] sm:$0xf]
        %v1216 = vld [vmem:[%s1191 + $0x90] sm:$0xf]
        %v1217 = vld [vmem:[%s1191 + $0x94] sm:$0xf]
        %v1218 = vld [vmem:[%s1191 + $0x9c] sm:$0xf]
        %v1219 = vld [vmem:[%s1191 + $0xa0] sm:$0xf]
        %v1220 = vld [vmem:[%s1191 + $0xa8] sm:$0xf]
        %v1221 = vld [vmem:[%s1191 + $0xac] sm:$0xf]
        %v1252 = vunpack.c.l.b16 %v1192
        %v1253 = vunpack.c.l.b16 %v1193
        %v1254 = vunpack.c.l.b16 %v1194
        %v1255 = vunpack.c.l.b16 %v1195
        %v1256 = vunpack.c.l.b16 %v1196
        %v1257 = vunpack.c.l.b16 %v1197
        %v1258 = vunpack.c.l.b16 %v1198
        %v1259 = vunpack.c.l.b16 %v1199
        %v1260 = vunpack.c.l.b16 %v1200
        %v1261 = vunpack.c.l.b16 %v1201
        %v1262 = vunpack.c.l.b16 %v1202
        %v1263 = vunpack.c.l.b16 %v1203
        %v1264 = vunpack.c.l.b16 %v1204
        %v1265 = vunpack.c.l.b16 %v1205
        %v1266 = vunpack.c.l.b16 %v1206
        %v1267 = vunpack.c.l.b16 %v1207
        %v1268 = vunpack.c.l.b16 %v1208
        %v1269 = vunpack.c.l.b16 %v1209
        %v1270 = vunpack.c.l.b16 %v1210
        %v1271 = vunpack.c.l.b16 %v1211
        %v1272 = vunpack.c.l.b16 %v1212
        %v1273 = vunpack.c.l.b16 %v1213
        %v1274 = vunpack.c.l.b16 %v1214
        %v1275 = vunpack.c.l.b16 %v1215
        %v1276 = vunpack.c.l.b16 %v1216
        %v1277 = vunpack.c.l.b16 %v1217
        %v1278 = vunpack.c.l.b16 %v1218
        %v1279 = vunpack.c.l.b16 %v1219
        %v1280 = vunpack.c.l.b16 %v1220
        %v1281 = vunpack.c.l.b16 %v1221
        %v1282 = vpack.c.b16 %v1253, %v1252
        %v1283 = vpack.c.b16 %v1255, %v1254
        %v1284 = vpack.c.b16 %v1257, %v1256
        %v1285 = vpack.c.b16 %v1259, %v1258
        %v1286 = vpack.c.b16 %v1261, %v1260
        %v1287 = vpack.c.b16 %v1263, %v1262
        %v1288 = vpack.c.b16 %v1265, %v1264
        %v1289 = vpack.c.b16 %v1267, %v1266
        %v1290 = vpack.c.b16 %v1269, %v1268
        %v1291 = vpack.c.b16 %v1271, %v1270
        %v1292 = vpack.c.b16 %v1273, %v1272
        %v1293 = vpack.c.b16 %v1275, %v1274
        %v1294 = vpack.c.b16 %v1277, %v1276
        %v1295 = vpack.c.b16 %v1279, %v1278
        %v1296 = vpack.c.b16 %v1281, %v1280
        %1297 = vrot.lane.b32.xlu0 %v1282, 18
        %v1298 = vpop.permute.xlu0 %1297
        %1299 = vrot.lane.b32.xlu0 %v1283, 18
        %v1300 = vpop.permute.xlu0 %1299
        %1301 = vrot.lane.b32.xlu0 %v1284, 18
        %v1302 = vpop.permute.xlu0 %1301
        %1303 = vrot.lane.b32.xlu0 %v1285, 18
        %v1304 = vpop.permute.xlu0 %1303
        %1305 = vrot.lane.b32.xlu0 %v1286, 18
        %v1306 = vpop.permute.xlu0 %1305
        %1307 = vrot.lane.b32.xlu0 %v1287, 18
        %v1308 = vpop.permute.xlu0 %1307
        %1309 = vrot.lane.b32.xlu0 %v1288, 18
        %v1310 = vpop.permute.xlu0 %1309
        %1311 = vrot.lane.b32.xlu0 %v1289, 18
        %v1312 = vpop.permute.xlu0 %1311
        %1313 = vrot.lane.b32.xlu0 %v1290, 18
        %v1314 = vpop.permute.xlu0 %1313
        %1315 = vrot.lane.b32.xlu0 %v1291, 18
        %v1316 = vpop.permute.xlu0 %1315
        %1317 = vrot.lane.b32.xlu0 %v1292, 18
        %v1318 = vpop.permute.xlu0 %1317
        %1319 = vrot.lane.b32.xlu0 %v1293, 18
        %v1320 = vpop.permute.xlu0 %1319
        %1321 = vrot.lane.b32.xlu0 %v1294, 18
        %v1322 = vpop.permute.xlu0 %1321
        %1323 = vrot.lane.b32.xlu0 %v1295, 18
        %v1324 = vpop.permute.xlu0 %1323
        %1325 = vrot.lane.b32.xlu0 %v1296, 18
        %v1326 = vpop.permute.xlu0 %1325
        %vm1342 = vcmask 195728
        %1343 = vst.msk [vmem:[#allocation2] sm:$0xff] %vm1342, %v1298
        %1344 = vst.msk [vmem:[#allocation2 + $0x8] sm:$0xff] %vm1342, %v1300
        %1345 = vst.msk [vmem:[#allocation2 + $0x10] sm:$0xff] %vm1342, %v1302
        %1346 = vst.msk [vmem:[#allocation2 + $0x18] sm:$0xff] %vm1342, %v1304
        %1347 = vst.msk [vmem:[#allocation2 + $0x20] sm:$0xff] %vm1342, %v1306
        %1348 = vst.msk [vmem:[#allocation2 + $0x28] sm:$0xff] %vm1342, %v1308
        %1349 = vst.msk [vmem:[#allocation2 + $0x30] sm:$0xff] %vm1342, %v1310
        %1350 = vst.msk [vmem:[#allocation2 + $0x38] sm:$0xff] %vm1342, %v1312
        %1351 = vst.msk [vmem:[#allocation2 + $0x40] sm:$0xff] %vm1342, %v1314
        %1352 = vst.msk [vmem:[#allocation2 + $0x48] sm:$0xff] %vm1342, %v1316
        %1353 = vst.msk [vmem:[#allocation2 + $0x50] sm:$0xff] %vm1342, %v1318
        %1354 = vst.msk [vmem:[#allocation2 + $0x58] sm:$0xff] %vm1342, %v1320
        %1355 = vst.msk [vmem:[#allocation2 + $0x60] sm:$0xff] %vm1342, %v1322
        %1356 = vst.msk [vmem:[#allocation2 + $0x68] sm:$0xff] %vm1342, %v1324
        %1357 = vst.msk [vmem:[#allocation2 + $0x70] sm:$0xff] %vm1342, %v1326
        %v1358 = vld [vmem:[%s308] sm:$0xf]
        %v1359 = vld [vmem:[%s308 + $0x4] sm:$0xf]
        %v1362 = vunpack.c.l.b16 %v1358
        %v1363 = vunpack.c.l.b16 %v1359
        %v1364 = vpack.c.b16 %v1363, %v1362
        %1365 = vrot.lane.b32.xlu0 %v1364, 18
        %v1366 = vpop.permute.xlu0 %1365
        %s1368 = scalar_lea.vmem [#allocation2], 120
        %1369 = vst.msk [vmem:[%s1368] sm:$0xff] %vm1342, %v1366
        %v1370 = vld [vmem:[%s1191] sm:$0xf]
        %v1371 = vld [vmem:[%s1191 + $0x4] sm:$0xf]
        %v1372 = vld [vmem:[%s1191 + $0x8] sm:$0x1]
        %v1373 = vld [vmem:[%s1191 + $0xc] sm:$0xf]
        %v1374 = vld [vmem:[%s1191 + $0x10] sm:$0xf]
        %v1375 = vld [vmem:[%s1191 + $0x14] sm:$0x1]
        %v1376 = vld [vmem:[%s1191 + $0x18] sm:$0xf]
        %v1377 = vld [vmem:[%s1191 + $0x1c] sm:$0xf]
        %v1378 = vld [vmem:[%s1191 + $0x20] sm:$0x1]
        %v1379 = vld [vmem:[%s1191 + $0x24] sm:$0xf]
        %v1380 = vld [vmem:[%s1191 + $0x28] sm:$0xf]
        %v1381 = vld [vmem:[%s1191 + $0x2c] sm:$0x1]
        %v1382 = vld [vmem:[%s1191 + $0x30] sm:$0xf]
        %v1383 = vld [vmem:[%s1191 + $0x34] sm:$0xf]
        %v1384 = vld [vmem:[%s1191 + $0x38] sm:$0x1]
        %v1385 = vld [vmem:[%s1191 + $0x3c] sm:$0xf]
        %v1386 = vld [vmem:[%s1191 + $0x40] sm:$0xf]
        %v1387 = vld [vmem:[%s1191 + $0x44] sm:$0x1]
        %v1388 = vld [vmem:[%s1191 + $0x48] sm:$0xf]
        %v1389 = vld [vmem:[%s1191 + $0x4c] sm:$0xf]
        %v1390 = vld [vmem:[%s1191 + $0x50] sm:$0x1]
        %v1391 = vld [vmem:[%s1191 + $0x54] sm:$0xf]
        %v1392 = vld [vmem:[%s1191 + $0x58] sm:$0xf]
        %v1393 = vld [vmem:[%s1191 + $0x5c] sm:$0x1]
        %v1394 = vld [vmem:[%s1191 + $0x60] sm:$0xf]
        %v1395 = vld [vmem:[%s1191 + $0x64] sm:$0xf]
        %v1396 = vld [vmem:[%s1191 + $0x68] sm:$0x1]
        %v1397 = vld [vmem:[%s1191 + $0x6c] sm:$0xf]
        %v1398 = vld [vmem:[%s1191 + $0x70] sm:$0xf]
        %v1399 = vld [vmem:[%s1191 + $0x74] sm:$0x1]
        %v1400 = vld [vmem:[%s1191 + $0x78] sm:$0xf]
        %v1401 = vld [vmem:[%s1191 + $0x7c] sm:$0xf]
        %v1402 = vld [vmem:[%s1191 + $0x80] sm:$0x1]
        %v1403 = vld [vmem:[%s1191 + $0x84] sm:$0xf]
        %v1404 = vld [vmem:[%s1191 + $0x88] sm:$0xf]
        %v1405 = vld [vmem:[%s1191 + $0x8c] sm:$0x1]
        %v1406 = vld [vmem:[%s1191 + $0x90] sm:$0xf]
        %v1407 = vld [vmem:[%s1191 + $0x94] sm:$0xf]
        %v1408 = vld [vmem:[%s1191 + $0x98] sm:$0x1]
        %v1409 = vld [vmem:[%s1191 + $0x9c] sm:$0xf]
        %v1410 = vld [vmem:[%s1191 + $0xa0] sm:$0xf]
        %v1411 = vld [vmem:[%s1191 + $0xa4] sm:$0x1]
        %v1412 = vld [vmem:[%s1191 + $0xa8] sm:$0xf]
        %v1413 = vld [vmem:[%s1191 + $0xac] sm:$0xf]
        %v1414 = vld [vmem:[%s1191 + $0xb0] sm:$0x1]
        %v1460 = vunpack.c.l.b16 %v1370
        %v1461 = vunpack.c.l.b16 %v1371
        %v1462 = vunpack.c.l.b16 %v1372
        %v1463 = vunpack.c.l.b16 %v1373
        %v1464 = vunpack.c.l.b16 %v1374
        %v1465 = vunpack.c.l.b16 %v1375
        %v1466 = vunpack.c.l.b16 %v1376
        %v1467 = vunpack.c.l.b16 %v1377
        %v1468 = vunpack.c.l.b16 %v1378
        %v1469 = vunpack.c.l.b16 %v1379
        %v1470 = vunpack.c.l.b16 %v1380
        %v1471 = vunpack.c.l.b16 %v1381
        %v1472 = vunpack.c.l.b16 %v1382
        %v1473 = vunpack.c.l.b16 %v1383
        %v1474 = vunpack.c.l.b16 %v1384
        %v1475 = vunpack.c.l.b16 %v1385
        %v1476 = vunpack.c.l.b16 %v1386
        %v1477 = vunpack.c.l.b16 %v1387
        %v1478 = vunpack.c.l.b16 %v1388
        %v1479 = vunpack.c.l.b16 %v1389
        %v1480 = vunpack.c.l.b16 %v1390
        %v1481 = vunpack.c.l.b16 %v1391
        %v1482 = vunpack.c.l.b16 %v1392
        %v1483 = vunpack.c.l.b16 %v1393
        %v1484 = vunpack.c.l.b16 %v1394
        %v1485 = vunpack.c.l.b16 %v1395
        %v1486 = vunpack.c.l.b16 %v1396
        %v1487 = vunpack.c.l.b16 %v1397
        %v1488 = vunpack.c.l.b16 %v1398
        %v1489 = vunpack.c.l.b16 %v1399
        %v1490 = vunpack.c.l.b16 %v1400
        %v1491 = vunpack.c.l.b16 %v1401
        %v1492 = vunpack.c.l.b16 %v1402
        %v1493 = vunpack.c.l.b16 %v1403
        %v1494 = vunpack.c.l.b16 %v1404
        %v1495 = vunpack.c.l.b16 %v1405
        %v1496 = vunpack.c.l.b16 %v1406
        %v1497 = vunpack.c.l.b16 %v1407
        %v1498 = vunpack.c.l.b16 %v1408
        %v1499 = vunpack.c.l.b16 %v1409
        %v1500 = vunpack.c.l.b16 %v1410
        %v1501 = vunpack.c.l.b16 %v1411
        %v1502 = vunpack.c.l.b16 %v1412
        %v1503 = vunpack.c.l.b16 %v1413
        %v1504 = vunpack.c.l.b16 %v1414
        %v1505 = vpack.c.b16 %v1461, %v1460
        %v1506 = vpack.c.b16 %v1462, %v1462
        %v1507 = vpack.c.b16 %v1464, %v1463
        %v1508 = vpack.c.b16 %v1465, %v1465
        %v1509 = vpack.c.b16 %v1467, %v1466
        %v1510 = vpack.c.b16 %v1468, %v1468
        %v1511 = vpack.c.b16 %v1470, %v1469
        %v1512 = vpack.c.b16 %v1471, %v1471
        %v1513 = vpack.c.b16 %v1473, %v1472
        %v1514 = vpack.c.b16 %v1474, %v1474
        %v1515 = vpack.c.b16 %v1476, %v1475
        %v1516 = vpack.c.b16 %v1477, %v1477
        %v1517 = vpack.c.b16 %v1479, %v1478
        %v1518 = vpack.c.b16 %v1480, %v1480
        %v1519 = vpack.c.b16 %v1482, %v1481
        %v1520 = vpack.c.b16 %v1483, %v1483
        %v1521 = vpack.c.b16 %v1485, %v1484
        %v1522 = vpack.c.b16 %v1486, %v1486
        %v1523 = vpack.c.b16 %v1488, %v1487
        %v1524 = vpack.c.b16 %v1489, %v1489
        %v1525 = vpack.c.b16 %v1491, %v1490
        %v1526 = vpack.c.b16 %v1492, %v1492
        %v1527 = vpack.c.b16 %v1494, %v1493
        %v1528 = vpack.c.b16 %v1495, %v1495
        %v1529 = vpack.c.b16 %v1497, %v1496
        %v1530 = vpack.c.b16 %v1498, %v1498
        %v1531 = vpack.c.b16 %v1500, %v1499
        %v1532 = vpack.c.b16 %v1501, %v1501
        %v1533 = vpack.c.b16 %v1503, %v1502
        %v1534 = vpack.c.b16 %v1504, %v1504
        %v1536 = vshrl.u32 %v1505, 16
        %v1538 = vshll.u32 %v1505, 16
        %v1540 = vrot.slane %v1538, 1
        %v1541 = vor.u32 %v1536, %v1540
        %v1543 = vshll.u32 %v1506, 16
        %v1545 = vrot.slane %v1543, 1
        %v1546 = vsel %vm643, %v1541, %v1545
        %v1548 = vshrl.u32 %v1507, 16
        %v1550 = vshll.u32 %v1507, 16
        %v1552 = vrot.slane %v1550, 1
        %v1553 = vor.u32 %v1548, %v1552
        %v1555 = vshll.u32 %v1508, 16
        %v1557 = vrot.slane %v1555, 1
        %v1558 = vsel %vm643, %v1553, %v1557
        %v1560 = vshrl.u32 %v1509, 16
        %v1562 = vshll.u32 %v1509, 16
        %v1564 = vrot.slane %v1562, 1
        %v1565 = vor.u32 %v1560, %v1564
        %v1567 = vshll.u32 %v1510, 16
        %v1569 = vrot.slane %v1567, 1
        %v1570 = vsel %vm643, %v1565, %v1569
        %v1572 = vshrl.u32 %v1511, 16
        %v1574 = vshll.u32 %v1511, 16
        %v1576 = vrot.slane %v1574, 1
        %v1577 = vor.u32 %v1572, %v1576
        %v1579 = vshll.u32 %v1512, 16
        %v1581 = vrot.slane %v1579, 1
        %v1582 = vsel %vm643, %v1577, %v1581
        %v1584 = vshrl.u32 %v1513, 16
        %v1586 = vshll.u32 %v1513, 16
        %v1588 = vrot.slane %v1586, 1
        %v1589 = vor.u32 %v1584, %v1588
        %v1591 = vshll.u32 %v1514, 16
        %v1593 = vrot.slane %v1591, 1
        %v1594 = vsel %vm643, %v1589, %v1593
        %v1596 = vshrl.u32 %v1515, 16
        %v1598 = vshll.u32 %v1515, 16
        %v1600 = vrot.slane %v1598, 1
        %v1601 = vor.u32 %v1596, %v1600
        %v1603 = vshll.u32 %v1516, 16
        %v1605 = vrot.slane %v1603, 1
        %v1606 = vsel %vm643, %v1601, %v1605
        %v1608 = vshrl.u32 %v1517, 16
        %v1610 = vshll.u32 %v1517, 16
        %v1612 = vrot.slane %v1610, 1
        %v1613 = vor.u32 %v1608, %v1612
        %v1615 = vshll.u32 %v1518, 16
        %v1617 = vrot.slane %v1615, 1
        %v1618 = vsel %vm643, %v1613, %v1617
        %v1620 = vshrl.u32 %v1519, 16
        %v1622 = vshll.u32 %v1519, 16
        %v1624 = vrot.slane %v1622, 1
        %v1625 = vor.u32 %v1620, %v1624
        %v1627 = vshll.u32 %v1520, 16
        %v1629 = vrot.slane %v1627, 1
        %v1630 = vsel %vm643, %v1625, %v1629
        %v1632 = vshrl.u32 %v1521, 16
        %v1634 = vshll.u32 %v1521, 16
        %v1636 = vrot.slane %v1634, 1
        %v1637 = vor.u32 %v1632, %v1636
        %v1639 = vshll.u32 %v1522, 16
        %v1641 = vrot.slane %v1639, 1
        %v1642 = vsel %vm643, %v1637, %v1641
        %v1644 = vshrl.u32 %v1523, 16
        %v1646 = vshll.u32 %v1523, 16
        %v1648 = vrot.slane %v1646, 1
        %v1649 = vor.u32 %v1644, %v1648
        %v1651 = vshll.u32 %v1524, 16
        %v1653 = vrot.slane %v1651, 1
        %v1654 = vsel %vm643, %v1649, %v1653
        %v1656 = vshrl.u32 %v1525, 16
        %v1658 = vshll.u32 %v1525, 16
        %v1660 = vrot.slane %v1658, 1
        %v1661 = vor.u32 %v1656, %v1660
        %v1663 = vshll.u32 %v1526, 16
        %v1665 = vrot.slane %v1663, 1
        %v1666 = vsel %vm643, %v1661, %v1665
        %v1668 = vshrl.u32 %v1527, 16
        %v1670 = vshll.u32 %v1527, 16
        %v1672 = vrot.slane %v1670, 1
        %v1673 = vor.u32 %v1668, %v1672
        %v1675 = vshll.u32 %v1528, 16
        %v1677 = vrot.slane %v1675, 1
        %v1678 = vsel %vm643, %v1673, %v1677
        %v1680 = vshrl.u32 %v1529, 16
        %v1682 = vshll.u32 %v1529, 16
        %v1684 = vrot.slane %v1682, 1
        %v1685 = vor.u32 %v1680, %v1684
        %v1687 = vshll.u32 %v1530, 16
        %v1689 = vrot.slane %v1687, 1
        %v1690 = vsel %vm643, %v1685, %v1689
        %v1692 = vshrl.u32 %v1531, 16
        %v1694 = vshll.u32 %v1531, 16
        %v1696 = vrot.slane %v1694, 1
        %v1697 = vor.u32 %v1692, %v1696
        %v1699 = vshll.u32 %v1532, 16
        %v1701 = vrot.slane %v1699, 1
        %v1702 = vsel %vm643, %v1697, %v1701
        %v1704 = vshrl.u32 %v1533, 16
        %v1706 = vshll.u32 %v1533, 16
        %v1708 = vrot.slane %v1706, 1
        %v1709 = vor.u32 %v1704, %v1708
        %v1711 = vshll.u32 %v1534, 16
        %v1713 = vrot.slane %v1711, 1
        %v1714 = vsel %vm643, %v1709, %v1713
        %1715 = vrot.lane.b32.xlu0 %v1546, 24
        %v1716 = vpop.permute.xlu0 %1715
        %1717 = vrot.lane.b32.xlu0 %v1558, 24
        %v1718 = vpop.permute.xlu0 %1717
        %1719 = vrot.lane.b32.xlu0 %v1570, 24
        %v1720 = vpop.permute.xlu0 %1719
        %1721 = vrot.lane.b32.xlu0 %v1582, 24
        %v1722 = vpop.permute.xlu0 %1721
        %1723 = vrot.lane.b32.xlu0 %v1594, 24
        %v1724 = vpop.permute.xlu0 %1723
        %1725 = vrot.lane.b32.xlu0 %v1606, 24
        %v1726 = vpop.permute.xlu0 %1725
        %1727 = vrot.lane.b32.xlu0 %v1618, 24
        %v1728 = vpop.permute.xlu0 %1727
        %1729 = vrot.lane.b32.xlu0 %v1630, 24
        %v1730 = vpop.permute.xlu0 %1729
        %1731 = vrot.lane.b32.xlu0 %v1642, 24
        %v1732 = vpop.permute.xlu0 %1731
        %1733 = vrot.lane.b32.xlu0 %v1654, 24
        %v1734 = vpop.permute.xlu0 %1733
        %1735 = vrot.lane.b32.xlu0 %v1666, 24
        %v1736 = vpop.permute.xlu0 %1735
        %1737 = vrot.lane.b32.xlu0 %v1678, 24
        %v1738 = vpop.permute.xlu0 %1737
        %1739 = vrot.lane.b32.xlu0 %v1690, 24
        %v1740 = vpop.permute.xlu0 %1739
        %1741 = vrot.lane.b32.xlu0 %v1702, 24
        %v1742 = vpop.permute.xlu0 %1741
        %1743 = vrot.lane.b32.xlu0 %v1714, 24
        %v1744 = vpop.permute.xlu0 %1743
        %vm1760 = vcmask 244928
        %1761 = vst.msk [vmem:[#allocation2] sm:$0xff] %vm1760, %v1716
        %1762 = vst.msk [vmem:[#allocation2 + $0x8] sm:$0xff] %vm1760, %v1718
        %1763 = vst.msk [vmem:[#allocation2 + $0x10] sm:$0xff] %vm1760, %v1720
        %1764 = vst.msk [vmem:[#allocation2 + $0x18] sm:$0xff] %vm1760, %v1722
        %1765 = vst.msk [vmem:[#allocation2 + $0x20] sm:$0xff] %vm1760, %v1724
        %1766 = vst.msk [vmem:[#allocation2 + $0x28] sm:$0xff] %vm1760, %v1726
        %1767 = vst.msk [vmem:[#allocation2 + $0x30] sm:$0xff] %vm1760, %v1728
        %1768 = vst.msk [vmem:[#allocation2 + $0x38] sm:$0xff] %vm1760, %v1730
        %1769 = vst.msk [vmem:[#allocation2 + $0x40] sm:$0xff] %vm1760, %v1732
        %1770 = vst.msk [vmem:[#allocation2 + $0x48] sm:$0xff] %vm1760, %v1734
        %1771 = vst.msk [vmem:[#allocation2 + $0x50] sm:$0xff] %vm1760, %v1736
        %1772 = vst.msk [vmem:[#allocation2 + $0x58] sm:$0xff] %vm1760, %v1738
        %1773 = vst.msk [vmem:[#allocation2 + $0x60] sm:$0xff] %vm1760, %v1740
        %1774 = vst.msk [vmem:[#allocation2 + $0x68] sm:$0xff] %vm1760, %v1742
        %1775 = vst.msk [vmem:[#allocation2 + $0x70] sm:$0xff] %vm1760, %v1744
        %v1776 = vld [vmem:[%s308] sm:$0xf]
        %v1777 = vld [vmem:[%s308 + $0x4] sm:$0xf]
        %v1778 = vld [vmem:[%s308 + $0x8] sm:$0x1]
        %v1782 = vunpack.c.l.b16 %v1776
        %v1783 = vunpack.c.l.b16 %v1777
        %v1784 = vunpack.c.l.b16 %v1778
        %v1785 = vpack.c.b16 %v1783, %v1782
        %v1786 = vpack.c.b16 %v1784, %v1784
        %v1788 = vshrl.u32 %v1785, 16
        %v1790 = vshll.u32 %v1785, 16
        %v1792 = vrot.slane %v1790, 1
        %v1793 = vor.u32 %v1788, %v1792
        %v1795 = vshll.u32 %v1786, 16
        %v1797 = vrot.slane %v1795, 1
        %v1798 = vsel %vm643, %v1793, %v1797
        %1799 = vrot.lane.b32.xlu0 %v1798, 24
        %v1800 = vpop.permute.xlu0 %1799
        %1802 = vst.msk [vmem:[%s1368] sm:$0xff] %vm1760, %v1800
        %v1803 = vld [vmem:[%s1191] sm:$0xe]
        %v1804 = vld [vmem:[%s1191 + $0x4] sm:$0xf]
        %v1805 = vld [vmem:[%s1191 + $0x8] sm:$0x1]
        %v1806 = vld [vmem:[%s1191 + $0xc] sm:$0xe]
        %v1807 = vld [vmem:[%s1191 + $0x10] sm:$0xf]
        %v1808 = vld [vmem:[%s1191 + $0x14] sm:$0x1]
        %v1809 = vld [vmem:[%s1191 + $0x18] sm:$0xe]
        %v1810 = vld [vmem:[%s1191 + $0x1c] sm:$0xf]
        %v1811 = vld [vmem:[%s1191 + $0x20] sm:$0x1]
        %v1812 = vld [vmem:[%s1191 + $0x24] sm:$0xe]
        %v1813 = vld [vmem:[%s1191 + $0x28] sm:$0xf]
        %v1814 = vld [vmem:[%s1191 + $0x2c] sm:$0x1]
        %v1815 = vld [vmem:[%s1191 + $0x30] sm:$0xe]
        %v1816 = vld [vmem:[%s1191 + $0x34] sm:$0xf]
        %v1817 = vld [vmem:[%s1191 + $0x38] sm:$0x1]
        %v1818 = vld [vmem:[%s1191 + $0x3c] sm:$0xe]
        %v1819 = vld [vmem:[%s1191 + $0x40] sm:$0xf]
        %v1820 = vld [vmem:[%s1191 + $0x44] sm:$0x1]
        %v1821 = vld [vmem:[%s1191 + $0x48] sm:$0xe]
        %v1822 = vld [vmem:[%s1191 + $0x4c] sm:$0xf]
        %v1823 = vld [vmem:[%s1191 + $0x50] sm:$0x1]
        %v1824 = vld [vmem:[%s1191 + $0x54] sm:$0xe]
        %v1825 = vld [vmem:[%s1191 + $0x58] sm:$0xf]
        %v1826 = vld [vmem:[%s1191 + $0x5c] sm:$0x1]
        %v1827 = vld [vmem:[%s1191 + $0x60] sm:$0xe]
        %v1828 = vld [vmem:[%s1191 + $0x64] sm:$0xf]
        %v1829 = vld [vmem:[%s1191 + $0x68] sm:$0x1]
        %v1830 = vld [vmem:[%s1191 + $0x6c] sm:$0xe]
        %v1831 = vld [vmem:[%s1191 + $0x70] sm:$0xf]
        %v1832 = vld [vmem:[%s1191 + $0x74] sm:$0x1]
        %v1833 = vld [vmem:[%s1191 + $0x78] sm:$0xe]
        %v1834 = vld [vmem:[%s1191 + $0x7c] sm:$0xf]
        %v1835 = vld [vmem:[%s1191 + $0x80] sm:$0x1]
        %v1836 = vld [vmem:[%s1191 + $0x84] sm:$0xe]
        %v1837 = vld [vmem:[%s1191 + $0x88] sm:$0xf]
        %v1838 = vld [vmem:[%s1191 + $0x8c] sm:$0x1]
        %v1839 = vld [vmem:[%s1191 + $0x90] sm:$0xe]
        %v1840 = vld [vmem:[%s1191 + $0x94] sm:$0xf]
        %v1841 = vld [vmem:[%s1191 + $0x98] sm:$0x1]
        %v1842 = vld [vmem:[%s1191 + $0x9c] sm:$0xe]
        %v1843 = vld [vmem:[%s1191 + $0xa0] sm:$0xf]
        %v1844 = vld [vmem:[%s1191 + $0xa4] sm:$0x1]
        %v1845 = vld [vmem:[%s1191 + $0xa8] sm:$0xe]
        %v1846 = vld [vmem:[%s1191 + $0xac] sm:$0xf]
        %v1847 = vld [vmem:[%s1191 + $0xb0] sm:$0x1]
        %v1893 = vunpack.c.l.b16 %v1803
        %v1894 = vunpack.c.l.b16 %v1804
        %v1895 = vunpack.c.l.b16 %v1805
        %v1896 = vunpack.c.l.b16 %v1806
        %v1897 = vunpack.c.l.b16 %v1807
        %v1898 = vunpack.c.l.b16 %v1808
        %v1899 = vunpack.c.l.b16 %v1809
        %v1900 = vunpack.c.l.b16 %v1810
        %v1901 = vunpack.c.l.b16 %v1811
        %v1902 = vunpack.c.l.b16 %v1812
        %v1903 = vunpack.c.l.b16 %v1813
        %v1904 = vunpack.c.l.b16 %v1814
        %v1905 = vunpack.c.l.b16 %v1815
        %v1906 = vunpack.c.l.b16 %v1816
        %v1907 = vunpack.c.l.b16 %v1817
        %v1908 = vunpack.c.l.b16 %v1818
        %v1909 = vunpack.c.l.b16 %v1819
        %v1910 = vunpack.c.l.b16 %v1820
        %v1911 = vunpack.c.l.b16 %v1821
        %v1912 = vunpack.c.l.b16 %v1822
        %v1913 = vunpack.c.l.b16 %v1823
        %v1914 = vunpack.c.l.b16 %v1824
        %v1915 = vunpack.c.l.b16 %v1825
        %v1916 = vunpack.c.l.b16 %v1826
        %v1917 = vunpack.c.l.b16 %v1827
        %v1918 = vunpack.c.l.b16 %v1828
        %v1919 = vunpack.c.l.b16 %v1829
        %v1920 = vunpack.c.l.b16 %v1830
        %v1921 = vunpack.c.l.b16 %v1831
        %v1922 = vunpack.c.l.b16 %v1832
        %v1923 = vunpack.c.l.b16 %v1833
        %v1924 = vunpack.c.l.b16 %v1834
        %v1925 = vunpack.c.l.b16 %v1835
        %v1926 = vunpack.c.l.b16 %v1836
        %v1927 = vunpack.c.l.b16 %v1837
        %v1928 = vunpack.c.l.b16 %v1838
        %v1929 = vunpack.c.l.b16 %v1839
        %v1930 = vunpack.c.l.b16 %v1840
        %v1931 = vunpack.c.l.b16 %v1841
        %v1932 = vunpack.c.l.b16 %v1842
        %v1933 = vunpack.c.l.b16 %v1843
        %v1934 = vunpack.c.l.b16 %v1844
        %v1935 = vunpack.c.l.b16 %v1845
        %v1936 = vunpack.c.l.b16 %v1846
        %v1937 = vunpack.c.l.b16 %v1847
        %v1938 = vpack.c.b16 %v1894, %v1893
        %v1939 = vpack.c.b16 %v1895, %v1895
        %v1940 = vpack.c.b16 %v1897, %v1896
        %v1941 = vpack.c.b16 %v1898, %v1898
        %v1942 = vpack.c.b16 %v1900, %v1899
        %v1943 = vpack.c.b16 %v1901, %v1901
        %v1944 = vpack.c.b16 %v1903, %v1902
        %v1945 = vpack.c.b16 %v1904, %v1904
        %v1946 = vpack.c.b16 %v1906, %v1905
        %v1947 = vpack.c.b16 %v1907, %v1907
        %v1948 = vpack.c.b16 %v1909, %v1908
        %v1949 = vpack.c.b16 %v1910, %v1910
        %v1950 = vpack.c.b16 %v1912, %v1911
        %v1951 = vpack.c.b16 %v1913, %v1913
        %v1952 = vpack.c.b16 %v1915, %v1914
        %v1953 = vpack.c.b16 %v1916, %v1916
        %v1954 = vpack.c.b16 %v1918, %v1917
        %v1955 = vpack.c.b16 %v1919, %v1919
        %v1956 = vpack.c.b16 %v1921, %v1920
        %v1957 = vpack.c.b16 %v1922, %v1922
        %v1958 = vpack.c.b16 %v1924, %v1923
        %v1959 = vpack.c.b16 %v1925, %v1925
        %v1960 = vpack.c.b16 %v1927, %v1926
        %v1961 = vpack.c.b16 %v1928, %v1928
        %v1962 = vpack.c.b16 %v1930, %v1929
        %v1963 = vpack.c.b16 %v1931, %v1931
        %v1964 = vpack.c.b16 %v1933, %v1932
        %v1965 = vpack.c.b16 %v1934, %v1934
        %v1966 = vpack.c.b16 %v1936, %v1935
        %v1967 = vpack.c.b16 %v1937, %v1937
        %v1968 = vrot.slane %v1938, 1
        %v1969 = vrot.slane %v1939, 1
        %v1970 = vsel %vm1077, %v1968, %v1969
        %v1971 = vrot.slane %v1940, 1
        %v1972 = vrot.slane %v1941, 1
        %v1973 = vsel %vm1077, %v1971, %v1972
        %v1974 = vrot.slane %v1942, 1
        %v1975 = vrot.slane %v1943, 1
        %v1976 = vsel %vm1077, %v1974, %v1975
        %v1977 = vrot.slane %v1944, 1
        %v1978 = vrot.slane %v1945, 1
        %v1979 = vsel %vm1077, %v1977, %v1978
        %v1980 = vrot.slane %v1946, 1
        %v1981 = vrot.slane %v1947, 1
        %v1982 = vsel %vm1077, %v1980, %v1981
        %v1983 = vrot.slane %v1948, 1
        %v1984 = vrot.slane %v1949, 1
        %v1985 = vsel %vm1077, %v1983, %v1984
        %v1986 = vrot.slane %v1950, 1
        %v1987 = vrot.slane %v1951, 1
        %v1988 = vsel %vm1077, %v1986, %v1987
        %v1989 = vrot.slane %v1952, 1
        %v1990 = vrot.slane %v1953, 1
        %v1991 = vsel %vm1077, %v1989, %v1990
        %v1992 = vrot.slane %v1954, 1
        %v1993 = vrot.slane %v1955, 1
        %v1994 = vsel %vm1077, %v1992, %v1993
        %v1995 = vrot.slane %v1956, 1
        %v1996 = vrot.slane %v1957, 1
        %v1997 = vsel %vm1077, %v1995, %v1996
        %v1998 = vrot.slane %v1958, 1
        %v1999 = vrot.slane %v1959, 1
        %v2000 = vsel %vm1077, %v1998, %v1999
        %v2001 = vrot.slane %v1960, 1
        %v2002 = vrot.slane %v1961, 1
        %v2003 = vsel %vm1077, %v2001, %v2002
        %v2004 = vrot.slane %v1962, 1
        %v2005 = vrot.slane %v1963, 1
        %v2006 = vsel %vm1077, %v2004, %v2005
        %v2007 = vrot.slane %v1964, 1
        %v2008 = vrot.slane %v1965, 1
        %v2009 = vsel %vm1077, %v2007, %v2008
        %v2010 = vrot.slane %v1966, 1
        %v2011 = vrot.slane %v1967, 1
        %v2012 = vsel %vm1077, %v2010, %v2011
        %2013 = vrot.lane.b32.xlu0 %v1970, 30
        %v2014 = vpop.permute.xlu0 %2013
        %2015 = vrot.lane.b32.xlu0 %v1973, 30
        %v2016 = vpop.permute.xlu0 %2015
        %2017 = vrot.lane.b32.xlu0 %v1976, 30
        %v2018 = vpop.permute.xlu0 %2017
        %2019 = vrot.lane.b32.xlu0 %v1979, 30
        %v2020 = vpop.permute.xlu0 %2019
        %2021 = vrot.lane.b32.xlu0 %v1982, 30
        %v2022 = vpop.permute.xlu0 %2021
        %2023 = vrot.lane.b32.xlu0 %v1985, 30
        %v2024 = vpop.permute.xlu0 %2023
        %2025 = vrot.lane.b32.xlu0 %v1988, 30
        %v2026 = vpop.permute.xlu0 %2025
        %2027 = vrot.lane.b32.xlu0 %v1991, 30
        %v2028 = vpop.permute.xlu0 %2027
        %2029 = vrot.lane.b32.xlu0 %v1994, 30
        %v2030 = vpop.permute.xlu0 %2029
        %2031 = vrot.lane.b32.xlu0 %v1997, 30
        %v2032 = vpop.permute.xlu0 %2031
        %2033 = vrot.lane.b32.xlu0 %v2000, 30
        %v2034 = vpop.permute.xlu0 %2033
        %2035 = vrot.lane.b32.xlu0 %v2003, 30
        %v2036 = vpop.permute.xlu0 %2035
        %2037 = vrot.lane.b32.xlu0 %v2006, 30
        %v2038 = vpop.permute.xlu0 %2037
        %2039 = vrot.lane.b32.xlu0 %v2009, 30
        %v2040 = vpop.permute.xlu0 %2039
        %2041 = vrot.lane.b32.xlu0 %v2012, 30
        %v2042 = vpop.permute.xlu0 %2041
        %vm2058 = vcmask 294128
        %2059 = vst.msk [vmem:[#allocation2] sm:$0xff] %vm2058, %v2014
        %2060 = vst.msk [vmem:[#allocation2 + $0x8] sm:$0xff] %vm2058, %v2016
        %2061 = vst.msk [vmem:[#allocation2 + $0x10] sm:$0xff] %vm2058, %v2018
        %2062 = vst.msk [vmem:[#allocation2 + $0x18] sm:$0xff] %vm2058, %v2020
        %2063 = vst.msk [vmem:[#allocation2 + $0x20] sm:$0xff] %vm2058, %v2022
        %2064 = vst.msk [vmem:[#allocation2 + $0x28] sm:$0xff] %vm2058, %v2024
        %2065 = vst.msk [vmem:[#allocation2 + $0x30] sm:$0xff] %vm2058, %v2026
        %2066 = vst.msk [vmem:[#allocation2 + $0x38] sm:$0xff] %vm2058, %v2028
        %2067 = vst.msk [vmem:[#allocation2 + $0x40] sm:$0xff] %vm2058, %v2030
        %2068 = vst.msk [vmem:[#allocation2 + $0x48] sm:$0xff] %vm2058, %v2032
        %2069 = vst.msk [vmem:[#allocation2 + $0x50] sm:$0xff] %vm2058, %v2034
        %2070 = vst.msk [vmem:[#allocation2 + $0x58] sm:$0xff] %vm2058, %v2036
        %2071 = vst.msk [vmem:[#allocation2 + $0x60] sm:$0xff] %vm2058, %v2038
        %2072 = vst.msk [vmem:[#allocation2 + $0x68] sm:$0xff] %vm2058, %v2040
        %2073 = vst.msk [vmem:[#allocation2 + $0x70] sm:$0xff] %vm2058, %v2042
        %v2074 = vld [vmem:[%s308] sm:$0xe]
        %v2075 = vld [vmem:[%s308 + $0x4] sm:$0xf]
        %v2076 = vld [vmem:[%s308 + $0x8] sm:$0x1]
        %v2080 = vunpack.c.l.b16 %v2074
        %v2081 = vunpack.c.l.b16 %v2075
        %v2082 = vunpack.c.l.b16 %v2076
        %v2083 = vpack.c.b16 %v2081, %v2080
        %v2084 = vpack.c.b16 %v2082, %v2082
        %v2085 = vrot.slane %v2083, 1
        %v2086 = vrot.slane %v2084, 1
        %v2087 = vsel %vm1077, %v2085, %v2086
        %2088 = vrot.lane.b32.xlu0 %v2087, 30
        %v2089 = vpop.permute.xlu0 %2088
        %2091 = vst.msk [vmem:[%s1368] sm:$0xff] %vm2058, %v2089
        %s2092 = scalar_lea.vmem %s290, 24
        %v2093 = vld [vmem:[%s2092] sm:$0xf]
        %v2094 = vld [vmem:[%s2092 + $0x4] sm:$0xf]
        %v2095 = vld [vmem:[%s2092 + $0xc] sm:$0xf]
        %v2096 = vld [vmem:[%s2092 + $0x10] sm:$0xf]
        %v2097 = vld [vmem:[%s2092 + $0x18] sm:$0xf]
        %v2098 = vld [vmem:[%s2092 + $0x1c] sm:$0xf]
        %v2099 = vld [vmem:[%s2092 + $0x24] sm:$0xf]
        %v2100 = vld [vmem:[%s2092 + $0x28] sm:$0xf]
        %v2101 = vld [vmem:[%s2092 + $0x30] sm:$0xf]
        %v2102 = vld [vmem:[%s2092 + $0x34] sm:$0xf]
        %v2103 = vld [vmem:[%s2092 + $0x3c] sm:$0xf]
        %v2104 = vld [vmem:[%s2092 + $0x40] sm:$0xf]
        %v2105 = vld [vmem:[%s2092 + $0x48] sm:$0xf]
        %v2106 = vld [vmem:[%s2092 + $0x4c] sm:$0xf]
        %v2107 = vld [vmem:[%s2092 + $0x54] sm:$0xf]
        %v2108 = vld [vmem:[%s2092 + $0x58] sm:$0xf]
        %v2109 = vld [vmem:[%s2092 + $0x60] sm:$0xf]
        %v2110 = vld [vmem:[%s2092 + $0x64] sm:$0xf]
        %v2111 = vld [vmem:[%s2092 + $0x6c] sm:$0xf]
        %v2112 = vld [vmem:[%s2092 + $0x70] sm:$0xf]
        %v2113 = vld [vmem:[%s2092 + $0x78] sm:$0xf]
        %v2114 = vld [vmem:[%s2092 + $0x7c] sm:$0xf]
        %v2115 = vld [vmem:[%s2092 + $0x84] sm:$0xf]
        %v2116 = vld [vmem:[%s2092 + $0x88] sm:$0xf]
        %v2117 = vld [vmem:[%s2092 + $0x90] sm:$0xf]
        %v2118 = vld [vmem:[%s2092 + $0x94] sm:$0xf]
        %v2119 = vld [vmem:[%s2092 + $0x9c] sm:$0xf]
        %v2120 = vld [vmem:[%s2092 + $0xa0] sm:$0xf]
        %v2149 = vunpack.c.l.b16 %v2093
        %v2150 = vunpack.c.l.b16 %v2094
        %v2151 = vunpack.c.l.b16 %v2095
        %v2152 = vunpack.c.l.b16 %v2096
        %v2153 = vunpack.c.l.b16 %v2097
        %v2154 = vunpack.c.l.b16 %v2098
        %v2155 = vunpack.c.l.b16 %v2099
        %v2156 = vunpack.c.l.b16 %v2100
        %v2157 = vunpack.c.l.b16 %v2101
        %v2158 = vunpack.c.l.b16 %v2102
        %v2159 = vunpack.c.l.b16 %v2103
        %v2160 = vunpack.c.l.b16 %v2104
        %v2161 = vunpack.c.l.b16 %v2105
        %v2162 = vunpack.c.l.b16 %v2106
        %v2163 = vunpack.c.l.b16 %v2107
        %v2164 = vunpack.c.l.b16 %v2108
        %v2165 = vunpack.c.l.b16 %v2109
        %v2166 = vunpack.c.l.b16 %v2110
        %v2167 = vunpack.c.l.b16 %v2111
        %v2168 = vunpack.c.l.b16 %v2112
        %v2169 = vunpack.c.l.b16 %v2113
        %v2170 = vunpack.c.l.b16 %v2114
        %v2171 = vunpack.c.l.b16 %v2115
        %v2172 = vunpack.c.l.b16 %v2116
        %v2173 = vunpack.c.l.b16 %v2117
        %v2174 = vunpack.c.l.b16 %v2118
        %v2175 = vunpack.c.l.b16 %v2119
        %v2176 = vunpack.c.l.b16 %v2120
        %v2177 = vpack.c.b16 %v2150, %v2149
        %v2178 = vpack.c.b16 %v2152, %v2151
        %v2179 = vpack.c.b16 %v2154, %v2153
        %v2180 = vpack.c.b16 %v2156, %v2155
        %v2181 = vpack.c.b16 %v2158, %v2157
        %v2182 = vpack.c.b16 %v2160, %v2159
        %v2183 = vpack.c.b16 %v2162, %v2161
        %v2184 = vpack.c.b16 %v2164, %v2163
        %v2185 = vpack.c.b16 %v2166, %v2165
        %v2186 = vpack.c.b16 %v2168, %v2167
        %v2187 = vpack.c.b16 %v2170, %v2169
        %v2188 = vpack.c.b16 %v2172, %v2171
        %v2189 = vpack.c.b16 %v2174, %v2173
        %v2190 = vpack.c.b16 %v2176, %v2175
        %2191 = vrot.lane.b32.xlu0 %v2177, 36
        %v2192 = vpop.permute.xlu0 %2191
        %2193 = vrot.lane.b32.xlu0 %v2178, 36
        %v2194 = vpop.permute.xlu0 %2193
        %2195 = vrot.lane.b32.xlu0 %v2179, 36
        %v2196 = vpop.permute.xlu0 %2195
        %2197 = vrot.lane.b32.xlu0 %v2180, 36
        %v2198 = vpop.permute.xlu0 %2197
        %2199 = vrot.lane.b32.xlu0 %v2181, 36
        %v2200 = vpop.permute.xlu0 %2199
        %2201 = vrot.lane.b32.xlu0 %v2182, 36
        %v2202 = vpop.permute.xlu0 %2201
        %2203 = vrot.lane.b32.xlu0 %v2183, 36
        %v2204 = vpop.permute.xlu0 %2203
        %2205 = vrot.lane.b32.xlu0 %v2184, 36
        %v2206 = vpop.permute.xlu0 %2205
        %2207 = vrot.lane.b32.xlu0 %v2185, 36
        %v2208 = vpop.permute.xlu0 %2207
        %2209 = vrot.lane.b32.xlu0 %v2186, 36
        %v2210 = vpop.permute.xlu0 %2209
        %2211 = vrot.lane.b32.xlu0 %v2187, 36
        %v2212 = vpop.permute.xlu0 %2211
        %2213 = vrot.lane.b32.xlu0 %v2188, 36
        %v2214 = vpop.permute.xlu0 %2213
        %2215 = vrot.lane.b32.xlu0 %v2189, 36
        %v2216 = vpop.permute.xlu0 %2215
        %2217 = vrot.lane.b32.xlu0 %v2190, 36
        %v2218 = vpop.permute.xlu0 %2217
        %vm2233 = vcmask 343328
        %2234 = vst.msk [vmem:[#allocation2] sm:$0xff] %vm2233, %v2192
        %2235 = vst.msk [vmem:[#allocation2 + $0x8] sm:$0xff] %vm2233, %v2194
        %2236 = vst.msk [vmem:[#allocation2 + $0x10] sm:$0xff] %vm2233, %v2196
        %2237 = vst.msk [vmem:[#allocation2 + $0x18] sm:$0xff] %vm2233, %v2198
        %2238 = vst.msk [vmem:[#allocation2 + $0x20] sm:$0xff] %vm2233, %v2200
        %2239 = vst.msk [vmem:[#allocation2 + $0x28] sm:$0xff] %vm2233, %v2202
        %2240 = vst.msk [vmem:[#allocation2 + $0x30] sm:$0xff] %vm2233, %v2204
        %2241 = vst.msk [vmem:[#allocation2 + $0x38] sm:$0xff] %vm2233, %v2206
        %2242 = vst.msk [vmem:[#allocation2 + $0x40] sm:$0xff] %vm2233, %v2208
        %2243 = vst.msk [vmem:[#allocation2 + $0x48] sm:$0xff] %vm2233, %v2210
        %2244 = vst.msk [vmem:[#allocation2 + $0x50] sm:$0xff] %vm2233, %v2212
        %2245 = vst.msk [vmem:[#allocation2 + $0x58] sm:$0xff] %vm2233, %v2214
        %2246 = vst.msk [vmem:[#allocation2 + $0x60] sm:$0xff] %vm2233, %v2216
        %2247 = vst.msk [vmem:[#allocation2 + $0x68] sm:$0xff] %vm2233, %v2218
        %v2248 = vld [vmem:[%s308] sm:$0xf]
        %v2249 = vld [vmem:[%s308 + $0x4] sm:$0xf]
        %v2250 = vld [vmem:[%s308 + $0xc] sm:$0xf]
        %v2251 = vld [vmem:[%s308 + $0x10] sm:$0xf]
        %v2256 = vunpack.c.l.b16 %v2248
        %v2257 = vunpack.c.l.b16 %v2249
        %v2258 = vunpack.c.l.b16 %v2250
        %v2259 = vunpack.c.l.b16 %v2251
        %v2260 = vpack.c.b16 %v2257, %v2256
        %v2261 = vpack.c.b16 %v2259, %v2258
        %2262 = vrot.lane.b32.xlu0 %v2260, 36
        %v2263 = vpop.permute.xlu0 %2262
        %2264 = vrot.lane.b32.xlu0 %v2261, 36
        %v2265 = vpop.permute.xlu0 %2264
        %s2268 = scalar_lea.vmem [#allocation2], 112
        %2269 = vst.msk [vmem:[%s2268] sm:$0xff] %vm2233, %v2263
        %2270 = vst.msk [vmem:[%s2268 + $0x8] sm:$0xff] %vm2233, %v2265
        %v2271 = vld [vmem:[%s2092] sm:$0xf]
        %v2272 = vld [vmem:[%s2092 + $0x4] sm:$0xf]
        %v2273 = vld [vmem:[%s2092 + $0x8] sm:$0x1]
        %v2274 = vld [vmem:[%s2092 + $0xc] sm:$0xf]
        %v2275 = vld [vmem:[%s2092 + $0x10] sm:$0xf]
        %v2276 = vld [vmem:[%s2092 + $0x14] sm:$0x1]
        %v2277 = vld [vmem:[%s2092 + $0x18] sm:$0xf]
        %v2278 = vld [vmem:[%s2092 + $0x1c] sm:$0xf]
        %v2279 = vld [vmem:[%s2092 + $0x20] sm:$0x1]
        %v2280 = vld [vmem:[%s2092 + $0x24] sm:$0xf]
        %v2281 = vld [vmem:[%s2092 + $0x28] sm:$0xf]
        %v2282 = vld [vmem:[%s2092 + $0x2c] sm:$0x1]
        %v2283 = vld [vmem:[%s2092 + $0x30] sm:$0xf]
        %v2284 = vld [vmem:[%s2092 + $0x34] sm:$0xf]
        %v2285 = vld [vmem:[%s2092 + $0x38] sm:$0x1]
        %v2286 = vld [vmem:[%s2092 + $0x3c] sm:$0xf]
        %v2287 = vld [vmem:[%s2092 + $0x40] sm:$0xf]
        %v2288 = vld [vmem:[%s2092 + $0x44] sm:$0x1]
        %v2289 = vld [vmem:[%s2092 + $0x48] sm:$0xf]
        %v2290 = vld [vmem:[%s2092 + $0x4c] sm:$0xf]
        %v2291 = vld [vmem:[%s2092 + $0x50] sm:$0x1]
        %v2292 = vld [vmem:[%s2092 + $0x54] sm:$0xf]
        %v2293 = vld [vmem:[%s2092 + $0x58] sm:$0xf]
        %v2294 = vld [vmem:[%s2092 + $0x5c] sm:$0x1]
        %v2295 = vld [vmem:[%s2092 + $0x60] sm:$0xf]
        %v2296 = vld [vmem:[%s2092 + $0x64] sm:$0xf]
        %v2297 = vld [vmem:[%s2092 + $0x68] sm:$0x1]
        %v2298 = vld [vmem:[%s2092 + $0x6c] sm:$0xf]
        %v2299 = vld [vmem:[%s2092 + $0x70] sm:$0xf]
        %v2300 = vld [vmem:[%s2092 + $0x74] sm:$0x1]
        %v2301 = vld [vmem:[%s2092 + $0x78] sm:$0xf]
        %v2302 = vld [vmem:[%s2092 + $0x7c] sm:$0xf]
        %v2303 = vld [vmem:[%s2092 + $0x80] sm:$0x1]
        %v2304 = vld [vmem:[%s2092 + $0x84] sm:$0xf]
        %v2305 = vld [vmem:[%s2092 + $0x88] sm:$0xf]
        %v2306 = vld [vmem:[%s2092 + $0x8c] sm:$0x1]
        %v2307 = vld [vmem:[%s2092 + $0x90] sm:$0xf]
        %v2308 = vld [vmem:[%s2092 + $0x94] sm:$0xf]
        %v2309 = vld [vmem:[%s2092 + $0x98] sm:$0x1]
        %v2310 = vld [vmem:[%s2092 + $0x9c] sm:$0xf]
        %v2311 = vld [vmem:[%s2092 + $0xa0] sm:$0xf]
        %v2312 = vld [vmem:[%s2092 + $0xa4] sm:$0x1]
        %v2355 = vunpack.c.l.b16 %v2271
        %v2356 = vunpack.c.l.b16 %v2272
        %v2357 = vunpack.c.l.b16 %v2273
        %v2358 = vunpack.c.l.b16 %v2274
        %v2359 = vunpack.c.l.b16 %v2275
        %v2360 = vunpack.c.l.b16 %v2276
        %v2361 = vunpack.c.l.b16 %v2277
        %v2362 = vunpack.c.l.b16 %v2278
        %v2363 = vunpack.c.l.b16 %v2279
        %v2364 = vunpack.c.l.b16 %v2280
        %v2365 = vunpack.c.l.b16 %v2281
        %v2366 = vunpack.c.l.b16 %v2282
        %v2367 = vunpack.c.l.b16 %v2283
        %v2368 = vunpack.c.l.b16 %v2284
        %v2369 = vunpack.c.l.b16 %v2285
        %v2370 = vunpack.c.l.b16 %v2286
        %v2371 = vunpack.c.l.b16 %v2287
        %v2372 = vunpack.c.l.b16 %v2288
        %v2373 = vunpack.c.l.b16 %v2289
        %v2374 = vunpack.c.l.b16 %v2290
        %v2375 = vunpack.c.l.b16 %v2291
        %v2376 = vunpack.c.l.b16 %v2292
        %v2377 = vunpack.c.l.b16 %v2293
        %v2378 = vunpack.c.l.b16 %v2294
        %v2379 = vunpack.c.l.b16 %v2295
        %v2380 = vunpack.c.l.b16 %v2296
        %v2381 = vunpack.c.l.b16 %v2297
        %v2382 = vunpack.c.l.b16 %v2298
        %v2383 = vunpack.c.l.b16 %v2299
        %v2384 = vunpack.c.l.b16 %v2300
        %v2385 = vunpack.c.l.b16 %v2301
        %v2386 = vunpack.c.l.b16 %v2302
        %v2387 = vunpack.c.l.b16 %v2303
        %v2388 = vunpack.c.l.b16 %v2304
        %v2389 = vunpack.c.l.b16 %v2305
        %v2390 = vunpack.c.l.b16 %v2306
        %v2391 = vunpack.c.l.b16 %v2307
        %v2392 = vunpack.c.l.b16 %v2308
        %v2393 = vunpack.c.l.b16 %v2309
        %v2394 = vunpack.c.l.b16 %v2310
        %v2395 = vunpack.c.l.b16 %v2311
        %v2396 = vunpack.c.l.b16 %v2312
        %v2397 = vpack.c.b16 %v2356, %v2355
        %v2398 = vpack.c.b16 %v2357, %v2357
        %v2399 = vpack.c.b16 %v2359, %v2358
        %v2400 = vpack.c.b16 %v2360, %v2360
        %v2401 = vpack.c.b16 %v2362, %v2361
        %v2402 = vpack.c.b16 %v2363, %v2363
        %v2403 = vpack.c.b16 %v2365, %v2364
        %v2404 = vpack.c.b16 %v2366, %v2366
        %v2405 = vpack.c.b16 %v2368, %v2367
        %v2406 = vpack.c.b16 %v2369, %v2369
        %v2407 = vpack.c.b16 %v2371, %v2370
        %v2408 = vpack.c.b16 %v2372, %v2372
        %v2409 = vpack.c.b16 %v2374, %v2373
        %v2410 = vpack.c.b16 %v2375, %v2375
        %v2411 = vpack.c.b16 %v2377, %v2376
        %v2412 = vpack.c.b16 %v2378, %v2378
        %v2413 = vpack.c.b16 %v2380, %v2379
        %v2414 = vpack.c.b16 %v2381, %v2381
        %v2415 = vpack.c.b16 %v2383, %v2382
        %v2416 = vpack.c.b16 %v2384, %v2384
        %v2417 = vpack.c.b16 %v2386, %v2385
        %v2418 = vpack.c.b16 %v2387, %v2387
        %v2419 = vpack.c.b16 %v2389, %v2388
        %v2420 = vpack.c.b16 %v2390, %v2390
        %v2421 = vpack.c.b16 %v2392, %v2391
        %v2422 = vpack.c.b16 %v2393, %v2393
        %v2423 = vpack.c.b16 %v2395, %v2394
        %v2424 = vpack.c.b16 %v2396, %v2396
        %v2426 = vshrl.u32 %v2397, 16
        %v2428 = vshll.u32 %v2397, 16
        %v2430 = vrot.slane %v2428, 1
        %v2431 = vor.u32 %v2426, %v2430
        %v2433 = vshll.u32 %v2398, 16
        %v2435 = vrot.slane %v2433, 1
        %v2436 = vsel %vm643, %v2431, %v2435
        %v2438 = vshrl.u32 %v2399, 16
        %v2440 = vshll.u32 %v2399, 16
        %v2442 = vrot.slane %v2440, 1
        %v2443 = vor.u32 %v2438, %v2442
        %v2445 = vshll.u32 %v2400, 16
        %v2447 = vrot.slane %v2445, 1
        %v2448 = vsel %vm643, %v2443, %v2447
        %v2450 = vshrl.u32 %v2401, 16
        %v2452 = vshll.u32 %v2401, 16
        %v2454 = vrot.slane %v2452, 1
        %v2455 = vor.u32 %v2450, %v2454
        %v2457 = vshll.u32 %v2402, 16
        %v2459 = vrot.slane %v2457, 1
        %v2460 = vsel %vm643, %v2455, %v2459
        %v2462 = vshrl.u32 %v2403, 16
        %v2464 = vshll.u32 %v2403, 16
        %v2466 = vrot.slane %v2464, 1
        %v2467 = vor.u32 %v2462, %v2466
        %v2469 = vshll.u32 %v2404, 16
        %v2471 = vrot.slane %v2469, 1
        %v2472 = vsel %vm643, %v2467, %v2471
        %v2474 = vshrl.u32 %v2405, 16
        %v2476 = vshll.u32 %v2405, 16
        %v2478 = vrot.slane %v2476, 1
        %v2479 = vor.u32 %v2474, %v2478
        %v2481 = vshll.u32 %v2406, 16
        %v2483 = vrot.slane %v2481, 1
        %v2484 = vsel %vm643, %v2479, %v2483
        %v2486 = vshrl.u32 %v2407, 16
        %v2488 = vshll.u32 %v2407, 16
        %v2490 = vrot.slane %v2488, 1
        %v2491 = vor.u32 %v2486, %v2490
        %v2493 = vshll.u32 %v2408, 16
        %v2495 = vrot.slane %v2493, 1
        %v2496 = vsel %vm643, %v2491, %v2495
        %v2498 = vshrl.u32 %v2409, 16
        %v2500 = vshll.u32 %v2409, 16
        %v2502 = vrot.slane %v2500, 1
        %v2503 = vor.u32 %v2498, %v2502
        %v2505 = vshll.u32 %v2410, 16
        %v2507 = vrot.slane %v2505, 1
        %v2508 = vsel %vm643, %v2503, %v2507
        %v2510 = vshrl.u32 %v2411, 16
        %v2512 = vshll.u32 %v2411, 16
        %v2514 = vrot.slane %v2512, 1
        %v2515 = vor.u32 %v2510, %v2514
        %v2517 = vshll.u32 %v2412, 16
        %v2519 = vrot.slane %v2517, 1
        %v2520 = vsel %vm643, %v2515, %v2519
        %v2522 = vshrl.u32 %v2413, 16
        %v2524 = vshll.u32 %v2413, 16
        %v2526 = vrot.slane %v2524, 1
        %v2527 = vor.u32 %v2522, %v2526
        %v2529 = vshll.u32 %v2414, 16
        %v2531 = vrot.slane %v2529, 1
        %v2532 = vsel %vm643, %v2527, %v2531
        %v2534 = vshrl.u32 %v2415, 16
        %v2536 = vshll.u32 %v2415, 16
        %v2538 = vrot.slane %v2536, 1
        %v2539 = vor.u32 %v2534, %v2538
        %v2541 = vshll.u32 %v2416, 16
        %v2543 = vrot.slane %v2541, 1
        %v2544 = vsel %vm643, %v2539, %v2543
        %v2546 = vshrl.u32 %v2417, 16
        %v2548 = vshll.u32 %v2417, 16
        %v2550 = vrot.slane %v2548, 1
        %v2551 = vor.u32 %v2546, %v2550
        %v2553 = vshll.u32 %v2418, 16
        %v2555 = vrot.slane %v2553, 1
        %v2556 = vsel %vm643, %v2551, %v2555
        %v2558 = vshrl.u32 %v2419, 16
        %v2560 = vshll.u32 %v2419, 16
        %v2562 = vrot.slane %v2560, 1
        %v2563 = vor.u32 %v2558, %v2562
        %v2565 = vshll.u32 %v2420, 16
        %v2567 = vrot.slane %v2565, 1
        %v2568 = vsel %vm643, %v2563, %v2567
        %v2570 = vshrl.u32 %v2421, 16
        %v2572 = vshll.u32 %v2421, 16
        %v2574 = vrot.slane %v2572, 1
        %v2575 = vor.u32 %v2570, %v2574
        %v2577 = vshll.u32 %v2422, 16
        %v2579 = vrot.slane %v2577, 1
        %v2580 = vsel %vm643, %v2575, %v2579
        %v2582 = vshrl.u32 %v2423, 16
        %v2584 = vshll.u32 %v2423, 16
        %v2586 = vrot.slane %v2584, 1
        %v2587 = vor.u32 %v2582, %v2586
        %v2589 = vshll.u32 %v2424, 16
        %v2591 = vrot.slane %v2589, 1
        %v2592 = vsel %vm643, %v2587, %v2591
        %2593 = vrot.lane.b32.xlu0 %v2436, 42
        %v2594 = vpop.permute.xlu0 %2593
        %2595 = vrot.lane.b32.xlu0 %v2448, 42
        %v2596 = vpop.permute.xlu0 %2595
        %2597 = vrot.lane.b32.xlu0 %v2460, 42
        %v2598 = vpop.permute.xlu0 %2597
        %2599 = vrot.lane.b32.xlu0 %v2472, 42
        %v2600 = vpop.permute.xlu0 %2599
        %2601 = vrot.lane.b32.xlu0 %v2484, 42
        %v2602 = vpop.permute.xlu0 %2601
        %2603 = vrot.lane.b32.xlu0 %v2496, 42
        %v2604 = vpop.permute.xlu0 %2603
        %2605 = vrot.lane.b32.xlu0 %v2508, 42
        %v2606 = vpop.permute.xlu0 %2605
        %2607 = vrot.lane.b32.xlu0 %v2520, 42
        %v2608 = vpop.permute.xlu0 %2607
        %2609 = vrot.lane.b32.xlu0 %v2532, 42
        %v2610 = vpop.permute.xlu0 %2609
        %2611 = vrot.lane.b32.xlu0 %v2544, 42
        %v2612 = vpop.permute.xlu0 %2611
        %2613 = vrot.lane.b32.xlu0 %v2556, 42
        %v2614 = vpop.permute.xlu0 %2613
        %2615 = vrot.lane.b32.xlu0 %v2568, 42
        %v2616 = vpop.permute.xlu0 %2615
        %2617 = vrot.lane.b32.xlu0 %v2580, 42
        %v2618 = vpop.permute.xlu0 %2617
        %2619 = vrot.lane.b32.xlu0 %v2592, 42
        %v2620 = vpop.permute.xlu0 %2619
        %vm2635 = vcmask 392528
        %2636 = vst.msk [vmem:[#allocation2] sm:$0xff] %vm2635, %v2594
        %2637 = vst.msk [vmem:[#allocation2 + $0x8] sm:$0xff] %vm2635, %v2596
        %2638 = vst.msk [vmem:[#allocation2 + $0x10] sm:$0xff] %vm2635, %v2598
        %2639 = vst.msk [vmem:[#allocation2 + $0x18] sm:$0xff] %vm2635, %v2600
        %2640 = vst.msk [vmem:[#allocation2 + $0x20] sm:$0xff] %vm2635, %v2602
        %2641 = vst.msk [vmem:[#allocation2 + $0x28] sm:$0xff] %vm2635, %v2604
        %2642 = vst.msk [vmem:[#allocation2 + $0x30] sm:$0xff] %vm2635, %v2606
        %2643 = vst.msk [vmem:[#allocation2 + $0x38] sm:$0xff] %vm2635, %v2608
        %2644 = vst.msk [vmem:[#allocation2 + $0x40] sm:$0xff] %vm2635, %v2610
        %2645 = vst.msk [vmem:[#allocation2 + $0x48] sm:$0xff] %vm2635, %v2612
        %2646 = vst.msk [vmem:[#allocation2 + $0x50] sm:$0xff] %vm2635, %v2614
        %2647 = vst.msk [vmem:[#allocation2 + $0x58] sm:$0xff] %vm2635, %v2616
        %2648 = vst.msk [vmem:[#allocation2 + $0x60] sm:$0xff] %vm2635, %v2618
        %2649 = vst.msk [vmem:[#allocation2 + $0x68] sm:$0xff] %vm2635, %v2620
        %v2650 = vld [vmem:[%s308] sm:$0xf]
        %v2651 = vld [vmem:[%s308 + $0x4] sm:$0xf]
        %v2652 = vld [vmem:[%s308 + $0x8] sm:$0x1]
        %v2653 = vld [vmem:[%s308 + $0xc] sm:$0xf]
        %v2654 = vld [vmem:[%s308 + $0x10] sm:$0xf]
        %v2655 = vld [vmem:[%s308 + $0x14] sm:$0x1]
        %v2662 = vunpack.c.l.b16 %v2650
        %v2663 = vunpack.c.l.b16 %v2651
        %v2664 = vunpack.c.l.b16 %v2652
        %v2665 = vunpack.c.l.b16 %v2653
        %v2666 = vunpack.c.l.b16 %v2654
        %v2667 = vunpack.c.l.b16 %v2655
        %v2668 = vpack.c.b16 %v2663, %v2662
        %v2669 = vpack.c.b16 %v2664, %v2664
        %v2670 = vpack.c.b16 %v2666, %v2665
        %v2671 = vpack.c.b16 %v2667, %v2667
        %v2673 = vshrl.u32 %v2668, 16
        %v2675 = vshll.u32 %v2668, 16
        %v2677 = vrot.slane %v2675, 1
        %v2678 = vor.u32 %v2673, %v2677
        %v2680 = vshll.u32 %v2669, 16
        %v2682 = vrot.slane %v2680, 1
        %v2683 = vsel %vm643, %v2678, %v2682
        %v2685 = vshrl.u32 %v2670, 16
        %v2687 = vshll.u32 %v2670, 16
        %v2689 = vrot.slane %v2687, 1
        %v2690 = vor.u32 %v2685, %v2689
        %v2692 = vshll.u32 %v2671, 16
        %v2694 = vrot.slane %v2692, 1
        %v2695 = vsel %vm643, %v2690, %v2694
        %2696 = vrot.lane.b32.xlu0 %v2683, 42
        %v2697 = vpop.permute.xlu0 %2696
        %2698 = vrot.lane.b32.xlu0 %v2695, 42
        %v2699 = vpop.permute.xlu0 %2698
        %2702 = vst.msk [vmem:[%s2268] sm:$0xff] %vm2635, %v2697
        %2703 = vst.msk [vmem:[%s2268 + $0x8] sm:$0xff] %vm2635, %v2699
        %v2704 = vld [vmem:[%s2092] sm:$0xe]
        %v2705 = vld [vmem:[%s2092 + $0x4] sm:$0xf]
        %v2706 = vld [vmem:[%s2092 + $0x8] sm:$0x1]
        %v2707 = vld [vmem:[%s2092 + $0xc] sm:$0xe]
        %v2708 = vld [vmem:[%s2092 + $0x10] sm:$0xf]
        %v2709 = vld [vmem:[%s2092 + $0x14] sm:$0x1]
        %v2710 = vld [vmem:[%s2092 + $0x18] sm:$0xe]
        %v2711 = vld [vmem:[%s2092 + $0x1c] sm:$0xf]
        %v2712 = vld [vmem:[%s2092 + $0x20] sm:$0x1]
        %v2713 = vld [vmem:[%s2092 + $0x24] sm:$0xe]
        %v2714 = vld [vmem:[%s2092 + $0x28] sm:$0xf]
        %v2715 = vld [vmem:[%s2092 + $0x2c] sm:$0x1]
        %v2716 = vld [vmem:[%s2092 + $0x30] sm:$0xe]
        %v2717 = vld [vmem:[%s2092 + $0x34] sm:$0xf]
        %v2718 = vld [vmem:[%s2092 + $0x38] sm:$0x1]
        %v2719 = vld [vmem:[%s2092 + $0x3c] sm:$0xe]
        %v2720 = vld [vmem:[%s2092 + $0x40] sm:$0xf]
        %v2721 = vld [vmem:[%s2092 + $0x44] sm:$0x1]
        %v2722 = vld [vmem:[%s2092 + $0x48] sm:$0xe]
        %v2723 = vld [vmem:[%s2092 + $0x4c] sm:$0xf]
        %v2724 = vld [vmem:[%s2092 + $0x50] sm:$0x1]
        %v2725 = vld [vmem:[%s2092 + $0x54] sm:$0xe]
        %v2726 = vld [vmem:[%s2092 + $0x58] sm:$0xf]
        %v2727 = vld [vmem:[%s2092 + $0x5c] sm:$0x1]
        %v2728 = vld [vmem:[%s2092 + $0x60] sm:$0xe]
        %v2729 = vld [vmem:[%s2092 + $0x64] sm:$0xf]
        %v2730 = vld [vmem:[%s2092 + $0x68] sm:$0x1]
        %v2731 = vld [vmem:[%s2092 + $0x6c] sm:$0xe]
        %v2732 = vld [vmem:[%s2092 + $0x70] sm:$0xf]
        %v2733 = vld [vmem:[%s2092 + $0x74] sm:$0x1]
        %v2734 = vld [vmem:[%s2092 + $0x78] sm:$0xe]
        %v2735 = vld [vmem:[%s2092 + $0x7c] sm:$0xf]
        %v2736 = vld [vmem:[%s2092 + $0x80] sm:$0x1]
        %v2737 = vld [vmem:[%s2092 + $0x84] sm:$0xe]
        %v2738 = vld [vmem:[%s2092 + $0x88] sm:$0xf]
        %v2739 = vld [vmem:[%s2092 + $0x8c] sm:$0x1]
        %v2740 = vld [vmem:[%s2092 + $0x90] sm:$0xe]
        %v2741 = vld [vmem:[%s2092 + $0x94] sm:$0xf]
        %v2742 = vld [vmem:[%s2092 + $0x98] sm:$0x1]
        %v2743 = vld [vmem:[%s2092 + $0x9c] sm:$0xe]
        %v2744 = vld [vmem:[%s2092 + $0xa0] sm:$0xf]
        %v2745 = vld [vmem:[%s2092 + $0xa4] sm:$0x1]
        %v2788 = vunpack.c.l.b16 %v2704
        %v2789 = vunpack.c.l.b16 %v2705
        %v2790 = vunpack.c.l.b16 %v2706
        %v2791 = vunpack.c.l.b16 %v2707
        %v2792 = vunpack.c.l.b16 %v2708
        %v2793 = vunpack.c.l.b16 %v2709
        %v2794 = vunpack.c.l.b16 %v2710
        %v2795 = vunpack.c.l.b16 %v2711
        %v2796 = vunpack.c.l.b16 %v2712
        %v2797 = vunpack.c.l.b16 %v2713
        %v2798 = vunpack.c.l.b16 %v2714
        %v2799 = vunpack.c.l.b16 %v2715
        %v2800 = vunpack.c.l.b16 %v2716
        %v2801 = vunpack.c.l.b16 %v2717
        %v2802 = vunpack.c.l.b16 %v2718
        %v2803 = vunpack.c.l.b16 %v2719
        %v2804 = vunpack.c.l.b16 %v2720
        %v2805 = vunpack.c.l.b16 %v2721
        %v2806 = vunpack.c.l.b16 %v2722
        %v2807 = vunpack.c.l.b16 %v2723
        %v2808 = vunpack.c.l.b16 %v2724
        %v2809 = vunpack.c.l.b16 %v2725
        %v2810 = vunpack.c.l.b16 %v2726
        %v2811 = vunpack.c.l.b16 %v2727
        %v2812 = vunpack.c.l.b16 %v2728
        %v2813 = vunpack.c.l.b16 %v2729
        %v2814 = vunpack.c.l.b16 %v2730
        %v2815 = vunpack.c.l.b16 %v2731
        %v2816 = vunpack.c.l.b16 %v2732
        %v2817 = vunpack.c.l.b16 %v2733
        %v2818 = vunpack.c.l.b16 %v2734
        %v2819 = vunpack.c.l.b16 %v2735
        %v2820 = vunpack.c.l.b16 %v2736
        %v2821 = vunpack.c.l.b16 %v2737
        %v2822 = vunpack.c.l.b16 %v2738
        %v2823 = vunpack.c.l.b16 %v2739
        %v2824 = vunpack.c.l.b16 %v2740
        %v2825 = vunpack.c.l.b16 %v2741
        %v2826 = vunpack.c.l.b16 %v2742
        %v2827 = vunpack.c.l.b16 %v2743
        %v2828 = vunpack.c.l.b16 %v2744
        %v2829 = vunpack.c.l.b16 %v2745
        %v2830 = vpack.c.b16 %v2789, %v2788
        %v2831 = vpack.c.b16 %v2790, %v2790
        %v2832 = vpack.c.b16 %v2792, %v2791
        %v2833 = vpack.c.b16 %v2793, %v2793
        %v2834 = vpack.c.b16 %v2795, %v2794
        %v2835 = vpack.c.b16 %v2796, %v2796
        %v2836 = vpack.c.b16 %v2798, %v2797
        %v2837 = vpack.c.b16 %v2799, %v2799
        %v2838 = vpack.c.b16 %v2801, %v2800
        %v2839 = vpack.c.b16 %v2802, %v2802
        %v2840 = vpack.c.b16 %v2804, %v2803
        %v2841 = vpack.c.b16 %v2805, %v2805
        %v2842 = vpack.c.b16 %v2807, %v2806
        %v2843 = vpack.c.b16 %v2808, %v2808
        %v2844 = vpack.c.b16 %v2810, %v2809
        %v2845 = vpack.c.b16 %v2811, %v2811
        %v2846 = vpack.c.b16 %v2813, %v2812
        %v2847 = vpack.c.b16 %v2814, %v2814
        %v2848 = vpack.c.b16 %v2816, %v2815
        %v2849 = vpack.c.b16 %v2817, %v2817
        %v2850 = vpack.c.b16 %v2819, %v2818
        %v2851 = vpack.c.b16 %v2820, %v2820
        %v2852 = vpack.c.b16 %v2822, %v2821
        %v2853 = vpack.c.b16 %v2823, %v2823
        %v2854 = vpack.c.b16 %v2825, %v2824
        %v2855 = vpack.c.b16 %v2826, %v2826
        %v2856 = vpack.c.b16 %v2828, %v2827
        %v2857 = vpack.c.b16 %v2829, %v2829
        %v2858 = vrot.slane %v2830, 1
        %v2859 = vrot.slane %v2831, 1
        %v2860 = vsel %vm1077, %v2858, %v2859
        %v2861 = vrot.slane %v2832, 1
        %v2862 = vrot.slane %v2833, 1
        %v2863 = vsel %vm1077, %v2861, %v2862
        %v2864 = vrot.slane %v2834, 1
        %v2865 = vrot.slane %v2835, 1
        %v2866 = vsel %vm1077, %v2864, %v2865
        %v2867 = vrot.slane %v2836, 1
        %v2868 = vrot.slane %v2837, 1
        %v2869 = vsel %vm1077, %v2867, %v2868
        %v2870 = vrot.slane %v2838, 1
        %v2871 = vrot.slane %v2839, 1
        %v2872 = vsel %vm1077, %v2870, %v2871
        %v2873 = vrot.slane %v2840, 1
        %v2874 = vrot.slane %v2841, 1
        %v2875 = vsel %vm1077, %v2873, %v2874
        %v2876 = vrot.slane %v2842, 1
        %v2877 = vrot.slane %v2843, 1
        %v2878 = vsel %vm1077, %v2876, %v2877
        %v2879 = vrot.slane %v2844, 1
        %v2880 = vrot.slane %v2845, 1
        %v2881 = vsel %vm1077, %v2879, %v2880
        %v2882 = vrot.slane %v2846, 1
        %v2883 = vrot.slane %v2847, 1
        %v2884 = vsel %vm1077, %v2882, %v2883
        %v2885 = vrot.slane %v2848, 1
        %v2886 = vrot.slane %v2849, 1
        %v2887 = vsel %vm1077, %v2885, %v2886
        %v2888 = vrot.slane %v2850, 1
        %v2889 = vrot.slane %v2851, 1
        %v2890 = vsel %vm1077, %v2888, %v2889
        %v2891 = vrot.slane %v2852, 1
        %v2892 = vrot.slane %v2853, 1
        %v2893 = vsel %vm1077, %v2891, %v2892
        %v2894 = vrot.slane %v2854, 1
        %v2895 = vrot.slane %v2855, 1
        %v2896 = vsel %vm1077, %v2894, %v2895
        %v2897 = vrot.slane %v2856, 1
        %v2898 = vrot.slane %v2857, 1
        %v2899 = vsel %vm1077, %v2897, %v2898
        %2900 = vrot.lane.b32.xlu0 %v2860, 48
        %v2901 = vpop.permute.xlu0 %2900
        %2902 = vrot.lane.b32.xlu0 %v2863, 48
        %v2903 = vpop.permute.xlu0 %2902
        %2904 = vrot.lane.b32.xlu0 %v2866, 48
        %v2905 = vpop.permute.xlu0 %2904
        %2906 = vrot.lane.b32.xlu0 %v2869, 48
        %v2907 = vpop.permute.xlu0 %2906
        %2908 = vrot.lane.b32.xlu0 %v2872, 48
        %v2909 = vpop.permute.xlu0 %2908
        %2910 = vrot.lane.b32.xlu0 %v2875, 48
        %v2911 = vpop.permute.xlu0 %2910
        %2912 = vrot.lane.b32.xlu0 %v2878, 48
        %v2913 = vpop.permute.xlu0 %2912
        %2914 = vrot.lane.b32.xlu0 %v2881, 48
        %v2915 = vpop.permute.xlu0 %2914
        %2916 = vrot.lane.b32.xlu0 %v2884, 48
        %v2917 = vpop.permute.xlu0 %2916
        %2918 = vrot.lane.b32.xlu0 %v2887, 48
        %v2919 = vpop.permute.xlu0 %2918
        %2920 = vrot.lane.b32.xlu0 %v2890, 48
        %v2921 = vpop.permute.xlu0 %2920
        %2922 = vrot.lane.b32.xlu0 %v2893, 48
        %v2923 = vpop.permute.xlu0 %2922
        %2924 = vrot.lane.b32.xlu0 %v2896, 48
        %v2925 = vpop.permute.xlu0 %2924
        %2926 = vrot.lane.b32.xlu0 %v2899, 48
        %v2927 = vpop.permute.xlu0 %2926
        %vm2942 = vcmask 441728
        %2943 = vst.msk [vmem:[#allocation2] sm:$0xff] %vm2942, %v2901
        %2944 = vst.msk [vmem:[#allocation2 + $0x8] sm:$0xff] %vm2942, %v2903
        %2945 = vst.msk [vmem:[#allocation2 + $0x10] sm:$0xff] %vm2942, %v2905
        %2946 = vst.msk [vmem:[#allocation2 + $0x18] sm:$0xff] %vm2942, %v2907
        %2947 = vst.msk [vmem:[#allocation2 + $0x20] sm:$0xff] %vm2942, %v2909
        %2948 = vst.msk [vmem:[#allocation2 + $0x28] sm:$0xff] %vm2942, %v2911
        %2949 = vst.msk [vmem:[#allocation2 + $0x30] sm:$0xff] %vm2942, %v2913
        %2950 = vst.msk [vmem:[#allocation2 + $0x38] sm:$0xff] %vm2942, %v2915
        %2951 = vst.msk [vmem:[#allocation2 + $0x40] sm:$0xff] %vm2942, %v2917
        %2952 = vst.msk [vmem:[#allocation2 + $0x48] sm:$0xff] %vm2942, %v2919
        %2953 = vst.msk [vmem:[#allocation2 + $0x50] sm:$0xff] %vm2942, %v2921
        %2954 = vst.msk [vmem:[#allocation2 + $0x58] sm:$0xff] %vm2942, %v2923
        %2955 = vst.msk [vmem:[#allocation2 + $0x60] sm:$0xff] %vm2942, %v2925
        %2956 = vst.msk [vmem:[#allocation2 + $0x68] sm:$0xff] %vm2942, %v2927
        %v2957 = vld [vmem:[%s308] sm:$0xe]
        %v2958 = vld [vmem:[%s308 + $0x4] sm:$0xf]
        %v2959 = vld [vmem:[%s308 + $0x8] sm:$0x1]
        %v2960 = vld [vmem:[%s308 + $0xc] sm:$0xe]
        %v2961 = vld [vmem:[%s308 + $0x10] sm:$0xf]
        %v2962 = vld [vmem:[%s308 + $0x14] sm:$0x1]
        %v2969 = vunpack.c.l.b16 %v2957
        %v2970 = vunpack.c.l.b16 %v2958
        %v2971 = vunpack.c.l.b16 %v2959
        %v2972 = vunpack.c.l.b16 %v2960
        %v2973 = vunpack.c.l.b16 %v2961
        %v2974 = vunpack.c.l.b16 %v2962
        %v2975 = vpack.c.b16 %v2970, %v2969
        %v2976 = vpack.c.b16 %v2971, %v2971
        %v2977 = vpack.c.b16 %v2973, %v2972
        %v2978 = vpack.c.b16 %v2974, %v2974
        %v2979 = vrot.slane %v2975, 1
        %v2980 = vrot.slane %v2976, 1
        %v2981 = vsel %vm1077, %v2979, %v2980
        %v2982 = vrot.slane %v2977, 1
        %v2983 = vrot.slane %v2978, 1
        %v2984 = vsel %vm1077, %v2982, %v2983
        %2985 = vrot.lane.b32.xlu0 %v2981, 48
        %v2986 = vpop.permute.xlu0 %2985
        %2987 = vrot.lane.b32.xlu0 %v2984, 48
        %v2988 = vpop.permute.xlu0 %2987
        %2991 = vst.msk [vmem:[%s2268] sm:$0xff] %vm2942, %v2986
        %2992 = vst.msk [vmem:[%s2268 + $0x8] sm:$0xff] %vm2942, %v2988
        %v2993 = vld [vmem:[#allocation2] sm:$0xff]
        %v2994 = vld [vmem:[#allocation2 + $0x8] sm:$0xff]
        %v2995 = vld [vmem:[#allocation2 + $0x10] sm:$0xff]
        %v2996 = vld [vmem:[#allocation2 + $0x18] sm:$0xff]
        %v2997 = vld [vmem:[#allocation2 + $0x20] sm:$0xff]
        %v2998 = vld [vmem:[#allocation2 + $0x28] sm:$0xff]
        %v2999 = vld [vmem:[#allocation2 + $0x30] sm:$0xff]
        %v3000 = vld [vmem:[#allocation2 + $0x38] sm:$0xff]
        %v3001 = vld [vmem:[#allocation2 + $0x40] sm:$0xff]
        %v3002 = vld [vmem:[#allocation2 + $0x48] sm:$0xff]
        %v3003 = vld [vmem:[#allocation2 + $0x50] sm:$0xff]
        %v3004 = vld [vmem:[#allocation2 + $0x58] sm:$0xff]
        %v3005 = vld [vmem:[#allocation2 + $0x60] sm:$0xff]
        %v3006 = vld [vmem:[#allocation2 + $0x68] sm:$0xff]
        %v3007 = vld [vmem:[#allocation2 + $0x70] sm:$0xff]
        %v3008 = vld [vmem:[#allocation2 + $0x78] sm:$0xff]
        %v3009 = vld [vmem:[%s319] sm:$0xf]
        %v3010 = vld [vmem:[%s319 + $0x4] sm:$0xf]
        %v3011 = vld [vmem:[%s319 + $0x8] sm:$0xf]
        %v3012 = vld [vmem:[%s319 + $0xc] sm:$0xf]
        %v3013 = vld [vmem:[%s319 + $0x10] sm:$0xf]
        %v3014 = vld [vmem:[%s319 + $0x14] sm:$0xf]
        %v3015 = vld [vmem:[%s319 + $0x18] sm:$0x7]
        %v3023 = vunpack.c.l.b16 %v3009
        %v3024 = vunpack.c.l.b16 %v3010
        %v3025 = vunpack.c.l.b16 %v3011
        %v3026 = vunpack.c.l.b16 %v3012
        %v3027 = vunpack.c.l.b16 %v3013
        %v3028 = vunpack.c.l.b16 %v3014
        %v3029 = vunpack.c.l.b16 %v3015
        %v3030 = vpack.c.b16 %v3024, %v3023
        %v3031 = vpack.c.b16 %v3026, %v3025
        %v3032 = vpack.c.b16 %v3028, %v3027
        %v3033 = vpack.c.b16 %v3029, %v3029
        %vm3037 = vcmask 441344
        %v3039 = vsel %vm3037, %v2993, 0
        %v3042 = vsel %vm3037, %v2994, 0
        %v3045 = vsel %vm3037, %v2995, 0
        %v3048 = vsel %vm3037, %v2996, 0
        %v3051 = vsel %vm3037, %v2997, 0
        %v3054 = vsel %vm3037, %v2998, 0
        %v3057 = vsel %vm3037, %v2999, 0
        %v3060 = vsel %vm3037, %v3000, 0
        %v3063 = vsel %vm3037, %v3001, 0
        %v3066 = vsel %vm3037, %v3002, 0
        %v3069 = vsel %vm3037, %v3003, 0
        %v3072 = vsel %vm3037, %v3004, 0
        %v3075 = vsel %vm3037, %v3005, 0
        %v3078 = vsel %vm3037, %v3006, 0
        %v3081 = vsel %vm3037, %v3007, 0
        %v3084 = vsel %vm3037, %v3008, 0
        %vm3086 = vcmask 1042432
        %v3088 = vsel %vm3086, %v3033, 0
        %3090 = vmatprep.subr.bf16.mxu0 0
        %3091 = vmatpush1.bf16.msra.mxu0 %v3030
        %3092 = vmatprep.subr.bf16.mxu0 0
        %3093 = vmatpush1.bf16.msra.mxu0 %v3031
        %3094 = vmatprep.subr.bf16.mxu0 0
        %3095 = vmatpush1.bf16.msra.mxu0 %v3032
        %3096 = vmatprep.subr.bf16.mxu0 0
        %3097 = vmatpush1.bf16.msra.mxu0 %v3088
        %3098 = vmatprep.subr.bf16.mxu0 0
        %3099 = vmatpush1.bf16.msra.mxu0 0
        %3100 = vmatprep.subr.bf16.mxu0 0
        %3101 = vmatpush1.bf16.msra.mxu0 0
        %3102 = vmatprep.subr.bf16.mxu0 0
        %3103 = vmatpush1.bf16.msra.mxu0 0
        %3104 = vmatprep.subr.bf16.mxu0 0
        %3105 = vmatpush1.bf16.msra.mxu0 0
        %3106 = vmatprep.subr.bf16.mxu0 0
        %3107 = vmatpush1.bf16.msra.mxu0 0
        %3108 = vmatprep.subr.bf16.mxu0 0
        %3109 = vmatpush1.bf16.msra.mxu0 0
        %3110 = vmatprep.subr.bf16.mxu0 0
        %3111 = vmatpush1.bf16.msra.mxu0 0
        %3112 = vmatprep.subr.bf16.mxu0 0
        %3113 = vmatpush1.bf16.msra.mxu0 0
        %3114 = vmatprep.subr.bf16.mxu0 0
        %3115 = vmatpush1.bf16.msra.mxu0 0
        %3116 = vmatprep.subr.bf16.mxu0 0
        %3117 = vmatpush1.bf16.msra.mxu0 0
        %3118 = vmatprep.subr.bf16.mxu0 0
        %3119 = vmatpush1.bf16.msra.mxu0 0
        %3120 = vmatprep.subr.bf16.mxu0 0
        %3121 = vmatpush1.bf16.msra.mxu0 0
        %3122 = vmatprep.mubr.bf16.mxu0 0
        %3123 = vmatmul.mubr.bf16.gmra.mrb[0].mxu0 %v3039
        %v3124 = vpop.f32.mrb[0].mxu0
        %v3125 = vadd.f32 0.0, %v3124
        %v3126 = vpop.f32.mrb[0].mxu0
        %v3127 = vpop.f32.mrb[0].mxu0
        %v3128 = vadd.f32 0.0, %v3127
        %v3129 = vpop.f32.mrb[0].mxu0
        %3130 = vmatprep.mubr.bf16.mxu0 0
        %3131 = vmatmul.mubr.bf16.gmra.mrb[0].mxu0 %v3042
        %v3132 = vpop.f32.mrb[0].mxu0
        %v3133 = vadd.f32 0.0, %v3132
        %v3134 = vpop.f32.mrb[0].mxu0
        %v3135 = vpop.f32.mrb[0].mxu0
        %v3136 = vadd.f32 0.0, %v3135
        %v3137 = vpop.f32.mrb[0].mxu0
        %3138 = vmatprep.mubr.bf16.mxu0 0
        %3139 = vmatmul.mubr.bf16.gmra.mrb[0].mxu0 %v3045
        %v3140 = vpop.f32.mrb[0].mxu0
        %v3141 = vadd.f32 0.0, %v3140
        %v3142 = vpop.f32.mrb[0].mxu0
        %v3143 = vpop.f32.mrb[0].mxu0
        %v3144 = vadd.f32 0.0, %v3143
        %v3145 = vpop.f32.mrb[0].mxu0
        %3146 = vmatprep.mubr.bf16.mxu0 0
        %3147 = vmatmul.mubr.bf16.gmra.mrb[0].mxu0 %v3048
        %v3148 = vpop.f32.mrb[0].mxu0
        %v3149 = vadd.f32 0.0, %v3148
        %v3150 = vpop.f32.mrb[0].mxu0
        %v3151 = vpop.f32.mrb[0].mxu0
        %v3152 = vadd.f32 0.0, %v3151
        %v3153 = vpop.f32.mrb[0].mxu0
        %3154 = vmatprep.mubr.bf16.mxu0 0
        %3155 = vmatmul.mubr.bf16.gmra.mrb[0].mxu0 %v3051
        %v3156 = vpop.f32.mrb[0].mxu0
        %v3157 = vadd.f32 0.0, %v3156
        %v3158 = vpop.f32.mrb[0].mxu0
        %v3159 = vpop.f32.mrb[0].mxu0
        %v3160 = vadd.f32 0.0, %v3159
        %v3161 = vpop.f32.mrb[0].mxu0
        %3162 = vmatprep.mubr.bf16.mxu0 0
        %3163 = vmatmul.mubr.bf16.gmra.mrb[0].mxu0 %v3054
        %v3164 = vpop.f32.mrb[0].mxu0
        %v3165 = vadd.f32 0.0, %v3164
        %v3166 = vpop.f32.mrb[0].mxu0
        %v3167 = vpop.f32.mrb[0].mxu0
        %v3168 = vadd.f32 0.0, %v3167
        %v3169 = vpop.f32.mrb[0].mxu0
        %3170 = vmatprep.mubr.bf16.mxu0 0
        %3171 = vmatmul.mubr.bf16.gmra.mrb[0].mxu0 %v3057
        %v3172 = vpop.f32.mrb[0].mxu0
        %v3173 = vadd.f32 0.0, %v3172
        %v3174 = vpop.f32.mrb[0].mxu0
        %v3175 = vpop.f32.mrb[0].mxu0
        %v3176 = vadd.f32 0.0, %v3175
        %v3177 = vpop.f32.mrb[0].mxu0
        %3178 = vmatprep.mubr.bf16.mxu0 0
        %3179 = vmatmul.mubr.bf16.gmra.mrb[0].mxu0 %v3060
        %v3180 = vpop.f32.mrb[0].mxu0
        %v3181 = vadd.f32 0.0, %v3180
        %v3182 = vpop.f32.mrb[0].mxu0
        %v3183 = vpop.f32.mrb[0].mxu0
        %v3184 = vadd.f32 0.0, %v3183
        %v3185 = vpop.f32.mrb[0].mxu0
        %3186 = vmatprep.mubr.bf16.mxu0 0
        %3187 = vmatmul.mubr.bf16.gmra.mrb[0].mxu0 %v3063
        %v3188 = vpop.f32.mrb[0].mxu0
        %v3189 = vadd.f32 0.0, %v3188
        %v3190 = vpop.f32.mrb[0].mxu0
        %v3191 = vpop.f32.mrb[0].mxu0
        %v3192 = vadd.f32 0.0, %v3191
        %v3193 = vpop.f32.mrb[0].mxu0
        %3194 = vmatprep.mubr.bf16.mxu0 0
        %3195 = vmatmul.mubr.bf16.gmra.mrb[0].mxu0 %v3066
        %v3196 = vpop.f32.mrb[0].mxu0
        %v3197 = vadd.f32 0.0, %v3196
        %v3198 = vpop.f32.mrb[0].mxu0
        %v3199 = vpop.f32.mrb[0].mxu0
        %v3200 = vadd.f32 0.0, %v3199
        %v3201 = vpop.f32.mrb[0].mxu0
        %3202 = vmatprep.mubr.bf16.mxu0 0
        %3203 = vmatmul.mubr.bf16.gmra.mrb[0].mxu0 %v3069
        %v3204 = vpop.f32.mrb[0].mxu0
        %v3205 = vadd.f32 0.0, %v3204
        %v3206 = vpop.f32.mrb[0].mxu0
        %v3207 = vpop.f32.mrb[0].mxu0
        %v3208 = vadd.f32 0.0, %v3207
        %v3209 = vpop.f32.mrb[0].mxu0
        %3210 = vmatprep.mubr.bf16.mxu0 0
        %3211 = vmatmul.mubr.bf16.gmra.mrb[0].mxu0 %v3072
        %v3212 = vpop.f32.mrb[0].mxu0
        %v3213 = vadd.f32 0.0, %v3212
        %v3214 = vpop.f32.mrb[0].mxu0
        %v3215 = vpop.f32.mrb[0].mxu0
        %v3216 = vadd.f32 0.0, %v3215
        %v3217 = vpop.f32.mrb[0].mxu0
        %3218 = vmatprep.mubr.bf16.mxu0 0
        %3219 = vmatmul.mubr.bf16.gmra.mrb[0].mxu0 %v3075
        %v3220 = vpop.f32.mrb[0].mxu0
        %v3221 = vadd.f32 0.0, %v3220
        %v3222 = vpop.f32.mrb[0].mxu0
        %v3223 = vpop.f32.mrb[0].mxu0
        %v3224 = vadd.f32 0.0, %v3223
        %v3225 = vpop.f32.mrb[0].mxu0
        %3226 = vmatprep.mubr.bf16.mxu0 0
        %3227 = vmatmul.mubr.bf16.gmra.mrb[0].mxu0 %v3078
        %v3228 = vpop.f32.mrb[0].mxu0
        %v3229 = vadd.f32 0.0, %v3228
        %v3230 = vpop.f32.mrb[0].mxu0
        %v3231 = vpop.f32.mrb[0].mxu0
        %v3232 = vadd.f32 0.0, %v3231
        %v3233 = vpop.f32.mrb[0].mxu0
        %3234 = vmatprep.mubr.bf16.mxu0 0
        %3235 = vmatmul.mubr.bf16.gmra.mrb[0].mxu0 %v3081
        %v3236 = vpop.f32.mrb[0].mxu0
        %v3237 = vadd.f32 0.0, %v3236
        %v3238 = vpop.f32.mrb[0].mxu0
        %v3239 = vpop.f32.mrb[0].mxu0
        %v3240 = vadd.f32 0.0, %v3239
        %v3241 = vpop.f32.mrb[0].mxu0
        %3242 = vmatprep.mubr.bf16.mxu0 0
        %3243 = vmatmul.mubr.bf16.gmra.mrb[0].mxu0 %v3084
        %v3244 = vpop.f32.mrb[0].mxu0
        %v3245 = vadd.f32 0.0, %v3244
        %v3246 = vpop.f32.mrb[0].mxu0
        %v3247 = vpop.f32.mrb[0].mxu0
        %v3248 = vadd.f32 0.0, %v3247
        %v3249 = vpop.f32.mrb[0].mxu0
        %3250 = vdwg.mxu0
        %vm3251 = vcmp.ge.f32.partialorder %v3125, 0.0
        %vm3252 = vcmp.ge.f32.partialorder %v3128, 0.0
        %vm3253 = vcmp.ge.f32.partialorder %v3133, 0.0
        %vm3254 = vcmp.ge.f32.partialorder %v3136, 0.0
        %vm3255 = vcmp.ge.f32.partialorder %v3141, 0.0
        %vm3256 = vcmp.ge.f32.partialorder %v3144, 0.0
        %vm3257 = vcmp.ge.f32.partialorder %v3149, 0.0
        %vm3258 = vcmp.ge.f32.partialorder %v3152, 0.0
        %vm3259 = vcmp.ge.f32.partialorder %v3157, 0.0
        %vm3260 = vcmp.ge.f32.partialorder %v3160, 0.0
        %vm3261 = vcmp.ge.f32.partialorder %v3165, 0.0
        %vm3262 = vcmp.ge.f32.partialorder %v3168, 0.0
        %vm3263 = vcmp.ge.f32.partialorder %v3173, 0.0
        %vm3264 = vcmp.ge.f32.partialorder %v3176, 0.0
        %vm3265 = vcmp.ge.f32.partialorder %v3181, 0.0
        %vm3266 = vcmp.ge.f32.partialorder %v3184, 0.0
        %vm3267 = vcmp.ge.f32.partialorder %v3189, 0.0
        %vm3268 = vcmp.ge.f32.partialorder %v3192, 0.0
        %vm3269 = vcmp.ge.f32.partialorder %v3197, 0.0
        %vm3270 = vcmp.ge.f32.partialorder %v3200, 0.0
        %vm3271 = vcmp.ge.f32.partialorder %v3205, 0.0
        %vm3272 = vcmp.ge.f32.partialorder %v3208, 0.0
        %vm3273 = vcmp.ge.f32.partialorder %v3213, 0.0
        %vm3274 = vcmp.ge.f32.partialorder %v3216, 0.0
        %vm3275 = vcmp.ge.f32.partialorder %v3221, 0.0
        %vm3276 = vcmp.ge.f32.partialorder %v3224, 0.0
        %vm3277 = vcmp.ge.f32.partialorder %v3229, 0.0
        %vm3278 = vcmp.ge.f32.partialorder %v3232, 0.0
        %vm3279 = vcmp.ge.f32.partialorder %v3237, 0.0
        %vm3280 = vcmp.ge.f32.partialorder %v3240, 0.0
        %vm3281 = vcmp.ge.f32.partialorder %v3245, 0.0
        %vm3282 = vcmp.ge.f32.partialorder %v3248, 0.0
        %v3283 = vmul.f32 %v3125, 1.4142135
        %v3284 = vmul.f32 %v3128, 1.4142135
        %v3285 = vmul.f32 %v3133, 1.4142135
        %v3286 = vmul.f32 %v3136, 1.4142135
        %v3287 = vmul.f32 %v3141, 1.4142135
        %v3288 = vmul.f32 %v3144, 1.4142135
        %v3289 = vmul.f32 %v3149, 1.4142135
        %v3290 = vmul.f32 %v3152, 1.4142135
        %v3291 = vmul.f32 %v3157, 1.4142135
        %v3292 = vmul.f32 %v3160, 1.4142135
        %v3293 = vmul.f32 %v3165, 1.4142135
        %v3294 = vmul.f32 %v3168, 1.4142135
        %v3295 = vmul.f32 %v3173, 1.4142135
        %v3296 = vmul.f32 %v3176, 1.4142135
        %v3297 = vmul.f32 %v3181, 1.4142135
        %v3298 = vmul.f32 %v3184, 1.4142135
        %v3299 = vmul.f32 %v3189, 1.4142135
        %v3300 = vmul.f32 %v3192, 1.4142135
        %v3301 = vmul.f32 %v3197, 1.4142135
        %v3302 = vmul.f32 %v3200, 1.4142135
        %v3303 = vmul.f32 %v3205, 1.4142135
        %v3304 = vmul.f32 %v3208, 1.4142135
        %v3305 = vmul.f32 %v3213, 1.4142135
        %v3306 = vmul.f32 %v3216, 1.4142135
        %v3307 = vmul.f32 %v3221, 1.4142135
        %v3308 = vmul.f32 %v3224, 1.4142135
        %v3309 = vmul.f32 %v3229, 1.4142135
        %v3310 = vmul.f32 %v3232, 1.4142135
        %v3311 = vmul.f32 %v3237, 1.4142135
        %v3312 = vmul.f32 %v3240, 1.4142135
        %v3313 = vmul.f32 %v3245, 1.4142135
        %v3314 = vmul.f32 %v3248, 1.4142135
        %v3315 = vmul.f32 %v3125, 0.28284273
        %v3316 = vmul.f32 %v3128, 0.28284273
        %v3317 = vmul.f32 %v3133, 0.28284273
        %v3318 = vmul.f32 %v3136, 0.28284273
        %v3319 = vmul.f32 %v3141, 0.28284273
        %v3320 = vmul.f32 %v3144, 0.28284273
        %v3321 = vmul.f32 %v3149, 0.28284273
        %v3322 = vmul.f32 %v3152, 0.28284273
        %v3323 = vmul.f32 %v3157, 0.28284273
        %v3324 = vmul.f32 %v3160, 0.28284273
        %v3325 = vmul.f32 %v3165, 0.28284273
        %v3326 = vmul.f32 %v3168, 0.28284273
        %v3327 = vmul.f32 %v3173, 0.28284273
        %v3328 = vmul.f32 %v3176, 0.28284273
        %v3329 = vmul.f32 %v3181, 0.28284273
        %v3330 = vmul.f32 %v3184, 0.28284273
        %v3331 = vmul.f32 %v3189, 0.28284273
        %v3332 = vmul.f32 %v3192, 0.28284273
        %v3333 = vmul.f32 %v3197, 0.28284273
        %v3334 = vmul.f32 %v3200, 0.28284273
        %v3335 = vmul.f32 %v3205, 0.28284273
        %v3336 = vmul.f32 %v3208, 0.28284273
        %v3337 = vmul.f32 %v3213, 0.28284273
        %v3338 = vmul.f32 %v3216, 0.28284273
        %v3339 = vmul.f32 %v3221, 0.28284273
        %v3340 = vmul.f32 %v3224, 0.28284273
        %v3341 = vmul.f32 %v3229, 0.28284273
        %v3342 = vmul.f32 %v3232, 0.28284273
        %v3343 = vmul.f32 %v3237, 0.28284273
        %v3344 = vmul.f32 %v3240, 0.28284273
        %v3345 = vmul.f32 %v3245, 0.28284273
        %v3346 = vmul.f32 %v3248, 0.28284273
        %v3347 = vsel %vm3251, %v3283, %v3315
        %v3348 = vsel %vm3252, %v3284, %v3316
        %v3349 = vsel %vm3253, %v3285, %v3317
        %v3350 = vsel %vm3254, %v3286, %v3318
        %v3351 = vsel %vm3255, %v3287, %v3319
        %v3352 = vsel %vm3256, %v3288, %v3320
        %v3353 = vsel %vm3257, %v3289, %v3321
        %v3354 = vsel %vm3258, %v3290, %v3322
        %v3355 = vsel %vm3259, %v3291, %v3323
        %v3356 = vsel %vm3260, %v3292, %v3324
        %v3357 = vsel %vm3261, %v3293, %v3325
        %v3358 = vsel %vm3262, %v3294, %v3326
        %v3359 = vsel %vm3263, %v3295, %v3327
        %v3360 = vsel %vm3264, %v3296, %v3328
        %v3361 = vsel %vm3265, %v3297, %v3329
        %v3362 = vsel %vm3266, %v3298, %v3330
        %v3363 = vsel %vm3267, %v3299, %v3331
        %v3364 = vsel %vm3268, %v3300, %v3332
        %v3365 = vsel %vm3269, %v3301, %v3333
        %v3366 = vsel %vm3270, %v3302, %v3334
        %v3367 = vsel %vm3271, %v3303, %v3335
        %v3368 = vsel %vm3272, %v3304, %v3336
        %v3369 = vsel %vm3273, %v3305, %v3337
        %v3370 = vsel %vm3274, %v3306, %v3338
        %v3371 = vsel %vm3275, %v3307, %v3339
        %v3372 = vsel %vm3276, %v3308, %v3340
        %v3373 = vsel %vm3277, %v3309, %v3341
        %v3374 = vsel %vm3278, %v3310, %v3342
        %v3375 = vsel %vm3279, %v3311, %v3343
        %v3376 = vsel %vm3280, %v3312, %v3344
        %v3377 = vsel %vm3281, %v3313, %v3345
        %v3378 = vsel %vm3282, %v3314, %v3346
        %v3379 = vpack.c.bf16 %v3348, %v3347
        %v3380 = vpack.c.bf16 %v3350, %v3349
        %v3381 = vpack.c.bf16 %v3352, %v3351
        %v3382 = vpack.c.bf16 %v3354, %v3353
        %v3383 = vpack.c.bf16 %v3356, %v3355
        %v3384 = vpack.c.bf16 %v3358, %v3357
        %v3385 = vpack.c.bf16 %v3360, %v3359
        %v3386 = vpack.c.bf16 %v3362, %v3361
        %v3387 = vpack.c.bf16 %v3364, %v3363
        %v3388 = vpack.c.bf16 %v3366, %v3365
        %v3389 = vpack.c.bf16 %v3368, %v3367
        %v3390 = vpack.c.bf16 %v3370, %v3369
        %v3391 = vpack.c.bf16 %v3372, %v3371
        %v3392 = vpack.c.bf16 %v3374, %v3373
        %v3393 = vpack.c.bf16 %v3376, %v3375
        %v3394 = vpack.c.bf16 %v3378, %v3377
        %v3411 = vunpack.c.l.b16 %v3379
        %v3412 = vunpack.c.h.b16 %v3379
        %v3413 = vunpack.c.l.b16 %v3380
        %v3414 = vunpack.c.h.b16 %v3380
        %v3415 = vunpack.c.l.b16 %v3381
        %v3416 = vunpack.c.h.b16 %v3381
        %v3417 = vunpack.c.l.b16 %v3382
        %v3418 = vunpack.c.h.b16 %v3382
        %v3419 = vunpack.c.l.b16 %v3383
        %v3420 = vunpack.c.h.b16 %v3383
        %v3421 = vunpack.c.l.b16 %v3384
        %v3422 = vunpack.c.h.b16 %v3384
        %v3423 = vunpack.c.l.b16 %v3385
        %v3424 = vunpack.c.h.b16 %v3385
        %v3425 = vunpack.c.l.b16 %v3386
        %v3426 = vunpack.c.h.b16 %v3386
        %v3427 = vunpack.c.l.b16 %v3387
        %v3428 = vunpack.c.h.b16 %v3387
        %v3429 = vunpack.c.l.b16 %v3388
        %v3430 = vunpack.c.h.b16 %v3388
        %v3431 = vunpack.c.l.b16 %v3389
        %v3432 = vunpack.c.h.b16 %v3389
        %v3433 = vunpack.c.l.b16 %v3390
        %v3434 = vunpack.c.h.b16 %v3390
        %v3435 = vunpack.c.l.b16 %v3391
        %v3436 = vunpack.c.h.b16 %v3391
        %v3437 = vunpack.c.l.b16 %v3392
        %v3438 = vunpack.c.h.b16 %v3392
        %v3439 = vunpack.c.l.b16 %v3393
        %v3440 = vunpack.c.h.b16 %v3393
        %v3441 = vunpack.c.l.b16 %v3394
        %v3442 = vunpack.c.h.b16 %v3394
        %v3443 = vpack.c.b16 %v3411, %v3411
        %v3444 = vpack.c.b16 %v3412, %v3412
        %v3445 = vpack.c.b16 %v3413, %v3413
        %v3446 = vpack.c.b16 %v3414, %v3414
        %v3447 = vpack.c.b16 %v3415, %v3415
        %v3448 = vpack.c.b16 %v3416, %v3416
        %v3449 = vpack.c.b16 %v3417, %v3417
        %v3450 = vpack.c.b16 %v3418, %v3418
        %v3451 = vpack.c.b16 %v3419, %v3419
        %v3452 = vpack.c.b16 %v3420, %v3420
        %v3453 = vpack.c.b16 %v3421, %v3421
        %v3454 = vpack.c.b16 %v3422, %v3422
        %v3455 = vpack.c.b16 %v3423, %v3423
        %v3456 = vpack.c.b16 %v3424, %v3424
        %v3457 = vpack.c.b16 %v3425, %v3425
        %v3458 = vpack.c.b16 %v3426, %v3426
        %v3459 = vpack.c.b16 %v3427, %v3427
        %v3460 = vpack.c.b16 %v3428, %v3428
        %v3461 = vpack.c.b16 %v3429, %v3429
        %v3462 = vpack.c.b16 %v3430, %v3430
        %v3463 = vpack.c.b16 %v3431, %v3431
        %v3464 = vpack.c.b16 %v3432, %v3432
        %v3465 = vpack.c.b16 %v3433, %v3433
        %v3466 = vpack.c.b16 %v3434, %v3434
        %v3467 = vpack.c.b16 %v3435, %v3435
        %v3468 = vpack.c.b16 %v3436, %v3436
        %v3469 = vpack.c.b16 %v3437, %v3437
        %v3470 = vpack.c.b16 %v3438, %v3438
        %v3471 = vpack.c.b16 %v3439, %v3439
        %v3472 = vpack.c.b16 %v3440, %v3440
        %v3473 = vpack.c.b16 %v3441, %v3441
        %v3474 = vpack.c.b16 %v3442, %v3442
        %3507 = vst [vmem:[%s275] sm:$0xf] %v3443
        %3508 = vst [vmem:[%s275 + $0x4] sm:$0xf] %v3444
        %3509 = vst [vmem:[%s275 + $0x8] sm:$0xf] %v3445
        %3510 = vst [vmem:[%s275 + $0xc] sm:$0xf] %v3446
        %3511 = vst [vmem:[%s275 + $0x10] sm:$0xf] %v3447
        %3512 = vst [vmem:[%s275 + $0x14] sm:$0xf] %v3448
        %3513 = vst [vmem:[%s275 + $0x18] sm:$0xf] %v3449
        %3514 = vst [vmem:[%s275 + $0x1c] sm:$0xf] %v3450
        %3515 = vst [vmem:[%s275 + $0x20] sm:$0xf] %v3451
        %3516 = vst [vmem:[%s275 + $0x24] sm:$0xf] %v3452
        %3517 = vst [vmem:[%s275 + $0x28] sm:$0xf] %v3453
        %3518 = vst [vmem:[%s275 + $0x2c] sm:$0xf] %v3454
        %3519 = vst [vmem:[%s275 + $0x30] sm:$0xf] %v3455
        %3520 = vst [vmem:[%s275 + $0x34] sm:$0xf] %v3456
        %3521 = vst [vmem:[%s275 + $0x38] sm:$0xf] %v3457
        %3522 = vst [vmem:[%s275 + $0x3c] sm:$0xf] %v3458
        %3523 = vst [vmem:[%s275 + $0x40] sm:$0xf] %v3459
        %3524 = vst [vmem:[%s275 + $0x44] sm:$0xf] %v3460
        %3525 = vst [vmem:[%s275 + $0x48] sm:$0xf] %v3461
        %3526 = vst [vmem:[%s275 + $0x4c] sm:$0xf] %v3462
        %3527 = vst [vmem:[%s275 + $0x50] sm:$0xf] %v3463
        %3528 = vst [vmem:[%s275 + $0x54] sm:$0xf] %v3464
        %3529 = vst [vmem:[%s275 + $0x58] sm:$0xf] %v3465
        %3530 = vst [vmem:[%s275 + $0x5c] sm:$0xf] %v3466
        %3531 = vst [vmem:[%s275 + $0x60] sm:$0xf] %v3467
        %3532 = vst [vmem:[%s275 + $0x64] sm:$0xf] %v3468
        %3533 = vst [vmem:[%s275 + $0x68] sm:$0xf] %v3469
        %3534 = vst [vmem:[%s275 + $0x6c] sm:$0xf] %v3470
        %3535 = vst [vmem:[%s275 + $0x70] sm:$0xf] %v3471
        %3536 = vst [vmem:[%s275 + $0x74] sm:$0xf] %v3472
        %3537 = vst [vmem:[%s275 + $0x78] sm:$0xf] %v3473
        %3538 = vst [vmem:[%s275 + $0x7c] sm:$0xf] %v3474
        %s3539 = sand.u32 %s136, 1
        %s3540 = scalar_lea.sflag [#allocation4], %s3539
        %s3541 = sand.u32 %s136, 1
        %s3542 = smul.addr %s3541, 128
        %s3543 = scalar_lea.vmem [#allocation3], %s3542
        // Predicated region
        $region33: #{tpu_custom_call.1} parent=31 // pred_check
          %p3544 = pneg %p146
        $region34: #{tpu_custom_call.1} parent=31 // pred_check_branch
          %3546 = sbr.rel (%p3544) target = $region36
        $region35: #{tpu_custom_call.1} parent=31 // pred_region
          %s3547 = smul.u32 16, %s24
          %s3549 = ssub.s32 2048, 2048
          %3550 = vsyncadd %s3540, %s3549
          %s3551 = smul.addr %s3547, 2
          %s3552 = sadd.s32 %s23, %s3551
          %s3553 = smul.addr %s22, 32
          %s3554 = sadd.s32 %s3552, %s3553
          %s3555 = smul.addr %s3554, 64
          %s3556 = scalar_lea.hbm %s3, %s3555
          %s3557 = sshll.u32 %s3543, 4
          %s3558 = int_to_ptr.vmem [resolvable:$true] %s3557
          %3563 = dma.vmem_to_hbm [thread:$0]  %s3558, 2048, %s3556, %s3540, 64, 64, 4
        $region36: #{tpu_custom_call.1} parent=31 // pred_fallthru
          _
      $region32: #{tpu_custom_call.1} parent=5 // pred_fallthru
        _
      %p3564 = scmp.le.s32.totalorder 2, %s12
      // Predicated region
      $region37: #{tpu_custom_call.1} parent=5 // pred_check
        %p3565 = pneg %p3564
      $region38: #{tpu_custom_call.1} parent=5 // pred_check_branch
        %3567 = sbr.rel (%p3565) target = $region40
      $region39: #{tpu_custom_call.1} parent=5 // pred_region
        %s3568 = ssub.s32 %s12, 2
        // Predicated region
        $region41: #{tpu_custom_call.1} parent=39 // pred_check
          %p3569 = pneg %p152
        $region42: #{tpu_custom_call.1} parent=39 // pred_check_branch
          %3571 = sbr.rel (%p3569) target = $region44
        $region43: #{tpu_custom_call.1} parent=39 // pred_region
          %s3572 = sand.u32 %s137, 1
          %s3573 = scalar_lea.sflag [#allocation4], %s3572
          %s3574 = sand.u32 %s137, 1
          %s3575 = smul.addr %s3574, 128
          %s3576 = scalar_lea.vmem [#allocation3], %s3575
          %3577 = dma.done %s3573, 2048
        $region44: #{tpu_custom_call.1} parent=39 // pred_fallthru
          _
      $region40: #{tpu_custom_call.1} parent=5 // pred_fallthru
        _
    $region6: #{tpu_custom_call.1} parent=1 // loop_footer
      %s16 = sadd.s32 1, %s12
    $region7: #{tpu_custom_call.1} parent=1 // loop_footer_branch
      %11 = sbr.rel target = $region3
    $region8: #{tpu_custom_call.1} parent=1 // loop_exit
      _
    %3578 = vsyncpa [#allocation4], 1
    %s3579 = scalar_lea.sflag [#allocation4], 1
    %3580 = vsyncpa %s3579, 1

// kernel: tpu_custom_call.1
$region0: #{tpu_custom_call.1}
  #allocation0 [shape = 'u32[]', space=smem, size = 0x4, offset = 0x4, fixed_abs, tag = 'smem constant byte address 0x4 - core index']
  #allocation1 [shape = 'u32[144,128]{1,0:T(1,128)}', space=vmem, size = 0x12000, scoped, tag = 'internal scratch']
  #allocation2 [shape = 'bf16[16,16,54]{2,1,0:T(16,128)(2,1)}', space=vmem, size = 0x10000, scoped, tag = 'scratch operand']
  %s0 = inlined_call_operand.vmem [shape: bf16[2,18,18,6], index: 0, kind: input, shape index: {}]
  %s1 = inlined_call_operand.vmem [shape: bf16[2,18,18,6], index: 1, kind: input, shape index: {}]
  %s2 = inlined_call_operand.vmem [shape: bf16[2,54,128], index: 2, kind: input, shape index: {}]
  %s3 = inlined_call_operand.hbm [shape: bf16[2,16,16,128], index: 3, kind: output, shape index: {}]
  %s4 = sld [smem:[#allocation0]]
  $region45: #{tpu_custom_call.1} parent=0
    _
  %s6 = ssub.s32 1, %s4
  %s7 = scalar_select 0, %s6, %s4
  $region1: #{tpu_custom_call.1} parent=0
    #allocation3 [shape = 'u8[131072]{0}', space=vmem, size = 0x20000, scoped, tag = 'output window, operand 0']
    #allocation4 [shape = 's32[2]{0}', space=sflag, size = 0x8, scoped, tag = 'scoped memory for tpu_custom_call.1']
    %8 = vsyncpa [#allocation4], 0
    %s9 = scalar_lea.sflag [#allocation4], 1
    %10 = vsyncpa %s9, 0
    loop: start=0, step=1, limit=4
    $region2: #{tpu_custom_call.1} parent=1 // loop_pre_header
      _
    $region3: #{tpu_custom_call.1} parent=1 // loop_header
      %s12 = sphi 0, %s16
      %p13 = scmp.ge.s32.totalorder %s12, 4
      %s19 = sphi 0, %s38
      %s20 = sphi 0, %s34
      %s21 = sphi 0, %s30
      %s22 = sphi 0, %s19
      %s23 = sphi 0, %s20
      %s24 = sphi 0, %s21
      %s25 = sphi 0, %s22
      %s26 = sphi 0, %s23
      %s27 = sphi 0, %s24
      %s43 = sphi 0, %s45
      %s46 = sphi 0, %s43
      %s47 = sphi 0, %s46
      %s63 = sphi 0, %s47
      %s75 = sphi 0, %s77
      %s78 = sphi 0, %s75
      %s79 = sphi 0, %s78
      %s95 = sphi 0, %s79
      %s103 = sphi 0, %s105
      %s106 = sphi 0, %s103
      %s107 = sphi 0, %s106
      %s123 = sphi 0, %s107
      %s133 = sphi 0, %s135
      %s136 = sphi 0, %s133
      %s137 = sphi 0, %s136
      %s153 = sphi 0, %s137
    $region4: #{tpu_custom_call.1} parent=1 // loop_header_branch
      %15 = sbr.rel (%p13) target = $region8
    $region5: #{tpu_custom_call.1} parent=1 // loop_body
      %s17 = ssub.s32 %s12, 1
      %s18 = ssub.s32 %s12, 2
      %s28 = sadd.s32 1, %s21
      %p29 = scmp.ge.s32.totalorder %s28, 1
      %s30 = scalar_select %p29, 0, %s28
      %s31 = sadd.s32 1, %s20
      %s32 = scalar_select %p29, %s31, %s20
      %p33 = scmp.ge.s32.totalorder %s32, 1
      %s34 = scalar_select %p33, 0, %s32
      %s35 = sadd.s32 1, %s19
      %s36 = scalar_select %p33, %s35, %s19
      %p37 = scmp.ge.s32.totalorder %s36, 2
      %s38 = scalar_select %p37, 0, %s36
      %s39 = ssub.s32 %s19, %s38
      %s40 = ssub.s32 %s21, %s30
      %s41 = sor.u32 %s39, %s40
      %p42 = scmp.eq.s32.totalorder %s41, 0
      %s44 = sadd.s32 %s43, 1
      %s45 = scalar_select %p42, %s43, %s44
      %p48 = pneg %p42
      %p49 = scmp.eq.s32.totalorder %s12, 1
      %p50 = por %p48, %p49
      %p51 = scmp.ne.s32.totalorder %s43, %s46
      %p52 = scmp.eq.s32.totalorder %s12, 0
      %p53 = por %p51, %p52
      %p54 = scmp.ne.s32.totalorder %s43, %s46
      %p55 = scmp.eq.s32.totalorder %s17, 1
      %p56 = por %p54, %p55
      %p57 = scmp.ne.s32.totalorder %s46, %s47
      %p58 = scmp.eq.s32.totalorder %s17, 0
      %p59 = por %p57, %p58
      %p60 = scmp.ne.s32.totalorder %s46, %s47
      %p61 = scmp.eq.s32.totalorder %s18, 1
      %p62 = por %p60, %p61
      %p64 = scmp.ne.s32.totalorder %s47, %s63
      %p65 = scmp.eq.s32.totalorder %s18, 0
      %p66 = por %p64, %p65
      %s67 = sadd.s32 %s21, 1
      %s68 = smul.u32 %s67, 8
      %s69 = sadd.s32 %s30, 1
      %s70 = smul.u32 %s69, 8
      %s71 = ssub.s32 %s19, %s38
      %s72 = ssub.s32 %s68, %s70
      %s73 = sor.u32 %s71, %s72
      %p74 = scmp.eq.s32.totalorder %s73, 0
      %s76 = sadd.s32 %s75, 1
      %s77 = scalar_select %p74, %s75, %s76
      %p80 = pneg %p74
      %p81 = scmp.eq.s32.totalorder %s12, 1
      %p82 = por %p80, %p81
      %p83 = scmp.ne.s32.totalorder %s75, %s78
      %p84 = scmp.eq.s32.totalorder %s12, 0
      %p85 = por %p83, %p84
      %p86 = scmp.ne.s32.totalorder %s75, %s78
      %p87 = scmp.eq.s32.totalorder %s17, 1
      %p88 = por %p86, %p87
      %p89 = scmp.ne.s32.totalorder %s78, %s79
      %p90 = scmp.eq.s32.totalorder %s17, 0
      %p91 = por %p89, %p90
      %p92 = scmp.ne.s32.totalorder %s78, %s79
      %p93 = scmp.eq.s32.totalorder %s18, 1
      %p94 = por %p92, %p93
      %p96 = scmp.ne.s32.totalorder %s79, %s95
      %p97 = scmp.eq.s32.totalorder %s18, 0
      %p98 = por %p96, %p97
      %s99 = ssub.s32 %s19, %s38
      %s100 = ssub.s32 %s20, %s34
      %s101 = sor.u32 %s99, %s100
      %p102 = scmp.eq.s32.totalorder %s101, 0
      %s104 = sadd.s32 %s103, 1
      %s105 = scalar_select %p102, %s103, %s104
      %p108 = pneg %p102
      %p109 = scmp.eq.s32.totalorder %s12, 1
      %p110 = por %p108, %p109
      %p111 = scmp.ne.s32.totalorder %s103, %s106
      %p112 = scmp.eq.s32.totalorder %s12, 0
      %p113 = por %p111, %p112
      %p114 = scmp.ne.s32.totalorder %s103, %s106
      %p115 = scmp.eq.s32.totalorder %s17, 1
      %p116 = por %p114, %p115
      %p117 = scmp.ne.s32.totalorder %s106, %s107
      %p118 = scmp.eq.s32.totalorder %s17, 0
      %p119 = por %p117, %p118
      %p120 = scmp.ne.s32.totalorder %s106, %s107
      %p121 = scmp.eq.s32.totalorder %s18, 1
      %p122 = por %p120, %p121
      %p124 = scmp.ne.s32.totalorder %s107, %s123
      %p125 = scmp.eq.s32.totalorder %s18, 0
      %p126 = por %p124, %p125
      %s127 = ssub.s32 %s19, %s38
      %s128 = ssub.s32 %s21, %s30
      %s129 = sor.u32 %s127, %s128
      %s130 = ssub.s32 %s20, %s34
      %s131 = sor.u32 %s129, %s130
      %p132 = scmp.eq.s32.totalorder %s131, 0
      %s134 = sadd.s32 %s133, 1
      %s135 = scalar_select %p132, %s133, %s134
      %p138 = pneg %p132
      %p139 = scmp.eq.s32.totalorder %s12, 1
      %p140 = por %p138, %p139
      %p141 = scmp.ne.s32.totalorder %s133, %s136
      %p142 = scmp.eq.s32.totalorder %s12, 0
      %p143 = por %p141, %p142
      %p144 = scmp.ne.s32.totalorder %s133, %s136
      %p145 = scmp.eq.s32.totalorder %s17, 1
      %p146 = por %p144, %p145
      %p147 = scmp.ne.s32.totalorder %s136, %s137
      %p148 = scmp.eq.s32.totalorder %s17, 0
      %p149 = por %p147, %p148
      %p150 = scmp.ne.s32.totalorder %s136, %s137
      %p151 = scmp.eq.s32.totalorder %s18, 1
      %p152 = por %p150, %p151
      %p154 = scmp.ne.s32.totalorder %s137, %s153
      %p155 = scmp.eq.s32.totalorder %s18, 0
      %p156 = por %p154, %p155
      %p157 = scmp.le.s32.totalorder 1, %s12
      %p158 = scmp.lt.s32.totalorder %s12, 3
      %p159 = pnand %p157, %p158
      %p160 = pneg %p159
      // Predicated region
      $region9: #{tpu_custom_call.1} parent=5 // pred_check
        _
      $region10: #{tpu_custom_call.1} parent=5 // pred_check_branch
        %162 = sbr.rel (%p159) target = $region12
      $region11: #{tpu_custom_call.1} parent=5 // pred_region
        %s163 = ssub.s32 %s12, 1
      $region12: #{tpu_custom_call.1} parent=5 // pred_fallthru
        _
      %p164 = scmp.lt.s32.totalorder %s12, 2
      // Predicated region
      $region13: #{tpu_custom_call.1} parent=5 // pred_check
        %p165 = pneg %p164
      $region14: #{tpu_custom_call.1} parent=5 // pred_check_branch
        %167 = sbr.rel (%p165) target = $region16
      $region15: #{tpu_custom_call.1} parent=5 // pred_region
        // Predicated region
        $region17: #{tpu_custom_call.1} parent=15 // pred_check
          %p168 = pneg %p53
        $region18: #{tpu_custom_call.1} parent=15 // pred_check_branch
          %170 = sbr.rel (%p168) target = $region20
        $region19: #{tpu_custom_call.1} parent=15 // pred_region
          %s171 = smul.u32 16, %s21
          %s172 = ssub.s32 18, %s171
          %p173 = scmp.lt.s32.totalorder %s172, 16
          %s174 = scalar_select %p173, %s172, 16
          %s175 = smul.u32 64, %s174
          %s176 = smul.u32 %s175, 3
          %p177 = scmp.lt.s32.totalorder %s19, 1
          %s178 = scalar_select %p177, %s19, 1
          %p179 = scmp.lt.s32.totalorder %s171, 17
          %s180 = scalar_select %p179, %s171, 17
          %s181 = smul.addr %s180, 3
          %s182 = smul.addr %s178, 54
          %s183 = sadd.s32 %s181, %s182
          %s184 = smul.addr %s183, 4
          %s185 = scalar_lea.vmem %s0, %s184
          %s186 = smul.u32 16, %s21
          %s187 = ssub.s32 18, %s186
          %p188 = scmp.lt.s32.totalorder %s187, 16
          %s189 = scalar_select %p188, %s187, 16
          %s190 = smul.u32 64, %s189
          %s191 = smul.u32 %s190, 3
        $region20: #{tpu_custom_call.1} parent=15 // pred_fallthru
          _
        // Predicated region
        $region21: #{tpu_custom_call.1} parent=15 // pred_check
          %p192 = pneg %p85
        $region22: #{tpu_custom_call.1} parent=15 // pred_check_branch
          %194 = sbr.rel (%p192) target = $region24
        $region23: #{tpu_custom_call.1} parent=15 // pred_region
          %s195 = sadd.s32 %s21, 1
          %s196 = smul.u32 %s195, 8
          %s197 = smul.u32 2, %s196
          %p198 = scmp.lt.s32.totalorder %s19, 1
          %s199 = scalar_select %p198, %s19, 1
          %p200 = scmp.lt.s32.totalorder %s197, 17
          %s201 = scalar_select %p200, %s197, 17
          %s202 = smul.addr %s201, 3
          %s203 = smul.addr %s199, 54
          %s204 = sadd.s32 %s202, %s203
          %s205 = smul.addr %s204, 4
          %s206 = scalar_lea.vmem %s1, %s205
          %s207 = sadd.s32 %s21, 1
          %s208 = smul.u32 %s207, 8
          %s209 = smul.u32 2, %s208
        $region24: #{tpu_custom_call.1} parent=15 // pred_fallthru
          _
        // Predicated region
        $region25: #{tpu_custom_call.1} parent=15 // pred_check
          %p210 = pneg %p113
        $region26: #{tpu_custom_call.1} parent=15 // pred_check_branch
          %212 = sbr.rel (%p210) target = $region28
        $region27: #{tpu_custom_call.1} parent=15 // pred_region
          %p213 = scmp.lt.s32.totalorder %s19, 1
          %s214 = scalar_select %p213, %s19, 1
          %p215 = scmp.lt.s32.totalorder %s20, 0
          %s216 = scalar_select %p215, %s20, 0
          %s217 = smul.addr %s214, 7
          %s218 = sadd.s32 %s216, %s217
          %s219 = smul.addr %s218, 4
          %s220 = scalar_lea.vmem %s2, %s219
        $region28: #{tpu_custom_call.1} parent=15 // pred_fallthru
          _
      $region16: #{tpu_custom_call.1} parent=5 // pred_fallthru
        _
      %p221 = scmp.le.s32.totalorder 1, %s12
      %p222 = scmp.lt.s32.totalorder %s12, 3
      %p223 = pnand %p221, %p222
      %p224 = pneg %p223
      // Predicated region
      $region29: #{tpu_custom_call.1} parent=5 // pred_check
        _
      $region30: #{tpu_custom_call.1} parent=5 // pred_check_branch
        %226 = sbr.rel (%p223) target = $region32
      $region31: #{tpu_custom_call.1} parent=5 // pred_region
        %s227 = ssub.s32 %s12, 1
        %s228 = smul.u32 16, %s24
        %s229 = ssub.s32 18, %s228
        %p230 = scmp.lt.s32.totalorder %s229, 16
        %s231 = scalar_select %p230, %s229, 16
        %s232 = smul.u32 64, %s231
        %s233 = smul.u32 %s232, 3
        %p234 = scmp.lt.s32.totalorder %s22, 1
        %s235 = scalar_select %p234, %s22, 1
        %p236 = scmp.lt.s32.totalorder %s228, 17
        %s237 = scalar_select %p236, %s228, 17
        %s238 = smul.addr %s237, 3
        %s239 = smul.addr %s235, 54
        %s240 = sadd.s32 %s238, %s239
        %s241 = smul.addr %s240, 4
        %s242 = scalar_lea.vmem %s0, %s241
        %p243 = pneg %p59
        %p244 = pneg %p56
        %s245 = sadd.s32 %s24, 1
        %s246 = smul.u32 %s245, 8
        %s247 = smul.u32 2, %s246
        %p248 = scmp.lt.s32.totalorder %s22, 1
        %s249 = scalar_select %p248, %s22, 1
        %p250 = scmp.lt.s32.totalorder %s247, 17
        %s251 = scalar_select %p250, %s247, 17
        %s252 = smul.addr %s251, 3
        %s253 = smul.addr %s249, 54
        %s254 = sadd.s32 %s252, %s253
        %s255 = smul.addr %s254, 4
        %s256 = scalar_lea.vmem %s1, %s255
        %p257 = pneg %p91
        %p258 = pneg %p88
        %p259 = scmp.lt.s32.totalorder %s22, 1
        %s260 = scalar_select %p259, %s22, 1
        %p261 = scmp.lt.s32.totalorder %s23, 0
        %s262 = scalar_select %p261, %s23, 0
        %s263 = smul.addr %s260, 7
        %s264 = sadd.s32 %s262, %s263
        %s265 = smul.addr %s264, 4
        %s266 = scalar_lea.vmem %s2, %s265
        %p267 = pneg %p119
        %p268 = pneg %p116
        %p269 = pneg %p149
        %p270 = pneg %p146
        %s271 = sand.u32 %s136, 1
        %s272 = scalar_lea.sflag [#allocation4], %s271
        %s273 = sand.u32 %s136, 1
        %s274 = smul.addr %s273, 128
        %s275 = scalar_lea.vmem [#allocation3], %s274
        %s276 = smul.u32 16, %s24
        %s277 = ssub.s32 18, %s276
        %p278 = scmp.lt.s32.totalorder %s277, 16
        %s279 = scalar_select %p278, %s277, 16
        %s280 = smul.u32 64, %s279
        %s281 = smul.u32 %s280, 3
        %p282 = scmp.lt.s32.totalorder %s22, 1
        %s283 = scalar_select %p282, %s22, 1
        %p284 = scmp.lt.s32.totalorder %s276, 17
        %s285 = scalar_select %p284, %s276, 17
        %s286 = smul.addr %s285, 3
        %s287 = smul.addr %s283, 54
        %s288 = sadd.s32 %s286, %s287
        %s289 = smul.addr %s288, 4
        %s290 = scalar_lea.vmem %s0, %s289
        %s291 = smul.u32 16, %s24
        %s292 = ssub.s32 18, %s291
        %p293 = scmp.lt.s32.totalorder %s292, 16
        %s294 = scalar_select %p293, %s292, 16
        %s295 = smul.u32 64, %s294
        %s296 = smul.u32 %s295, 3
        %s297 = sadd.s32 %s24, 1
        %s298 = smul.u32 %s297, 8
        %s299 = smul.u32 2, %s298
        %p300 = scmp.lt.s32.totalorder %s22, 1
        %s301 = scalar_select %p300, %s22, 1
        %p302 = scmp.lt.s32.totalorder %s299, 17
        %s303 = scalar_select %p302, %s299, 17
        %s304 = smul.addr %s303, 3
        %s305 = smul.addr %s301, 54
        %s306 = sadd.s32 %s304, %s305
        %s307 = smul.addr %s306, 4
        %s308 = scalar_lea.vmem %s1, %s307
        %s309 = sadd.s32 %s24, 1
        %s310 = smul.u32 %s309, 8
        %s311 = smul.u32 2, %s310
        %p312 = scmp.lt.s32.totalorder %s22, 1
        %s313 = scalar_select %p312, %s22, 1
        %p314 = scmp.lt.s32.totalorder %s23, 0
        %s315 = scalar_select %p314, %s23, 0
        %s316 = smul.addr %s313, 7
        %s317 = sadd.s32 %s315, %s316
        %s318 = smul.addr %s317, 4
        %s319 = scalar_lea.vmem %s2, %s318
        %s320 = smul.u32 16, %s24
        %v322 = vld [vmem:[%s290] sm:$0xf]
        %v323 = vld [vmem:[%s290 + $0x4] sm:$0xf]
        %v324 = vld [vmem:[%s290 + $0xc] sm:$0xf]
        %v325 = vld [vmem:[%s290 + $0x10] sm:$0xf]
        %v326 = vld [vmem:[%s290 + $0x18] sm:$0xf]
        %v327 = vld [vmem:[%s290 + $0x1c] sm:$0xf]
        %v328 = vld [vmem:[%s290 + $0x24] sm:$0xf]
        %v329 = vld [vmem:[%s290 + $0x28] sm:$0xf]
        %v330 = vld [vmem:[%s290 + $0x30] sm:$0xf]
        %v331 = vld [vmem:[%s290 + $0x34] sm:$0xf]
        %v332 = vld [vmem:[%s290 + $0x3c] sm:$0xf]
        %v333 = vld [vmem:[%s290 + $0x40] sm:$0xf]
        %v334 = vld [vmem:[%s290 + $0x48] sm:$0xf]
        %v335 = vld [vmem:[%s290 + $0x4c] sm:$0xf]
        %v336 = vld [vmem:[%s290 + $0x54] sm:$0xf]
        %v337 = vld [vmem:[%s290 + $0x58] sm:$0xf]
        %v338 = vld [vmem:[%s290 + $0x60] sm:$0xf]
        %v339 = vld [vmem:[%s290 + $0x64] sm:$0xf]
        %v340 = vld [vmem:[%s290 + $0x6c] sm:$0xf]
        %v341 = vld [vmem:[%s290 + $0x70] sm:$0xf]
        %v342 = vld [vmem:[%s290 + $0x78] sm:$0xf]
        %v343 = vld [vmem:[%s290 + $0x7c] sm:$0xf]
        %v344 = vld [vmem:[%s290 + $0x84] sm:$0xf]
        %v345 = vld [vmem:[%s290 + $0x88] sm:$0xf]
        %v346 = vld [vmem:[%s290 + $0x90] sm:$0xf]
        %v347 = vld [vmem:[%s290 + $0x94] sm:$0xf]
        %v348 = vld [vmem:[%s290 + $0x9c] sm:$0xf]
        %v349 = vld [vmem:[%s290 + $0xa0] sm:$0xf]
        %v350 = vld [vmem:[%s290 + $0xa8] sm:$0xf]
        %v351 = vld [vmem:[%s290 + $0xac] sm:$0xf]
        %v352 = vld [vmem:[%s290 + $0xb4] sm:$0xf]
        %v353 = vld [vmem:[%s290 + $0xb8] sm:$0xf]
        %v386 = vunpack.c.l.b16 %v322
        %v387 = vunpack.c.l.b16 %v323
        %v388 = vunpack.c.l.b16 %v324
        %v389 = vunpack.c.l.b16 %v325
        %v390 = vunpack.c.l.b16 %v326
        %v391 = vunpack.c.l.b16 %v327
        %v392 = vunpack.c.l.b16 %v328
        %v393 = vunpack.c.l.b16 %v329
        %v394 = vunpack.c.l.b16 %v330
        %v395 = vunpack.c.l.b16 %v331
        %v396 = vunpack.c.l.b16 %v332
        %v397 = vunpack.c.l.b16 %v333
        %v398 = vunpack.c.l.b16 %v334
        %v399 = vunpack.c.l.b16 %v335
        %v400 = vunpack.c.l.b16 %v336
        %v401 = vunpack.c.l.b16 %v337
        %v402 = vunpack.c.l.b16 %v338
        %v403 = vunpack.c.l.b16 %v339
        %v404 = vunpack.c.l.b16 %v340
        %v405 = vunpack.c.l.b16 %v341
        %v406 = vunpack.c.l.b16 %v342
        %v407 = vunpack.c.l.b16 %v343
        %v408 = vunpack.c.l.b16 %v344
        %v409 = vunpack.c.l.b16 %v345
        %v410 = vunpack.c.l.b16 %v346
        %v411 = vunpack.c.l.b16 %v347
        %v412 = vunpack.c.l.b16 %v348
        %v413 = vunpack.c.l.b16 %v349
        %v414 = vunpack.c.l.b16 %v350
        %v415 = vunpack.c.l.b16 %v351
        %v416 = vunpack.c.l.b16 %v352
        %v417 = vunpack.c.l.b16 %v353
        %v418 = vpack.c.b16 %v387, %v386
        %v419 = vpack.c.b16 %v389, %v388
        %v420 = vpack.c.b16 %v391, %v390
        %v421 = vpack.c.b16 %v393, %v392
        %v422 = vpack.c.b16 %v395, %v394
        %v423 = vpack.c.b16 %v397, %v396
        %v424 = vpack.c.b16 %v399, %v398
        %v425 = vpack.c.b16 %v401, %v400
        %v426 = vpack.c.b16 %v403, %v402
        %v427 = vpack.c.b16 %v405, %v404
        %v428 = vpack.c.b16 %v407, %v406
        %v429 = vpack.c.b16 %v409, %v408
        %v430 = vpack.c.b16 %v411, %v410
        %v431 = vpack.c.b16 %v413, %v412
        %v432 = vpack.c.b16 %v415, %v414
        %v433 = vpack.c.b16 %v417, %v416
        %vm450 = vcmask 48128
        %451 = vst.msk [vmem:[#allocation2] sm:$0xff] %vm450, %v418
        %452 = vst.msk [vmem:[#allocation2 + $0x8] sm:$0xff] %vm450, %v419
        %453 = vst.msk [vmem:[#allocation2 + $0x10] sm:$0xff] %vm450, %v420
        %454 = vst.msk [vmem:[#allocation2 + $0x18] sm:$0xff] %vm450, %v421
        %455 = vst.msk [vmem:[#allocation2 + $0x20] sm:$0xff] %vm450, %v422
        %456 = vst.msk [vmem:[#allocation2 + $0x28] sm:$0xff] %vm450, %v423
        %457 = vst.msk [vmem:[#allocation2 + $0x30] sm:$0xff] %vm450, %v424
        %458 = vst.msk [vmem:[#allocation2 + $0x38] sm:$0xff] %vm450, %v425
        %459 = vst.msk [vmem:[#allocation2 + $0x40] sm:$0xff] %vm450, %v426
        %460 = vst.msk [vmem:[#allocation2 + $0x48] sm:$0xff] %vm450, %v427
        %461 = vst.msk [vmem:[#allocation2 + $0x50] sm:$0xff] %vm450, %v428
        %462 = vst.msk [vmem:[#allocation2 + $0x58] sm:$0xff] %vm450, %v429
        %463 = vst.msk [vmem:[#allocation2 + $0x60] sm:$0xff] %vm450, %v430
        %464 = vst.msk [vmem:[#allocation2 + $0x68] sm:$0xff] %vm450, %v431
        %465 = vst.msk [vmem:[#allocation2 + $0x70] sm:$0xff] %vm450, %v432
        %466 = vst.msk [vmem:[#allocation2 + $0x78] sm:$0xff] %vm450, %v433
        %v467 = vld [vmem:[%s290] sm:$0xf]
        %v468 = vld [vmem:[%s290 + $0x4] sm:$0xf]
        %v469 = vld [vmem:[%s290 + $0x8] sm:$0x1]
        %v470 = vld [vmem:[%s290 + $0xc] sm:$0xf]
        %v471 = vld [vmem:[%s290 + $0x10] sm:$0xf]
        %v472 = vld [vmem:[%s290 + $0x14] sm:$0x1]
        %v473 = vld [vmem:[%s290 + $0x18] sm:$0xf]
        %v474 = vld [vmem:[%s290 + $0x1c] sm:$0xf]
        %v475 = vld [vmem:[%s290 + $0x20] sm:$0x1]
        %v476 = vld [vmem:[%s290 + $0x24] sm:$0xf]
        %v477 = vld [vmem:[%s290 + $0x28] sm:$0xf]
        %v478 = vld [vmem:[%s290 + $0x2c] sm:$0x1]
        %v479 = vld [vmem:[%s290 + $0x30] sm:$0xf]
        %v480 = vld [vmem:[%s290 + $0x34] sm:$0xf]
        %v481 = vld [vmem:[%s290 + $0x38] sm:$0x1]
        %v482 = vld [vmem:[%s290 + $0x3c] sm:$0xf]
        %v483 = vld [vmem:[%s290 + $0x40] sm:$0xf]
        %v484 = vld [vmem:[%s290 + $0x44] sm:$0x1]
        %v485 = vld [vmem:[%s290 + $0x48] sm:$0xf]
        %v486 = vld [vmem:[%s290 + $0x4c] sm:$0xf]
        %v487 = vld [vmem:[%s290 + $0x50] sm:$0x1]
        %v488 = vld [vmem:[%s290 + $0x54] sm:$0xf]
        %v489 = vld [vmem:[%s290 + $0x58] sm:$0xf]
        %v490 = vld [vmem:[%s290 + $0x5c] sm:$0x1]
        %v491 = vld [vmem:[%s290 + $0x60] sm:$0xf]
        %v492 = vld [vmem:[%s290 + $0x64] sm:$0xf]
        %v493 = vld [vmem:[%s290 + $0x68] sm:$0x1]
        %v494 = vld [vmem:[%s290 + $0x6c] sm:$0xf]
        %v495 = vld [vmem:[%s290 + $0x70] sm:$0xf]
        %v496 = vld [vmem:[%s290 + $0x74] sm:$0x1]
        %v497 = vld [vmem:[%s290 + $0x78] sm:$0xf]
        %v498 = vld [vmem:[%s290 + $0x7c] sm:$0xf]
        %v499 = vld [vmem:[%s290 + $0x80] sm:$0x1]
        %v500 = vld [vmem:[%s290 + $0x84] sm:$0xf]
        %v501 = vld [vmem:[%s290 + $0x88] sm:$0xf]
        %v502 = vld [vmem:[%s290 + $0x8c] sm:$0x1]
        %v503 = vld [vmem:[%s290 + $0x90] sm:$0xf]
        %v504 = vld [vmem:[%s290 + $0x94] sm:$0xf]
        %v505 = vld [vmem:[%s290 + $0x98] sm:$0x1]
        %v506 = vld [vmem:[%s290 + $0x9c] sm:$0xf]
        %v507 = vld [vmem:[%s290 + $0xa0] sm:$0xf]
        %v508 = vld [vmem:[%s290 + $0xa4] sm:$0x1]
        %v509 = vld [vmem:[%s290 + $0xa8] sm:$0xf]
        %v510 = vld [vmem:[%s290 + $0xac] sm:$0xf]
        %v511 = vld [vmem:[%s290 + $0xb0] sm:$0x1]
        %v512 = vld [vmem:[%s290 + $0xb4] sm:$0xf]
        %v513 = vld [vmem:[%s290 + $0xb8] sm:$0xf]
        %v514 = vld [vmem:[%s290 + $0xbc] sm:$0x1]
        %v563 = vunpack.c.l.b16 %v467
        %v564 = vunpack.c.l.b16 %v468
        %v565 = vunpack.c.l.b16 %v469
        %v566 = vunpack.c.l.b16 %v470
        %v567 = vunpack.c.l.b16 %v471
        %v568 = vunpack.c.l.b16 %v472
        %v569 = vunpack.c.l.b16 %v473
        %v570 = vunpack.c.l.b16 %v474
        %v571 = vunpack.c.l.b16 %v475
        %v572 = vunpack.c.l.b16 %v476
        %v573 = vunpack.c.l.b16 %v477
        %v574 = vunpack.c.l.b16 %v478
        %v575 = vunpack.c.l.b16 %v479
        %v576 = vunpack.c.l.b16 %v480
        %v577 = vunpack.c.l.b16 %v481
        %v578 = vunpack.c.l.b16 %v482
        %v579 = vunpack.c.l.b16 %v483
        %v580 = vunpack.c.l.b16 %v484
        %v581 = vunpack.c.l.b16 %v485
        %v582 = vunpack.c.l.b16 %v486
        %v583 = vunpack.c.l.b16 %v487
        %v584 = vunpack.c.l.b16 %v488
        %v585 = vunpack.c.l.b16 %v489
        %v586 = vunpack.c.l.b16 %v490
        %v587 = vunpack.c.l.b16 %v491
        %v588 = vunpack.c.l.b16 %v492
        %v589 = vunpack.c.l.b16 %v493
        %v590 = vunpack.c.l.b16 %v494
        %v591 = vunpack.c.l.b16 %v495
        %v592 = vunpack.c.l.b16 %v496
        %v593 = vunpack.c.l.b16 %v497
        %v594 = vunpack.c.l.b16 %v498
        %v595 = vunpack.c.l.b16 %v499
        %v596 = vunpack.c.l.b16 %v500
        %v597 = vunpack.c.l.b16 %v501
        %v598 = vunpack.c.l.b16 %v502
        %v599 = vunpack.c.l.b16 %v503
        %v600 = vunpack.c.l.b16 %v504
        %v601 = vunpack.c.l.b16 %v505
        %v602 = vunpack.c.l.b16 %v506
        %v603 = vunpack.c.l.b16 %v507
        %v604 = vunpack.c.l.b16 %v508
        %v605 = vunpack.c.l.b16 %v509
        %v606 = vunpack.c.l.b16 %v510
        %v607 = vunpack.c.l.b16 %v511
        %v608 = vunpack.c.l.b16 %v512
        %v609 = vunpack.c.l.b16 %v513
        %v610 = vunpack.c.l.b16 %v514
        %v611 = vpack.c.b16 %v564, %v563
        %v612 = vpack.c.b16 %v565, %v565
        %v613 = vpack.c.b16 %v567, %v566
        %v614 = vpack.c.b16 %v568, %v568
        %v615 = vpack.c.b16 %v570, %v569
        %v616 = vpack.c.b16 %v571, %v571
        %v617 = vpack.c.b16 %v573, %v572
        %v618 = vpack.c.b16 %v574, %v574
        %v619 = vpack.c.b16 %v576, %v575
        %v620 = vpack.c.b16 %v577, %v577
        %v621 = vpack.c.b16 %v579, %v578
        %v622 = vpack.c.b16 %v580, %v580
        %v623 = vpack.c.b16 %v582, %v581
        %v624 = vpack.c.b16 %v583, %v583
        %v625 = vpack.c.b16 %v585, %v584
        %v626 = vpack.c.b16 %v586, %v586
        %v627 = vpack.c.b16 %v588, %v587
        %v628 = vpack.c.b16 %v589, %v589
        %v629 = vpack.c.b16 %v591, %v590
        %v630 = vpack.c.b16 %v592, %v592
        %v631 = vpack.c.b16 %v594, %v593
        %v632 = vpack.c.b16 %v595, %v595
        %v633 = vpack.c.b16 %v597, %v596
        %v634 = vpack.c.b16 %v598, %v598
        %v635 = vpack.c.b16 %v600, %v599
        %v636 = vpack.c.b16 %v601, %v601
        %v637 = vpack.c.b16 %v603, %v602
        %v638 = vpack.c.b16 %v604, %v604
        %v639 = vpack.c.b16 %v606, %v605
        %v640 = vpack.c.b16 %v607, %v607
        %v641 = vpack.c.b16 %v609, %v608
        %v642 = vpack.c.b16 %v610, %v610
        %vm643 = vsmask.f32 7424
        %v645 = vshrl.u32 %v611, 16
        %v647 = vshll.u32 %v611, 16
        %v649 = vrot.slane %v647, 1
        %v650 = vor.u32 %v645, %v649
        %v652 = vshll.u32 %v612, 16
        %v654 = vrot.slane %v652, 1
        %v655 = vsel %vm643, %v650, %v654
        %v657 = vshrl.u32 %v613, 16
        %v659 = vshll.u32 %v613, 16
        %v661 = vrot.slane %v659, 1
        %v662 = vor.u32 %v657, %v661
        %v664 = vshll.u32 %v614, 16
        %v666 = vrot.slane %v664, 1
        %v667 = vsel %vm643, %v662, %v666
        %v669 = vshrl.u32 %v615, 16
        %v671 = vshll.u32 %v615, 16
        %v673 = vrot.slane %v671, 1
        %v674 = vor.u32 %v669, %v673
        %v676 = vshll.u32 %v616, 16
        %v678 = vrot.slane %v676, 1
        %v679 = vsel %vm643, %v674, %v678
        %v681 = vshrl.u32 %v617, 16
        %v683 = vshll.u32 %v617, 16
        %v685 = vrot.slane %v683, 1
        %v686 = vor.u32 %v681, %v685
        %v688 = vshll.u32 %v618, 16
        %v690 = vrot.slane %v688, 1
        %v691 = vsel %vm643, %v686, %v690
        %v693 = vshrl.u32 %v619, 16
        %v695 = vshll.u32 %v619, 16
        %v697 = vrot.slane %v695, 1
        %v698 = vor.u32 %v693, %v697
        %v700 = vshll.u32 %v620, 16
        %v702 = vrot.slane %v700, 1
        %v703 = vsel %vm643, %v698, %v702
        %v705 = vshrl.u32 %v621, 16
        %v707 = vshll.u32 %v621, 16
        %v709 = vrot.slane %v707, 1
        %v710 = vor.u32 %v705, %v709
        %v712 = vshll.u32 %v622, 16
        %v714 = vrot.slane %v712, 1
        %v715 = vsel %vm643, %v710, %v714
        %v717 = vshrl.u32 %v623, 16
        %v719 = vshll.u32 %v623, 16
        %v721 = vrot.slane %v719, 1
        %v722 = vor.u32 %v717, %v721
        %v724 = vshll.u32 %v624, 16
        %v726 = vrot.slane %v724, 1
        %v727 = vsel %vm643, %v722, %v726
        %v729 = vshrl.u32 %v625, 16
        %v731 = vshll.u32 %v625, 16
        %v733 = vrot.slane %v731, 1
        %v734 = vor.u32 %v729, %v733
        %v736 = vshll.u32 %v626, 16
        %v738 = vrot.slane %v736, 1
        %v739 = vsel %vm643, %v734, %v738
        %v741 = vshrl.u32 %v627, 16
        %v743 = vshll.u32 %v627, 16
        %v745 = vrot.slane %v743, 1
        %v746 = vor.u32 %v741, %v745
        %v748 = vshll.u32 %v628, 16
        %v750 = vrot.slane %v748, 1
        %v751 = vsel %vm643, %v746, %v750
        %v753 = vshrl.u32 %v629, 16
        %v755 = vshll.u32 %v629, 16
        %v757 = vrot.slane %v755, 1
        %v758 = vor.u32 %v753, %v757
        %v760 = vshll.u32 %v630, 16
        %v762 = vrot.slane %v760, 1
        %v763 = vsel %vm643, %v758, %v762
        %v765 = vshrl.u32 %v631, 16
        %v767 = vshll.u32 %v631, 16
        %v769 = vrot.slane %v767, 1
        %v770 = vor.u32 %v765, %v769
        %v772 = vshll.u32 %v632, 16
        %v774 = vrot.slane %v772, 1
        %v775 = vsel %vm643, %v770, %v774
        %v777 = vshrl.u32 %v633, 16
        %v779 = vshll.u32 %v633, 16
        %v781 = vrot.slane %v779, 1
        %v782 = vor.u32 %v777, %v781
        %v784 = vshll.u32 %v634, 16
        %v786 = vrot.slane %v784, 1
        %v787 = vsel %vm643, %v782, %v786
        %v789 = vshrl.u32 %v635, 16
        %v791 = vshll.u32 %v635, 16
        %v793 = vrot.slane %v791, 1
        %v794 = vor.u32 %v789, %v793
        %v796 = vshll.u32 %v636, 16
        %v798 = vrot.slane %v796, 1
        %v799 = vsel %vm643, %v794, %v798
        %v801 = vshrl.u32 %v637, 16
        %v803 = vshll.u32 %v637, 16
        %v805 = vrot.slane %v803, 1
        %v806 = vor.u32 %v801, %v805
        %v808 = vshll.u32 %v638, 16
        %v810 = vrot.slane %v808, 1
        %v811 = vsel %vm643, %v806, %v810
        %v813 = vshrl.u32 %v639, 16
        %v815 = vshll.u32 %v639, 16
        %v817 = vrot.slane %v815, 1
        %v818 = vor.u32 %v813, %v817
        %v820 = vshll.u32 %v640, 16
        %v822 = vrot.slane %v820, 1
        %v823 = vsel %vm643, %v818, %v822
        %v825 = vshrl.u32 %v641, 16
        %v827 = vshll.u32 %v641, 16
        %v829 = vrot.slane %v827, 1
        %v830 = vor.u32 %v825, %v829
        %v832 = vshll.u32 %v642, 16
        %v834 = vrot.slane %v832, 1
        %v835 = vsel %vm643, %v830, %v834
        %836 = vrot.lane.b32.xlu0 %v655, 6
        %v837 = vpop.permute.xlu0 %836
        %838 = vrot.lane.b32.xlu0 %v667, 6
        %v839 = vpop.permute.xlu0 %838
        %840 = vrot.lane.b32.xlu0 %v679, 6
        %v841 = vpop.permute.xlu0 %840
        %842 = vrot.lane.b32.xlu0 %v691, 6
        %v843 = vpop.permute.xlu0 %842
        %844 = vrot.lane.b32.xlu0 %v703, 6
        %v845 = vpop.permute.xlu0 %844
        %846 = vrot.lane.b32.xlu0 %v715, 6
        %v847 = vpop.permute.xlu0 %846
        %848 = vrot.lane.b32.xlu0 %v727, 6
        %v849 = vpop.permute.xlu0 %848
        %850 = vrot.lane.b32.xlu0 %v739, 6
        %v851 = vpop.permute.xlu0 %850
        %852 = vrot.lane.b32.xlu0 %v751, 6
        %v853 = vpop.permute.xlu0 %852
        %854 = vrot.lane.b32.xlu0 %v763, 6
        %v855 = vpop.permute.xlu0 %854
        %856 = vrot.lane.b32.xlu0 %v775, 6
        %v857 = vpop.permute.xlu0 %856
        %858 = vrot.lane.b32.xlu0 %v787, 6
        %v859 = vpop.permute.xlu0 %858
        %860 = vrot.lane.b32.xlu0 %v799, 6
        %v861 = vpop.permute.xlu0 %860
        %862 = vrot.lane.b32.xlu0 %v811, 6
        %v863 = vpop.permute.xlu0 %862
        %864 = vrot.lane.b32.xlu0 %v823, 6
        %v865 = vpop.permute.xlu0 %864
        %866 = vrot.lane.b32.xlu0 %v835, 6
        %v867 = vpop.permute.xlu0 %866
        %vm884 = vcmask 97328
        %885 = vst.msk [vmem:[#allocation2] sm:$0xff] %vm884, %v837
        %886 = vst.msk [vmem:[#allocation2 + $0x8] sm:$0xff] %vm884, %v839
        %887 = vst.msk [vmem:[#allocation2 + $0x10] sm:$0xff] %vm884, %v841
        %888 = vst.msk [vmem:[#allocation2 + $0x18] sm:$0xff] %vm884, %v843
        %889 = vst.msk [vmem:[#allocation2 + $0x20] sm:$0xff] %vm884, %v845
        %890 = vst.msk [vmem:[#allocation2 + $0x28] sm:$0xff] %vm884, %v847
        %891 = vst.msk [vmem:[#allocation2 + $0x30] sm:$0xff] %vm884, %v849
        %892 = vst.msk [vmem:[#allocation2 + $0x38] sm:$0xff] %vm884, %v851
        %893 = vst.msk [vmem:[#allocation2 + $0x40] sm:$0xff] %vm884, %v853
        %894 = vst.msk [vmem:[#allocation2 + $0x48] sm:$0xff] %vm884, %v855
        %895 = vst.msk [vmem:[#allocation2 + $0x50] sm:$0xff] %vm884, %v857
        %896 = vst.msk [vmem:[#allocation2 + $0x58] sm:$0xff] %vm884, %v859
        %897 = vst.msk [vmem:[#allocation2 + $0x60] sm:$0xff] %vm884, %v861
        %898 = vst.msk [vmem:[#allocation2 + $0x68] sm:$0xff] %vm884, %v863
        %899 = vst.msk [vmem:[#allocation2 + $0x70] sm:$0xff] %vm884, %v865
        %900 = vst.msk [vmem:[#allocation2 + $0x78] sm:$0xff] %vm884, %v867
        %v901 = vld [vmem:[%s290] sm:$0xe]
        %v902 = vld [vmem:[%s290 + $0x4] sm:$0xf]
        %v903 = vld [vmem:[%s290 + $0x8] sm:$0x1]
        %v904 = vld [vmem:[%s290 + $0xc] sm:$0xe]
        %v905 = vld [vmem:[%s290 + $0x10] sm:$0xf]
        %v906 = vld [vmem:[%s290 + $0x14] sm:$0x1]
        %v907 = vld [vmem:[%s290 + $0x18] sm:$0xe]
        %v908 = vld [vmem:[%s290 + $0x1c] sm:$0xf]
        %v909 = vld [vmem:[%s290 + $0x20] sm:$0x1]
        %v910 = vld [vmem:[%s290 + $0x24] sm:$0xe]
        %v911 = vld [vmem:[%s290 + $0x28] sm:$0xf]
        %v912 = vld [vmem:[%s290 + $0x2c] sm:$0x1]
        %v913 = vld [vmem:[%s290 + $0x30] sm:$0xe]
        %v914 = vld [vmem:[%s290 + $0x34] sm:$0xf]
        %v915 = vld [vmem:[%s290 + $0x38] sm:$0x1]
        %v916 = vld [vmem:[%s290 + $0x3c] sm:$0xe]
        %v917 = vld [vmem:[%s290 + $0x40] sm:$0xf]
        %v918 = vld [vmem:[%s290 + $0x44] sm:$0x1]
        %v919 = vld [vmem:[%s290 + $0x48] sm:$0xe]
        %v920 = vld [vmem:[%s290 + $0x4c] sm:$0xf]
        %v921 = vld [vmem:[%s290 + $0x50] sm:$0x1]
        %v922 = vld [vmem:[%s290 + $0x54] sm:$0xe]
        %v923 = vld [vmem:[%s290 + $0x58] sm:$0xf]
        %v924 = vld [vmem:[%s290 + $0x5c] sm:$0x1]
        %v925 = vld [vmem:[%s290 + $0x60] sm:$0xe]
        %v926 = vld [vmem:[%s290 + $0x64] sm:$0xf]
        %v927 = vld [vmem:[%s290 + $0x68] sm:$0x1]
        %v928 = vld [vmem:[%s290 + $0x6c] sm:$0xe]
        %v929 = vld [vmem:[%s290 + $0x70] sm:$0xf]
        %v930 = vld [vmem:[%s290 + $0x74] sm:$0x1]
        %v931 = vld [vmem:[%s290 + $0x78] sm:$0xe]
        %v932 = vld [vmem:[%s290 + $0x7c] sm:$0xf]
        %v933 = vld [vmem:[%s290 + $0x80] sm:$0x1]
        %v934 = vld [vmem:[%s290 + $0x84] sm:$0xe]
        %v935 = vld [vmem:[%s290 + $0x88] sm:$0xf]
        %v936 = vld [vmem:[%s290 + $0x8c] sm:$0x1]
        %v937 = vld [vmem:[%s290 + $0x90] sm:$0xe]
        %v938 = vld [vmem:[%s290 + $0x94] sm:$0xf]
        %v939 = vld [vmem:[%s290 + $0x98] sm:$0x1]
        %v940 = vld [vmem:[%s290 + $0x9c] sm:$0xe]
        %v941 = vld [vmem:[%s290 + $0xa0] sm:$0xf]
        %v942 = vld [vmem:[%s290 + $0xa4] sm:$0x1]
        %v943 = vld [vmem:[%s290 + $0xa8] sm:$0xe]
        %v944 = vld [vmem:[%s290 + $0xac] sm:$0xf]
        %v945 = vld [vmem:[%s290 + $0xb0] sm:$0x1]
        %v946 = vld [vmem:[%s290 + $0xb4] sm:$0xe]
        %v947 = vld [vmem:[%s290 + $0xb8] sm:$0xf]
        %v948 = vld [vmem:[%s290 + $0xbc] sm:$0x1]
        %v997 = vunpack.c.l.b16 %v901
        %v998 = vunpack.c.l.b16 %v902
        %v999 = vunpack.c.l.b16 %v903
        %v1000 = vunpack.c.l.b16 %v904
        %v1001 = vunpack.c.l.b16 %v905
        %v1002 = vunpack.c.l.b16 %v906
        %v1003 = vunpack.c.l.b16 %v907
        %v1004 = vunpack.c.l.b16 %v908
        %v1005 = vunpack.c.l.b16 %v909
        %v1006 = vunpack.c.l.b16 %v910
        %v1007 = vunpack.c.l.b16 %v911
        %v1008 = vunpack.c.l.b16 %v912
        %v1009 = vunpack.c.l.b16 %v913
        %v1010 = vunpack.c.l.b16 %v914
        %v1011 = vunpack.c.l.b16 %v915
        %v1012 = vunpack.c.l.b16 %v916
        %v1013 = vunpack.c.l.b16 %v917
        %v1014 = vunpack.c.l.b16 %v918
        %v1015 = vunpack.c.l.b16 %v919
        %v1016 = vunpack.c.l.b16 %v920
        %v1017 = vunpack.c.l.b16 %v921
        %v1018 = vunpack.c.l.b16 %v922
        %v1019 = vunpack.c.l.b16 %v923
        %v1020 = vunpack.c.l.b16 %v924
        %v1021 = vunpack.c.l.b16 %v925
        %v1022 = vunpack.c.l.b16 %v926
        %v1023 = vunpack.c.l.b16 %v927
        %v1024 = vunpack.c.l.b16 %v928
        %v1025 = vunpack.c.l.b16 %v929
        %v1026 = vunpack.c.l.b16 %v930
        %v1027 = vunpack.c.l.b16 %v931
        %v1028 = vunpack.c.l.b16 %v932
        %v1029 = vunpack.c.l.b16 %v933
        %v1030 = vunpack.c.l.b16 %v934
        %v1031 = vunpack.c.l.b16 %v935
        %v1032 = vunpack.c.l.b16 %v936
        %v1033 = vunpack.c.l.b16 %v937
        %v1034 = vunpack.c.l.b16 %v938
        %v1035 = vunpack.c.l.b16 %v939
        %v1036 = vunpack.c.l.b16 %v940
        %v1037 = vunpack.c.l.b16 %v941
        %v1038 = vunpack.c.l.b16 %v942
        %v1039 = vunpack.c.l.b16 %v943
        %v1040 = vunpack.c.l.b16 %v944
        %v1041 = vunpack.c.l.b16 %v945
        %v1042 = vunpack.c.l.b16 %v946
        %v1043 = vunpack.c.l.b16 %v947
        %v1044 = vunpack.c.l.b16 %v948
        %v1045 = vpack.c.b16 %v998, %v997
        %v1046 = vpack.c.b16 %v999, %v999
        %v1047 = vpack.c.b16 %v1001, %v1000
        %v1048 = vpack.c.b16 %v1002, %v1002
        %v1049 = vpack.c.b16 %v1004, %v1003
        %v1050 = vpack.c.b16 %v1005, %v1005
        %v1051 = vpack.c.b16 %v1007, %v1006
        %v1052 = vpack.c.b16 %v1008, %v1008
        %v1053 = vpack.c.b16 %v1010, %v1009
        %v1054 = vpack.c.b16 %v1011, %v1011
        %v1055 = vpack.c.b16 %v1013, %v1012
        %v1056 = vpack.c.b16 %v1014, %v1014
        %v1057 = vpack.c.b16 %v1016, %v1015
        %v1058 = vpack.c.b16 %v1017, %v1017
        %v1059 = vpack.c.b16 %v1019, %v1018
        %v1060 = vpack.c.b16 %v1020, %v1020
        %v1061 = vpack.c.b16 %v1022, %v1021
        %v1062 = vpack.c.b16 %v1023, %v1023
        %v1063 = vpack.c.b16 %v1025, %v1024
        %v1064 = vpack.c.b16 %v1026, %v1026
        %v1065 = vpack.c.b16 %v1028, %v1027
        %v1066 = vpack.c.b16 %v1029, %v1029
        %v1067 = vpack.c.b16 %v1031, %v1030
        %v1068 = vpack.c.b16 %v1032, %v1032
        %v1069 = vpack.c.b16 %v1034, %v1033
        %v1070 = vpack.c.b16 %v1035, %v1035
        %v1071 = vpack.c.b16 %v1037, %v1036
        %v1072 = vpack.c.b16 %v1038, %v1038
        %v1073 = vpack.c.b16 %v1040, %v1039
        %v1074 = vpack.c.b16 %v1041, %v1041
        %v1075 = vpack.c.b16 %v1043, %v1042
        %v1076 = vpack.c.b16 %v1044, %v1044
        %vm1077 = vcmask 1046528
        %v1078 = vrot.slane %v1045, 1
        %v1079 = vrot.slane %v1046, 1
        %v1080 = vsel %vm1077, %v1078, %v1079
        %v1081 = vrot.slane %v1047, 1
        %v1082 = vrot.slane %v1048, 1
        %v1083 = vsel %vm1077, %v1081, %v1082
        %v1084 = vrot.slane %v1049, 1
        %v1085 = vrot.slane %v1050, 1
        %v1086 = vsel %vm1077, %v1084, %v1085
        %v1087 = vrot.slane %v1051, 1
        %v1088 = vrot.slane %v1052, 1
        %v1089 = vsel %vm1077, %v1087, %v1088
        %v1090 = vrot.slane %v1053, 1
        %v1091 = vrot.slane %v1054, 1
        %v1092 = vsel %vm1077, %v1090, %v1091
        %v1093 = vrot.slane %v1055, 1
        %v1094 = vrot.slane %v1056, 1
        %v1095 = vsel %vm1077, %v1093, %v1094
        %v1096 = vrot.slane %v1057, 1
        %v1097 = vrot.slane %v1058, 1
        %v1098 = vsel %vm1077, %v1096, %v1097
        %v1099 = vrot.slane %v1059, 1
        %v1100 = vrot.slane %v1060, 1
        %v1101 = vsel %vm1077, %v1099, %v1100
        %v1102 = vrot.slane %v1061, 1
        %v1103 = vrot.slane %v1062, 1
        %v1104 = vsel %vm1077, %v1102, %v1103
        %v1105 = vrot.slane %v1063, 1
        %v1106 = vrot.slane %v1064, 1
        %v1107 = vsel %vm1077, %v1105, %v1106
        %v1108 = vrot.slane %v1065, 1
        %v1109 = vrot.slane %v1066, 1
        %v1110 = vsel %vm1077, %v1108, %v1109
        %v1111 = vrot.slane %v1067, 1
        %v1112 = vrot.slane %v1068, 1
        %v1113 = vsel %vm1077, %v1111, %v1112
        %v1114 = vrot.slane %v1069, 1
        %v1115 = vrot.slane %v1070, 1
        %v1116 = vsel %vm1077, %v1114, %v1115
        %v1117 = vrot.slane %v1071, 1
        %v1118 = vrot.slane %v1072, 1
        %v1119 = vsel %vm1077, %v1117, %v1118
        %v1120 = vrot.slane %v1073, 1
        %v1121 = vrot.slane %v1074, 1
        %v1122 = vsel %vm1077, %v1120, %v1121
        %v1123 = vrot.slane %v1075, 1
        %v1124 = vrot.slane %v1076, 1
        %v1125 = vsel %vm1077, %v1123, %v1124
        %1126 = vrot.lane.b32.xlu0 %v1080, 12
        %v1127 = vpop.permute.xlu0 %1126
        %1128 = vrot.lane.b32.xlu0 %v1083, 12
        %v1129 = vpop.permute.xlu0 %1128
        %1130 = vrot.lane.b32.xlu0 %v1086, 12
        %v1131 = vpop.permute.xlu0 %1130
        %1132 = vrot.lane.b32.xlu0 %v1089, 12
        %v1133 = vpop.permute.xlu0 %1132
        %1134 = vrot.lane.b32.xlu0 %v1092, 12
        %v1135 = vpop.permute.xlu0 %1134
        %1136 = vrot.lane.b32.xlu0 %v1095, 12
        %v1137 = vpop.permute.xlu0 %1136
        %1138 = vrot.lane.b32.xlu0 %v1098, 12
        %v1139 = vpop.permute.xlu0 %1138
        %1140 = vrot.lane.b32.xlu0 %v1101, 12
        %v1141 = vpop.permute.xlu0 %1140
        %1142 = vrot.lane.b32.xlu0 %v1104, 12
        %v1143 = vpop.permute.xlu0 %1142
        %1144 = vrot.lane.b32.xlu0 %v1107, 12
        %v1145 = vpop.permute.xlu0 %1144
        %1146 = vrot.lane.b32.xlu0 %v1110, 12
        %v1147 = vpop.permute.xlu0 %1146
        %1148 = vrot.lane.b32.xlu0 %v1113, 12
        %v1149 = vpop.permute.xlu0 %1148
        %1150 = vrot.lane.b32.xlu0 %v1116, 12
        %v1151 = vpop.permute.xlu0 %1150
        %1152 = vrot.lane.b32.xlu0 %v1119, 12
        %v1153 = vpop.permute.xlu0 %1152
        %1154 = vrot.lane.b32.xlu0 %v1122, 12
        %v1155 = vpop.permute.xlu0 %1154
        %1156 = vrot.lane.b32.xlu0 %v1125, 12
        %v1157 = vpop.permute.xlu0 %1156
        %vm1174 = vcmask 146528
        %1175 = vst.msk [vmem:[#allocation2] sm:$0xff] %vm1174, %v1127
        %1176 = vst.msk [vmem:[#allocation2 + $0x8] sm:$0xff] %vm1174, %v1129
        %1177 = vst.msk [vmem:[#allocation2 + $0x10] sm:$0xff] %vm1174, %v1131
        %1178 = vst.msk [vmem:[#allocation2 + $0x18] sm:$0xff] %vm1174, %v1133
        %1179 = vst.msk [vmem:[#allocation2 + $0x20] sm:$0xff] %vm1174, %v1135
        %1180 = vst.msk [vmem:[#allocation2 + $0x28] sm:$0xff] %vm1174, %v1137
        %1181 = vst.msk [vmem:[#allocation2 + $0x30] sm:$0xff] %vm1174, %v1139
        %1182 = vst.msk [vmem:[#allocation2 + $0x38] sm:$0xff] %vm1174, %v1141
        %1183 = vst.msk [vmem:[#allocation2 + $0x40] sm:$0xff] %vm1174, %v1143
        %1184 = vst.msk [vmem:[#allocation2 + $0x48] sm:$0xff] %vm1174, %v1145
        %1185 = vst.msk [vmem:[#allocation2 + $0x50] sm:$0xff] %vm1174, %v1147
        %1186 = vst.msk [vmem:[#allocation2 + $0x58] sm:$0xff] %vm1174, %v1149
        %1187 = vst.msk [vmem:[#allocation2 + $0x60] sm:$0xff] %vm1174, %v1151
        %1188 = vst.msk [vmem:[#allocation2 + $0x68] sm:$0xff] %vm1174, %v1153
        %1189 = vst.msk [vmem:[#allocation2 + $0x70] sm:$0xff] %vm1174, %v1155
        %1190 = vst.msk [vmem:[#allocation2 + $0x78] sm:$0xff] %vm1174, %v1157
        %s1191 = scalar_lea.vmem %s290, 12
        %v1192 = vld [vmem:[%s1191] sm:$0xf]
        %v1193 = vld [vmem:[%s1191 + $0x4] sm:$0xf]
        %v1194 = vld [vmem:[%s1191 + $0xc] sm:$0xf]
        %v1195 = vld [vmem:[%s1191 + $0x10] sm:$0xf]
        %v1196 = vld [vmem:[%s1191 + $0x18] sm:$0xf]
        %v1197 = vld [vmem:[%s1191 + $0x1c] sm:$0xf]
        %v1198 = vld [vmem:[%s1191 + $0x24] sm:$0xf]
        %v1199 = vld [vmem:[%s1191 + $0x28] sm:$0xf]
        %v1200 = vld [vmem:[%s1191 + $0x30] sm:$0xf]
        %v1201 = vld [vmem:[%s1191 + $0x34] sm:$0xf]
        %v1202 = vld [vmem:[%s1191 + $0x3c] sm:$0xf]
        %v1203 = vld [vmem:[%s1191 + $0x40] sm:$0xf]
        %v1204 = vld [vmem:[%s1191 + $0x48] sm:$0xf]
        %v1205 = vld [vmem:[%s1191 + $0x4c] sm:$0xf]
        %v1206 = vld [vmem:[%s1191 + $0x54] sm:$0xf]
        %v1207 = vld [vmem:[%s1191 + $0x58] sm:$0xf]
        %v1208 = vld [vmem:[%s1191 + $0x60] sm:$0xf]
        %v1209 = vld [vmem:[%s1191 + $0x64] sm:$0xf]
        %v1210 = vld [vmem:[%s1191 + $0x6c] sm:$0xf]
        %v1211 = vld [vmem:[%s1191 + $0x70] sm:$0xf]
        %v1212 = vld [vmem:[%s1191 + $0x78] sm:$0xf]
        %v1213 = vld [vmem:[%s1191 + $0x7c] sm:$0xf]
        %v1214 = vld [vmem:[%s1191 + $0x84] sm:$0xf]
        %v1215 = vld [vmem:[%s1191 + $0x88] sm:$0xf]
        %v1216 = vld [vmem:[%s1191 + $0x90] sm:$0xf]
        %v1217 = vld [vmem:[%s1191 + $0x94] sm:$0xf]
        %v1218 = vld [vmem:[%s1191 + $0x9c] sm:$0xf]
        %v1219 = vld [vmem:[%s1191 + $0xa0] sm:$0xf]
        %v1220 = vld [vmem:[%s1191 + $0xa8] sm:$0xf]
        %v1221 = vld [vmem:[%s1191 + $0xac] sm:$0xf]
        %v1252 = vunpack.c.l.b16 %v1192
        %v1253 = vunpack.c.l.b16 %v1193
        %v1254 = vunpack.c.l.b16 %v1194
        %v1255 = vunpack.c.l.b16 %v1195
        %v1256 = vunpack.c.l.b16 %v1196
        %v1257 = vunpack.c.l.b16 %v1197
        %v1258 = vunpack.c.l.b16 %v1198
        %v1259 = vunpack.c.l.b16 %v1199
        %v1260 = vunpack.c.l.b16 %v1200
        %v1261 = vunpack.c.l.b16 %v1201
        %v1262 = vunpack.c.l.b16 %v1202
        %v1263 = vunpack.c.l.b16 %v1203
        %v1264 = vunpack.c.l.b16 %v1204
        %v1265 = vunpack.c.l.b16 %v1205
        %v1266 = vunpack.c.l.b16 %v1206
        %v1267 = vunpack.c.l.b16 %v1207
        %v1268 = vunpack.c.l.b16 %v1208
        %v1269 = vunpack.c.l.b16 %v1209
        %v1270 = vunpack.c.l.b16 %v1210
        %v1271 = vunpack.c.l.b16 %v1211
        %v1272 = vunpack.c.l.b16 %v1212
        %v1273 = vunpack.c.l.b16 %v1213
        %v1274 = vunpack.c.l.b16 %v1214
        %v1275 = vunpack.c.l.b16 %v1215
        %v1276 = vunpack.c.l.b16 %v1216
        %v1277 = vunpack.c.l.b16 %v1217
        %v1278 = vunpack.c.l.b16 %v1218
        %v1279 = vunpack.c.l.b16 %v1219
        %v1280 = vunpack.c.l.b16 %v1220
        %v1281 = vunpack.c.l.b16 %v1221
        %v1282 = vpack.c.b16 %v1253, %v1252
        %v1283 = vpack.c.b16 %v1255, %v1254
        %v1284 = vpack.c.b16 %v1257, %v1256
        %v1285 = vpack.c.b16 %v1259, %v1258
        %v1286 = vpack.c.b16 %v1261, %v1260
        %v1287 = vpack.c.b16 %v1263, %v1262
        %v1288 = vpack.c.b16 %v1265, %v1264
        %v1289 = vpack.c.b16 %v1267, %v1266
        %v1290 = vpack.c.b16 %v1269, %v1268
        %v1291 = vpack.c.b16 %v1271, %v1270
        %v1292 = vpack.c.b16 %v1273, %v1272
        %v1293 = vpack.c.b16 %v1275, %v1274
        %v1294 = vpack.c.b16 %v1277, %v1276
        %v1295 = vpack.c.b16 %v1279, %v1278
        %v1296 = vpack.c.b16 %v1281, %v1280
        %1297 = vrot.lane.b32.xlu0 %v1282, 18
        %v1298 = vpop.permute.xlu0 %1297
        %1299 = vrot.lane.b32.xlu0 %v1283, 18
        %v1300 = vpop.permute.xlu0 %1299
        %1301 = vrot.lane.b32.xlu0 %v1284, 18
        %v1302 = vpop.permute.xlu0 %1301
        %1303 = vrot.lane.b32.xlu0 %v1285, 18
        %v1304 = vpop.permute.xlu0 %1303
        %1305 = vrot.lane.b32.xlu0 %v1286, 18
        %v1306 = vpop.permute.xlu0 %1305
        %1307 = vrot.lane.b32.xlu0 %v1287, 18
        %v1308 = vpop.permute.xlu0 %1307
        %1309 = vrot.lane.b32.xlu0 %v1288, 18
        %v1310 = vpop.permute.xlu0 %1309
        %1311 = vrot.lane.b32.xlu0 %v1289, 18
        %v1312 = vpop.permute.xlu0 %1311
        %1313 = vrot.lane.b32.xlu0 %v1290, 18
        %v1314 = vpop.permute.xlu0 %1313
        %1315 = vrot.lane.b32.xlu0 %v1291, 18
        %v1316 = vpop.permute.xlu0 %1315
        %1317 = vrot.lane.b32.xlu0 %v1292, 18
        %v1318 = vpop.permute.xlu0 %1317
        %1319 = vrot.lane.b32.xlu0 %v1293, 18
        %v1320 = vpop.permute.xlu0 %1319
        %1321 = vrot.lane.b32.xlu0 %v1294, 18
        %v1322 = vpop.permute.xlu0 %1321
        %1323 = vrot.lane.b32.xlu0 %v1295, 18
        %v1324 = vpop.permute.xlu0 %1323
        %1325 = vrot.lane.b32.xlu0 %v1296, 18
        %v1326 = vpop.permute.xlu0 %1325
        %vm1342 = vcmask 195728
        %1343 = vst.msk [vmem:[#allocation2] sm:$0xff] %vm1342, %v1298
        %1344 = vst.msk [vmem:[#allocation2 + $0x8] sm:$0xff] %vm1342, %v1300
        %1345 = vst.msk [vmem:[#allocation2 + $0x10] sm:$0xff] %vm1342, %v1302
        %1346 = vst.msk [vmem:[#allocation2 + $0x18] sm:$0xff] %vm1342, %v1304
        %1347 = vst.msk [vmem:[#allocation2 + $0x20] sm:$0xff] %vm1342, %v1306
        %1348 = vst.msk [vmem:[#allocation2 + $0x28] sm:$0xff] %vm1342, %v1308
        %1349 = vst.msk [vmem:[#allocation2 + $0x30] sm:$0xff] %vm1342, %v1310
        %1350 = vst.msk [vmem:[#allocation2 + $0x38] sm:$0xff] %vm1342, %v1312
        %1351 = vst.msk [vmem:[#allocation2 + $0x40] sm:$0xff] %vm1342, %v1314
        %1352 = vst.msk [vmem:[#allocation2 + $0x48] sm:$0xff] %vm1342, %v1316
        %1353 = vst.msk [vmem:[#allocation2 + $0x50] sm:$0xff] %vm1342, %v1318
        %1354 = vst.msk [vmem:[#allocation2 + $0x58] sm:$0xff] %vm1342, %v1320
        %1355 = vst.msk [vmem:[#allocation2 + $0x60] sm:$0xff] %vm1342, %v1322
        %1356 = vst.msk [vmem:[#allocation2 + $0x68] sm:$0xff] %vm1342, %v1324
        %1357 = vst.msk [vmem:[#allocation2 + $0x70] sm:$0xff] %vm1342, %v1326
        %v1358 = vld [vmem:[%s308] sm:$0xf]
        %v1359 = vld [vmem:[%s308 + $0x4] sm:$0xf]
        %v1362 = vunpack.c.l.b16 %v1358
        %v1363 = vunpack.c.l.b16 %v1359
        %v1364 = vpack.c.b16 %v1363, %v1362
        %1365 = vrot.lane.b32.xlu0 %v1364, 18
        %v1366 = vpop.permute.xlu0 %1365
        %s1368 = scalar_lea.vmem [#allocation2], 120
        %1369 = vst.msk [vmem:[%s1368] sm:$0xff] %vm1342, %v1366
        %v1370 = vld [vmem:[%s1191] sm:$0xf]
        %v1371 = vld [vmem:[%s1191 + $0x4] sm:$0xf]
        %v1372 = vld [vmem:[%s1191 + $0x8] sm:$0x1]
        %v1373 = vld [vmem:[%s1191 + $0xc] sm:$0xf]
        %v1374 = vld [vmem:[%s1191 + $0x10] sm:$0xf]
        %v1375 = vld [vmem:[%s1191 + $0x14] sm:$0x1]
        %v1376 = vld [vmem:[%s1191 + $0x18] sm:$0xf]
        %v1377 = vld [vmem:[%s1191 + $0x1c] sm:$0xf]
        %v1378 = vld [vmem:[%s1191 + $0x20] sm:$0x1]
        %v1379 = vld [vmem:[%s1191 + $0x24] sm:$0xf]
        %v1380 = vld [vmem:[%s1191 + $0x28] sm:$0xf]
        %v1381 = vld [vmem:[%s1191 + $0x2c] sm:$0x1]
        %v1382 = vld [vmem:[%s1191 + $0x30] sm:$0xf]
        %v1383 = vld [vmem:[%s1191 + $0x34] sm:$0xf]
        %v1384 = vld [vmem:[%s1191 + $0x38] sm:$0x1]
        %v1385 = vld [vmem:[%s1191 + $0x3c] sm:$0xf]
        %v1386 = vld [vmem:[%s1191 + $0x40] sm:$0xf]
        %v1387 = vld [vmem:[%s1191 + $0x44] sm:$0x1]
        %v1388 = vld [vmem:[%s1191 + $0x48] sm:$0xf]
        %v1389 = vld [vmem:[%s1191 + $0x4c] sm:$0xf]
        %v1390 = vld [vmem:[%s1191 + $0x50] sm:$0x1]
        %v1391 = vld [vmem:[%s1191 + $0x54] sm:$0xf]
        %v1392 = vld [vmem:[%s1191 + $0x58] sm:$0xf]
        %v1393 = vld [vmem:[%s1191 + $0x5c] sm:$0x1]
        %v1394 = vld [vmem:[%s1191 + $0x60] sm:$0xf]
        %v1395 = vld [vmem:[%s1191 + $0x64] sm:$0xf]
        %v1396 = vld [vmem:[%s1191 + $0x68] sm:$0x1]
        %v1397 = vld [vmem:[%s1191 + $0x6c] sm:$0xf]
        %v1398 = vld [vmem:[%s1191 + $0x70] sm:$0xf]
        %v1399 = vld [vmem:[%s1191 + $0x74] sm:$0x1]
        %v1400 = vld [vmem:[%s1191 + $0x78] sm:$0xf]
        %v1401 = vld [vmem:[%s1191 + $0x7c] sm:$0xf]
        %v1402 = vld [vmem:[%s1191 + $0x80] sm:$0x1]
        %v1403 = vld [vmem:[%s1191 + $0x84] sm:$0xf]
        %v1404 = vld [vmem:[%s1191 + $0x88] sm:$0xf]
        %v1405 = vld [vmem:[%s1191 + $0x8c] sm:$0x1]
        %v1406 = vld [vmem:[%s1191 + $0x90] sm:$0xf]
        %v1407 = vld [vmem:[%s1191 + $0x94] sm:$0xf]
        %v1408 = vld [vmem:[%s1191 + $0x98] sm:$0x1]
        %v1409 = vld [vmem:[%s1191 + $0x9c] sm:$0xf]
        %v1410 = vld [vmem:[%s1191 + $0xa0] sm:$0xf]
        %v1411 = vld [vmem:[%s1191 + $0xa4] sm:$0x1]
        %v1412 = vld [vmem:[%s1191 + $0xa8] sm:$0xf]
        %v1413 = vld [vmem:[%s1191 + $0xac] sm:$0xf]
        %v1414 = vld [vmem:[%s1191 + $0xb0] sm:$0x1]
        %v1460 = vunpack.c.l.b16 %v1370
        %v1461 = vunpack.c.l.b16 %v1371
        %v1462 = vunpack.c.l.b16 %v1372
        %v1463 = vunpack.c.l.b16 %v1373
        %v1464 = vunpack.c.l.b16 %v1374
        %v1465 = vunpack.c.l.b16 %v1375
        %v1466 = vunpack.c.l.b16 %v1376
        %v1467 = vunpack.c.l.b16 %v1377
        %v1468 = vunpack.c.l.b16 %v1378
        %v1469 = vunpack.c.l.b16 %v1379
        %v1470 = vunpack.c.l.b16 %v1380
        %v1471 = vunpack.c.l.b16 %v1381
        %v1472 = vunpack.c.l.b16 %v1382
        %v1473 = vunpack.c.l.b16 %v1383
        %v1474 = vunpack.c.l.b16 %v1384
        %v1475 = vunpack.c.l.b16 %v1385
        %v1476 = vunpack.c.l.b16 %v1386
        %v1477 = vunpack.c.l.b16 %v1387
        %v1478 = vunpack.c.l.b16 %v1388
        %v1479 = vunpack.c.l.b16 %v1389
        %v1480 = vunpack.c.l.b16 %v1390
        %v1481 = vunpack.c.l.b16 %v1391
        %v1482 = vunpack.c.l.b16 %v1392
        %v1483 = vunpack.c.l.b16 %v1393
        %v1484 = vunpack.c.l.b16 %v1394
        %v1485 = vunpack.c.l.b16 %v1395
        %v1486 = vunpack.c.l.b16 %v1396
        %v1487 = vunpack.c.l.b16 %v1397
        %v1488 = vunpack.c.l.b16 %v1398
        %v1489 = vunpack.c.l.b16 %v1399
        %v1490 = vunpack.c.l.b16 %v1400
        %v1491 = vunpack.c.l.b16 %v1401
        %v1492 = vunpack.c.l.b16 %v1402
        %v1493 = vunpack.c.l.b16 %v1403
        %v1494 = vunpack.c.l.b16 %v1404
        %v1495 = vunpack.c.l.b16 %v1405
        %v1496 = vunpack.c.l.b16 %v1406
        %v1497 = vunpack.c.l.b16 %v1407
        %v1498 = vunpack.c.l.b16 %v1408
        %v1499 = vunpack.c.l.b16 %v1409
        %v1500 = vunpack.c.l.b16 %v1410
        %v1501 = vunpack.c.l.b16 %v1411
        %v1502 = vunpack.c.l.b16 %v1412
        %v1503 = vunpack.c.l.b16 %v1413
        %v1504 = vunpack.c.l.b16 %v1414
        %v1505 = vpack.c.b16 %v1461, %v1460
        %v1506 = vpack.c.b16 %v1462, %v1462
        %v1507 = vpack.c.b16 %v1464, %v1463
        %v1508 = vpack.c.b16 %v1465, %v1465
        %v1509 = vpack.c.b16 %v1467, %v1466
        %v1510 = vpack.c.b16 %v1468, %v1468
        %v1511 = vpack.c.b16 %v1470, %v1469
        %v1512 = vpack.c.b16 %v1471, %v1471
        %v1513 = vpack.c.b16 %v1473, %v1472
        %v1514 = vpack.c.b16 %v1474, %v1474
        %v1515 = vpack.c.b16 %v1476, %v1475
        %v1516 = vpack.c.b16 %v1477, %v1477
        %v1517 = vpack.c.b16 %v1479, %v1478
        %v1518 = vpack.c.b16 %v1480, %v1480
        %v1519 = vpack.c.b16 %v1482, %v1481
        %v1520 = vpack.c.b16 %v1483, %v1483
        %v1521 = vpack.c.b16 %v1485, %v1484
        %v1522 = vpack.c.b16 %v1486, %v1486
        %v1523 = vpack.c.b16 %v1488, %v1487
        %v1524 = vpack.c.b16 %v1489, %v1489
        %v1525 = vpack.c.b16 %v1491, %v1490
        %v1526 = vpack.c.b16 %v1492, %v1492
        %v1527 = vpack.c.b16 %v1494, %v1493
        %v1528 = vpack.c.b16 %v1495, %v1495
        %v1529 = vpack.c.b16 %v1497, %v1496
        %v1530 = vpack.c.b16 %v1498, %v1498
        %v1531 = vpack.c.b16 %v1500, %v1499
        %v1532 = vpack.c.b16 %v1501, %v1501
        %v1533 = vpack.c.b16 %v1503, %v1502
        %v1534 = vpack.c.b16 %v1504, %v1504
        %v1536 = vshrl.u32 %v1505, 16
        %v1538 = vshll.u32 %v1505, 16
        %v1540 = vrot.slane %v1538, 1
        %v1541 = vor.u32 %v1536, %v1540
        %v1543 = vshll.u32 %v1506, 16
        %v1545 = vrot.slane %v1543, 1
        %v1546 = vsel %vm643, %v1541, %v1545
        %v1548 = vshrl.u32 %v1507, 16
        %v1550 = vshll.u32 %v1507, 16
        %v1552 = vrot.slane %v1550, 1
        %v1553 = vor.u32 %v1548, %v1552
        %v1555 = vshll.u32 %v1508, 16
        %v1557 = vrot.slane %v1555, 1
        %v1558 = vsel %vm643, %v1553, %v1557
        %v1560 = vshrl.u32 %v1509, 16
        %v1562 = vshll.u32 %v1509, 16
        %v1564 = vrot.slane %v1562, 1
        %v1565 = vor.u32 %v1560, %v1564
        %v1567 = vshll.u32 %v1510, 16
        %v1569 = vrot.slane %v1567, 1
        %v1570 = vsel %vm643, %v1565, %v1569
        %v1572 = vshrl.u32 %v1511, 16
        %v1574 = vshll.u32 %v1511, 16
        %v1576 = vrot.slane %v1574, 1
        %v1577 = vor.u32 %v1572, %v1576
        %v1579 = vshll.u32 %v1512, 16
        %v1581 = vrot.slane %v1579, 1
        %v1582 = vsel %vm643, %v1577, %v1581
        %v1584 = vshrl.u32 %v1513, 16
        %v1586 = vshll.u32 %v1513, 16
        %v1588 = vrot.slane %v1586, 1
        %v1589 = vor.u32 %v1584, %v1588
        %v1591 = vshll.u32 %v1514, 16
        %v1593 = vrot.slane %v1591, 1
        %v1594 = vsel %vm643, %v1589, %v1593
        %v1596 = vshrl.u32 %v1515, 16
        %v1598 = vshll.u32 %v1515, 16
        %v1600 = vrot.slane %v1598, 1
        %v1601 = vor.u32 %v1596, %v1600
        %v1603 = vshll.u32 %v1516, 16
        %v1605 = vrot.slane %v1603, 1
        %v1606 = vsel %vm643, %v1601, %v1605
        %v1608 = vshrl.u32 %v1517, 16
        %v1610 = vshll.u32 %v1517, 16
        %v1612 = vrot.slane %v1610, 1
        %v1613 = vor.u32 %v1608, %v1612
        %v1615 = vshll.u32 %v1518, 16
        %v1617 = vrot.slane %v1615, 1
        %v1618 = vsel %vm643, %v1613, %v1617
        %v1620 = vshrl.u32 %v1519, 16
        %v1622 = vshll.u32 %v1519, 16
        %v1624 = vrot.slane %v1622, 1
        %v1625 = vor.u32 %v1620, %v1624
        %v1627 = vshll.u32 %v1520, 16
        %v1629 = vrot.slane %v1627, 1
        %v1630 = vsel %vm643, %v1625, %v1629
        %v1632 = vshrl.u32 %v1521, 16
        %v1634 = vshll.u32 %v1521, 16
        %v1636 = vrot.slane %v1634, 1
        %v1637 = vor.u32 %v1632, %v1636
        %v1639 = vshll.u32 %v1522, 16
        %v1641 = vrot.slane %v1639, 1
        %v1642 = vsel %vm643, %v1637, %v1641
        %v1644 = vshrl.u32 %v1523, 16
        %v1646 = vshll.u32 %v1523, 16
        %v1648 = vrot.slane %v1646, 1
        %v1649 = vor.u32 %v1644, %v1648
        %v1651 = vshll.u32 %v1524, 16
        %v1653 = vrot.slane %v1651, 1
        %v1654 = vsel %vm643, %v1649, %v1653
        %v1656 = vshrl.u32 %v1525, 16
        %v1658 = vshll.u32 %v1525, 16
        %v1660 = vrot.slane %v1658, 1
        %v1661 = vor.u32 %v1656, %v1660
        %v1663 = vshll.u32 %v1526, 16
        %v1665 = vrot.slane %v1663, 1
        %v1666 = vsel %vm643, %v1661, %v1665
        %v1668 = vshrl.u32 %v1527, 16
        %v1670 = vshll.u32 %v1527, 16
        %v1672 = vrot.slane %v1670, 1
        %v1673 = vor.u32 %v1668, %v1672
        %v1675 = vshll.u32 %v1528, 16
        %v1677 = vrot.slane %v1675, 1
        %v1678 = vsel %vm643, %v1673, %v1677
        %v1680 = vshrl.u32 %v1529, 16
        %v1682 = vshll.u32 %v1529, 16
        %v1684 = vrot.slane %v1682, 1
        %v1685 = vor.u32 %v1680, %v1684
        %v1687 = vshll.u32 %v1530, 16
        %v1689 = vrot.slane %v1687, 1
        %v1690 = vsel %vm643, %v1685, %v1689
        %v1692 = vshrl.u32 %v1531, 16
        %v1694 = vshll.u32 %v1531, 16
        %v1696 = vrot.slane %v1694, 1
        %v1697 = vor.u32 %v1692, %v1696
        %v1699 = vshll.u32 %v1532, 16
        %v1701 = vrot.slane %v1699, 1
        %v1702 = vsel %vm643, %v1697, %v1701
        %v1704 = vshrl.u32 %v1533, 16
        %v1706 = vshll.u32 %v1533, 16
        %v1708 = vrot.slane %v1706, 1
        %v1709 = vor.u32 %v1704, %v1708
        %v1711 = vshll.u32 %v1534, 16
        %v1713 = vrot.slane %v1711, 1
        %v1714 = vsel %vm643, %v1709, %v1713
        %1715 = vrot.lane.b32.xlu0 %v1546, 24
        %v1716 = vpop.permute.xlu0 %1715
        %1717 = vrot.lane.b32.xlu0 %v1558, 24
        %v1718 = vpop.permute.xlu0 %1717
        %1719 = vrot.lane.b32.xlu0 %v1570, 24
        %v1720 = vpop.permute.xlu0 %1719
        %1721 = vrot.lane.b32.xlu0 %v1582, 24
        %v1722 = vpop.permute.xlu0 %1721
        %1723 = vrot.lane.b32.xlu0 %v1594, 24
        %v1724 = vpop.permute.xlu0 %1723
        %1725 = vrot.lane.b32.xlu0 %v1606, 24
        %v1726 = vpop.permute.xlu0 %1725
        %1727 = vrot.lane.b32.xlu0 %v1618, 24
        %v1728 = vpop.permute.xlu0 %1727
        %1729 = vrot.lane.b32.xlu0 %v1630, 24
        %v1730 = vpop.permute.xlu0 %1729
        %1731 = vrot.lane.b32.xlu0 %v1642, 24
        %v1732 = vpop.permute.xlu0 %1731
        %1733 = vrot.lane.b32.xlu0 %v1654, 24
        %v1734 = vpop.permute.xlu0 %1733
        %1735 = vrot.lane.b32.xlu0 %v1666, 24
        %v1736 = vpop.permute.xlu0 %1735
        %1737 = vrot.lane.b32.xlu0 %v1678, 24
        %v1738 = vpop.permute.xlu0 %1737
        %1739 = vrot.lane.b32.xlu0 %v1690, 24
        %v1740 = vpop.permute.xlu0 %1739
        %1741 = vrot.lane.b32.xlu0 %v1702, 24
        %v1742 = vpop.permute.xlu0 %1741
        %1743 = vrot.lane.b32.xlu0 %v1714, 24
        %v1744 = vpop.permute.xlu0 %1743
        %vm1760 = vcmask 244928
        %1761 = vst.msk [vmem:[#allocation2] sm:$0xff] %vm1760, %v1716
        %1762 = vst.msk [vmem:[#allocation2 + $0x8] sm:$0xff] %vm1760, %v1718
        %1763 = vst.msk [vmem:[#allocation2 + $0x10] sm:$0xff] %vm1760, %v1720
        %1764 = vst.msk [vmem:[#allocation2 + $0x18] sm:$0xff] %vm1760, %v1722
        %1765 = vst.msk [vmem:[#allocation2 + $0x20] sm:$0xff] %vm1760, %v1724
        %1766 = vst.msk [vmem:[#allocation2 + $0x28] sm:$0xff] %vm1760, %v1726
        %1767 = vst.msk [vmem:[#allocation2 + $0x30] sm:$0xff] %vm1760, %v1728
        %1768 = vst.msk [vmem:[#allocation2 + $0x38] sm:$0xff] %vm1760, %v1730
        %1769 = vst.msk [vmem:[#allocation2 + $0x40] sm:$0xff] %vm1760, %v1732
        %1770 = vst.msk [vmem:[#allocation2 + $0x48] sm:$0xff] %vm1760, %v1734
        %1771 = vst.msk [vmem:[#allocation2 + $0x50] sm:$0xff] %vm1760, %v1736
        %1772 = vst.msk [vmem:[#allocation2 + $0x58] sm:$0xff] %vm1760, %v1738
        %1773 = vst.msk [vmem:[#allocation2 + $0x60] sm:$0xff] %vm1760, %v1740
        %1774 = vst.msk [vmem:[#allocation2 + $0x68] sm:$0xff] %vm1760, %v1742
        %1775 = vst.msk [vmem:[#allocation2 + $0x70] sm:$0xff] %vm1760, %v1744
        %v1776 = vld [vmem:[%s308] sm:$0xf]
        %v1777 = vld [vmem:[%s308 + $0x4] sm:$0xf]
        %v1778 = vld [vmem:[%s308 + $0x8] sm:$0x1]
        %v1782 = vunpack.c.l.b16 %v1776
        %v1783 = vunpack.c.l.b16 %v1777
        %v1784 = vunpack.c.l.b16 %v1778
        %v1785 = vpack.c.b16 %v1783, %v1782
        %v1786 = vpack.c.b16 %v1784, %v1784
        %v1788 = vshrl.u32 %v1785, 16
        %v1790 = vshll.u32 %v1785, 16
        %v1792 = vrot.slane %v1790, 1
        %v1793 = vor.u32 %v1788, %v1792
        %v1795 = vshll.u32 %v1786, 16
        %v1797 = vrot.slane %v1795, 1
        %v1798 = vsel %vm643, %v1793, %v1797
        %1799 = vrot.lane.b32.xlu0 %v1798, 24
        %v1800 = vpop.permute.xlu0 %1799
        %1802 = vst.msk [vmem:[%s1368] sm:$0xff] %vm1760, %v1800
        %v1803 = vld [vmem:[%s1191] sm:$0xe]
        %v1804 = vld [vmem:[%s1191 + $0x4] sm:$0xf]
        %v1805 = vld [vmem:[%s1191 + $0x8] sm:$0x1]
        %v1806 = vld [vmem:[%s1191 + $0xc] sm:$0xe]
        %v1807 = vld [vmem:[%s1191 + $0x10] sm:$0xf]
        %v1808 = vld [vmem:[%s1191 + $0x14] sm:$0x1]
        %v1809 = vld [vmem:[%s1191 + $0x18] sm:$0xe]
        %v1810 = vld [vmem:[%s1191 + $0x1c] sm:$0xf]
        %v1811 = vld [vmem:[%s1191 + $0x20] sm:$0x1]
        %v1812 = vld [vmem:[%s1191 + $0x24] sm:$0xe]
        %v1813 = vld [vmem:[%s1191 + $0x28] sm:$0xf]
        %v1814 = vld [vmem:[%s1191 + $0x2c] sm:$0x1]
        %v1815 = vld [vmem:[%s1191 + $0x30] sm:$0xe]
        %v1816 = vld [vmem:[%s1191 + $0x34] sm:$0xf]
        %v1817 = vld [vmem:[%s1191 + $0x38] sm:$0x1]
        %v1818 = vld [vmem:[%s1191 + $0x3c] sm:$0xe]
        %v1819 = vld [vmem:[%s1191 + $0x40] sm:$0xf]
        %v1820 = vld [vmem:[%s1191 + $0x44] sm:$0x1]
        %v1821 = vld [vmem:[%s1191 + $0x48] sm:$0xe]
        %v1822 = vld [vmem:[%s1191 + $0x4c] sm:$0xf]
        %v1823 = vld [vmem:[%s1191 + $0x50] sm:$0x1]
        %v1824 = vld [vmem:[%s1191 + $0x54] sm:$0xe]
        %v1825 = vld [vmem:[%s1191 + $0x58] sm:$0xf]
        %v1826 = vld [vmem:[%s1191 + $0x5c] sm:$0x1]
        %v1827 = vld [vmem:[%s1191 + $0x60] sm:$0xe]
        %v1828 = vld [vmem:[%s1191 + $0x64] sm:$0xf]
        %v1829 = vld [vmem:[%s1191 + $0x68] sm:$0x1]
        %v1830 = vld [vmem:[%s1191 + $0x6c] sm:$0xe]
        %v1831 = vld [vmem:[%s1191 + $0x70] sm:$0xf]
        %v1832 = vld [vmem:[%s1191 + $0x74] sm:$0x1]
        %v1833 = vld [vmem:[%s1191 + $0x78] sm:$0xe]
        %v1834 = vld [vmem:[%s1191 + $0x7c] sm:$0xf]
        %v1835 = vld [vmem:[%s1191 + $0x80] sm:$0x1]
        %v1836 = vld [vmem:[%s1191 + $0x84] sm:$0xe]
        %v1837 = vld [vmem:[%s1191 + $0x88] sm:$0xf]
        %v1838 = vld [vmem:[%s1191 + $0x8c] sm:$0x1]
        %v1839 = vld [vmem:[%s1191 + $0x90] sm:$0xe]
        %v1840 = vld [vmem:[%s1191 + $0x94] sm:$0xf]
        %v1841 = vld [vmem:[%s1191 + $0x98] sm:$0x1]
        %v1842 = vld [vmem:[%s1191 + $0x9c] sm:$0xe]
        %v1843 = vld [vmem:[%s1191 + $0xa0] sm:$0xf]
        %v1844 = vld [vmem:[%s1191 + $0xa4] sm:$0x1]
        %v1845 = vld [vmem:[%s1191 + $0xa8] sm:$0xe]
        %v1846 = vld [vmem:[%s1191 + $0xac] sm:$0xf]
        %v1847 = vld [vmem:[%s1191 + $0xb0] sm:$0x1]
        %v1893 = vunpack.c.l.b16 %v1803
        %v1894 = vunpack.c.l.b16 %v1804
        %v1895 = vunpack.c.l.b16 %v1805
        %v1896 = vunpack.c.l.b16 %v1806
        %v1897 = vunpack.c.l.b16 %v1807
        %v1898 = vunpack.c.l.b16 %v1808
        %v1899 = vunpack.c.l.b16 %v1809
        %v1900 = vunpack.c.l.b16 %v1810
        %v1901 = vunpack.c.l.b16 %v1811
        %v1902 = vunpack.c.l.b16 %v1812
        %v1903 = vunpack.c.l.b16 %v1813
        %v1904 = vunpack.c.l.b16 %v1814
        %v1905 = vunpack.c.l.b16 %v1815
        %v1906 = vunpack.c.l.b16 %v1816
        %v1907 = vunpack.c.l.b16 %v1817
        %v1908 = vunpack.c.l.b16 %v1818
        %v1909 = vunpack.c.l.b16 %v1819
        %v1910 = vunpack.c.l.b16 %v1820
        %v1911 = vunpack.c.l.b16 %v1821
        %v1912 = vunpack.c.l.b16 %v1822
        %v1913 = vunpack.c.l.b16 %v1823
        %v1914 = vunpack.c.l.b16 %v1824
        %v1915 = vunpack.c.l.b16 %v1825
        %v1916 = vunpack.c.l.b16 %v1826
        %v1917 = vunpack.c.l.b16 %v1827
        %v1918 = vunpack.c.l.b16 %v1828
        %v1919 = vunpack.c.l.b16 %v1829
        %v1920 = vunpack.c.l.b16 %v1830
        %v1921 = vunpack.c.l.b16 %v1831
        %v1922 = vunpack.c.l.b16 %v1832
        %v1923 = vunpack.c.l.b16 %v1833
        %v1924 = vunpack.c.l.b16 %v1834
        %v1925 = vunpack.c.l.b16 %v1835
        %v1926 = vunpack.c.l.b16 %v1836
        %v1927 = vunpack.c.l.b16 %v1837
        %v1928 = vunpack.c.l.b16 %v1838
        %v1929 = vunpack.c.l.b16 %v1839
        %v1930 = vunpack.c.l.b16 %v1840
        %v1931 = vunpack.c.l.b16 %v1841
        %v1932 = vunpack.c.l.b16 %v1842
        %v1933 = vunpack.c.l.b16 %v1843
        %v1934 = vunpack.c.l.b16 %v1844
        %v1935 = vunpack.c.l.b16 %v1845
        %v1936 = vunpack.c.l.b16 %v1846
        %v1937 = vunpack.c.l.b16 %v1847
        %v1938 = vpack.c.b16 %v1894, %v1893
        %v1939 = vpack.c.b16 %v1895, %v1895
        %v1940 = vpack.c.b16 %v1897, %v1896
        %v1941 = vpack.c.b16 %v1898, %v1898
        %v1942 = vpack.c.b16 %v1900, %v1899
        %v1943 = vpack.c.b16 %v1901, %v1901
        %v1944 = vpack.c.b16 %v1903, %v1902
        %v1945 = vpack.c.b16 %v1904, %v1904
        %v1946 = vpack.c.b16 %v1906, %v1905
        %v1947 = vpack.c.b16 %v1907, %v1907
        %v1948 = vpack.c.b16 %v1909, %v1908
        %v1949 = vpack.c.b16 %v1910, %v1910
        %v1950 = vpack.c.b16 %v1912, %v1911
        %v1951 = vpack.c.b16 %v1913, %v1913
        %v1952 = vpack.c.b16 %v1915, %v1914
        %v1953 = vpack.c.b16 %v1916, %v1916
        %v1954 = vpack.c.b16 %v1918, %v1917
        %v1955 = vpack.c.b16 %v1919, %v1919
        %v1956 = vpack.c.b16 %v1921, %v1920
        %v1957 = vpack.c.b16 %v1922, %v1922
        %v1958 = vpack.c.b16 %v1924, %v1923
        %v1959 = vpack.c.b16 %v1925, %v1925
        %v1960 = vpack.c.b16 %v1927, %v1926
        %v1961 = vpack.c.b16 %v1928, %v1928
        %v1962 = vpack.c.b16 %v1930, %v1929
        %v1963 = vpack.c.b16 %v1931, %v1931
        %v1964 = vpack.c.b16 %v1933, %v1932
        %v1965 = vpack.c.b16 %v1934, %v1934
        %v1966 = vpack.c.b16 %v1936, %v1935
        %v1967 = vpack.c.b16 %v1937, %v1937
        %v1968 = vrot.slane %v1938, 1
        %v1969 = vrot.slane %v1939, 1
        %v1970 = vsel %vm1077, %v1968, %v1969
        %v1971 = vrot.slane %v1940, 1
        %v1972 = vrot.slane %v1941, 1
        %v1973 = vsel %vm1077, %v1971, %v1972
        %v1974 = vrot.slane %v1942, 1
        %v1975 = vrot.slane %v1943, 1
        %v1976 = vsel %vm1077, %v1974, %v1975
        %v1977 = vrot.slane %v1944, 1
        %v1978 = vrot.slane %v1945, 1
        %v1979 = vsel %vm1077, %v1977, %v1978
        %v1980 = vrot.slane %v1946, 1
        %v1981 = vrot.slane %v1947, 1
        %v1982 = vsel %vm1077, %v1980, %v1981
        %v1983 = vrot.slane %v1948, 1
        %v1984 = vrot.slane %v1949, 1
        %v1985 = vsel %vm1077, %v1983, %v1984
        %v1986 = vrot.slane %v1950, 1
        %v1987 = vrot.slane %v1951, 1
        %v1988 = vsel %vm1077, %v1986, %v1987
        %v1989 = vrot.slane %v1952, 1
        %v1990 = vrot.slane %v1953, 1
        %v1991 = vsel %vm1077, %v1989, %v1990
        %v1992 = vrot.slane %v1954, 1
        %v1993 = vrot.slane %v1955, 1
        %v1994 = vsel %vm1077, %v1992, %v1993
        %v1995 = vrot.slane %v1956, 1
        %v1996 = vrot.slane %v1957, 1
        %v1997 = vsel %vm1077, %v1995, %v1996
        %v1998 = vrot.slane %v1958, 1
        %v1999 = vrot.slane %v1959, 1
        %v2000 = vsel %vm1077, %v1998, %v1999
        %v2001 = vrot.slane %v1960, 1
        %v2002 = vrot.slane %v1961, 1
        %v2003 = vsel %vm1077, %v2001, %v2002
        %v2004 = vrot.slane %v1962, 1
        %v2005 = vrot.slane %v1963, 1
        %v2006 = vsel %vm1077, %v2004, %v2005
        %v2007 = vrot.slane %v1964, 1
        %v2008 = vrot.slane %v1965, 1
        %v2009 = vsel %vm1077, %v2007, %v2008
        %v2010 = vrot.slane %v1966, 1
        %v2011 = vrot.slane %v1967, 1
        %v2012 = vsel %vm1077, %v2010, %v2011
        %2013 = vrot.lane.b32.xlu0 %v1970, 30
        %v2014 = vpop.permute.xlu0 %2013
        %2015 = vrot.lane.b32.xlu0 %v1973, 30
        %v2016 = vpop.permute.xlu0 %2015
        %2017 = vrot.lane.b32.xlu0 %v1976, 30
        %v2018 = vpop.permute.xlu0 %2017
        %2019 = vrot.lane.b32.xlu0 %v1979, 30
        %v2020 = vpop.permute.xlu0 %2019
        %2021 = vrot.lane.b32.xlu0 %v1982, 30
        %v2022 = vpop.permute.xlu0 %2021
        %2023 = vrot.lane.b32.xlu0 %v1985, 30
        %v2024 = vpop.permute.xlu0 %2023
        %2025 = vrot.lane.b32.xlu0 %v1988, 30
        %v2026 = vpop.permute.xlu0 %2025
        %2027 = vrot.lane.b32.xlu0 %v1991, 30
        %v2028 = vpop.permute.xlu0 %2027
        %2029 = vrot.lane.b32.xlu0 %v1994, 30
        %v2030 = vpop.permute.xlu0 %2029
        %2031 = vrot.lane.b32.xlu0 %v1997, 30
        %v2032 = vpop.permute.xlu0 %2031
        %2033 = vrot.lane.b32.xlu0 %v2000, 30
        %v2034 = vpop.permute.xlu0 %2033
        %2035 = vrot.lane.b32.xlu0 %v2003, 30
        %v2036 = vpop.permute.xlu0 %2035
        %2037 = vrot.lane.b32.xlu0 %v2006, 30
        %v2038 = vpop.permute.xlu0 %2037
        %2039 = vrot.lane.b32.xlu0 %v2009, 30
        %v2040 = vpop.permute.xlu0 %2039
        %2041 = vrot.lane.b32.xlu0 %v2012, 30
        %v2042 = vpop.permute.xlu0 %2041
        %vm2058 = vcmask 294128
        %2059 = vst.msk [vmem:[#allocation2] sm:$0xff] %vm2058, %v2014
        %2060 = vst.msk [vmem:[#allocation2 + $0x8] sm:$0xff] %vm2058, %v2016
        %2061 = vst.msk [vmem:[#allocation2 + $0x10] sm:$0xff] %vm2058, %v2018
        %2062 = vst.msk [vmem:[#allocation2 + $0x18] sm:$0xff] %vm2058, %v2020
        %2063 = vst.msk [vmem:[#allocation2 + $0x20] sm:$0xff] %vm2058, %v2022
        %2064 = vst.msk [vmem:[#allocation2 + $0x28] sm:$0xff] %vm2058, %v2024
        %2065 = vst.msk [vmem:[#allocation2 + $0x30] sm:$0xff] %vm2058, %v2026
        %2066 = vst.msk [vmem:[#allocation2 + $0x38] sm:$0xff] %vm2058, %v2028
        %2067 = vst.msk [vmem:[#allocation2 + $0x40] sm:$0xff] %vm2058, %v2030
        %2068 = vst.msk [vmem:[#allocation2 + $0x48] sm:$0xff] %vm2058, %v2032
        %2069 = vst.msk [vmem:[#allocation2 + $0x50] sm:$0xff] %vm2058, %v2034
        %2070 = vst.msk [vmem:[#allocation2 + $0x58] sm:$0xff] %vm2058, %v2036
        %2071 = vst.msk [vmem:[#allocation2 + $0x60] sm:$0xff] %vm2058, %v2038
        %2072 = vst.msk [vmem:[#allocation2 + $0x68] sm:$0xff] %vm2058, %v2040
        %2073 = vst.msk [vmem:[#allocation2 + $0x70] sm:$0xff] %vm2058, %v2042
        %v2074 = vld [vmem:[%s308] sm:$0xe]
        %v2075 = vld [vmem:[%s308 + $0x4] sm:$0xf]
        %v2076 = vld [vmem:[%s308 + $0x8] sm:$0x1]
        %v2080 = vunpack.c.l.b16 %v2074
        %v2081 = vunpack.c.l.b16 %v2075
        %v2082 = vunpack.c.l.b16 %v2076
        %v2083 = vpack.c.b16 %v2081, %v2080
        %v2084 = vpack.c.b16 %v2082, %v2082
        %v2085 = vrot.slane %v2083, 1
        %v2086 = vrot.slane %v2084, 1
        %v2087 = vsel %vm1077, %v2085, %v2086
        %2088 = vrot.lane.b32.xlu0 %v2087, 30
        %v2089 = vpop.permute.xlu0 %2088
        %2091 = vst.msk [vmem:[%s1368] sm:$0xff] %vm2058, %v2089
        %s2092 = scalar_lea.vmem %s290, 24
        %v2093 = vld [vmem:[%s2092] sm:$0xf]
        %v2094 = vld [vmem:[%s2092 + $0x4] sm:$0xf]
        %v2095 = vld [vmem:[%s2092 + $0xc] sm:$0xf]
        %v2096 = vld [vmem:[%s2092 + $0x10] sm:$0xf]
        %v2097 = vld [vmem:[%s2092 + $0x18] sm:$0xf]
        %v2098 = vld [vmem:[%s2092 + $0x1c] sm:$0xf]
        %v2099 = vld [vmem:[%s2092 + $0x24] sm:$0xf]
        %v2100 = vld [vmem:[%s2092 + $0x28] sm:$0xf]
        %v2101 = vld [vmem:[%s2092 + $0x30] sm:$0xf]
        %v2102 = vld [vmem:[%s2092 + $0x34] sm:$0xf]
        %v2103 = vld [vmem:[%s2092 + $0x3c] sm:$0xf]
        %v2104 = vld [vmem:[%s2092 + $0x40] sm:$0xf]
        %v2105 = vld [vmem:[%s2092 + $0x48] sm:$0xf]
        %v2106 = vld [vmem:[%s2092 + $0x4c] sm:$0xf]
        %v2107 = vld [vmem:[%s2092 + $0x54] sm:$0xf]
        %v2108 = vld [vmem:[%s2092 + $0x58] sm:$0xf]
        %v2109 = vld [vmem:[%s2092 + $0x60] sm:$0xf]
        %v2110 = vld [vmem:[%s2092 + $0x64] sm:$0xf]
        %v2111 = vld [vmem:[%s2092 + $0x6c] sm:$0xf]
        %v2112 = vld [vmem:[%s2092 + $0x70] sm:$0xf]
        %v2113 = vld [vmem:[%s2092 + $0x78] sm:$0xf]
        %v2114 = vld [vmem:[%s2092 + $0x7c] sm:$0xf]
        %v2115 = vld [vmem:[%s2092 + $0x84] sm:$0xf]
        %v2116 = vld [vmem:[%s2092 + $0x88] sm:$0xf]
        %v2117 = vld [vmem:[%s2092 + $0x90] sm:$0xf]
        %v2118 = vld [vmem:[%s2092 + $0x94] sm:$0xf]
        %v2119 = vld [vmem:[%s2092 + $0x9c] sm:$0xf]
        %v2120 = vld [vmem:[%s2092 + $0xa0] sm:$0xf]
        %v2149 = vunpack.c.l.b16 %v2093
        %v2150 = vunpack.c.l.b16 %v2094
        %v2151 = vunpack.c.l.b16 %v2095
        %v2152 = vunpack.c.l.b16 %v2096
        %v2153 = vunpack.c.l.b16 %v2097
        %v2154 = vunpack.c.l.b16 %v2098
        %v2155 = vunpack.c.l.b16 %v2099
        %v2156 = vunpack.c.l.b16 %v2100
        %v2157 = vunpack.c.l.b16 %v2101
        %v2158 = vunpack.c.l.b16 %v2102
        %v2159 = vunpack.c.l.b16 %v2103
        %v2160 = vunpack.c.l.b16 %v2104
        %v2161 = vunpack.c.l.b16 %v2105
        %v2162 = vunpack.c.l.b16 %v2106
        %v2163 = vunpack.c.l.b16 %v2107
        %v2164 = vunpack.c.l.b16 %v2108
        %v2165 = vunpack.c.l.b16 %v2109
        %v2166 = vunpack.c.l.b16 %v2110
        %v2167 = vunpack.c.l.b16 %v2111
        %v2168 = vunpack.c.l.b16 %v2112
        %v2169 = vunpack.c.l.b16 %v2113
        %v2170 = vunpack.c.l.b16 %v2114
        %v2171 = vunpack.c.l.b16 %v2115
        %v2172 = vunpack.c.l.b16 %v2116
        %v2173 = vunpack.c.l.b16 %v2117
        %v2174 = vunpack.c.l.b16 %v2118
        %v2175 = vunpack.c.l.b16 %v2119
        %v2176 = vunpack.c.l.b16 %v2120
        %v2177 = vpack.c.b16 %v2150, %v2149
        %v2178 = vpack.c.b16 %v2152, %v2151
        %v2179 = vpack.c.b16 %v2154, %v2153
        %v2180 = vpack.c.b16 %v2156, %v2155
        %v2181 = vpack.c.b16 %v2158, %v2157
        %v2182 = vpack.c.b16 %v2160, %v2159
        %v2183 = vpack.c.b16 %v2162, %v2161
        %v2184 = vpack.c.b16 %v2164, %v2163
        %v2185 = vpack.c.b16 %v2166, %v2165
        %v2186 = vpack.c.b16 %v2168, %v2167
        %v2187 = vpack.c.b16 %v2170, %v2169
        %v2188 = vpack.c.b16 %v2172, %v2171
        %v2189 = vpack.c.b16 %v2174, %v2173
        %v2190 = vpack.c.b16 %v2176, %v2175
        %2191 = vrot.lane.b32.xlu0 %v2177, 36
        %v2192 = vpop.permute.xlu0 %2191
        %2193 = vrot.lane.b32.xlu0 %v2178, 36
        %v2194 = vpop.permute.xlu0 %2193
        %2195 = vrot.lane.b32.xlu0 %v2179, 36
        %v2196 = vpop.permute.xlu0 %2195
        %2197 = vrot.lane.b32.xlu0 %v2180, 36
        %v2198 = vpop.permute.xlu0 %2197
        %2199 = vrot.lane.b32.xlu0 %v2181, 36
        %v2200 = vpop.permute.xlu0 %2199
        %2201 = vrot.lane.b32.xlu0 %v2182, 36
        %v2202 = vpop.permute.xlu0 %2201
        %2203 = vrot.lane.b32.xlu0 %v2183, 36
        %v2204 = vpop.permute.xlu0 %2203
        %2205 = vrot.lane.b32.xlu0 %v2184, 36
        %v2206 = vpop.permute.xlu0 %2205
        %2207 = vrot.lane.b32.xlu0 %v2185, 36
        %v2208 = vpop.permute.xlu0 %2207
        %2209 = vrot.lane.b32.xlu0 %v2186, 36
        %v2210 = vpop.permute.xlu0 %2209
        %2211 = vrot.lane.b32.xlu0 %v2187, 36
        %v2212 = vpop.permute.xlu0 %2211
        %2213 = vrot.lane.b32.xlu0 %v2188, 36
        %v2214 = vpop.permute.xlu0 %2213
        %2215 = vrot.lane.b32.xlu0 %v2189, 36
        %v2216 = vpop.permute.xlu0 %2215
        %2217 = vrot.lane.b32.xlu0 %v2190, 36
        %v2218 = vpop.permute.xlu0 %2217
        %vm2233 = vcmask 343328
        %2234 = vst.msk [vmem:[#allocation2] sm:$0xff] %vm2233, %v2192
        %2235 = vst.msk [vmem:[#allocation2 + $0x8] sm:$0xff] %vm2233, %v2194
        %2236 = vst.msk [vmem:[#allocation2 + $0x10] sm:$0xff] %vm2233, %v2196
        %2237 = vst.msk [vmem:[#allocation2 + $0x18] sm:$0xff] %vm2233, %v2198
        %2238 = vst.msk [vmem:[#allocation2 + $0x20] sm:$0xff] %vm2233, %v2200
        %2239 = vst.msk [vmem:[#allocation2 + $0x28] sm:$0xff] %vm2233, %v2202
        %2240 = vst.msk [vmem:[#allocation2 + $0x30] sm:$0xff] %vm2233, %v2204
        %2241 = vst.msk [vmem:[#allocation2 + $0x38] sm:$0xff] %vm2233, %v2206
        %2242 = vst.msk [vmem:[#allocation2 + $0x40] sm:$0xff] %vm2233, %v2208
        %2243 = vst.msk [vmem:[#allocation2 + $0x48] sm:$0xff] %vm2233, %v2210
        %2244 = vst.msk [vmem:[#allocation2 + $0x50] sm:$0xff] %vm2233, %v2212
        %2245 = vst.msk [vmem:[#allocation2 + $0x58] sm:$0xff] %vm2233, %v2214
        %2246 = vst.msk [vmem:[#allocation2 + $0x60] sm:$0xff] %vm2233, %v2216
        %2247 = vst.msk [vmem:[#allocation2 + $0x68] sm:$0xff] %vm2233, %v2218
        %v2248 = vld [vmem:[%s308] sm:$0xf]
        %v2249 = vld [vmem:[%s308 + $0x4] sm:$0xf]
        %v2250 = vld [vmem:[%s308 + $0xc] sm:$0xf]
        %v2251 = vld [vmem:[%s308 + $0x10] sm:$0xf]
        %v2256 = vunpack.c.l.b16 %v2248
        %v2257 = vunpack.c.l.b16 %v2249
        %v2258 = vunpack.c.l.b16 %v2250
        %v2259 = vunpack.c.l.b16 %v2251
        %v2260 = vpack.c.b16 %v2257, %v2256
        %v2261 = vpack.c.b16 %v2259, %v2258
        %2262 = vrot.lane.b32.xlu0 %v2260, 36
        %v2263 = vpop.permute.xlu0 %2262
        %2264 = vrot.lane.b32.xlu0 %v2261, 36
        %v2265 = vpop.permute.xlu0 %2264
        %s2268 = scalar_lea.vmem [#allocation2], 112
        %2269 = vst.msk [vmem:[%s2268] sm:$0xff] %vm2233, %v2263
        %2270 = vst.msk [vmem:[%s2268 + $0x8] sm:$0xff] %vm2233, %v2265
        %v2271 = vld [vmem:[%s2092] sm:$0xf]
        %v2272 = vld [vmem:[%s2092 + $0x4] sm:$0xf]
        %v2273 = vld [vmem:[%s2092 + $0x8] sm:$0x1]
        %v2274 = vld [vmem:[%s2092 + $0xc] sm:$0xf]
        %v2275 = vld [vmem:[%s2092 + $0x10] sm:$0xf]
        %v2276 = vld [vmem:[%s2092 + $0x14] sm:$0x1]
        %v2277 = vld [vmem:[%s2092 + $0x18] sm:$0xf]
        %v2278 = vld [vmem:[%s2092 + $0x1c] sm:$0xf]
        %v2279 = vld [vmem:[%s2092 + $0x20] sm:$0x1]
        %v2280 = vld [vmem:[%s2092 + $0x24] sm:$0xf]
        %v2281 = vld [vmem:[%s2092 + $0x28] sm:$0xf]
        %v2282 = vld [vmem:[%s2092 + $0x2c] sm:$0x1]
        %v2283 = vld [vmem:[%s2092 + $0x30] sm:$0xf]
        %v2284 = vld [vmem:[%s2092 + $0x34] sm:$0xf]
        %v2285 = vld [vmem:[%s2092 + $0x38] sm:$0x1]
        %v2286 = vld [vmem:[%s2092 + $0x3c] sm:$0xf]
        %v2287 = vld [vmem:[%s2092 + $0x40] sm:$0xf]
        %v2288 = vld [vmem:[%s2092 + $0x44] sm:$0x1]
        %v2289 = vld [vmem:[%s2092 + $0x48] sm:$0xf]
        %v2290 = vld [vmem:[%s2092 + $0x4c] sm:$0xf]
        %v2291 = vld [vmem:[%s2092 + $0x50] sm:$0x1]
        %v2292 = vld [vmem:[%s2092 + $0x54] sm:$0xf]
        %v2293 = vld [vmem:[%s2092 + $0x58] sm:$0xf]
        %v2294 = vld [vmem:[%s2092 + $0x5c] sm:$0x1]
        %v2295 = vld [vmem:[%s2092 + $0x60] sm:$0xf]
        %v2296 = vld [vmem:[%s2092 + $0x64] sm:$0xf]
        %v2297 = vld [vmem:[%s2092 + $0x68] sm:$0x1]
        %v2298 = vld [vmem:[%s2092 + $0x6c] sm:$0xf]
        %v2299 = vld [vmem:[%s2092 + $0x70] sm:$0xf]
        %v2300 = vld [vmem:[%s2092 + $0x74] sm:$0x1]
        %v2301 = vld [vmem:[%s2092 + $0x78] sm:$0xf]
        %v2302 = vld [vmem:[%s2092 + $0x7c] sm:$0xf]
        %v2303 = vld [vmem:[%s2092 + $0x80] sm:$0x1]
        %v2304 = vld [vmem:[%s2092 + $0x84] sm:$0xf]
        %v2305 = vld [vmem:[%s2092 + $0x88] sm:$0xf]
        %v2306 = vld [vmem:[%s2092 + $0x8c] sm:$0x1]
        %v2307 = vld [vmem:[%s2092 + $0x90] sm:$0xf]
        %v2308 = vld [vmem:[%s2092 + $0x94] sm:$0xf]
        %v2309 = vld [vmem:[%s2092 + $0x98] sm:$0x1]
        %v2310 = vld [vmem:[%s2092 + $0x9c] sm:$0xf]
        %v2311 = vld [vmem:[%s2092 + $0xa0] sm:$0xf]
        %v2312 = vld [vmem:[%s2092 + $0xa4] sm:$0x1]
        %v2355 = vunpack.c.l.b16 %v2271
        %v2356 = vunpack.c.l.b16 %v2272
        %v2357 = vunpack.c.l.b16 %v2273
        %v2358 = vunpack.c.l.b16 %v2274
        %v2359 = vunpack.c.l.b16 %v2275
        %v2360 = vunpack.c.l.b16 %v2276
        %v2361 = vunpack.c.l.b16 %v2277
        %v2362 = vunpack.c.l.b16 %v2278
        %v2363 = vunpack.c.l.b16 %v2279
        %v2364 = vunpack.c.l.b16 %v2280
        %v2365 = vunpack.c.l.b16 %v2281
        %v2366 = vunpack.c.l.b16 %v2282
        %v2367 = vunpack.c.l.b16 %v2283
        %v2368 = vunpack.c.l.b16 %v2284
        %v2369 = vunpack.c.l.b16 %v2285
        %v2370 = vunpack.c.l.b16 %v2286
        %v2371 = vunpack.c.l.b16 %v2287
        %v2372 = vunpack.c.l.b16 %v2288
        %v2373 = vunpack.c.l.b16 %v2289
        %v2374 = vunpack.c.l.b16 %v2290
        %v2375 = vunpack.c.l.b16 %v2291
        %v2376 = vunpack.c.l.b16 %v2292
        %v2377 = vunpack.c.l.b16 %v2293
        %v2378 = vunpack.c.l.b16 %v2294
        %v2379 = vunpack.c.l.b16 %v2295
        %v2380 = vunpack.c.l.b16 %v2296
        %v2381 = vunpack.c.l.b16 %v2297
        %v2382 = vunpack.c.l.b16 %v2298
        %v2383 = vunpack.c.l.b16 %v2299
        %v2384 = vunpack.c.l.b16 %v2300
        %v2385 = vunpack.c.l.b16 %v2301
        %v2386 = vunpack.c.l.b16 %v2302
        %v2387 = vunpack.c.l.b16 %v2303
        %v2388 = vunpack.c.l.b16 %v2304
        %v2389 = vunpack.c.l.b16 %v2305
        %v2390 = vunpack.c.l.b16 %v2306
        %v2391 = vunpack.c.l.b16 %v2307
        %v2392 = vunpack.c.l.b16 %v2308
        %v2393 = vunpack.c.l.b16 %v2309
        %v2394 = vunpack.c.l.b16 %v2310
        %v2395 = vunpack.c.l.b16 %v2311
        %v2396 = vunpack.c.l.b16 %v2312
        %v2397 = vpack.c.b16 %v2356, %v2355
        %v2398 = vpack.c.b16 %v2357, %v2357
        %v2399 = vpack.c.b16 %v2359, %v2358
        %v2400 = vpack.c.b16 %v2360, %v2360
        %v2401 = vpack.c.b16 %v2362, %v2361
        %v2402 = vpack.c.b16 %v2363, %v2363
        %v2403 = vpack.c.b16 %v2365, %v2364
        %v2404 = vpack.c.b16 %v2366, %v2366
        %v2405 = vpack.c.b16 %v2368, %v2367
        %v2406 = vpack.c.b16 %v2369, %v2369
        %v2407 = vpack.c.b16 %v2371, %v2370
        %v2408 = vpack.c.b16 %v2372, %v2372
        %v2409 = vpack.c.b16 %v2374, %v2373
        %v2410 = vpack.c.b16 %v2375, %v2375
        %v2411 = vpack.c.b16 %v2377, %v2376
        %v2412 = vpack.c.b16 %v2378, %v2378
        %v2413 = vpack.c.b16 %v2380, %v2379
        %v2414 = vpack.c.b16 %v2381, %v2381
        %v2415 = vpack.c.b16 %v2383, %v2382
        %v2416 = vpack.c.b16 %v2384, %v2384
        %v2417 = vpack.c.b16 %v2386, %v2385
        %v2418 = vpack.c.b16 %v2387, %v2387
        %v2419 = vpack.c.b16 %v2389, %v2388
        %v2420 = vpack.c.b16 %v2390, %v2390
        %v2421 = vpack.c.b16 %v2392, %v2391
        %v2422 = vpack.c.b16 %v2393, %v2393
        %v2423 = vpack.c.b16 %v2395, %v2394
        %v2424 = vpack.c.b16 %v2396, %v2396
        %v2426 = vshrl.u32 %v2397, 16
        %v2428 = vshll.u32 %v2397, 16
        %v2430 = vrot.slane %v2428, 1
        %v2431 = vor.u32 %v2426, %v2430
        %v2433 = vshll.u32 %v2398, 16
        %v2435 = vrot.slane %v2433, 1
        %v2436 = vsel %vm643, %v2431, %v2435
        %v2438 = vshrl.u32 %v2399, 16
        %v2440 = vshll.u32 %v2399, 16
        %v2442 = vrot.slane %v2440, 1
        %v2443 = vor.u32 %v2438, %v2442
        %v2445 = vshll.u32 %v2400, 16
        %v2447 = vrot.slane %v2445, 1
        %v2448 = vsel %vm643, %v2443, %v2447
        %v2450 = vshrl.u32 %v2401, 16
        %v2452 = vshll.u32 %v2401, 16
        %v2454 = vrot.slane %v2452, 1
        %v2455 = vor.u32 %v2450, %v2454
        %v2457 = vshll.u32 %v2402, 16
        %v2459 = vrot.slane %v2457, 1
        %v2460 = vsel %vm643, %v2455, %v2459
        %v2462 = vshrl.u32 %v2403, 16
        %v2464 = vshll.u32 %v2403, 16
        %v2466 = vrot.slane %v2464, 1
        %v2467 = vor.u32 %v2462, %v2466
        %v2469 = vshll.u32 %v2404, 16
        %v2471 = vrot.slane %v2469, 1
        %v2472 = vsel %vm643, %v2467, %v2471
        %v2474 = vshrl.u32 %v2405, 16
        %v2476 = vshll.u32 %v2405, 16
        %v2478 = vrot.slane %v2476, 1
        %v2479 = vor.u32 %v2474, %v2478
        %v2481 = vshll.u32 %v2406, 16
        %v2483 = vrot.slane %v2481, 1
        %v2484 = vsel %vm643, %v2479, %v2483
        %v2486 = vshrl.u32 %v2407, 16
        %v2488 = vshll.u32 %v2407, 16
        %v2490 = vrot.slane %v2488, 1
        %v2491 = vor.u32 %v2486, %v2490
        %v2493 = vshll.u32 %v2408, 16
        %v2495 = vrot.slane %v2493, 1
        %v2496 = vsel %vm643, %v2491, %v2495
        %v2498 = vshrl.u32 %v2409, 16
        %v2500 = vshll.u32 %v2409, 16
        %v2502 = vrot.slane %v2500, 1
        %v2503 = vor.u32 %v2498, %v2502
        %v2505 = vshll.u32 %v2410, 16
        %v2507 = vrot.slane %v2505, 1
        %v2508 = vsel %vm643, %v2503, %v2507
        %v2510 = vshrl.u32 %v2411, 16
        %v2512 = vshll.u32 %v2411, 16
        %v2514 = vrot.slane %v2512, 1
        %v2515 = vor.u32 %v2510, %v2514
        %v2517 = vshll.u32 %v2412, 16
        %v2519 = vrot.slane %v2517, 1
        %v2520 = vsel %vm643, %v2515, %v2519
        %v2522 = vshrl.u32 %v2413, 16
        %v2524 = vshll.u32 %v2413, 16
        %v2526 = vrot.slane %v2524, 1
        %v2527 = vor.u32 %v2522, %v2526
        %v2529 = vshll.u32 %v2414, 16
        %v2531 = vrot.slane %v2529, 1
        %v2532 = vsel %vm643, %v2527, %v2531
        %v2534 = vshrl.u32 %v2415, 16
        %v2536 = vshll.u32 %v2415, 16
        %v2538 = vrot.slane %v2536, 1
        %v2539 = vor.u32 %v2534, %v2538
        %v2541 = vshll.u32 %v2416, 16
        %v2543 = vrot.slane %v2541, 1
        %v2544 = vsel %vm643, %v2539, %v2543
        %v2546 = vshrl.u32 %v2417, 16
        %v2548 = vshll.u32 %v2417, 16
        %v2550 = vrot.slane %v2548, 1
        %v2551 = vor.u32 %v2546, %v2550
        %v2553 = vshll.u32 %v2418, 16
        %v2555 = vrot.slane %v2553, 1
        %v2556 = vsel %vm643, %v2551, %v2555
        %v2558 = vshrl.u32 %v2419, 16
        %v2560 = vshll.u32 %v2419, 16
        %v2562 = vrot.slane %v2560, 1
        %v2563 = vor.u32 %v2558, %v2562
        %v2565 = vshll.u32 %v2420, 16
        %v2567 = vrot.slane %v2565, 1
        %v2568 = vsel %vm643, %v2563, %v2567
        %v2570 = vshrl.u32 %v2421, 16
        %v2572 = vshll.u32 %v2421, 16
        %v2574 = vrot.slane %v2572, 1
        %v2575 = vor.u32 %v2570, %v2574
        %v2577 = vshll.u32 %v2422, 16
        %v2579 = vrot.slane %v2577, 1
        %v2580 = vsel %vm643, %v2575, %v2579
        %v2582 = vshrl.u32 %v2423, 16
        %v2584 = vshll.u32 %v2423, 16
        %v2586 = vrot.slane %v2584, 1
        %v2587 = vor.u32 %v2582, %v2586
        %v2589 = vshll.u32 %v2424, 16
        %v2591 = vrot.slane %v2589, 1
        %v2592 = vsel %vm643, %v2587, %v2591
        %2593 = vrot.lane.b32.xlu0 %v2436, 42
        %v2594 = vpop.permute.xlu0 %2593
        %2595 = vrot.lane.b32.xlu0 %v2448, 42
        %v2596 = vpop.permute.xlu0 %2595
        %2597 = vrot.lane.b32.xlu0 %v2460, 42
        %v2598 = vpop.permute.xlu0 %2597
        %2599 = vrot.lane.b32.xlu0 %v2472, 42
        %v2600 = vpop.permute.xlu0 %2599
        %2601 = vrot.lane.b32.xlu0 %v2484, 42
        %v2602 = vpop.permute.xlu0 %2601
        %2603 = vrot.lane.b32.xlu0 %v2496, 42
        %v2604 = vpop.permute.xlu0 %2603
        %2605 = vrot.lane.b32.xlu0 %v2508, 42
        %v2606 = vpop.permute.xlu0 %2605
        %2607 = vrot.lane.b32.xlu0 %v2520, 42
        %v2608 = vpop.permute.xlu0 %2607
        %2609 = vrot.lane.b32.xlu0 %v2532, 42
        %v2610 = vpop.permute.xlu0 %2609
        %2611 = vrot.lane.b32.xlu0 %v2544, 42
        %v2612 = vpop.permute.xlu0 %2611
        %2613 = vrot.lane.b32.xlu0 %v2556, 42
        %v2614 = vpop.permute.xlu0 %2613
        %2615 = vrot.lane.b32.xlu0 %v2568, 42
        %v2616 = vpop.permute.xlu0 %2615
        %2617 = vrot.lane.b32.xlu0 %v2580, 42
        %v2618 = vpop.permute.xlu0 %2617
        %2619 = vrot.lane.b32.xlu0 %v2592, 42
        %v2620 = vpop.permute.xlu0 %2619
        %vm2635 = vcmask 392528
        %2636 = vst.msk [vmem:[#allocation2] sm:$0xff] %vm2635, %v2594
        %2637 = vst.msk [vmem:[#allocation2 + $0x8] sm:$0xff] %vm2635, %v2596
        %2638 = vst.msk [vmem:[#allocation2 + $0x10] sm:$0xff] %vm2635, %v2598
        %2639 = vst.msk [vmem:[#allocation2 + $0x18] sm:$0xff] %vm2635, %v2600
        %2640 = vst.msk [vmem:[#allocation2 + $0x20] sm:$0xff] %vm2635, %v2602
        %2641 = vst.msk [vmem:[#allocation2 + $0x28] sm:$0xff] %vm2635, %v2604
        %2642 = vst.msk [vmem:[#allocation2 + $0x30] sm:$0xff] %vm2635, %v2606
        %2643 = vst.msk [vmem:[#allocation2 + $0x38] sm:$0xff] %vm2635, %v2608
        %2644 = vst.msk [vmem:[#allocation2 + $0x40] sm:$0xff] %vm2635, %v2610
        %2645 = vst.msk [vmem:[#allocation2 + $0x48] sm:$0xff] %vm2635, %v2612
        %2646 = vst.msk [vmem:[#allocation2 + $0x50] sm:$0xff] %vm2635, %v2614
        %2647 = vst.msk [vmem:[#allocation2 + $0x58] sm:$0xff] %vm2635, %v2616
        %2648 = vst.msk [vmem:[#allocation2 + $0x60] sm:$0xff] %vm2635, %v2618
        %2649 = vst.msk [vmem:[#allocation2 + $0x68] sm:$0xff] %vm2635, %v2620
        %v2650 = vld [vmem:[%s308] sm:$0xf]
        %v2651 = vld [vmem:[%s308 + $0x4] sm:$0xf]
        %v2652 = vld [vmem:[%s308 + $0x8] sm:$0x1]
        %v2653 = vld [vmem:[%s308 + $0xc] sm:$0xf]
        %v2654 = vld [vmem:[%s308 + $0x10] sm:$0xf]
        %v2655 = vld [vmem:[%s308 + $0x14] sm:$0x1]
        %v2662 = vunpack.c.l.b16 %v2650
        %v2663 = vunpack.c.l.b16 %v2651
        %v2664 = vunpack.c.l.b16 %v2652
        %v2665 = vunpack.c.l.b16 %v2653
        %v2666 = vunpack.c.l.b16 %v2654
        %v2667 = vunpack.c.l.b16 %v2655
        %v2668 = vpack.c.b16 %v2663, %v2662
        %v2669 = vpack.c.b16 %v2664, %v2664
        %v2670 = vpack.c.b16 %v2666, %v2665
        %v2671 = vpack.c.b16 %v2667, %v2667
        %v2673 = vshrl.u32 %v2668, 16
        %v2675 = vshll.u32 %v2668, 16
        %v2677 = vrot.slane %v2675, 1
        %v2678 = vor.u32 %v2673, %v2677
        %v2680 = vshll.u32 %v2669, 16
        %v2682 = vrot.slane %v2680, 1
        %v2683 = vsel %vm643, %v2678, %v2682
        %v2685 = vshrl.u32 %v2670, 16
        %v2687 = vshll.u32 %v2670, 16
        %v2689 = vrot.slane %v2687, 1
        %v2690 = vor.u32 %v2685, %v2689
        %v2692 = vshll.u32 %v2671, 16
        %v2694 = vrot.slane %v2692, 1
        %v2695 = vsel %vm643, %v2690, %v2694
        %2696 = vrot.lane.b32.xlu0 %v2683, 42
        %v2697 = vpop.permute.xlu0 %2696
        %2698 = vrot.lane.b32.xlu0 %v2695, 42
        %v2699 = vpop.permute.xlu0 %2698
        %2702 = vst.msk [vmem:[%s2268] sm:$0xff] %vm2635, %v2697
        %2703 = vst.msk [vmem:[%s2268 + $0x8] sm:$0xff] %vm2635, %v2699
        %v2704 = vld [vmem:[%s2092] sm:$0xe]
        %v2705 = vld [vmem:[%s2092 + $0x4] sm:$0xf]
        %v2706 = vld [vmem:[%s2092 + $0x8] sm:$0x1]
        %v2707 = vld [vmem:[%s2092 + $0xc] sm:$0xe]
        %v2708 = vld [vmem:[%s2092 + $0x10] sm:$0xf]
        %v2709 = vld [vmem:[%s2092 + $0x14] sm:$0x1]
        %v2710 = vld [vmem:[%s2092 + $0x18] sm:$0xe]
        %v2711 = vld [vmem:[%s2092 + $0x1c] sm:$0xf]
        %v2712 = vld [vmem:[%s2092 + $0x20] sm:$0x1]
        %v2713 = vld [vmem:[%s2092 + $0x24] sm:$0xe]
        %v2714 = vld [vmem:[%s2092 + $0x28] sm:$0xf]
        %v2715 = vld [vmem:[%s2092 + $0x2c] sm:$0x1]
        %v2716 = vld [vmem:[%s2092 + $0x30] sm:$0xe]
        %v2717 = vld [vmem:[%s2092 + $0x34] sm:$0xf]
        %v2718 = vld [vmem:[%s2092 + $0x38] sm:$0x1]
        %v2719 = vld [vmem:[%s2092 + $0x3c] sm:$0xe]
        %v2720 = vld [vmem:[%s2092 + $0x40] sm:$0xf]
        %v2721 = vld [vmem:[%s2092 + $0x44] sm:$0x1]
        %v2722 = vld [vmem:[%s2092 + $0x48] sm:$0xe]
        %v2723 = vld [vmem:[%s2092 + $0x4c] sm:$0xf]
        %v2724 = vld [vmem:[%s2092 + $0x50] sm:$0x1]
        %v2725 = vld [vmem:[%s2092 + $0x54] sm:$0xe]
        %v2726 = vld [vmem:[%s2092 + $0x58] sm:$0xf]
        %v2727 = vld [vmem:[%s2092 + $0x5c] sm:$0x1]
        %v2728 = vld [vmem:[%s2092 + $0x60] sm:$0xe]
        %v2729 = vld [vmem:[%s2092 + $0x64] sm:$0xf]
        %v2730 = vld [vmem:[%s2092 + $0x68] sm:$0x1]
        %v2731 = vld [vmem:[%s2092 + $0x6c] sm:$0xe]
        %v2732 = vld [vmem:[%s2092 + $0x70] sm:$0xf]
        %v2733 = vld [vmem:[%s2092 + $0x74] sm:$0x1]
        %v2734 = vld [vmem:[%s2092 + $0x78] sm:$0xe]
        %v2735 = vld [vmem:[%s2092 + $0x7c] sm:$0xf]
        %v2736 = vld [vmem:[%s2092 + $0x80] sm:$0x1]
        %v2737 = vld [vmem:[%s2092 + $0x84] sm:$0xe]
        %v2738 = vld [vmem:[%s2092 + $0x88] sm:$0xf]
        %v2739 = vld [vmem:[%s2092 + $0x8c] sm:$0x1]
        %v2740 = vld [vmem:[%s2092 + $0x90] sm:$0xe]
        %v2741 = vld [vmem:[%s2092 + $0x94] sm:$0xf]
        %v2742 = vld [vmem:[%s2092 + $0x98] sm:$0x1]
        %v2743 = vld [vmem:[%s2092 + $0x9c] sm:$0xe]
        %v2744 = vld [vmem:[%s2092 + $0xa0] sm:$0xf]
        %v2745 = vld [vmem:[%s2092 + $0xa4] sm:$0x1]
        %v2788 = vunpack.c.l.b16 %v2704
        %v2789 = vunpack.c.l.b16 %v2705
        %v2790 = vunpack.c.l.b16 %v2706
        %v2791 = vunpack.c.l.b16 %v2707
        %v2792 = vunpack.c.l.b16 %v2708
        %v2793 = vunpack.c.l.b16 %v2709
        %v2794 = vunpack.c.l.b16 %v2710
        %v2795 = vunpack.c.l.b16 %v2711
        %v2796 = vunpack.c.l.b16 %v2712
        %v2797 = vunpack.c.l.b16 %v2713
        %v2798 = vunpack.c.l.b16 %v2714
        %v2799 = vunpack.c.l.b16 %v2715
        %v2800 = vunpack.c.l.b16 %v2716
        %v2801 = vunpack.c.l.b16 %v2717
        %v2802 = vunpack.c.l.b16 %v2718
        %v2803 = vunpack.c.l.b16 %v2719
        %v2804 = vunpack.c.l.b16 %v2720
        %v2805 = vunpack.c.l.b16 %v2721
        %v2806 = vunpack.c.l.b16 %v2722
        %v2807 = vunpack.c.l.b16 %v2723
        %v2808 = vunpack.c.l.b16 %v2724
        %v2809 = vunpack.c.l.b16 %v2725
        %v2810 = vunpack.c.l.b16 %v2726
        %v2811 = vunpack.c.l.b16 %v2727
        %v2812 = vunpack.c.l.b16 %v2728
        %v2813 = vunpack.c.l.b16 %v2729
        %v2814 = vunpack.c.l.b16 %v2730
        %v2815 = vunpack.c.l.b16 %v2731
        %v2816 = vunpack.c.l.b16 %v2732
        %v2817 = vunpack.c.l.b16 %v2733
        %v2818 = vunpack.c.l.b16 %v2734
        %v2819 = vunpack.c.l.b16 %v2735
        %v2820 = vunpack.c.l.b16 %v2736
        %v2821 = vunpack.c.l.b16 %v2737
        %v2822 = vunpack.c.l.b16 %v2738
        %v2823 = vunpack.c.l.b16 %v2739
        %v2824 = vunpack.c.l.b16 %v2740
        %v2825 = vunpack.c.l.b16 %v2741
        %v2826 = vunpack.c.l.b16 %v2742
        %v2827 = vunpack.c.l.b16 %v2743
        %v2828 = vunpack.c.l.b16 %v2744
        %v2829 = vunpack.c.l.b16 %v2745
        %v2830 = vpack.c.b16 %v2789, %v2788
        %v2831 = vpack.c.b16 %v2790, %v2790
        %v2832 = vpack.c.b16 %v2792, %v2791
        %v2833 = vpack.c.b16 %v2793, %v2793
        %v2834 = vpack.c.b16 %v2795, %v2794
        %v2835 = vpack.c.b16 %v2796, %v2796
        %v2836 = vpack.c.b16 %v2798, %v2797
        %v2837 = vpack.c.b16 %v2799, %v2799
        %v2838 = vpack.c.b16 %v2801, %v2800
        %v2839 = vpack.c.b16 %v2802, %v2802
        %v2840 = vpack.c.b16 %v2804, %v2803
        %v2841 = vpack.c.b16 %v2805, %v2805
        %v2842 = vpack.c.b16 %v2807, %v2806
        %v2843 = vpack.c.b16 %v2808, %v2808
        %v2844 = vpack.c.b16 %v2810, %v2809
        %v2845 = vpack.c.b16 %v2811, %v2811
        %v2846 = vpack.c.b16 %v2813, %v2812
        %v2847 = vpack.c.b16 %v2814, %v2814
        %v2848 = vpack.c.b16 %v2816, %v2815
        %v2849 = vpack.c.b16 %v2817, %v2817
        %v2850 = vpack.c.b16 %v2819, %v2818
        %v2851 = vpack.c.b16 %v2820, %v2820
        %v2852 = vpack.c.b16 %v2822, %v2821
        %v2853 = vpack.c.b16 %v2823, %v2823
        %v2854 = vpack.c.b16 %v2825, %v2824
        %v2855 = vpack.c.b16 %v2826, %v2826
        %v2856 = vpack.c.b16 %v2828, %v2827
        %v2857 = vpack.c.b16 %v2829, %v2829
        %v2858 = vrot.slane %v2830, 1
        %v2859 = vrot.slane %v2831, 1
        %v2860 = vsel %vm1077, %v2858, %v2859
        %v2861 = vrot.slane %v2832, 1
        %v2862 = vrot.slane %v2833, 1
        %v2863 = vsel %vm1077, %v2861, %v2862
        %v2864 = vrot.slane %v2834, 1
        %v2865 = vrot.slane %v2835, 1
        %v2866 = vsel %vm1077, %v2864, %v2865
        %v2867 = vrot.slane %v2836, 1
        %v2868 = vrot.slane %v2837, 1
        %v2869 = vsel %vm1077, %v2867, %v2868
        %v2870 = vrot.slane %v2838, 1
        %v2871 = vrot.slane %v2839, 1
        %v2872 = vsel %vm1077, %v2870, %v2871
        %v2873 = vrot.slane %v2840, 1
        %v2874 = vrot.slane %v2841, 1
        %v2875 = vsel %vm1077, %v2873, %v2874
        %v2876 = vrot.slane %v2842, 1
        %v2877 = vrot.slane %v2843, 1
        %v2878 = vsel %vm1077, %v2876, %v2877
        %v2879 = vrot.slane %v2844, 1
        %v2880 = vrot.slane %v2845, 1
        %v2881 = vsel %vm1077, %v2879, %v2880
        %v2882 = vrot.slane %v2846, 1
        %v2883 = vrot.slane %v2847, 1
        %v2884 = vsel %vm1077, %v2882, %v2883
        %v2885 = vrot.slane %v2848, 1
        %v2886 = vrot.slane %v2849, 1
        %v2887 = vsel %vm1077, %v2885, %v2886
        %v2888 = vrot.slane %v2850, 1
        %v2889 = vrot.slane %v2851, 1
        %v2890 = vsel %vm1077, %v2888, %v2889
        %v2891 = vrot.slane %v2852, 1
        %v2892 = vrot.slane %v2853, 1
        %v2893 = vsel %vm1077, %v2891, %v2892
        %v2894 = vrot.slane %v2854, 1
        %v2895 = vrot.slane %v2855, 1
        %v2896 = vsel %vm1077, %v2894, %v2895
        %v2897 = vrot.slane %v2856, 1
        %v2898 = vrot.slane %v2857, 1
        %v2899 = vsel %vm1077, %v2897, %v2898
        %2900 = vrot.lane.b32.xlu0 %v2860, 48
        %v2901 = vpop.permute.xlu0 %2900
        %2902 = vrot.lane.b32.xlu0 %v2863, 48
        %v2903 = vpop.permute.xlu0 %2902
        %2904 = vrot.lane.b32.xlu0 %v2866, 48
        %v2905 = vpop.permute.xlu0 %2904
        %2906 = vrot.lane.b32.xlu0 %v2869, 48
        %v2907 = vpop.permute.xlu0 %2906
        %2908 = vrot.lane.b32.xlu0 %v2872, 48
        %v2909 = vpop.permute.xlu0 %2908
        %2910 = vrot.lane.b32.xlu0 %v2875, 48
        %v2911 = vpop.permute.xlu0 %2910
        %2912 = vrot.lane.b32.xlu0 %v2878, 48
        %v2913 = vpop.permute.xlu0 %2912
        %2914 = vrot.lane.b32.xlu0 %v2881, 48
        %v2915 = vpop.permute.xlu0 %2914
        %2916 = vrot.lane.b32.xlu0 %v2884, 48
        %v2917 = vpop.permute.xlu0 %2916
        %2918 = vrot.lane.b32.xlu0 %v2887, 48
        %v2919 = vpop.permute.xlu0 %2918
        %2920 = vrot.lane.b32.xlu0 %v2890, 48
        %v2921 = vpop.permute.xlu0 %2920
        %2922 = vrot.lane.b32.xlu0 %v2893, 48
        %v2923 = vpop.permute.xlu0 %2922
        %2924 = vrot.lane.b32.xlu0 %v2896, 48
        %v2925 = vpop.permute.xlu0 %2924
        %2926 = vrot.lane.b32.xlu0 %v2899, 48
        %v2927 = vpop.permute.xlu0 %2926
        %vm2942 = vcmask 441728
        %2943 = vst.msk [vmem:[#allocation2] sm:$0xff] %vm2942, %v2901
        %2944 = vst.msk [vmem:[#allocation2 + $0x8] sm:$0xff] %vm2942, %v2903
        %2945 = vst.msk [vmem:[#allocation2 + $0x10] sm:$0xff] %vm2942, %v2905
        %2946 = vst.msk [vmem:[#allocation2 + $0x18] sm:$0xff] %vm2942, %v2907
        %2947 = vst.msk [vmem:[#allocation2 + $0x20] sm:$0xff] %vm2942, %v2909
        %2948 = vst.msk [vmem:[#allocation2 + $0x28] sm:$0xff] %vm2942, %v2911
        %2949 = vst.msk [vmem:[#allocation2 + $0x30] sm:$0xff] %vm2942, %v2913
        %2950 = vst.msk [vmem:[#allocation2 + $0x38] sm:$0xff] %vm2942, %v2915
        %2951 = vst.msk [vmem:[#allocation2 + $0x40] sm:$0xff] %vm2942, %v2917
        %2952 = vst.msk [vmem:[#allocation2 + $0x48] sm:$0xff] %vm2942, %v2919
        %2953 = vst.msk [vmem:[#allocation2 + $0x50] sm:$0xff] %vm2942, %v2921
        %2954 = vst.msk [vmem:[#allocation2 + $0x58] sm:$0xff] %vm2942, %v2923
        %2955 = vst.msk [vmem:[#allocation2 + $0x60] sm:$0xff] %vm2942, %v2925
        %2956 = vst.msk [vmem:[#allocation2 + $0x68] sm:$0xff] %vm2942, %v2927
        %v2957 = vld [vmem:[%s308] sm:$0xe]
        %v2958 = vld [vmem:[%s308 + $0x4] sm:$0xf]
        %v2959 = vld [vmem:[%s308 + $0x8] sm:$0x1]
        %v2960 = vld [vmem:[%s308 + $0xc] sm:$0xe]
        %v2961 = vld [vmem:[%s308 + $0x10] sm:$0xf]
        %v2962 = vld [vmem:[%s308 + $0x14] sm:$0x1]
        %v2969 = vunpack.c.l.b16 %v2957
        %v2970 = vunpack.c.l.b16 %v2958
        %v2971 = vunpack.c.l.b16 %v2959
        %v2972 = vunpack.c.l.b16 %v2960
        %v2973 = vunpack.c.l.b16 %v2961
        %v2974 = vunpack.c.l.b16 %v2962
        %v2975 = vpack.c.b16 %v2970, %v2969
        %v2976 = vpack.c.b16 %v2971, %v2971
        %v2977 = vpack.c.b16 %v2973, %v2972
        %v2978 = vpack.c.b16 %v2974, %v2974
        %v2979 = vrot.slane %v2975, 1
        %v2980 = vrot.slane %v2976, 1
        %v2981 = vsel %vm1077, %v2979, %v2980
        %v2982 = vrot.slane %v2977, 1
        %v2983 = vrot.slane %v2978, 1
        %v2984 = vsel %vm1077, %v2982, %v2983
        %2985 = vrot.lane.b32.xlu0 %v2981, 48
        %v2986 = vpop.permute.xlu0 %2985
        %2987 = vrot.lane.b32.xlu0 %v2984, 48
        %v2988 = vpop.permute.xlu0 %2987
        %2991 = vst.msk [vmem:[%s2268] sm:$0xff] %vm2942, %v2986
        %2992 = vst.msk [vmem:[%s2268 + $0x8] sm:$0xff] %vm2942, %v2988
        %v2993 = vld [vmem:[#allocation2] sm:$0xff]
        %v2994 = vld [vmem:[#allocation2 + $0x8] sm:$0xff]
        %v2995 = vld [vmem:[#allocation2 + $0x10] sm:$0xff]
        %v2996 = vld [vmem:[#allocation2 + $0x18] sm:$0xff]
        %v2997 = vld [vmem:[#allocation2 + $0x20] sm:$0xff]
        %v2998 = vld [vmem:[#allocation2 + $0x28] sm:$0xff]
        %v2999 = vld [vmem:[#allocation2 + $0x30] sm:$0xff]
        %v3000 = vld [vmem:[#allocation2 + $0x38] sm:$0xff]
        %v3001 = vld [vmem:[#allocation2 + $0x40] sm:$0xff]
        %v3002 = vld [vmem:[#allocation2 + $0x48] sm:$0xff]
        %v3003 = vld [vmem:[#allocation2 + $0x50] sm:$0xff]
        %v3004 = vld [vmem:[#allocation2 + $0x58] sm:$0xff]
        %v3005 = vld [vmem:[#allocation2 + $0x60] sm:$0xff]
        %v3006 = vld [vmem:[#allocation2 + $0x68] sm:$0xff]
        %v3007 = vld [vmem:[#allocation2 + $0x70] sm:$0xff]
        %v3008 = vld [vmem:[#allocation2 + $0x78] sm:$0xff]
        %v3009 = vld [vmem:[%s319] sm:$0xf]
        %v3010 = vld [vmem:[%s319 + $0x4] sm:$0xf]
        %v3011 = vld [vmem:[%s319 + $0x8] sm:$0xf]
        %v3012 = vld [vmem:[%s319 + $0xc] sm:$0xf]
        %v3013 = vld [vmem:[%s319 + $0x10] sm:$0xf]
        %v3014 = vld [vmem:[%s319 + $0x14] sm:$0xf]
        %v3015 = vld [vmem:[%s319 + $0x18] sm:$0x7]
        %v3023 = vunpack.c.l.b16 %v3009
        %v3024 = vunpack.c.l.b16 %v3010
        %v3025 = vunpack.c.l.b16 %v3011
        %v3026 = vunpack.c.l.b16 %v3012
        %v3027 = vunpack.c.l.b16 %v3013
        %v3028 = vunpack.c.l.b16 %v3014
        %v3029 = vunpack.c.l.b16 %v3015
        %v3030 = vpack.c.b16 %v3024, %v3023
        %v3031 = vpack.c.b16 %v3026, %v3025
        %v3032 = vpack.c.b16 %v3028, %v3027
        %v3033 = vpack.c.b16 %v3029, %v3029
        %vm3037 = vcmask 441344
        %v3039 = vsel %vm3037, %v2993, 0
        %v3042 = vsel %vm3037, %v2994, 0
        %v3045 = vsel %vm3037, %v2995, 0
        %v3048 = vsel %vm3037, %v2996, 0
        %v3051 = vsel %vm3037, %v2997, 0
        %v3054 = vsel %vm3037, %v2998, 0
        %v3057 = vsel %vm3037, %v2999, 0
        %v3060 = vsel %vm3037, %v3000, 0
        %v3063 = vsel %vm3037, %v3001, 0
        %v3066 = vsel %vm3037, %v3002, 0
        %v3069 = vsel %vm3037, %v3003, 0
        %v3072 = vsel %vm3037, %v3004, 0
        %v3075 = vsel %vm3037, %v3005, 0
        %v3078 = vsel %vm3037, %v3006, 0
        %v3081 = vsel %vm3037, %v3007, 0
        %v3084 = vsel %vm3037, %v3008, 0
        %vm3086 = vcmask 1042432
        %v3088 = vsel %vm3086, %v3033, 0
        %3090 = vmatprep.subr.bf16.mxu0 0
        %3091 = vmatpush1.bf16.msra.mxu0 %v3030
        %3092 = vmatprep.subr.bf16.mxu0 0
        %3093 = vmatpush1.bf16.msra.mxu0 %v3031
        %3094 = vmatprep.subr.bf16.mxu0 0
        %3095 = vmatpush1.bf16.msra.mxu0 %v3032
        %3096 = vmatprep.subr.bf16.mxu0 0
        %3097 = vmatpush1.bf16.msra.mxu0 %v3088
        %3098 = vmatprep.subr.bf16.mxu0 0
        %3099 = vmatpush1.bf16.msra.mxu0 0
        %3100 = vmatprep.subr.bf16.mxu0 0
        %3101 = vmatpush1.bf16.msra.mxu0 0
        %3102 = vmatprep.subr.bf16.mxu0 0
        %3103 = vmatpush1.bf16.msra.mxu0 0
        %3104 = vmatprep.subr.bf16.mxu0 0
        %3105 = vmatpush1.bf16.msra.mxu0 0
        %3106 = vmatprep.subr.bf16.mxu0 0
        %3107 = vmatpush1.bf16.msra.mxu0 0
        %3108 = vmatprep.subr.bf16.mxu0 0
        %3109 = vmatpush1.bf16.msra.mxu0 0
        %3110 = vmatprep.subr.bf16.mxu0 0
        %3111 = vmatpush1.bf16.msra.mxu0 0
        %3112 = vmatprep.subr.bf16.mxu0 0
        %3113 = vmatpush1.bf16.msra.mxu0 0
        %3114 = vmatprep.subr.bf16.mxu0 0
        %3115 = vmatpush1.bf16.msra.mxu0 0
        %3116 = vmatprep.subr.bf16.mxu0 0
        %3117 = vmatpush1.bf16.msra.mxu0 0
        %3118 = vmatprep.subr.bf16.mxu0 0
        %3119 = vmatpush1.bf16.msra.mxu0 0
        %3120 = vmatprep.subr.bf16.mxu0 0
        %3121 = vmatpush1.bf16.msra.mxu0 0
        %3122 = vmatprep.mubr.bf16.mxu0 0
        %3123 = vmatmul.mubr.bf16.gmra.mrb[0].mxu0 %v3039
        %v3124 = vpop.f32.mrb[0].mxu0
        %v3125 = vadd.f32 0.0, %v3124
        %v3126 = vpop.f32.mrb[0].mxu0
        %v3127 = vpop.f32.mrb[0].mxu0
        %v3128 = vadd.f32 0.0, %v3127
        %v3129 = vpop.f32.mrb[0].mxu0
        %3130 = vmatprep.mubr.bf16.mxu0 0
        %3131 = vmatmul.mubr.bf16.gmra.mrb[0].mxu0 %v3042
        %v3132 = vpop.f32.mrb[0].mxu0
        %v3133 = vadd.f32 0.0, %v3132
        %v3134 = vpop.f32.mrb[0].mxu0
        %v3135 = vpop.f32.mrb[0].mxu0
        %v3136 = vadd.f32 0.0, %v3135
        %v3137 = vpop.f32.mrb[0].mxu0
        %3138 = vmatprep.mubr.bf16.mxu0 0
        %3139 = vmatmul.mubr.bf16.gmra.mrb[0].mxu0 %v3045
        %v3140 = vpop.f32.mrb[0].mxu0
        %v3141 = vadd.f32 0.0, %v3140
        %v3142 = vpop.f32.mrb[0].mxu0
        %v3143 = vpop.f32.mrb[0].mxu0
        %v3144 = vadd.f32 0.0, %v3143
        %v3145 = vpop.f32.mrb[0].mxu0
        %3146 = vmatprep.mubr.bf16.mxu0 0
        %3147 = vmatmul.mubr.bf16.gmra.mrb[0].mxu0 %v3048
        %v3148 = vpop.f32.mrb[0].mxu0
        %v3149 = vadd.f32 0.0, %v3148
        %v3150 = vpop.f32.mrb[0].mxu0
        %v3151 = vpop.f32.mrb[0].mxu0
        %v3152 = vadd.f32 0.0, %v3151
        %v3153 = vpop.f32.mrb[0].mxu0
        %3154 = vmatprep.mubr.bf16.mxu0 0
        %3155 = vmatmul.mubr.bf16.gmra.mrb[0].mxu0 %v3051
        %v3156 = vpop.f32.mrb[0].mxu0
        %v3157 = vadd.f32 0.0, %v3156
        %v3158 = vpop.f32.mrb[0].mxu0
        %v3159 = vpop.f32.mrb[0].mxu0
        %v3160 = vadd.f32 0.0, %v3159
        %v3161 = vpop.f32.mrb[0].mxu0
        %3162 = vmatprep.mubr.bf16.mxu0 0
        %3163 = vmatmul.mubr.bf16.gmra.mrb[0].mxu0 %v3054
        %v3164 = vpop.f32.mrb[0].mxu0
        %v3165 = vadd.f32 0.0, %v3164
        %v3166 = vpop.f32.mrb[0].mxu0
        %v3167 = vpop.f32.mrb[0].mxu0
        %v3168 = vadd.f32 0.0, %v3167
        %v3169 = vpop.f32.mrb[0].mxu0
        %3170 = vmatprep.mubr.bf16.mxu0 0
        %3171 = vmatmul.mubr.bf16.gmra.mrb[0].mxu0 %v3057
        %v3172 = vpop.f32.mrb[0].mxu0
        %v3173 = vadd.f32 0.0, %v3172
        %v3174 = vpop.f32.mrb[0].mxu0
        %v3175 = vpop.f32.mrb[0].mxu0
        %v3176 = vadd.f32 0.0, %v3175
        %v3177 = vpop.f32.mrb[0].mxu0
        %3178 = vmatprep.mubr.bf16.mxu0 0
        %3179 = vmatmul.mubr.bf16.gmra.mrb[0].mxu0 %v3060
        %v3180 = vpop.f32.mrb[0].mxu0
        %v3181 = vadd.f32 0.0, %v3180
        %v3182 = vpop.f32.mrb[0].mxu0
        %v3183 = vpop.f32.mrb[0].mxu0
        %v3184 = vadd.f32 0.0, %v3183
        %v3185 = vpop.f32.mrb[0].mxu0
        %3186 = vmatprep.mubr.bf16.mxu0 0
        %3187 = vmatmul.mubr.bf16.gmra.mrb[0].mxu0 %v3063
        %v3188 = vpop.f32.mrb[0].mxu0
        %v3189 = vadd.f32 0.0, %v3188
        %v3190 = vpop.f32.mrb[0].mxu0
        %v3191 = vpop.f32.mrb[0].mxu0
        %v3192 = vadd.f32 0.0, %v3191
        %v3193 = vpop.f32.mrb[0].mxu0
        %3194 = vmatprep.mubr.bf16.mxu0 0
        %3195 = vmatmul.mubr.bf16.gmra.mrb[0].mxu0 %v3066
        %v3196 = vpop.f32.mrb[0].mxu0
        %v3197 = vadd.f32 0.0, %v3196
        %v3198 = vpop.f32.mrb[0].mxu0
        %v3199 = vpop.f32.mrb[0].mxu0
        %v3200 = vadd.f32 0.0, %v3199
        %v3201 = vpop.f32.mrb[0].mxu0
        %3202 = vmatprep.mubr.bf16.mxu0 0
        %3203 = vmatmul.mubr.bf16.gmra.mrb[0].mxu0 %v3069
        %v3204 = vpop.f32.mrb[0].mxu0
        %v3205 = vadd.f32 0.0, %v3204
        %v3206 = vpop.f32.mrb[0].mxu0
        %v3207 = vpop.f32.mrb[0].mxu0
        %v3208 = vadd.f32 0.0, %v3207
        %v3209 = vpop.f32.mrb[0].mxu0
        %3210 = vmatprep.mubr.bf16.mxu0 0
        %3211 = vmatmul.mubr.bf16.gmra.mrb[0].mxu0 %v3072
        %v3212 = vpop.f32.mrb[0].mxu0
        %v3213 = vadd.f32 0.0, %v3212
        %v3214 = vpop.f32.mrb[0].mxu0
        %v3215 = vpop.f32.mrb[0].mxu0
        %v3216 = vadd.f32 0.0, %v3215
        %v3217 = vpop.f32.mrb[0].mxu0
        %3218 = vmatprep.mubr.bf16.mxu0 0
        %3219 = vmatmul.mubr.bf16.gmra.mrb[0].mxu0 %v3075
        %v3220 = vpop.f32.mrb[0].mxu0
        %v3221 = vadd.f32 0.0, %v3220
        %v3222 = vpop.f32.mrb[0].mxu0
        %v3223 = vpop.f32.mrb[0].mxu0
        %v3224 = vadd.f32 0.0, %v3223
        %v3225 = vpop.f32.mrb[0].mxu0
        %3226 = vmatprep.mubr.bf16.mxu0 0
        %3227 = vmatmul.mubr.bf16.gmra.mrb[0].mxu0 %v3078
        %v3228 = vpop.f32.mrb[0].mxu0
        %v3229 = vadd.f32 0.0, %v3228
        %v3230 = vpop.f32.mrb[0].mxu0
        %v3231 = vpop.f32.mrb[0].mxu0
        %v3232 = vadd.f32 0.0, %v3231
        %v3233 = vpop.f32.mrb[0].mxu0
        %3234 = vmatprep.mubr.bf16.mxu0 0
        %3235 = vmatmul.mubr.bf16.gmra.mrb[0].mxu0 %v3081
        %v3236 = vpop.f32.mrb[0].mxu0
        %v3237 = vadd.f32 0.0, %v3236
        %v3238 = vpop.f32.mrb[0].mxu0
        %v3239 = vpop.f32.mrb[0].mxu0
        %v3240 = vadd.f32 0.0, %v3239
        %v3241 = vpop.f32.mrb[0].mxu0
        %3242 = vmatprep.mubr.bf16.mxu0 0
        %3243 = vmatmul.mubr.bf16.gmra.mrb[0].mxu0 %v3084
        %v3244 = vpop.f32.mrb[0].mxu0
        %v3245 = vadd.f32 0.0, %v3244
        %v3246 = vpop.f32.mrb[0].mxu0
        %v3247 = vpop.f32.mrb[0].mxu0
        %v3248 = vadd.f32 0.0, %v3247
        %v3249 = vpop.f32.mrb[0].mxu0
        %3250 = vdwg.mxu0
        %vm3251 = vcmp.ge.f32.partialorder %v3125, 0.0
        %vm3252 = vcmp.ge.f32.partialorder %v3128, 0.0
        %vm3253 = vcmp.ge.f32.partialorder %v3133, 0.0
        %vm3254 = vcmp.ge.f32.partialorder %v3136, 0.0
        %vm3255 = vcmp.ge.f32.partialorder %v3141, 0.0
        %vm3256 = vcmp.ge.f32.partialorder %v3144, 0.0
        %vm3257 = vcmp.ge.f32.partialorder %v3149, 0.0
        %vm3258 = vcmp.ge.f32.partialorder %v3152, 0.0
        %vm3259 = vcmp.ge.f32.partialorder %v3157, 0.0
        %vm3260 = vcmp.ge.f32.partialorder %v3160, 0.0
        %vm3261 = vcmp.ge.f32.partialorder %v3165, 0.0
        %vm3262 = vcmp.ge.f32.partialorder %v3168, 0.0
        %vm3263 = vcmp.ge.f32.partialorder %v3173, 0.0
        %vm3264 = vcmp.ge.f32.partialorder %v3176, 0.0
        %vm3265 = vcmp.ge.f32.partialorder %v3181, 0.0
        %vm3266 = vcmp.ge.f32.partialorder %v3184, 0.0
        %vm3267 = vcmp.ge.f32.partialorder %v3189, 0.0
        %vm3268 = vcmp.ge.f32.partialorder %v3192, 0.0
        %vm3269 = vcmp.ge.f32.partialorder %v3197, 0.0
        %vm3270 = vcmp.ge.f32.partialorder %v3200, 0.0
        %vm3271 = vcmp.ge.f32.partialorder %v3205, 0.0
        %vm3272 = vcmp.ge.f32.partialorder %v3208, 0.0
        %vm3273 = vcmp.ge.f32.partialorder %v3213, 0.0
        %vm3274 = vcmp.ge.f32.partialorder %v3216, 0.0
        %vm3275 = vcmp.ge.f32.partialorder %v3221, 0.0
        %vm3276 = vcmp.ge.f32.partialorder %v3224, 0.0
        %vm3277 = vcmp.ge.f32.partialorder %v3229, 0.0
        %vm3278 = vcmp.ge.f32.partialorder %v3232, 0.0
        %vm3279 = vcmp.ge.f32.partialorder %v3237, 0.0
        %vm3280 = vcmp.ge.f32.partialorder %v3240, 0.0
        %vm3281 = vcmp.ge.f32.partialorder %v3245, 0.0
        %vm3282 = vcmp.ge.f32.partialorder %v3248, 0.0
        %v3283 = vmul.f32 %v3125, 1.4142135
        %v3284 = vmul.f32 %v3128, 1.4142135
        %v3285 = vmul.f32 %v3133, 1.4142135
        %v3286 = vmul.f32 %v3136, 1.4142135
        %v3287 = vmul.f32 %v3141, 1.4142135
        %v3288 = vmul.f32 %v3144, 1.4142135
        %v3289 = vmul.f32 %v3149, 1.4142135
        %v3290 = vmul.f32 %v3152, 1.4142135
        %v3291 = vmul.f32 %v3157, 1.4142135
        %v3292 = vmul.f32 %v3160, 1.4142135
        %v3293 = vmul.f32 %v3165, 1.4142135
        %v3294 = vmul.f32 %v3168, 1.4142135
        %v3295 = vmul.f32 %v3173, 1.4142135
        %v3296 = vmul.f32 %v3176, 1.4142135
        %v3297 = vmul.f32 %v3181, 1.4142135
        %v3298 = vmul.f32 %v3184, 1.4142135
        %v3299 = vmul.f32 %v3189, 1.4142135
        %v3300 = vmul.f32 %v3192, 1.4142135
        %v3301 = vmul.f32 %v3197, 1.4142135
        %v3302 = vmul.f32 %v3200, 1.4142135
        %v3303 = vmul.f32 %v3205, 1.4142135
        %v3304 = vmul.f32 %v3208, 1.4142135
        %v3305 = vmul.f32 %v3213, 1.4142135
        %v3306 = vmul.f32 %v3216, 1.4142135
        %v3307 = vmul.f32 %v3221, 1.4142135
        %v3308 = vmul.f32 %v3224, 1.4142135
        %v3309 = vmul.f32 %v3229, 1.4142135
        %v3310 = vmul.f32 %v3232, 1.4142135
        %v3311 = vmul.f32 %v3237, 1.4142135
        %v3312 = vmul.f32 %v3240, 1.4142135
        %v3313 = vmul.f32 %v3245, 1.4142135
        %v3314 = vmul.f32 %v3248, 1.4142135
        %v3315 = vmul.f32 %v3125, 0.28284273
        %v3316 = vmul.f32 %v3128, 0.28284273
        %v3317 = vmul.f32 %v3133, 0.28284273
        %v3318 = vmul.f32 %v3136, 0.28284273
        %v3319 = vmul.f32 %v3141, 0.28284273
        %v3320 = vmul.f32 %v3144, 0.28284273
        %v3321 = vmul.f32 %v3149, 0.28284273
        %v3322 = vmul.f32 %v3152, 0.28284273
        %v3323 = vmul.f32 %v3157, 0.28284273
        %v3324 = vmul.f32 %v3160, 0.28284273
        %v3325 = vmul.f32 %v3165, 0.28284273
        %v3326 = vmul.f32 %v3168, 0.28284273
        %v3327 = vmul.f32 %v3173, 0.28284273
        %v3328 = vmul.f32 %v3176, 0.28284273
        %v3329 = vmul.f32 %v3181, 0.28284273
        %v3330 = vmul.f32 %v3184, 0.28284273
        %v3331 = vmul.f32 %v3189, 0.28284273
        %v3332 = vmul.f32 %v3192, 0.28284273
        %v3333 = vmul.f32 %v3197, 0.28284273
        %v3334 = vmul.f32 %v3200, 0.28284273
        %v3335 = vmul.f32 %v3205, 0.28284273
        %v3336 = vmul.f32 %v3208, 0.28284273
        %v3337 = vmul.f32 %v3213, 0.28284273
        %v3338 = vmul.f32 %v3216, 0.28284273
        %v3339 = vmul.f32 %v3221, 0.28284273
        %v3340 = vmul.f32 %v3224, 0.28284273
        %v3341 = vmul.f32 %v3229, 0.28284273
        %v3342 = vmul.f32 %v3232, 0.28284273
        %v3343 = vmul.f32 %v3237, 0.28284273
        %v3344 = vmul.f32 %v3240, 0.28284273
        %v3345 = vmul.f32 %v3245, 0.28284273
        %v3346 = vmul.f32 %v3248, 0.28284273
        %v3347 = vsel %vm3251, %v3283, %v3315
        %v3348 = vsel %vm3252, %v3284, %v3316
        %v3349 = vsel %vm3253, %v3285, %v3317
        %v3350 = vsel %vm3254, %v3286, %v3318
        %v3351 = vsel %vm3255, %v3287, %v3319
        %v3352 = vsel %vm3256, %v3288, %v3320
        %v3353 = vsel %vm3257, %v3289, %v3321
        %v3354 = vsel %vm3258, %v3290, %v3322
        %v3355 = vsel %vm3259, %v3291, %v3323
        %v3356 = vsel %vm3260, %v3292, %v3324
        %v3357 = vsel %vm3261, %v3293, %v3325
        %v3358 = vsel %vm3262, %v3294, %v3326
        %v3359 = vsel %vm3263, %v3295, %v3327
        %v3360 = vsel %vm3264, %v3296, %v3328
        %v3361 = vsel %vm3265, %v3297, %v3329
        %v3362 = vsel %vm3266, %v3298, %v3330
        %v3363 = vsel %vm3267, %v3299, %v3331
        %v3364 = vsel %vm3268, %v3300, %v3332
        %v3365 = vsel %vm3269, %v3301, %v3333
        %v3366 = vsel %vm3270, %v3302, %v3334
        %v3367 = vsel %vm3271, %v3303, %v3335
        %v3368 = vsel %vm3272, %v3304, %v3336
        %v3369 = vsel %vm3273, %v3305, %v3337
        %v3370 = vsel %vm3274, %v3306, %v3338
        %v3371 = vsel %vm3275, %v3307, %v3339
        %v3372 = vsel %vm3276, %v3308, %v3340
        %v3373 = vsel %vm3277, %v3309, %v3341
        %v3374 = vsel %vm3278, %v3310, %v3342
        %v3375 = vsel %vm3279, %v3311, %v3343
        %v3376 = vsel %vm3280, %v3312, %v3344
        %v3377 = vsel %vm3281, %v3313, %v3345
        %v3378 = vsel %vm3282, %v3314, %v3346
        %v3379 = vpack.c.bf16 %v3348, %v3347
        %v3380 = vpack.c.bf16 %v3350, %v3349
        %v3381 = vpack.c.bf16 %v3352, %v3351
        %v3382 = vpack.c.bf16 %v3354, %v3353
        %v3383 = vpack.c.bf16 %v3356, %v3355
        %v3384 = vpack.c.bf16 %v3358, %v3357
        %v3385 = vpack.c.bf16 %v3360, %v3359
        %v3386 = vpack.c.bf16 %v3362, %v3361
        %v3387 = vpack.c.bf16 %v3364, %v3363
        %v3388 = vpack.c.bf16 %v3366, %v3365
        %v3389 = vpack.c.bf16 %v3368, %v3367
        %v3390 = vpack.c.bf16 %v3370, %v3369
        %v3391 = vpack.c.bf16 %v3372, %v3371
        %v3392 = vpack.c.bf16 %v3374, %v3373
        %v3393 = vpack.c.bf16 %v3376, %v3375
        %v3394 = vpack.c.bf16 %v3378, %v3377
        %v3411 = vunpack.c.l.b16 %v3379
        %v3412 = vunpack.c.h.b16 %v3379
        %v3413 = vunpack.c.l.b16 %v3380
        %v3414 = vunpack.c.h.b16 %v3380
        %v3415 = vunpack.c.l.b16 %v3381
        %v3416 = vunpack.c.h.b16 %v3381
        %v3417 = vunpack.c.l.b16 %v3382
        %v3418 = vunpack.c.h.b16 %v3382
        %v3419 = vunpack.c.l.b16 %v3383
        %v3420 = vunpack.c.h.b16 %v3383
        %v3421 = vunpack.c.l.b16 %v3384
        %v3422 = vunpack.c.h.b16 %v3384
        %v3423 = vunpack.c.l.b16 %v3385
        %v3424 = vunpack.c.h.b16 %v3385
        %v3425 = vunpack.c.l.b16 %v3386
        %v3426 = vunpack.c.h.b16 %v3386
        %v3427 = vunpack.c.l.b16 %v3387
        %v3428 = vunpack.c.h.b16 %v3387
        %v3429 = vunpack.c.l.b16 %v3388
        %v3430 = vunpack.c.h.b16 %v3388
        %v3431 = vunpack.c.l.b16 %v3389
        %v3432 = vunpack.c.h.b16 %v3389
        %v3433 = vunpack.c.l.b16 %v3390
        %v3434 = vunpack.c.h.b16 %v3390
        %v3435 = vunpack.c.l.b16 %v3391
        %v3436 = vunpack.c.h.b16 %v3391
        %v3437 = vunpack.c.l.b16 %v3392
        %v3438 = vunpack.c.h.b16 %v3392
        %v3439 = vunpack.c.l.b16 %v3393
        %v3440 = vunpack.c.h.b16 %v3393
        %v3441 = vunpack.c.l.b16 %v3394
        %v3442 = vunpack.c.h.b16 %v3394
        %v3443 = vpack.c.b16 %v3411, %v3411
        %v3444 = vpack.c.b16 %v3412, %v3412
        %v3445 = vpack.c.b16 %v3413, %v3413
        %v3446 = vpack.c.b16 %v3414, %v3414
        %v3447 = vpack.c.b16 %v3415, %v3415
        %v3448 = vpack.c.b16 %v3416, %v3416
        %v3449 = vpack.c.b16 %v3417, %v3417
        %v3450 = vpack.c.b16 %v3418, %v3418
        %v3451 = vpack.c.b16 %v3419, %v3419
        %v3452 = vpack.c.b16 %v3420, %v3420
        %v3453 = vpack.c.b16 %v3421, %v3421
        %v3454 = vpack.c.b16 %v3422, %v3422
        %v3455 = vpack.c.b16 %v3423, %v3423
        %v3456 = vpack.c.b16 %v3424, %v3424
        %v3457 = vpack.c.b16 %v3425, %v3425
        %v3458 = vpack.c.b16 %v3426, %v3426
        %v3459 = vpack.c.b16 %v3427, %v3427
        %v3460 = vpack.c.b16 %v3428, %v3428
        %v3461 = vpack.c.b16 %v3429, %v3429
        %v3462 = vpack.c.b16 %v3430, %v3430
        %v3463 = vpack.c.b16 %v3431, %v3431
        %v3464 = vpack.c.b16 %v3432, %v3432
        %v3465 = vpack.c.b16 %v3433, %v3433
        %v3466 = vpack.c.b16 %v3434, %v3434
        %v3467 = vpack.c.b16 %v3435, %v3435
        %v3468 = vpack.c.b16 %v3436, %v3436
        %v3469 = vpack.c.b16 %v3437, %v3437
        %v3470 = vpack.c.b16 %v3438, %v3438
        %v3471 = vpack.c.b16 %v3439, %v3439
        %v3472 = vpack.c.b16 %v3440, %v3440
        %v3473 = vpack.c.b16 %v3441, %v3441
        %v3474 = vpack.c.b16 %v3442, %v3442
        %3507 = vst [vmem:[%s275] sm:$0xf] %v3443
        %3508 = vst [vmem:[%s275 + $0x4] sm:$0xf] %v3444
        %3509 = vst [vmem:[%s275 + $0x8] sm:$0xf] %v3445
        %3510 = vst [vmem:[%s275 + $0xc] sm:$0xf] %v3446
        %3511 = vst [vmem:[%s275 + $0x10] sm:$0xf] %v3447
        %3512 = vst [vmem:[%s275 + $0x14] sm:$0xf] %v3448
        %3513 = vst [vmem:[%s275 + $0x18] sm:$0xf] %v3449
        %3514 = vst [vmem:[%s275 + $0x1c] sm:$0xf] %v3450
        %3515 = vst [vmem:[%s275 + $0x20] sm:$0xf] %v3451
        %3516 = vst [vmem:[%s275 + $0x24] sm:$0xf] %v3452
        %3517 = vst [vmem:[%s275 + $0x28] sm:$0xf] %v3453
        %3518 = vst [vmem:[%s275 + $0x2c] sm:$0xf] %v3454
        %3519 = vst [vmem:[%s275 + $0x30] sm:$0xf] %v3455
        %3520 = vst [vmem:[%s275 + $0x34] sm:$0xf] %v3456
        %3521 = vst [vmem:[%s275 + $0x38] sm:$0xf] %v3457
        %3522 = vst [vmem:[%s275 + $0x3c] sm:$0xf] %v3458
        %3523 = vst [vmem:[%s275 + $0x40] sm:$0xf] %v3459
        %3524 = vst [vmem:[%s275 + $0x44] sm:$0xf] %v3460
        %3525 = vst [vmem:[%s275 + $0x48] sm:$0xf] %v3461
        %3526 = vst [vmem:[%s275 + $0x4c] sm:$0xf] %v3462
        %3527 = vst [vmem:[%s275 + $0x50] sm:$0xf] %v3463
        %3528 = vst [vmem:[%s275 + $0x54] sm:$0xf] %v3464
        %3529 = vst [vmem:[%s275 + $0x58] sm:$0xf] %v3465
        %3530 = vst [vmem:[%s275 + $0x5c] sm:$0xf] %v3466
        %3531 = vst [vmem:[%s275 + $0x60] sm:$0xf] %v3467
        %3532 = vst [vmem:[%s275 + $0x64] sm:$0xf] %v3468
        %3533 = vst [vmem:[%s275 + $0x68] sm:$0xf] %v3469
        %3534 = vst [vmem:[%s275 + $0x6c] sm:$0xf] %v3470
        %3535 = vst [vmem:[%s275 + $0x70] sm:$0xf] %v3471
        %3536 = vst [vmem:[%s275 + $0x74] sm:$0xf] %v3472
        %3537 = vst [vmem:[%s275 + $0x78] sm:$0xf] %v3473
        %3538 = vst [vmem:[%s275 + $0x7c] sm:$0xf] %v3474
        %s3539 = sand.u32 %s136, 1
        %s3540 = scalar_lea.sflag [#allocation4], %s3539
        %s3541 = sand.u32 %s136, 1
        %s3542 = smul.addr %s3541, 128
        %s3543 = scalar_lea.vmem [#allocation3], %s3542
        // Predicated region
        $region33: #{tpu_custom_call.1} parent=31 // pred_check
          %p3544 = pneg %p146
        $region34: #{tpu_custom_call.1} parent=31 // pred_check_branch
          %3546 = sbr.rel (%p3544) target = $region36
        $region35: #{tpu_custom_call.1} parent=31 // pred_region
          %s3547 = smul.u32 16, %s24
          %s3549 = ssub.s32 2048, 2048
          %3550 = vsyncadd %s3540, %s3549
          %s3551 = smul.addr %s3547, 2
          %s3552 = sadd.s32 %s23, %s3551
          %s3553 = smul.addr %s22, 32
          %s3554 = sadd.s32 %s3552, %s3553
          %s3555 = smul.addr %s3554, 64
          %s3556 = scalar_lea.hbm %s3, %s3555
          %s3557 = sshll.u32 %s3543, 4
          %s3558 = int_to_ptr.vmem [resolvable:$true] %s3557
          %3563 = dma.vmem_to_hbm [thread:$0]  %s3558, 2048, %s3556, %s3540, 64, 64, 4
        $region36: #{tpu_custom_call.1} parent=31 // pred_fallthru
          _
      $region32: #{tpu_custom_call.1} parent=5 // pred_fallthru
        _
      %p3564 = scmp.le.s32.totalorder 2, %s12
      // Predicated region
      $region37: #{tpu_custom_call.1} parent=5 // pred_check
        %p3565 = pneg %p3564
      $region38: #{tpu_custom_call.1} parent=5 // pred_check_branch
        %3567 = sbr.rel (%p3565) target = $region40
      $region39: #{tpu_custom_call.1} parent=5 // pred_region
        %s3568 = ssub.s32 %s12, 2
        // Predicated region
        $region41: #{tpu_custom_call.1} parent=39 // pred_check
          %p3569 = pneg %p152
        $region42: #{tpu_custom_call.1} parent=39 // pred_check_branch
          %3571 = sbr.rel (%p3569) target = $region44
        $region43: #{tpu_custom_call.1} parent=39 // pred_region
          %s3572 = sand.u32 %s137, 1
          %s3573 = scalar_lea.sflag [#allocation4], %s3572
          %s3574 = sand.u32 %s137, 1
          %s3575 = smul.addr %s3574, 128
          %s3576 = scalar_lea.vmem [#allocation3], %s3575
          %3577 = dma.done %s3573, 2048
        $region44: #{tpu_custom_call.1} parent=39 // pred_fallthru
          _
      $region40: #{tpu_custom_call.1} parent=5 // pred_fallthru
        _
    $region6: #{tpu_custom_call.1} parent=1 // loop_footer
      %s16 = sadd.s32 1, %s12
    $region7: #{tpu_custom_call.1} parent=1 // loop_footer_branch
      %11 = sbr.rel target = $region3
    $region8: #{tpu_custom_call.1} parent=1 // loop_exit
      _
    %3578 = vsyncpa [#allocation4], 1
    %s3579 = scalar_lea.sflag [#allocation4], 1
    %3580 = vsyncpa %s3579, 1

</llo_original>
